<compile_context>
chip_gen: v6e
topology: v6e:2x2x1
jax: 0.10.0
libtpu: 0.0.40
codegen_flags: <defaults>
</compile_context>

<pallas_src>
import jax
import jax.numpy as jnp
from jax.experimental import pallas as pl
from jax.experimental.pallas import tpu as pltpu


# ---------------------------------------------------------------------------
# Fused Pallas kernel: placeholder-PGT backbone + classifier MLP
# ---------------------------------------------------------------------------
def _fused_kernel(x_ref, wp_ref, bc_ref, w1_ref, b1_ref, w2_ref, b2_ref,
                  w3_ref, b3_ref, o_ref, acc_ref):
    """Grid = (B, num_k).  Per step:
       x_ref  : (nw_tile, C*1024)  bf16  windows of one batch element (K-tile)
       wp_ref : (C*1024, 512)      bf16  pool-folded 1x1-conv weight (resident)
       w1_ref : (nw_tile*512, 2000) bf16 K-tile of permuted first clf weight
       w2_ref : (2000, 100) bf16, w3_ref : (100, 128) bf16 (lane-padded)
       biases : f32
       o_ref  : (1, 128) f32 lane-padded logits for this batch element
       acc_ref: (1, 2000) f32 accumulator for the first clf layer
    """
    k = pl.program_id(1)

    @pl.when(k == 0)
    def _init():
        acc_ref[...] = jnp.zeros_like(acc_ref)

    # Backbone placeholder entirely on the MXU (avg-pool folded into wp).
    feat = jnp.dot(x_ref[...], wp_ref[...], preferred_element_type=jnp.float32)
    feat = jnp.maximum(feat + bc_ref[...], 0.0)              # (nw_tile, 512) f32
    feat = feat.reshape(1, -1).astype(jnp.bfloat16)          # (1, nw_tile*512)

    # First classifier layer, accumulated over K-tiles of w1.
    acc_ref[...] += jnp.dot(feat, w1_ref[...], preferred_element_type=jnp.float32)

    @pl.when(k == pl.num_programs(1) - 1)
    def _finalize():
        h1 = jnp.maximum(acc_ref[...] + b1_ref[...], 0.0).astype(jnp.bfloat16)
        h2 = jnp.dot(h1, w2_ref[...], preferred_element_type=jnp.float32) + b2_ref[...]
        h2 = jnp.maximum(h2, 0.0).astype(jnp.bfloat16)
        o_ref[...] = (jnp.dot(h2, w3_ref[...], preferred_element_type=jnp.float32)
                      + b3_ref[...])


# ---------------------------------------------------------------------------
# Parameter construction (deterministic, in-script)
# ---------------------------------------------------------------------------
def init_params(key, im_size, in_channels, num_classes):
    Hs = Ws = im_size // 32
    NW = Hs * Ws
    feat_dim = NW * 512                       # = im_size**2 // 32**2 * 512
    ks = jax.random.split(key, 4)

    def dense(k, fan_in, fan_out):
        scale = 1.0 / jnp.sqrt(jnp.float32(fan_in))
        return jax.random.uniform(k, (fan_in, fan_out), jnp.float32,
                                  minval=-scale, maxval=scale)

    # Placeholder PGT 1x1 conv (in_channels -> 512); the 32x32 average pool is
    # folded into the weight so the backbone is a single K=C*1024 MXU matmul.
    wc = dense(ks[0], in_channels, 512)                       # (C, 512)
    wp = jnp.repeat(wc, 32 * 32, axis=0) / (32.0 * 32.0)      # (C*1024, 512)

    # Classifier.  Fold the PyTorch NCHW flatten of out4 into a one-time row
    # permutation of w1 so the kernel consumes window-major / channel-minor
    # features directly (no transpose of the feature tensor at runtime).
    w1 = dense(ks[1], feat_dim, 2000)
    w1 = (w1.reshape(512, Hs, Ws, 2000)
            .transpose(1, 2, 0, 3)
            .reshape(feat_dim, 2000))
    w2 = dense(ks[2], 2000, 100)
    w3 = dense(ks[3], 100, num_classes)
    # Pad the logits projection to 128 output lanes -> unmasked vector stores.
    w3p = jnp.zeros((100, 128), jnp.float32).at[:, :num_classes].set(w3)

    return {
        "wp": wp.astype(jnp.bfloat16),
        "bc": jnp.zeros((1, 512), jnp.float32),
        "w1": w1.astype(jnp.bfloat16),
        "b1": jnp.zeros((1, 2000), jnp.float32),
        "w2": w2.astype(jnp.bfloat16),
        "b2": jnp.zeros((1, 100), jnp.float32),
        "w3": w3p.astype(jnp.bfloat16),
        "b3": jnp.zeros((1, 128), jnp.float32),
    }


# ---------------------------------------------------------------------------
# Forward wrapper
# ---------------------------------------------------------------------------
def model_forward(x, params, num_classes):
    B, C, H, W = x.shape
    Hs, Ws = H // 32, W // 32
    NW = Hs * Ws
    CK = C * 32 * 32

    # Non-overlapping 32x32 window extraction.  At im_size == 32 (Hs == Ws == 1)
    # the transpose only permutes size-1 axes, so XLA lowers it to a free
    # reshape (no extra HBM pass).
    # TODO(synk): for im_size > 32, replace with a BlockSpec-driven row-band
    # gather so the window transpose never materializes in HBM.
    xp = (x.reshape(B, C, Hs, 32, Ws, 32)
            .transpose(0, 2, 4, 1, 3, 5)
            .reshape(B, NW, CK)).astype(jnp.bfloat16)

    # K-tiling of the (feat_dim, 2000) first-layer weight: one tile = nw_tile
    # windows of rows, capped at ~8 MiB bf16 so the double-buffered tile fits
    # comfortably inside v7x's 64 MiB VMEM (and the 32 MiB scoped default).
    nw_tile = NW
    budget = 8 * 1024 * 1024
    for d in range(NW, 0, -1):
        if NW % d == 0 and d * 512 * 2000 * 2 <= budget and (d == NW or d % 8 == 0):
            nw_tile = d
            break
    num_k = NW // nw_tile
    tk = nw_tile * 512

    feat_dim = NW * 512
    flops = 2 * B * (NW * CK * 512 + feat_dim * 2000 + 2000 * 100 + 100 * 128)
    bytes_accessed = int(
        xp.size * 2
        + (params["wp"].size + params["w1"].size
           + params["w2"].size + params["w3"].size) * 2
        + (params["bc"].size + params["b1"].size
           + params["b2"].size + params["b3"].size) * 4
        + B * 128 * 4)

    out = pl.pallas_call(
        _fused_kernel,
        out_shape=jax.ShapeDtypeStruct((B, 1, 128), jnp.float32),
        grid_spec=pltpu.PrefetchScalarGridSpec(
            num_scalar_prefetch=0,
            grid=(B, num_k),
            in_specs=[
                pl.BlockSpec((None, nw_tile, CK), lambda b, k: (b, k, 0)),  # x windows
                pl.BlockSpec((CK, 512),   lambda b, k: (0, 0)),             # wp (resident)
                pl.BlockSpec((1, 512),    lambda b, k: (0, 0)),             # bc
                pl.BlockSpec((tk, 2000),  lambda b, k: (k, 0)),             # w1 K-tile
                pl.BlockSpec((1, 2000),   lambda b, k: (0, 0)),             # b1
                pl.BlockSpec((2000, 100), lambda b, k: (0, 0)),             # w2
                pl.BlockSpec((1, 100),    lambda b, k: (0, 0)),             # b2
                pl.BlockSpec((100, 128),  lambda b, k: (0, 0)),             # w3 (padded)
                pl.BlockSpec((1, 128),    lambda b, k: (0, 0)),             # b3 (padded)
            ],
            out_specs=pl.BlockSpec((None, 1, 128), lambda b, k: (b, 0, 0)),
            scratch_shapes=[pltpu.VMEM((1, 2000), jnp.float32)],
        ),
        compiler_params=pltpu.CompilerParams(
            dimension_semantics=("parallel", "arbitrary"),
            vmem_limit_bytes=32 * 1024 * 1024,
        ),
        cost_estimate=pl.CostEstimate(flops=flops, transcendentals=0,
                                      bytes_accessed=bytes_accessed),
    )(xp, params["wp"], params["bc"], params["w1"], params["b1"],
      params["w2"], params["b2"], params["w3"], params["b3"])

    return out[:, 0, :num_classes]


# ---------------------------------------------------------------------------
# Main
# ---------------------------------------------------------------------------
if __name__ == "__main__":
    im_size = 32          # smallest size the classifier's in_features allows
    num_classes = 10
    batch = 2
    in_channels = 3

    key = jax.random.PRNGKey(0)
    k_x, k_p = jax.random.split(key)

    x = jax.random.normal(k_x, (batch, in_channels, im_size, im_size), jnp.float32)
    params = init_params(k_p, im_size, in_channels, num_classes)

    fwd = jax.jit(model_forward, static_argnums=(2,))
    logits = fwd(x, params, num_classes)
    jax.block_until_ready(logits)

    assert logits.shape == (batch, num_classes), logits.shape
    assert logits.dtype == jnp.float32
    assert bool(jnp.all(jnp.isfinite(logits)))
    print("KERNEL_OK")
</pallas_src>

<mosaic_0001>
module attributes {stable_mosaic.version = 11 : i64} {
  func.func @_fused_kernel(%arg0: i32, %arg1: i32, %arg2: memref<1x1x3072xbf16, #tpu.memory_space<vmem>>, %arg3: memref<3072x512xbf16, #tpu.memory_space<vmem>>, %arg4: memref<1x512xf32, #tpu.memory_space<vmem>>, %arg5: memref<512x2000xbf16, #tpu.memory_space<vmem>>, %arg6: memref<1x2000xf32, #tpu.memory_space<vmem>>, %arg7: memref<2000x100xbf16, #tpu.memory_space<vmem>>, %arg8: memref<1x100xf32, #tpu.memory_space<vmem>>, %arg9: memref<100x128xbf16, #tpu.memory_space<vmem>>, %arg10: memref<1x128xf32, #tpu.memory_space<vmem>>, %arg11: memref<1x1x128xf32, #tpu.memory_space<vmem>>, %arg12: memref<1x2000xf32, #tpu.memory_space<vmem>>) attributes {dimension_semantics = [#tpu.dimension_semantics<parallel>, #tpu.dimension_semantics<arbitrary>], iteration_bounds = array<i64: 2, 1>, scalar_prefetch = 0 : i64, scratch_operands = 1 : i64, tpu.core_type = #tpu.core_type<tc>, window_params = [{transform_indices = @transform_0, window_bounds = array<i64: 1, 1, 3072>}, {pipeline_mode = #tpu.pipeline_mode<synchronous>, transform_indices = @transform_1, window_bounds = array<i64: 3072, 512>}, {pipeline_mode = #tpu.pipeline_mode<synchronous>, transform_indices = @transform_2, window_bounds = array<i64: 1, 512>}, {transform_indices = @transform_3, window_bounds = array<i64: 512, 2000>}, {pipeline_mode = #tpu.pipeline_mode<synchronous>, transform_indices = @transform_4, window_bounds = array<i64: 1, 2000>}, {pipeline_mode = #tpu.pipeline_mode<synchronous>, transform_indices = @transform_5, window_bounds = array<i64: 2000, 100>}, {pipeline_mode = #tpu.pipeline_mode<synchronous>, transform_indices = @transform_6, window_bounds = array<i64: 1, 100>}, {pipeline_mode = #tpu.pipeline_mode<synchronous>, transform_indices = @transform_7, window_bounds = array<i64: 100, 128>}, {pipeline_mode = #tpu.pipeline_mode<synchronous>, transform_indices = @transform_8, window_bounds = array<i64: 1, 128>}, {transform_indices = @transform_9, window_bounds = array<i64: 1, 1, 128>}]} {
    %c0_i32 = arith.constant 0 : i32
    %0 = arith.cmpi eq, %arg1, %c0_i32 : i32
    %1 = arith.extui %0 : i1 to i32
    %c0_i32_0 = arith.constant 0 : i32
    %2 = arith.cmpi ne, %1, %c0_i32_0 : i32
    scf.if %2 {
      %cst_17 = arith.constant 0.000000e+00 : f32
      %20 = vector.broadcast %cst_17 : f32 to vector<1x2000xf32>
      %c0_18 = arith.constant 0 : index
      %c0_19 = arith.constant 0 : index
      %21 = vector.load %arg12[%c0_18, %c0_19] : memref<1x2000xf32, #tpu.memory_space<vmem>>, vector<1x2000xf32>
      tpu.vector_store %arg12[%c0_18, %c0_19], %20 {strides = array<i32>} : memref<1x2000xf32, #tpu.memory_space<vmem>>, vector<1x2000xf32>,
    } else {
    }
    %c0 = arith.constant 0 : index
    %c0_1 = arith.constant 0 : index
    %c0_2 = arith.constant 0 : index
    %3 = vector.load %arg2[%c0, %c0_1, %c0_2] : memref<1x1x3072xbf16, #tpu.memory_space<vmem>>, vector<1x1x3072xbf16>
    %4 = vector.shape_cast %3 : vector<1x1x3072xbf16> to vector<1x3072xbf16>
    %c0_3 = arith.constant 0 : index
    %c0_4 = arith.constant 0 : index
    %5 = vector.load %arg3[%c0_3, %c0_4] : memref<3072x512xbf16, #tpu.memory_space<vmem>>, vector<3072x512xbf16>
    %cst = arith.constant dense<0.000000e+00> : vector<1x512xf32>
    %6 = tpu.matmul %4, %5, %cst {dimension_numbers = #tpu.dot_dimension_numbers<[1], [0], [0], [1], [0, 0, 1, 1], [], []>} : vector<1x3072xbf16>, vector<3072x512xbf16>, vector<1x512xf32> -> vector<1x512xf32>
    %c0_5 = arith.constant 0 : index
    %c0_6 = arith.constant 0 : index
    %7 = vector.load %arg4[%c0_5, %c0_6] : memref<1x512xf32, #tpu.memory_space<vmem>>, vector<1x512xf32>
    %8 = arith.addf %6, %7 : vector<1x512xf32>
    %cst_7 = arith.constant 0.000000e+00 : f32
    %9 = vector.broadcast %cst_7 : f32 to vector<1x512xf32>
    %10 = arith.maximumf %8, %9 : vector<1x512xf32>
    %11 = arith.truncf %10 : vector<1x512xf32> to vector<1x512xbf16>
    %c0_8 = arith.constant 0 : index
    %c0_9 = arith.constant 0 : index
    %12 = vector.load %arg12[%c0_8, %c0_9] : memref<1x2000xf32, #tpu.memory_space<vmem>>, vector<1x2000xf32>
    %c0_10 = arith.constant 0 : index
    %c0_11 = arith.constant 0 : index
    %13 = vector.load %arg5[%c0_10, %c0_11] : memref<512x2000xbf16, #tpu.memory_space<vmem>>, vector<512x2000xbf16>
    %cst_12 = arith.constant dense<0.000000e+00> : vector<1x2000xf32>
    %14 = tpu.matmul %11, %13, %cst_12 {dimension_numbers = #tpu.dot_dimension_numbers<[1], [0], [0], [1], [0, 0, 1, 1], [], []>} : vector<1x512xbf16>, vector<512x2000xbf16>, vector<1x2000xf32> -> vector<1x2000xf32>
    %15 = arith.addf %12, %14 : vector<1x2000xf32>
    %c0_13 = arith.constant 0 : index
    %c0_14 = arith.constant 0 : index
    %16 = vector.load %arg12[%c0_13, %c0_14] : memref<1x2000xf32, #tpu.memory_space<vmem>>, vector<1x2000xf32>
    tpu.vector_store %arg12[%c0_13, %c0_14], %15 {strides = array<i32>} : memref<1x2000xf32, #tpu.memory_space<vmem>>, vector<1x2000xf32>,
    %c0_i32_15 = arith.constant 0 : i32
    %17 = arith.cmpi eq, %arg1, %c0_i32_15 : i32
    %18 = arith.extui %17 : i1 to i32
    %c0_i32_16 = arith.constant 0 : i32
    %19 = arith.cmpi ne, %18, %c0_i32_16 : i32
    scf.if %19 {
      %c0_17 = arith.constant 0 : index
      %c0_18 = arith.constant 0 : index
      %20 = vector.load %arg12[%c0_17, %c0_18] : memref<1x2000xf32, #tpu.memory_space<vmem>>, vector<1x2000xf32>
      %c0_19 = arith.constant 0 : index
      %c0_20 = arith.constant 0 : index
      %21 = vector.load %arg6[%c0_19, %c0_20] : memref<1x2000xf32, #tpu.memory_space<vmem>>, vector<1x2000xf32>
      %22 = arith.addf %20, %21 : vector<1x2000xf32>
      %cst_21 = arith.constant 0.000000e+00 : f32
      %23 = vector.broadcast %cst_21 : f32 to vector<1x2000xf32>
      %24 = arith.maximumf %22, %23 : vector<1x2000xf32>
      %25 = arith.truncf %24 : vector<1x2000xf32> to vector<1x2000xbf16>
      %c0_22 = arith.constant 0 : index
      %c0_23 = arith.constant 0 : index
      %26 = vector.load %arg7[%c0_22, %c0_23] : memref<2000x100xbf16, #tpu.memory_space<vmem>>, vector<2000x100xbf16>
      %cst_24 = arith.constant dense<0.000000e+00> : vector<1x100xf32>
      %27 = tpu.matmul %25, %26, %cst_24 {dimension_numbers = #tpu.dot_dimension_numbers<[1], [0], [0], [1], [0, 0, 1, 1], [], []>} : vector<1x2000xbf16>, vector<2000x100xbf16>, vector<1x100xf32> -> vector<1x100xf32>
      %c0_25 = arith.constant 0 : index
      %c0_26 = arith.constant 0 : index
      %28 = vector.load %arg8[%c0_25, %c0_26] : memref<1x100xf32, #tpu.memory_space<vmem>>, vector<1x100xf32>
      %29 = arith.addf %27, %28 : vector<1x100xf32>
      %cst_27 = arith.constant 0.000000e+00 : f32
      %30 = vector.broadcast %cst_27 : f32 to vector<1x100xf32>
      %31 = arith.maximumf %29, %30 : vector<1x100xf32>
      %32 = arith.truncf %31 : vector<1x100xf32> to vector<1x100xbf16>
      %c0_28 = arith.constant 0 : index
      %c0_29 = arith.constant 0 : index
      %33 = vector.load %arg9[%c0_28, %c0_29] : memref<100x128xbf16, #tpu.memory_space<vmem>>, vector<100x128xbf16>
      %cst_30 = arith.constant dense<0.000000e+00> : vector<1x128xf32>
      %34 = tpu.matmul %32, %33, %cst_30 {dimension_numbers = #tpu.dot_dimension_numbers<[1], [0], [0], [1], [0, 0, 1, 1], [], []>} : vector<1x100xbf16>, vector<100x128xbf16>, vector<1x128xf32> -> vector<1x128xf32>
      %c0_31 = arith.constant 0 : index
      %c0_32 = arith.constant 0 : index
      %35 = vector.load %arg10[%c0_31, %c0_32] : memref<1x128xf32, #tpu.memory_space<vmem>>, vector<1x128xf32>
      %36 = arith.addf %34, %35 : vector<1x128xf32>
      %c0_33 = arith.constant 0 : index
      %c0_34 = arith.constant 0 : index
      %c0_35 = arith.constant 0 : index
      %37 = vector.load %arg11[%c0_33, %c0_34, %c0_35] : memref<1x1x128xf32, #tpu.memory_space<vmem>>, vector<1x1x128xf32>
      %38 = vector.shape_cast %37 : vector<1x1x128xf32> to vector<1x128xf32>
      %39 = vector.shape_cast %36 : vector<1x128xf32> to vector<1x1x128xf32>
      tpu.vector_store %arg11[%c0_33, %c0_34, %c0_35], %39 {strides = array<i32>} : memref<1x1x128xf32, #tpu.memory_space<vmem>>, vector<1x1x128xf32>,
    } else {
    }
    return
  }
  func.func @transform_0(%arg0: i32, %arg1: i32) -> (i32, i32, i32) {
    %c0_i32 = arith.constant 0 : i32
    %c0_i32_0 = arith.constant 0 : i32
    return %arg0, %arg1, %c0_i32 : i32, i32, i32
  }
  func.func @transform_1(%arg0: i32, %arg1: i32) -> (i32, i32) {
    %c0_i32 = arith.constant 0 : i32
    %c0_i32_0 = arith.constant 0 : i32
    %c0_i32_1 = arith.constant 0 : i32
    return %c0_i32, %c0_i32_0 : i32, i32
  }
  func.func @transform_2(%arg0: i32, %arg1: i32) -> (i32, i32) {
    %c0_i32 = arith.constant 0 : i32
    %c0_i32_0 = arith.constant 0 : i32
    %c0_i32_1 = arith.constant 0 : i32
    return %c0_i32, %c0_i32_0 : i32, i32
  }
  func.func @transform_3(%arg0: i32, %arg1: i32) -> (i32, i32) {
    %c0_i32 = arith.constant 0 : i32
    %c0_i32_0 = arith.constant 0 : i32
    return %arg1, %c0_i32 : i32, i32
  }
  func.func @transform_4(%arg0: i32, %arg1: i32) -> (i32, i32) {
    %c0_i32 = arith.constant 0 : i32
    %c0_i32_0 = arith.constant 0 : i32
    %c0_i32_1 = arith.constant 0 : i32
    return %c0_i32, %c0_i32_0 : i32, i32
  }
  func.func @transform_5(%arg0: i32, %arg1: i32) -> (i32, i32) {
    %c0_i32 = arith.constant 0 : i32
    %c0_i32_0 = arith.constant 0 : i32
    %c0_i32_1 = arith.constant 0 : i32
    return %c0_i32, %c0_i32_0 : i32, i32
  }
  func.func @transform_6(%arg0: i32, %arg1: i32) -> (i32, i32) {
    %c0_i32 = arith.constant 0 : i32
    %c0_i32_0 = arith.constant 0 : i32
    %c0_i32_1 = arith.constant 0 : i32
    return %c0_i32, %c0_i32_0 : i32, i32
  }
  func.func @transform_7(%arg0: i32, %arg1: i32) -> (i32, i32) {
    %c0_i32 = arith.constant 0 : i32
    %c0_i32_0 = arith.constant 0 : i32
    %c0_i32_1 = arith.constant 0 : i32
    return %c0_i32, %c0_i32_0 : i32, i32
  }
  func.func @transform_8(%arg0: i32, %arg1: i32) -> (i32, i32) {
    %c0_i32 = arith.constant 0 : i32
    %c0_i32_0 = arith.constant 0 : i32
    %c0_i32_1 = arith.constant 0 : i32
    return %c0_i32, %c0_i32_0 : i32, i32
  }
  func.func @transform_9(%arg0: i32, %arg1: i32) -> (i32, i32, i32) {
    %c0_i32 = arith.constant 0 : i32
    %c0_i32_0 = arith.constant 0 : i32
    %c0_i32_1 = arith.constant 0 : i32
    return %arg0, %c0_i32, %c0_i32_0 : i32, i32, i32
  }
}

</mosaic_0001>

<llo_original>
// kernel: model_forward.1
$region0: #{model_forward.1}
  #allocation0 [shape = 'u32[]', space=smem, size = 0x4, offset = 0x4, fixed_abs, tag = 'smem constant byte address 0x4 - core index']
  #allocation1 [shape = 'u32[144,128]{1,0:T(1,128)}', space=vmem, size = 0x12000, scoped, tag = 'internal scratch']
  #allocation2 [shape = 'f32[1,2000]{1,0:T(1,128)}', space=vmem, size = 0x2000, scoped, tag = 'scratch operand']
  %s0 = inlined_call_operand.vmem [shape: bf16[2,1,3072], index: 0, kind: input, shape index: {}]
  %s1 = inlined_call_operand.vmem [shape: bf16[3072,512], index: 1, kind: input, shape index: {}]
  %s2 = inlined_call_operand.vmem [shape: f32[1,512], index: 2, kind: input, shape index: {}]
  %s3 = inlined_call_operand.vmem [shape: bf16[512,2000], index: 3, kind: input, shape index: {}]
  %s4 = inlined_call_operand.vmem [shape: f32[1,2000], index: 4, kind: input, shape index: {}]
  %s5 = inlined_call_operand.vmem [shape: bf16[2000,100], index: 5, kind: input, shape index: {}]
  %s6 = inlined_call_operand.vmem [shape: f32[1,100], index: 6, kind: input, shape index: {}]
  %s7 = inlined_call_operand.vmem [shape: bf16[100,128], index: 7, kind: input, shape index: {}]
  %s8 = inlined_call_operand.vmem [shape: f32[1,128], index: 8, kind: input, shape index: {}]
  %s9 = inlined_call_operand.hbm [shape: f32[2,1,128], index: 9, kind: output, shape index: {}]
  %s10 = sld [smem:[#allocation0]]
  $region77: #{model_forward.1} parent=0
    _
  %s12 = ssub.s32 1, %s10
  %s13 = scalar_select 0, %s12, %s10
  $region1: #{model_forward.1} parent=0
    #allocation3 [shape = 'u8[1024]{0}', space=vmem, size = 0x400, scoped, tag = 'output window, operand 0']
    #allocation4 [shape = 's32[2]{0}', space=sflag, size = 0x8, scoped, tag = 'scoped memory for model_forward.1']
    %14 = vsyncpa [#allocation4], 0
    %s15 = scalar_lea.sflag [#allocation4], 1
    %16 = vsyncpa %s15, 0
    loop: start=0, step=1, limit=4
    $region2: #{model_forward.1} parent=1 // loop_pre_header
      _
    $region3: #{model_forward.1} parent=1 // loop_header
      %s18 = sphi 0, %s22
      %p19 = scmp.ge.s32.totalorder %s18, 4
      %s25 = sphi 0, %s37
      %s26 = sphi 0, %s33
      %s27 = sphi 0, %s25
      %s28 = sphi 0, %s26
      %s29 = sphi 0, %s27
      %s30 = sphi 0, %s28
      %s42 = sphi 0, %s44
      %s45 = sphi 0, %s42
      %s46 = sphi 0, %s45
      %s62 = sphi 0, %s46
      %s66 = sphi 0, %s66
      %s68 = sphi 0, %s66
      %s69 = sphi 0, %s68
      %s83 = sphi 0, %s69
      %s87 = sphi 0, %s87
      %s89 = sphi 0, %s87
      %s90 = sphi 0, %s89
      %s104 = sphi 0, %s90
      %s110 = sphi 0, %s112
      %s113 = sphi 0, %s110
      %s114 = sphi 0, %s113
      %s130 = sphi 0, %s114
      %s134 = sphi 0, %s134
      %s136 = sphi 0, %s134
      %s137 = sphi 0, %s136
      %s151 = sphi 0, %s137
      %s155 = sphi 0, %s155
      %s157 = sphi 0, %s155
      %s158 = sphi 0, %s157
      %s172 = sphi 0, %s158
      %s176 = sphi 0, %s176
      %s178 = sphi 0, %s176
      %s179 = sphi 0, %s178
      %s193 = sphi 0, %s179
      %s197 = sphi 0, %s197
      %s199 = sphi 0, %s197
      %s200 = sphi 0, %s199
      %s214 = sphi 0, %s200
      %s218 = sphi 0, %s218
      %s220 = sphi 0, %s218
      %s221 = sphi 0, %s220
      %s235 = sphi 0, %s221
      %s241 = sphi 0, %s243
      %s244 = sphi 0, %s241
      %s245 = sphi 0, %s244
      %s261 = sphi 0, %s245
    $region4: #{model_forward.1} parent=1 // loop_header_branch
      %21 = sbr.rel (%p19) target = $region8
    $region5: #{model_forward.1} parent=1 // loop_body
      %s23 = ssub.s32 %s18, 1
      %s24 = ssub.s32 %s18, 2
      %s31 = sadd.s32 1, %s26
      %p32 = scmp.ge.s32.totalorder %s31, 1
      %s33 = scalar_select %p32, 0, %s31
      %s34 = sadd.s32 1, %s25
      %s35 = scalar_select %p32, %s34, %s25
      %p36 = scmp.ge.s32.totalorder %s35, 2
      %s37 = scalar_select %p36, 0, %s35
      %s38 = ssub.s32 %s25, %s37
      %s39 = ssub.s32 %s26, %s33
      %s40 = sor.u32 %s38, %s39
      %p41 = scmp.eq.s32.totalorder %s40, 0
      %s43 = sadd.s32 %s42, 1
      %s44 = scalar_select %p41, %s42, %s43
      %p47 = pneg %p41
      %p48 = scmp.eq.s32.totalorder %s18, 1
      %p49 = por %p47, %p48
      %p50 = scmp.ne.s32.totalorder %s42, %s45
      %p51 = scmp.eq.s32.totalorder %s18, 0
      %p52 = por %p50, %p51
      %p53 = scmp.ne.s32.totalorder %s42, %s45
      %p54 = scmp.eq.s32.totalorder %s23, 1
      %p55 = por %p53, %p54
      %p56 = scmp.ne.s32.totalorder %s45, %s46
      %p57 = scmp.eq.s32.totalorder %s23, 0
      %p58 = por %p56, %p57
      %p59 = scmp.ne.s32.totalorder %s45, %s46
      %p60 = scmp.eq.s32.totalorder %s24, 1
      %p61 = por %p59, %p60
      %p63 = scmp.ne.s32.totalorder %s46, %s62
      %p64 = scmp.eq.s32.totalorder %s24, 0
      %p65 = por %p63, %p64
      %s67 = sadd.s32 %s66, 1
      %p70 = scmp.eq.s32.totalorder %s18, 1
      %p71 = scmp.ne.s32.totalorder %s66, %s68
      %p72 = scmp.eq.s32.totalorder %s18, 0
      %p73 = por %p71, %p72
      %p74 = scmp.ne.s32.totalorder %s66, %s68
      %p75 = scmp.eq.s32.totalorder %s23, 1
      %p76 = por %p74, %p75
      %p77 = scmp.ne.s32.totalorder %s68, %s69
      %p78 = scmp.eq.s32.totalorder %s23, 0
      %p79 = por %p77, %p78
      %p80 = scmp.ne.s32.totalorder %s68, %s69
      %p81 = scmp.eq.s32.totalorder %s24, 1
      %p82 = por %p80, %p81
      %p84 = scmp.ne.s32.totalorder %s69, %s83
      %p85 = scmp.eq.s32.totalorder %s24, 0
      %p86 = por %p84, %p85
      %s88 = sadd.s32 %s87, 1
      %p91 = scmp.eq.s32.totalorder %s18, 1
      %p92 = scmp.ne.s32.totalorder %s87, %s89
      %p93 = scmp.eq.s32.totalorder %s18, 0
      %p94 = por %p92, %p93
      %p95 = scmp.ne.s32.totalorder %s87, %s89
      %p96 = scmp.eq.s32.totalorder %s23, 1
      %p97 = por %p95, %p96
      %p98 = scmp.ne.s32.totalorder %s89, %s90
      %p99 = scmp.eq.s32.totalorder %s23, 0
      %p100 = por %p98, %p99
      %p101 = scmp.ne.s32.totalorder %s89, %s90
      %p102 = scmp.eq.s32.totalorder %s24, 1
      %p103 = por %p101, %p102
      %p105 = scmp.ne.s32.totalorder %s90, %s104
      %p106 = scmp.eq.s32.totalorder %s24, 0
      %p107 = por %p105, %p106
      %s108 = ssub.s32 %s26, %s33
      %p109 = scmp.eq.s32.totalorder %s108, 0
      %s111 = sadd.s32 %s110, 1
      %s112 = scalar_select %p109, %s110, %s111
      %p115 = pneg %p109
      %p116 = scmp.eq.s32.totalorder %s18, 1
      %p117 = por %p115, %p116
      %p118 = scmp.ne.s32.totalorder %s110, %s113
      %p119 = scmp.eq.s32.totalorder %s18, 0
      %p120 = por %p118, %p119
      %p121 = scmp.ne.s32.totalorder %s110, %s113
      %p122 = scmp.eq.s32.totalorder %s23, 1
      %p123 = por %p121, %p122
      %p124 = scmp.ne.s32.totalorder %s113, %s114
      %p125 = scmp.eq.s32.totalorder %s23, 0
      %p126 = por %p124, %p125
      %p127 = scmp.ne.s32.totalorder %s113, %s114
      %p128 = scmp.eq.s32.totalorder %s24, 1
      %p129 = por %p127, %p128
      %p131 = scmp.ne.s32.totalorder %s114, %s130
      %p132 = scmp.eq.s32.totalorder %s24, 0
      %p133 = por %p131, %p132
      %s135 = sadd.s32 %s134, 1
      %p138 = scmp.eq.s32.totalorder %s18, 1
      %p139 = scmp.ne.s32.totalorder %s134, %s136
      %p140 = scmp.eq.s32.totalorder %s18, 0
      %p141 = por %p139, %p140
      %p142 = scmp.ne.s32.totalorder %s134, %s136
      %p143 = scmp.eq.s32.totalorder %s23, 1
      %p144 = por %p142, %p143
      %p145 = scmp.ne.s32.totalorder %s136, %s137
      %p146 = scmp.eq.s32.totalorder %s23, 0
      %p147 = por %p145, %p146
      %p148 = scmp.ne.s32.totalorder %s136, %s137
      %p149 = scmp.eq.s32.totalorder %s24, 1
      %p150 = por %p148, %p149
      %p152 = scmp.ne.s32.totalorder %s137, %s151
      %p153 = scmp.eq.s32.totalorder %s24, 0
      %p154 = por %p152, %p153
      %s156 = sadd.s32 %s155, 1
      %p159 = scmp.eq.s32.totalorder %s18, 1
      %p160 = scmp.ne.s32.totalorder %s155, %s157
      %p161 = scmp.eq.s32.totalorder %s18, 0
      %p162 = por %p160, %p161
      %p163 = scmp.ne.s32.totalorder %s155, %s157
      %p164 = scmp.eq.s32.totalorder %s23, 1
      %p165 = por %p163, %p164
      %p166 = scmp.ne.s32.totalorder %s157, %s158
      %p167 = scmp.eq.s32.totalorder %s23, 0
      %p168 = por %p166, %p167
      %p169 = scmp.ne.s32.totalorder %s157, %s158
      %p170 = scmp.eq.s32.totalorder %s24, 1
      %p171 = por %p169, %p170
      %p173 = scmp.ne.s32.totalorder %s158, %s172
      %p174 = scmp.eq.s32.totalorder %s24, 0
      %p175 = por %p173, %p174
      %s177 = sadd.s32 %s176, 1
      %p180 = scmp.eq.s32.totalorder %s18, 1
      %p181 = scmp.ne.s32.totalorder %s176, %s178
      %p182 = scmp.eq.s32.totalorder %s18, 0
      %p183 = por %p181, %p182
      %p184 = scmp.ne.s32.totalorder %s176, %s178
      %p185 = scmp.eq.s32.totalorder %s23, 1
      %p186 = por %p184, %p185
      %p187 = scmp.ne.s32.totalorder %s178, %s179
      %p188 = scmp.eq.s32.totalorder %s23, 0
      %p189 = por %p187, %p188
      %p190 = scmp.ne.s32.totalorder %s178, %s179
      %p191 = scmp.eq.s32.totalorder %s24, 1
      %p192 = por %p190, %p191
      %p194 = scmp.ne.s32.totalorder %s179, %s193
      %p195 = scmp.eq.s32.totalorder %s24, 0
      %p196 = por %p194, %p195
      %s198 = sadd.s32 %s197, 1
      %p201 = scmp.eq.s32.totalorder %s18, 1
      %p202 = scmp.ne.s32.totalorder %s197, %s199
      %p203 = scmp.eq.s32.totalorder %s18, 0
      %p204 = por %p202, %p203
      %p205 = scmp.ne.s32.totalorder %s197, %s199
      %p206 = scmp.eq.s32.totalorder %s23, 1
      %p207 = por %p205, %p206
      %p208 = scmp.ne.s32.totalorder %s199, %s200
      %p209 = scmp.eq.s32.totalorder %s23, 0
      %p210 = por %p208, %p209
      %p211 = scmp.ne.s32.totalorder %s199, %s200
      %p212 = scmp.eq.s32.totalorder %s24, 1
      %p213 = por %p211, %p212
      %p215 = scmp.ne.s32.totalorder %s200, %s214
      %p216 = scmp.eq.s32.totalorder %s24, 0
      %p217 = por %p215, %p216
      %s219 = sadd.s32 %s218, 1
      %p222 = scmp.eq.s32.totalorder %s18, 1
      %p223 = scmp.ne.s32.totalorder %s218, %s220
      %p224 = scmp.eq.s32.totalorder %s18, 0
      %p225 = por %p223, %p224
      %p226 = scmp.ne.s32.totalorder %s218, %s220
      %p227 = scmp.eq.s32.totalorder %s23, 1
      %p228 = por %p226, %p227
      %p229 = scmp.ne.s32.totalorder %s220, %s221
      %p230 = scmp.eq.s32.totalorder %s23, 0
      %p231 = por %p229, %p230
      %p232 = scmp.ne.s32.totalorder %s220, %s221
      %p233 = scmp.eq.s32.totalorder %s24, 1
      %p234 = por %p232, %p233
      %p236 = scmp.ne.s32.totalorder %s221, %s235
      %p237 = scmp.eq.s32.totalorder %s24, 0
      %p238 = por %p236, %p237
      %s239 = ssub.s32 %s25, %s37
      %p240 = scmp.eq.s32.totalorder %s239, 0
      %s242 = sadd.s32 %s241, 1
      %s243 = scalar_select %p240, %s241, %s242
      %p246 = pneg %p240
      %p247 = scmp.eq.s32.totalorder %s18, 1
      %p248 = por %p246, %p247
      %p249 = scmp.ne.s32.totalorder %s241, %s244
      %p250 = scmp.eq.s32.totalorder %s18, 0
      %p251 = por %p249, %p250
      %p252 = scmp.ne.s32.totalorder %s241, %s244
      %p253 = scmp.eq.s32.totalorder %s23, 1
      %p254 = por %p252, %p253
      %p255 = scmp.ne.s32.totalorder %s244, %s245
      %p256 = scmp.eq.s32.totalorder %s23, 0
      %p257 = por %p255, %p256
      %p258 = scmp.ne.s32.totalorder %s244, %s245
      %p259 = scmp.eq.s32.totalorder %s24, 1
      %p260 = por %p258, %p259
      %p262 = scmp.ne.s32.totalorder %s245, %s261
      %p263 = scmp.eq.s32.totalorder %s24, 0
      %p264 = por %p262, %p263
      %p265 = scmp.le.s32.totalorder 1, %s18
      %p266 = scmp.lt.s32.totalorder %s18, 3
      %p267 = pnand %p265, %p266
      %p268 = pneg %p267
      // Predicated region
      $region9: #{model_forward.1} parent=5 // pred_check
        _
      $region10: #{model_forward.1} parent=5 // pred_check_branch
        %270 = sbr.rel (%p267) target = $region12
      $region11: #{model_forward.1} parent=5 // pred_region
        %s271 = ssub.s32 %s18, 1
        // Predicated region
        $region13: #{model_forward.1} parent=11 // pred_check
          %p272 = pneg %p79
        $region14: #{model_forward.1} parent=11 // pred_check_branch
          %274 = sbr.rel (%p272) target = $region16
        $region15: #{model_forward.1} parent=11 // pred_region
          _
        $region16: #{model_forward.1} parent=11 // pred_fallthru
          _
        // Predicated region
        $region17: #{model_forward.1} parent=11 // pred_check
          %p275 = pneg %p100
        $region18: #{model_forward.1} parent=11 // pred_check_branch
          %277 = sbr.rel (%p275) target = $region20
        $region19: #{model_forward.1} parent=11 // pred_region
          _
        $region20: #{model_forward.1} parent=11 // pred_fallthru
          _
        // Predicated region
        $region21: #{model_forward.1} parent=11 // pred_check
          %p278 = pneg %p126
        $region22: #{model_forward.1} parent=11 // pred_check_branch
          %280 = sbr.rel (%p278) target = $region24
        $region23: #{model_forward.1} parent=11 // pred_region
          %s281 = smul.u32 64, %s28
          %p282 = scmp.lt.s32.totalorder %s281, 63
          %s283 = scalar_select %p282, %s281, 63
          %s284 = smul.addr %s283, 16
          %s285 = smul.addr %s284, 4
          %s286 = scalar_lea.vmem %s3, %s285
          %s287 = smul.u32 64, %s28
        $region24: #{model_forward.1} parent=11 // pred_fallthru
          _
        // Predicated region
        $region25: #{model_forward.1} parent=11 // pred_check
          %p288 = pneg %p147
        $region26: #{model_forward.1} parent=11 // pred_check_branch
          %290 = sbr.rel (%p288) target = $region28
        $region27: #{model_forward.1} parent=11 // pred_region
          _
        $region28: #{model_forward.1} parent=11 // pred_fallthru
          _
        // Predicated region
        $region29: #{model_forward.1} parent=11 // pred_check
          %p291 = pneg %p168
        $region30: #{model_forward.1} parent=11 // pred_check_branch
          %293 = sbr.rel (%p291) target = $region32
        $region31: #{model_forward.1} parent=11 // pred_region
          _
        $region32: #{model_forward.1} parent=11 // pred_fallthru
          _
        // Predicated region
        $region33: #{model_forward.1} parent=11 // pred_check
          %p294 = pneg %p189
        $region34: #{model_forward.1} parent=11 // pred_check_branch
          %296 = sbr.rel (%p294) target = $region36
        $region35: #{model_forward.1} parent=11 // pred_region
          _
        $region36: #{model_forward.1} parent=11 // pred_fallthru
          _
        // Predicated region
        $region37: #{model_forward.1} parent=11 // pred_check
          %p297 = pneg %p210
        $region38: #{model_forward.1} parent=11 // pred_check_branch
          %299 = sbr.rel (%p297) target = $region40
        $region39: #{model_forward.1} parent=11 // pred_region
          _
        $region40: #{model_forward.1} parent=11 // pred_fallthru
          _
        // Predicated region
        $region41: #{model_forward.1} parent=11 // pred_check
          %p300 = pneg %p231
        $region42: #{model_forward.1} parent=11 // pred_check_branch
          %302 = sbr.rel (%p300) target = $region44
        $region43: #{model_forward.1} parent=11 // pred_region
          _
        $region44: #{model_forward.1} parent=11 // pred_fallthru
          _
      $region12: #{model_forward.1} parent=5 // pred_fallthru
        _
      %p303 = scmp.lt.s32.totalorder %s18, 2
      // Predicated region
      $region45: #{model_forward.1} parent=5 // pred_check
        %p304 = pneg %p303
      $region46: #{model_forward.1} parent=5 // pred_check_branch
        %306 = sbr.rel (%p304) target = $region48
      $region47: #{model_forward.1} parent=5 // pred_region
        // Predicated region
        $region49: #{model_forward.1} parent=47 // pred_check
          %p307 = pneg %p52
        $region50: #{model_forward.1} parent=47 // pred_check_branch
          %309 = sbr.rel (%p307) target = $region52
        $region51: #{model_forward.1} parent=47 // pred_region
          %p310 = scmp.lt.s32.totalorder %s25, 1
          %s311 = scalar_select %p310, %s25, 1
          %p312 = scmp.lt.s32.totalorder %s26, 0
          %s313 = scalar_select %p312, %s26, 0
          %s314 = smul.addr %s313, 24
          %s315 = smul.addr %s311, 24
          %s316 = sadd.s32 %s314, %s315
          %s317 = scalar_lea.vmem %s0, %s316
        $region52: #{model_forward.1} parent=47 // pred_fallthru
          _
      $region48: #{model_forward.1} parent=5 // pred_fallthru
        _
      %p318 = scmp.le.s32.totalorder 1, %s18
      %p319 = scmp.lt.s32.totalorder %s18, 3
      %p320 = pnand %p318, %p319
      %p321 = pneg %p320
      // Predicated region
      $region53: #{model_forward.1} parent=5 // pred_check
        _
      $region54: #{model_forward.1} parent=5 // pred_check_branch
        %323 = sbr.rel (%p320) target = $region56
      $region55: #{model_forward.1} parent=5 // pred_region
        %s324 = ssub.s32 %s18, 1
        %p325 = scmp.lt.s32.totalorder %s27, 1
        %s326 = scalar_select %p325, %s27, 1
        %p327 = scmp.lt.s32.totalorder %s28, 0
        %s328 = scalar_select %p327, %s28, 0
        %s329 = smul.addr %s328, 24
        %s330 = smul.addr %s326, 24
        %s331 = sadd.s32 %s329, %s330
        %s332 = scalar_lea.vmem %s0, %s331
        %p333 = pneg %p58
        %p334 = pneg %p55
        %p335 = pneg %p79
        %p336 = pneg %p76
        %p337 = pneg %p100
        %p338 = pneg %p97
        %s339 = smul.u32 64, %s28
        %p340 = scmp.lt.s32.totalorder %s339, 63
        %s341 = scalar_select %p340, %s339, 63
        %s342 = smul.addr %s341, 16
        %s343 = smul.addr %s342, 4
        %s344 = scalar_lea.vmem %s3, %s343
        %p345 = pneg %p126
        %p346 = pneg %p123
        %p347 = pneg %p147
        %p348 = pneg %p144
        %p349 = pneg %p168
        %p350 = pneg %p165
        %p351 = pneg %p189
        %p352 = pneg %p186
        %p353 = pneg %p210
        %p354 = pneg %p207
        %p355 = pneg %p231
        %p356 = pneg %p228
        %p357 = pneg %p257
        %p358 = pneg %p254
        %s359 = sand.u32 %s244, 1
        %s360 = scalar_lea.sflag [#allocation4], %s359
        %s361 = sand.u32 %s244, 1
        %s362 = scalar_lea.vmem [#allocation3], %s361
        %p363 = scmp.lt.s32.totalorder %s27, 1
        %s364 = scalar_select %p363, %s27, 1
        %p365 = scmp.lt.s32.totalorder %s28, 0
        %s366 = scalar_select %p365, %s28, 0
        %s367 = smul.addr %s366, 24
        %s368 = smul.addr %s364, 24
        %s369 = sadd.s32 %s367, %s368
        %s370 = scalar_lea.vmem %s0, %s369
        %s371 = smul.u32 64, %s28
        %p372 = scmp.lt.s32.totalorder %s371, 63
        %s373 = scalar_select %p372, %s371, 63
        %s374 = smul.addr %s373, 16
        %s375 = smul.addr %s374, 4
        %s376 = scalar_lea.vmem %s3, %s375
        %s377 = smul.u32 64, %s28
        %p379 = scmp.eq.s32.totalorder %s28, 0
        // Predicated region
        $region57: #{model_forward.1} parent=55 // pred_check
          %p380 = pneg %p379
        $region58: #{model_forward.1} parent=55 // pred_check_branch
          %382 = sbr.rel (%p380) target = $region60
        $region59: #{model_forward.1} parent=55 // pred_region
          %383 = vst [vmem:[#allocation2] sm:$0xff] 0.0
          %v384 = vlaneseq
          %vm385 = vcmp.ge.s32.totalorder %v384, 0
          %vm386 = vcmp.lt.s32.totalorder %v384, 976
          %vm387 = vmand %vm385, %vm386
          %388 = vst.msk [vmem:[#allocation2 + $0x8] sm:$0xff] %vm387, 0.0
        $region60: #{model_forward.1} parent=55 // pred_fallthru
          _
        %v389 = vld [vmem:[%s370] sm:$0xff]
        %v390 = vld [vmem:[%s370 + $0x8] sm:$0xff]
        %v391 = vld [vmem:[%s370 + $0x10] sm:$0xff]
        %v392 = vld [vmem:[%s1] sm:$0xff]
        %v393 = vld [vmem:[%s1 + $0x8] sm:$0xff]
        %v394 = vld [vmem:[%s1 + $0x10] sm:$0xff]
        %v395 = vld [vmem:[%s1 + $0x18] sm:$0xff]
        %v396 = vld [vmem:[%s1 + $0x20] sm:$0xff]
        %v397 = vld [vmem:[%s1 + $0x28] sm:$0xff]
        %v398 = vld [vmem:[%s1 + $0x30] sm:$0xff]
        %v399 = vld [vmem:[%s1 + $0x38] sm:$0xff]
        %v400 = vld [vmem:[%s1 + $0x40] sm:$0xff]
        %v401 = vld [vmem:[%s1 + $0x48] sm:$0xff]
        %v402 = vld [vmem:[%s1 + $0x50] sm:$0xff]
        %v403 = vld [vmem:[%s1 + $0x58] sm:$0xff]
        %v404 = vld [vmem:[%s1 + $0x60] sm:$0xff]
        %v405 = vld [vmem:[%s1 + $0x68] sm:$0xff]
        %v406 = vld [vmem:[%s1 + $0x70] sm:$0xff]
        %v407 = vld [vmem:[%s1 + $0x78] sm:$0xff]
        %v408 = vld [vmem:[%s1 + $0x80] sm:$0xff]
        %v409 = vld [vmem:[%s1 + $0x88] sm:$0xff]
        %v410 = vld [vmem:[%s1 + $0x90] sm:$0xff]
        %v411 = vld [vmem:[%s1 + $0x98] sm:$0xff]
        %v412 = vld [vmem:[%s1 + $0xa0] sm:$0xff]
        %v413 = vld [vmem:[%s1 + $0xa8] sm:$0xff]
        %v414 = vld [vmem:[%s1 + $0xb0] sm:$0xff]
        %v415 = vld [vmem:[%s1 + $0xb8] sm:$0xff]
        %v416 = vld [vmem:[%s1 + $0xc0] sm:$0xff]
        %v417 = vld [vmem:[%s1 + $0xc8] sm:$0xff]
        %v418 = vld [vmem:[%s1 + $0xd0] sm:$0xff]
        %v419 = vld [vmem:[%s1 + $0xd8] sm:$0xff]
        %v420 = vld [vmem:[%s1 + $0xe0] sm:$0xff]
        %v421 = vld [vmem:[%s1 + $0xe8] sm:$0xff]
        %v422 = vld [vmem:[%s1 + $0xf0] sm:$0xff]
        %v423 = vld [vmem:[%s1 + $0xf8] sm:$0xff]
        %v424 = vld [vmem:[%s1 + $0x100] sm:$0xff]
        %v425 = vld [vmem:[%s1 + $0x108] sm:$0xff]
        %v426 = vld [vmem:[%s1 + $0x110] sm:$0xff]
        %v427 = vld [vmem:[%s1 + $0x118] sm:$0xff]
        %v428 = vld [vmem:[%s1 + $0x120] sm:$0xff]
        %v429 = vld [vmem:[%s1 + $0x128] sm:$0xff]
        %v430 = vld [vmem:[%s1 + $0x130] sm:$0xff]
        %v431 = vld [vmem:[%s1 + $0x138] sm:$0xff]
        %v432 = vld [vmem:[%s1 + $0x140] sm:$0xff]
        %v433 = vld [vmem:[%s1 + $0x148] sm:$0xff]
        %v434 = vld [vmem:[%s1 + $0x150] sm:$0xff]
        %v435 = vld [vmem:[%s1 + $0x158] sm:$0xff]
        %v436 = vld [vmem:[%s1 + $0x160] sm:$0xff]
        %v437 = vld [vmem:[%s1 + $0x168] sm:$0xff]
        %v438 = vld [vmem:[%s1 + $0x170] sm:$0xff]
        %v439 = vld [vmem:[%s1 + $0x178] sm:$0xff]
        %v440 = vld [vmem:[%s1 + $0x180] sm:$0xff]
        %v441 = vld [vmem:[%s1 + $0x188] sm:$0xff]
        %v442 = vld [vmem:[%s1 + $0x190] sm:$0xff]
        %v443 = vld [vmem:[%s1 + $0x198] sm:$0xff]
        %v444 = vld [vmem:[%s1 + $0x1a0] sm:$0xff]
        %v445 = vld [vmem:[%s1 + $0x1a8] sm:$0xff]
        %v446 = vld [vmem:[%s1 + $0x1b0] sm:$0xff]
        %v447 = vld [vmem:[%s1 + $0x1b8] sm:$0xff]
        %v448 = vld [vmem:[%s1 + $0x1c0] sm:$0xff]
        %v449 = vld [vmem:[%s1 + $0x1c8] sm:$0xff]
        %v450 = vld [vmem:[%s1 + $0x1d0] sm:$0xff]
        %v451 = vld [vmem:[%s1 + $0x1d8] sm:$0xff]
        %v452 = vld [vmem:[%s1 + $0x1e0] sm:$0xff]
        %v453 = vld [vmem:[%s1 + $0x1e8] sm:$0xff]
        %v454 = vld [vmem:[%s1 + $0x1f0] sm:$0xff]
        %v455 = vld [vmem:[%s1 + $0x1f8] sm:$0xff]
        %v456 = vld [vmem:[%s1 + $0x200] sm:$0xff]
        %v457 = vld [vmem:[%s1 + $0x208] sm:$0xff]
        %v458 = vld [vmem:[%s1 + $0x210] sm:$0xff]
        %v459 = vld [vmem:[%s1 + $0x218] sm:$0xff]
        %v460 = vld [vmem:[%s1 + $0x220] sm:$0xff]
        %v461 = vld [vmem:[%s1 + $0x228] sm:$0xff]
        %v462 = vld [vmem:[%s1 + $0x230] sm:$0xff]
        %v463 = vld [vmem:[%s1 + $0x238] sm:$0xff]
        %v464 = vld [vmem:[%s1 + $0x240] sm:$0xff]
        %v465 = vld [vmem:[%s1 + $0x248] sm:$0xff]
        %v466 = vld [vmem:[%s1 + $0x250] sm:$0xff]
        %v467 = vld [vmem:[%s1 + $0x258] sm:$0xff]
        %v468 = vld [vmem:[%s1 + $0x260] sm:$0xff]
        %v469 = vld [vmem:[%s1 + $0x268] sm:$0xff]
        %v470 = vld [vmem:[%s1 + $0x270] sm:$0xff]
        %v471 = vld [vmem:[%s1 + $0x278] sm:$0xff]
        %v472 = vld [vmem:[%s1 + $0x280] sm:$0xff]
        %v473 = vld [vmem:[%s1 + $0x288] sm:$0xff]
        %v474 = vld [vmem:[%s1 + $0x290] sm:$0xff]
        %v475 = vld [vmem:[%s1 + $0x298] sm:$0xff]
        %v476 = vld [vmem:[%s1 + $0x2a0] sm:$0xff]
        %v477 = vld [vmem:[%s1 + $0x2a8] sm:$0xff]
        %v478 = vld [vmem:[%s1 + $0x2b0] sm:$0xff]
        %v479 = vld [vmem:[%s1 + $0x2b8] sm:$0xff]
        %v480 = vld [vmem:[%s1 + $0x2c0] sm:$0xff]
        %v481 = vld [vmem:[%s1 + $0x2c8] sm:$0xff]
        %v482 = vld [vmem:[%s1 + $0x2d0] sm:$0xff]
        %v483 = vld [vmem:[%s1 + $0x2d8] sm:$0xff]
        %v484 = vld [vmem:[%s1 + $0x2e0] sm:$0xff]
        %v485 = vld [vmem:[%s1 + $0x2e8] sm:$0xff]
        %v486 = vld [vmem:[%s1 + $0x2f0] sm:$0xff]
        %v487 = vld [vmem:[%s1 + $0x2f8] sm:$0xff]
        %v488 = vld [vmem:[%s1 + $0x300] sm:$0xff]
        %v489 = vld [vmem:[%s1 + $0x308] sm:$0xff]
        %v490 = vld [vmem:[%s1 + $0x310] sm:$0xff]
        %v491 = vld [vmem:[%s1 + $0x318] sm:$0xff]
        %v492 = vld [vmem:[%s1 + $0x320] sm:$0xff]
        %v493 = vld [vmem:[%s1 + $0x328] sm:$0xff]
        %v494 = vld [vmem:[%s1 + $0x330] sm:$0xff]
        %v495 = vld [vmem:[%s1 + $0x338] sm:$0xff]
        %v496 = vld [vmem:[%s1 + $0x340] sm:$0xff]
        %v497 = vld [vmem:[%s1 + $0x348] sm:$0xff]
        %v498 = vld [vmem:[%s1 + $0x350] sm:$0xff]
        %v499 = vld [vmem:[%s1 + $0x358] sm:$0xff]
        %v500 = vld [vmem:[%s1 + $0x360] sm:$0xff]
        %v501 = vld [vmem:[%s1 + $0x368] sm:$0xff]
        %v502 = vld [vmem:[%s1 + $0x370] sm:$0xff]
        %v503 = vld [vmem:[%s1 + $0x378] sm:$0xff]
        %v504 = vld [vmem:[%s1 + $0x380] sm:$0xff]
        %v505 = vld [vmem:[%s1 + $0x388] sm:$0xff]
        %v506 = vld [vmem:[%s1 + $0x390] sm:$0xff]
        %v507 = vld [vmem:[%s1 + $0x398] sm:$0xff]
        %v508 = vld [vmem:[%s1 + $0x3a0] sm:$0xff]
        %v509 = vld [vmem:[%s1 + $0x3a8] sm:$0xff]
        %v510 = vld [vmem:[%s1 + $0x3b0] sm:$0xff]
        %v511 = vld [vmem:[%s1 + $0x3b8] sm:$0xff]
        %v512 = vld [vmem:[%s1 + $0x3c0] sm:$0xff]
        %v513 = vld [vmem:[%s1 + $0x3c8] sm:$0xff]
        %v514 = vld [vmem:[%s1 + $0x3d0] sm:$0xff]
        %v515 = vld [vmem:[%s1 + $0x3d8] sm:$0xff]
        %v516 = vld [vmem:[%s1 + $0x3e0] sm:$0xff]
        %v517 = vld [vmem:[%s1 + $0x3e8] sm:$0xff]
        %v518 = vld [vmem:[%s1 + $0x3f0] sm:$0xff]
        %v519 = vld [vmem:[%s1 + $0x3f8] sm:$0xff]
        %v520 = vld [vmem:[%s1 + $0x400] sm:$0xff]
        %v521 = vld [vmem:[%s1 + $0x408] sm:$0xff]
        %v522 = vld [vmem:[%s1 + $0x410] sm:$0xff]
        %v523 = vld [vmem:[%s1 + $0x418] sm:$0xff]
        %v524 = vld [vmem:[%s1 + $0x420] sm:$0xff]
        %v525 = vld [vmem:[%s1 + $0x428] sm:$0xff]
        %v526 = vld [vmem:[%s1 + $0x430] sm:$0xff]
        %v527 = vld [vmem:[%s1 + $0x438] sm:$0xff]
        %v528 = vld [vmem:[%s1 + $0x440] sm:$0xff]
        %v529 = vld [vmem:[%s1 + $0x448] sm:$0xff]
        %v530 = vld [vmem:[%s1 + $0x450] sm:$0xff]
        %v531 = vld [vmem:[%s1 + $0x458] sm:$0xff]
        %v532 = vld [vmem:[%s1 + $0x460] sm:$0xff]
        %v533 = vld [vmem:[%s1 + $0x468] sm:$0xff]
        %v534 = vld [vmem:[%s1 + $0x470] sm:$0xff]
        %v535 = vld [vmem:[%s1 + $0x478] sm:$0xff]
        %v536 = vld [vmem:[%s1 + $0x480] sm:$0xff]
        %v537 = vld [vmem:[%s1 + $0x488] sm:$0xff]
        %v538 = vld [vmem:[%s1 + $0x490] sm:$0xff]
        %v539 = vld [vmem:[%s1 + $0x498] sm:$0xff]
        %v540 = vld [vmem:[%s1 + $0x4a0] sm:$0xff]
        %v541 = vld [vmem:[%s1 + $0x4a8] sm:$0xff]
        %v542 = vld [vmem:[%s1 + $0x4b0] sm:$0xff]
        %v543 = vld [vmem:[%s1 + $0x4b8] sm:$0xff]
        %v544 = vld [vmem:[%s1 + $0x4c0] sm:$0xff]
        %v545 = vld [vmem:[%s1 + $0x4c8] sm:$0xff]
        %v546 = vld [vmem:[%s1 + $0x4d0] sm:$0xff]
        %v547 = vld [vmem:[%s1 + $0x4d8] sm:$0xff]
        %v548 = vld [vmem:[%s1 + $0x4e0] sm:$0xff]
        %v549 = vld [vmem:[%s1 + $0x4e8] sm:$0xff]
        %v550 = vld [vmem:[%s1 + $0x4f0] sm:$0xff]
        %v551 = vld [vmem:[%s1 + $0x4f8] sm:$0xff]
        %v552 = vld [vmem:[%s1 + $0x500] sm:$0xff]
        %v553 = vld [vmem:[%s1 + $0x508] sm:$0xff]
        %v554 = vld [vmem:[%s1 + $0x510] sm:$0xff]
        %v555 = vld [vmem:[%s1 + $0x518] sm:$0xff]
        %v556 = vld [vmem:[%s1 + $0x520] sm:$0xff]
        %v557 = vld [vmem:[%s1 + $0x528] sm:$0xff]
        %v558 = vld [vmem:[%s1 + $0x530] sm:$0xff]
        %v559 = vld [vmem:[%s1 + $0x538] sm:$0xff]
        %v560 = vld [vmem:[%s1 + $0x540] sm:$0xff]
        %v561 = vld [vmem:[%s1 + $0x548] sm:$0xff]
        %v562 = vld [vmem:[%s1 + $0x550] sm:$0xff]
        %v563 = vld [vmem:[%s1 + $0x558] sm:$0xff]
        %v564 = vld [vmem:[%s1 + $0x560] sm:$0xff]
        %v565 = vld [vmem:[%s1 + $0x568] sm:$0xff]
        %v566 = vld [vmem:[%s1 + $0x570] sm:$0xff]
        %v567 = vld [vmem:[%s1 + $0x578] sm:$0xff]
        %v568 = vld [vmem:[%s1 + $0x580] sm:$0xff]
        %v569 = vld [vmem:[%s1 + $0x588] sm:$0xff]
        %v570 = vld [vmem:[%s1 + $0x590] sm:$0xff]
        %v571 = vld [vmem:[%s1 + $0x598] sm:$0xff]
        %v572 = vld [vmem:[%s1 + $0x5a0] sm:$0xff]
        %v573 = vld [vmem:[%s1 + $0x5a8] sm:$0xff]
        %v574 = vld [vmem:[%s1 + $0x5b0] sm:$0xff]
        %v575 = vld [vmem:[%s1 + $0x5b8] sm:$0xff]
        %v576 = vld [vmem:[%s1 + $0x5c0] sm:$0xff]
        %v577 = vld [vmem:[%s1 + $0x5c8] sm:$0xff]
        %v578 = vld [vmem:[%s1 + $0x5d0] sm:$0xff]
        %v579 = vld [vmem:[%s1 + $0x5d8] sm:$0xff]
        %v580 = vld [vmem:[%s1 + $0x5e0] sm:$0xff]
        %v581 = vld [vmem:[%s1 + $0x5e8] sm:$0xff]
        %v582 = vld [vmem:[%s1 + $0x5f0] sm:$0xff]
        %v583 = vld [vmem:[%s1 + $0x5f8] sm:$0xff]
        %v584 = vld [vmem:[%s1 + $0x600] sm:$0xff]
        %v585 = vld [vmem:[%s1 + $0x608] sm:$0xff]
        %v586 = vld [vmem:[%s1 + $0x610] sm:$0xff]
        %v587 = vld [vmem:[%s1 + $0x618] sm:$0xff]
        %v588 = vld [vmem:[%s1 + $0x620] sm:$0xff]
        %v589 = vld [vmem:[%s1 + $0x628] sm:$0xff]
        %v590 = vld [vmem:[%s1 + $0x630] sm:$0xff]
        %v591 = vld [vmem:[%s1 + $0x638] sm:$0xff]
        %v592 = vld [vmem:[%s1 + $0x640] sm:$0xff]
        %v593 = vld [vmem:[%s1 + $0x648] sm:$0xff]
        %v594 = vld [vmem:[%s1 + $0x650] sm:$0xff]
        %v595 = vld [vmem:[%s1 + $0x658] sm:$0xff]
        %v596 = vld [vmem:[%s1 + $0x660] sm:$0xff]
        %v597 = vld [vmem:[%s1 + $0x668] sm:$0xff]
        %v598 = vld [vmem:[%s1 + $0x670] sm:$0xff]
        %v599 = vld [vmem:[%s1 + $0x678] sm:$0xff]
        %v600 = vld [vmem:[%s1 + $0x680] sm:$0xff]
        %v601 = vld [vmem:[%s1 + $0x688] sm:$0xff]
        %v602 = vld [vmem:[%s1 + $0x690] sm:$0xff]
        %v603 = vld [vmem:[%s1 + $0x698] sm:$0xff]
        %v604 = vld [vmem:[%s1 + $0x6a0] sm:$0xff]
        %v605 = vld [vmem:[%s1 + $0x6a8] sm:$0xff]
        %v606 = vld [vmem:[%s1 + $0x6b0] sm:$0xff]
        %v607 = vld [vmem:[%s1 + $0x6b8] sm:$0xff]
        %v608 = vld [vmem:[%s1 + $0x6c0] sm:$0xff]
        %v609 = vld [vmem:[%s1 + $0x6c8] sm:$0xff]
        %v610 = vld [vmem:[%s1 + $0x6d0] sm:$0xff]
        %v611 = vld [vmem:[%s1 + $0x6d8] sm:$0xff]
        %v612 = vld [vmem:[%s1 + $0x6e0] sm:$0xff]
        %v613 = vld [vmem:[%s1 + $0x6e8] sm:$0xff]
        %v614 = vld [vmem:[%s1 + $0x6f0] sm:$0xff]
        %v615 = vld [vmem:[%s1 + $0x6f8] sm:$0xff]
        %v616 = vld [vmem:[%s1 + $0x700] sm:$0xff]
        %v617 = vld [vmem:[%s1 + $0x708] sm:$0xff]
        %v618 = vld [vmem:[%s1 + $0x710] sm:$0xff]
        %v619 = vld [vmem:[%s1 + $0x718] sm:$0xff]
        %v620 = vld [vmem:[%s1 + $0x720] sm:$0xff]
        %v621 = vld [vmem:[%s1 + $0x728] sm:$0xff]
        %v622 = vld [vmem:[%s1 + $0x730] sm:$0xff]
        %v623 = vld [vmem:[%s1 + $0x738] sm:$0xff]
        %v624 = vld [vmem:[%s1 + $0x740] sm:$0xff]
        %v625 = vld [vmem:[%s1 + $0x748] sm:$0xff]
        %v626 = vld [vmem:[%s1 + $0x750] sm:$0xff]
        %v627 = vld [vmem:[%s1 + $0x758] sm:$0xff]
        %v628 = vld [vmem:[%s1 + $0x760] sm:$0xff]
        %v629 = vld [vmem:[%s1 + $0x768] sm:$0xff]
        %v630 = vld [vmem:[%s1 + $0x770] sm:$0xff]
        %v631 = vld [vmem:[%s1 + $0x778] sm:$0xff]
        %v632 = vld [vmem:[%s1 + $0x780] sm:$0xff]
        %v633 = vld [vmem:[%s1 + $0x788] sm:$0xff]
        %v634 = vld [vmem:[%s1 + $0x790] sm:$0xff]
        %v635 = vld [vmem:[%s1 + $0x798] sm:$0xff]
        %v636 = vld [vmem:[%s1 + $0x7a0] sm:$0xff]
        %v637 = vld [vmem:[%s1 + $0x7a8] sm:$0xff]
        %v638 = vld [vmem:[%s1 + $0x7b0] sm:$0xff]
        %v639 = vld [vmem:[%s1 + $0x7b8] sm:$0xff]
        %v640 = vld [vmem:[%s1 + $0x7c0] sm:$0xff]
        %v641 = vld [vmem:[%s1 + $0x7c8] sm:$0xff]
        %v642 = vld [vmem:[%s1 + $0x7d0] sm:$0xff]
        %v643 = vld [vmem:[%s1 + $0x7d8] sm:$0xff]
        %v644 = vld [vmem:[%s1 + $0x7e0] sm:$0xff]
        %v645 = vld [vmem:[%s1 + $0x7e8] sm:$0xff]
        %v646 = vld [vmem:[%s1 + $0x7f0] sm:$0xff]
        %v647 = vld [vmem:[%s1 + $0x7f8] sm:$0xff]
        %v648 = vld [vmem:[%s1 + $0x800] sm:$0xff]
        %v649 = vld [vmem:[%s1 + $0x808] sm:$0xff]
        %v650 = vld [vmem:[%s1 + $0x810] sm:$0xff]
        %v651 = vld [vmem:[%s1 + $0x818] sm:$0xff]
        %v652 = vld [vmem:[%s1 + $0x820] sm:$0xff]
        %v653 = vld [vmem:[%s1 + $0x828] sm:$0xff]
        %v654 = vld [vmem:[%s1 + $0x830] sm:$0xff]
        %v655 = vld [vmem:[%s1 + $0x838] sm:$0xff]
        %v656 = vld [vmem:[%s1 + $0x840] sm:$0xff]
        %v657 = vld [vmem:[%s1 + $0x848] sm:$0xff]
        %v658 = vld [vmem:[%s1 + $0x850] sm:$0xff]
        %v659 = vld [vmem:[%s1 + $0x858] sm:$0xff]
        %v660 = vld [vmem:[%s1 + $0x860] sm:$0xff]
        %v661 = vld [vmem:[%s1 + $0x868] sm:$0xff]
        %v662 = vld [vmem:[%s1 + $0x870] sm:$0xff]
        %v663 = vld [vmem:[%s1 + $0x878] sm:$0xff]
        %v664 = vld [vmem:[%s1 + $0x880] sm:$0xff]
        %v665 = vld [vmem:[%s1 + $0x888] sm:$0xff]
        %v666 = vld [vmem:[%s1 + $0x890] sm:$0xff]
        %v667 = vld [vmem:[%s1 + $0x898] sm:$0xff]
        %v668 = vld [vmem:[%s1 + $0x8a0] sm:$0xff]
        %v669 = vld [vmem:[%s1 + $0x8a8] sm:$0xff]
        %v670 = vld [vmem:[%s1 + $0x8b0] sm:$0xff]
        %v671 = vld [vmem:[%s1 + $0x8b8] sm:$0xff]
        %v672 = vld [vmem:[%s1 + $0x8c0] sm:$0xff]
        %v673 = vld [vmem:[%s1 + $0x8c8] sm:$0xff]
        %v674 = vld [vmem:[%s1 + $0x8d0] sm:$0xff]
        %v675 = vld [vmem:[%s1 + $0x8d8] sm:$0xff]
        %v676 = vld [vmem:[%s1 + $0x8e0] sm:$0xff]
        %v677 = vld [vmem:[%s1 + $0x8e8] sm:$0xff]
        %v678 = vld [vmem:[%s1 + $0x8f0] sm:$0xff]
        %v679 = vld [vmem:[%s1 + $0x8f8] sm:$0xff]
        %v680 = vld [vmem:[%s1 + $0x900] sm:$0xff]
        %v681 = vld [vmem:[%s1 + $0x908] sm:$0xff]
        %v682 = vld [vmem:[%s1 + $0x910] sm:$0xff]
        %v683 = vld [vmem:[%s1 + $0x918] sm:$0xff]
        %v684 = vld [vmem:[%s1 + $0x920] sm:$0xff]
        %v685 = vld [vmem:[%s1 + $0x928] sm:$0xff]
        %v686 = vld [vmem:[%s1 + $0x930] sm:$0xff]
        %v687 = vld [vmem:[%s1 + $0x938] sm:$0xff]
        %v688 = vld [vmem:[%s1 + $0x940] sm:$0xff]
        %v689 = vld [vmem:[%s1 + $0x948] sm:$0xff]
        %v690 = vld [vmem:[%s1 + $0x950] sm:$0xff]
        %v691 = vld [vmem:[%s1 + $0x958] sm:$0xff]
        %v692 = vld [vmem:[%s1 + $0x960] sm:$0xff]
        %v693 = vld [vmem:[%s1 + $0x968] sm:$0xff]
        %v694 = vld [vmem:[%s1 + $0x970] sm:$0xff]
        %v695 = vld [vmem:[%s1 + $0x978] sm:$0xff]
        %v696 = vld [vmem:[%s1 + $0x980] sm:$0xff]
        %v697 = vld [vmem:[%s1 + $0x988] sm:$0xff]
        %v698 = vld [vmem:[%s1 + $0x990] sm:$0xff]
        %v699 = vld [vmem:[%s1 + $0x998] sm:$0xff]
        %v700 = vld [vmem:[%s1 + $0x9a0] sm:$0xff]
        %v701 = vld [vmem:[%s1 + $0x9a8] sm:$0xff]
        %v702 = vld [vmem:[%s1 + $0x9b0] sm:$0xff]
        %v703 = vld [vmem:[%s1 + $0x9b8] sm:$0xff]
        %v704 = vld [vmem:[%s1 + $0x9c0] sm:$0xff]
        %v705 = vld [vmem:[%s1 + $0x9c8] sm:$0xff]
        %v706 = vld [vmem:[%s1 + $0x9d0] sm:$0xff]
        %v707 = vld [vmem:[%s1 + $0x9d8] sm:$0xff]
        %v708 = vld [vmem:[%s1 + $0x9e0] sm:$0xff]
        %v709 = vld [vmem:[%s1 + $0x9e8] sm:$0xff]
        %v710 = vld [vmem:[%s1 + $0x9f0] sm:$0xff]
        %v711 = vld [vmem:[%s1 + $0x9f8] sm:$0xff]
        %v712 = vld [vmem:[%s1 + $0xa00] sm:$0xff]
        %v713 = vld [vmem:[%s1 + $0xa08] sm:$0xff]
        %v714 = vld [vmem:[%s1 + $0xa10] sm:$0xff]
        %v715 = vld [vmem:[%s1 + $0xa18] sm:$0xff]
        %v716 = vld [vmem:[%s1 + $0xa20] sm:$0xff]
        %v717 = vld [vmem:[%s1 + $0xa28] sm:$0xff]
        %v718 = vld [vmem:[%s1 + $0xa30] sm:$0xff]
        %v719 = vld [vmem:[%s1 + $0xa38] sm:$0xff]
        %v720 = vld [vmem:[%s1 + $0xa40] sm:$0xff]
        %v721 = vld [vmem:[%s1 + $0xa48] sm:$0xff]
        %v722 = vld [vmem:[%s1 + $0xa50] sm:$0xff]
        %v723 = vld [vmem:[%s1 + $0xa58] sm:$0xff]
        %v724 = vld [vmem:[%s1 + $0xa60] sm:$0xff]
        %v725 = vld [vmem:[%s1 + $0xa68] sm:$0xff]
        %v726 = vld [vmem:[%s1 + $0xa70] sm:$0xff]
        %v727 = vld [vmem:[%s1 + $0xa78] sm:$0xff]
        %v728 = vld [vmem:[%s1 + $0xa80] sm:$0xff]
        %v729 = vld [vmem:[%s1 + $0xa88] sm:$0xff]
        %v730 = vld [vmem:[%s1 + $0xa90] sm:$0xff]
        %v731 = vld [vmem:[%s1 + $0xa98] sm:$0xff]
        %v732 = vld [vmem:[%s1 + $0xaa0] sm:$0xff]
        %v733 = vld [vmem:[%s1 + $0xaa8] sm:$0xff]
        %v734 = vld [vmem:[%s1 + $0xab0] sm:$0xff]
        %v735 = vld [vmem:[%s1 + $0xab8] sm:$0xff]
        %v736 = vld [vmem:[%s1 + $0xac0] sm:$0xff]
        %v737 = vld [vmem:[%s1 + $0xac8] sm:$0xff]
        %v738 = vld [vmem:[%s1 + $0xad0] sm:$0xff]
        %v739 = vld [vmem:[%s1 + $0xad8] sm:$0xff]
        %v740 = vld [vmem:[%s1 + $0xae0] sm:$0xff]
        %v741 = vld [vmem:[%s1 + $0xae8] sm:$0xff]
        %v742 = vld [vmem:[%s1 + $0xaf0] sm:$0xff]
        %v743 = vld [vmem:[%s1 + $0xaf8] sm:$0xff]
        %v744 = vld [vmem:[%s1 + $0xb00] sm:$0xff]
        %v745 = vld [vmem:[%s1 + $0xb08] sm:$0xff]
        %v746 = vld [vmem:[%s1 + $0xb10] sm:$0xff]
        %v747 = vld [vmem:[%s1 + $0xb18] sm:$0xff]
        %v748 = vld [vmem:[%s1 + $0xb20] sm:$0xff]
        %v749 = vld [vmem:[%s1 + $0xb28] sm:$0xff]
        %v750 = vld [vmem:[%s1 + $0xb30] sm:$0xff]
        %v751 = vld [vmem:[%s1 + $0xb38] sm:$0xff]
        %v752 = vld [vmem:[%s1 + $0xb40] sm:$0xff]
        %v753 = vld [vmem:[%s1 + $0xb48] sm:$0xff]
        %v754 = vld [vmem:[%s1 + $0xb50] sm:$0xff]
        %v755 = vld [vmem:[%s1 + $0xb58] sm:$0xff]
        %v756 = vld [vmem:[%s1 + $0xb60] sm:$0xff]
        %v757 = vld [vmem:[%s1 + $0xb68] sm:$0xff]
        %v758 = vld [vmem:[%s1 + $0xb70] sm:$0xff]
        %v759 = vld [vmem:[%s1 + $0xb78] sm:$0xff]
        %v760 = vld [vmem:[%s1 + $0xb80] sm:$0xff]
        %v761 = vld [vmem:[%s1 + $0xb88] sm:$0xff]
        %v762 = vld [vmem:[%s1 + $0xb90] sm:$0xff]
        %v763 = vld [vmem:[%s1 + $0xb98] sm:$0xff]
        %v764 = vld [vmem:[%s1 + $0xba0] sm:$0xff]
        %v765 = vld [vmem:[%s1 + $0xba8] sm:$0xff]
        %v766 = vld [vmem:[%s1 + $0xbb0] sm:$0xff]
        %v767 = vld [vmem:[%s1 + $0xbb8] sm:$0xff]
        %v768 = vld [vmem:[%s1 + $0xbc0] sm:$0xff]
        %v769 = vld [vmem:[%s1 + $0xbc8] sm:$0xff]
        %v770 = vld [vmem:[%s1 + $0xbd0] sm:$0xff]
        %v771 = vld [vmem:[%s1 + $0xbd8] sm:$0xff]
        %v772 = vld [vmem:[%s1 + $0xbe0] sm:$0xff]
        %v773 = vld [vmem:[%s1 + $0xbe8] sm:$0xff]
        %v774 = vld [vmem:[%s1 + $0xbf0] sm:$0xff]
        %v775 = vld [vmem:[%s1 + $0xbf8] sm:$0xff]
        %v776 = vld [vmem:[%s1 + $0xc00] sm:$0xff]
        %v777 = vld [vmem:[%s1 + $0xc08] sm:$0xff]
        %v778 = vld [vmem:[%s1 + $0xc10] sm:$0xff]
        %v779 = vld [vmem:[%s1 + $0xc18] sm:$0xff]
        %v780 = vld [vmem:[%s1 + $0xc20] sm:$0xff]
        %v781 = vld [vmem:[%s1 + $0xc28] sm:$0xff]
        %v782 = vld [vmem:[%s1 + $0xc30] sm:$0xff]
        %v783 = vld [vmem:[%s1 + $0xc38] sm:$0xff]
        %v784 = vld [vmem:[%s1 + $0xc40] sm:$0xff]
        %v785 = vld [vmem:[%s1 + $0xc48] sm:$0xff]
        %v786 = vld [vmem:[%s1 + $0xc50] sm:$0xff]
        %v787 = vld [vmem:[%s1 + $0xc58] sm:$0xff]
        %v788 = vld [vmem:[%s1 + $0xc60] sm:$0xff]
        %v789 = vld [vmem:[%s1 + $0xc68] sm:$0xff]
        %v790 = vld [vmem:[%s1 + $0xc70] sm:$0xff]
        %v791 = vld [vmem:[%s1 + $0xc78] sm:$0xff]
        %v792 = vld [vmem:[%s1 + $0xc80] sm:$0xff]
        %v793 = vld [vmem:[%s1 + $0xc88] sm:$0xff]
        %v794 = vld [vmem:[%s1 + $0xc90] sm:$0xff]
        %v795 = vld [vmem:[%s1 + $0xc98] sm:$0xff]
        %v796 = vld [vmem:[%s1 + $0xca0] sm:$0xff]
        %v797 = vld [vmem:[%s1 + $0xca8] sm:$0xff]
        %v798 = vld [vmem:[%s1 + $0xcb0] sm:$0xff]
        %v799 = vld [vmem:[%s1 + $0xcb8] sm:$0xff]
        %v800 = vld [vmem:[%s1 + $0xcc0] sm:$0xff]
        %v801 = vld [vmem:[%s1 + $0xcc8] sm:$0xff]
        %v802 = vld [vmem:[%s1 + $0xcd0] sm:$0xff]
        %v803 = vld [vmem:[%s1 + $0xcd8] sm:$0xff]
        %v804 = vld [vmem:[%s1 + $0xce0] sm:$0xff]
        %v805 = vld [vmem:[%s1 + $0xce8] sm:$0xff]
        %v806 = vld [vmem:[%s1 + $0xcf0] sm:$0xff]
        %v807 = vld [vmem:[%s1 + $0xcf8] sm:$0xff]
        %v808 = vld [vmem:[%s1 + $0xd00] sm:$0xff]
        %v809 = vld [vmem:[%s1 + $0xd08] sm:$0xff]
        %v810 = vld [vmem:[%s1 + $0xd10] sm:$0xff]
        %v811 = vld [vmem:[%s1 + $0xd18] sm:$0xff]
        %v812 = vld [vmem:[%s1 + $0xd20] sm:$0xff]
        %v813 = vld [vmem:[%s1 + $0xd28] sm:$0xff]
        %v814 = vld [vmem:[%s1 + $0xd30] sm:$0xff]
        %v815 = vld [vmem:[%s1 + $0xd38] sm:$0xff]
        %v816 = vld [vmem:[%s1 + $0xd40] sm:$0xff]
        %v817 = vld [vmem:[%s1 + $0xd48] sm:$0xff]
        %v818 = vld [vmem:[%s1 + $0xd50] sm:$0xff]
        %v819 = vld [vmem:[%s1 + $0xd58] sm:$0xff]
        %v820 = vld [vmem:[%s1 + $0xd60] sm:$0xff]
        %v821 = vld [vmem:[%s1 + $0xd68] sm:$0xff]
        %v822 = vld [vmem:[%s1 + $0xd70] sm:$0xff]
        %v823 = vld [vmem:[%s1 + $0xd78] sm:$0xff]
        %v824 = vld [vmem:[%s1 + $0xd80] sm:$0xff]
        %v825 = vld [vmem:[%s1 + $0xd88] sm:$0xff]
        %v826 = vld [vmem:[%s1 + $0xd90] sm:$0xff]
        %v827 = vld [vmem:[%s1 + $0xd98] sm:$0xff]
        %v828 = vld [vmem:[%s1 + $0xda0] sm:$0xff]
        %v829 = vld [vmem:[%s1 + $0xda8] sm:$0xff]
        %v830 = vld [vmem:[%s1 + $0xdb0] sm:$0xff]
        %v831 = vld [vmem:[%s1 + $0xdb8] sm:$0xff]
        %v832 = vld [vmem:[%s1 + $0xdc0] sm:$0xff]
        %v833 = vld [vmem:[%s1 + $0xdc8] sm:$0xff]
        %v834 = vld [vmem:[%s1 + $0xdd0] sm:$0xff]
        %v835 = vld [vmem:[%s1 + $0xdd8] sm:$0xff]
        %v836 = vld [vmem:[%s1 + $0xde0] sm:$0xff]
        %v837 = vld [vmem:[%s1 + $0xde8] sm:$0xff]
        %v838 = vld [vmem:[%s1 + $0xdf0] sm:$0xff]
        %v839 = vld [vmem:[%s1 + $0xdf8] sm:$0xff]
        %v840 = vld [vmem:[%s1 + $0xe00] sm:$0xff]
        %v841 = vld [vmem:[%s1 + $0xe08] sm:$0xff]
        %v842 = vld [vmem:[%s1 + $0xe10] sm:$0xff]
        %v843 = vld [vmem:[%s1 + $0xe18] sm:$0xff]
        %v844 = vld [vmem:[%s1 + $0xe20] sm:$0xff]
        %v845 = vld [vmem:[%s1 + $0xe28] sm:$0xff]
        %v846 = vld [vmem:[%s1 + $0xe30] sm:$0xff]
        %v847 = vld [vmem:[%s1 + $0xe38] sm:$0xff]
        %v848 = vld [vmem:[%s1 + $0xe40] sm:$0xff]
        %v849 = vld [vmem:[%s1 + $0xe48] sm:$0xff]
        %v850 = vld [vmem:[%s1 + $0xe50] sm:$0xff]
        %v851 = vld [vmem:[%s1 + $0xe58] sm:$0xff]
        %v852 = vld [vmem:[%s1 + $0xe60] sm:$0xff]
        %v853 = vld [vmem:[%s1 + $0xe68] sm:$0xff]
        %v854 = vld [vmem:[%s1 + $0xe70] sm:$0xff]
        %v855 = vld [vmem:[%s1 + $0xe78] sm:$0xff]
        %v856 = vld [vmem:[%s1 + $0xe80] sm:$0xff]
        %v857 = vld [vmem:[%s1 + $0xe88] sm:$0xff]
        %v858 = vld [vmem:[%s1 + $0xe90] sm:$0xff]
        %v859 = vld [vmem:[%s1 + $0xe98] sm:$0xff]
        %v860 = vld [vmem:[%s1 + $0xea0] sm:$0xff]
        %v861 = vld [vmem:[%s1 + $0xea8] sm:$0xff]
        %v862 = vld [vmem:[%s1 + $0xeb0] sm:$0xff]
        %v863 = vld [vmem:[%s1 + $0xeb8] sm:$0xff]
        %v864 = vld [vmem:[%s1 + $0xec0] sm:$0xff]
        %v865 = vld [vmem:[%s1 + $0xec8] sm:$0xff]
        %v866 = vld [vmem:[%s1 + $0xed0] sm:$0xff]
        %v867 = vld [vmem:[%s1 + $0xed8] sm:$0xff]
        %v868 = vld [vmem:[%s1 + $0xee0] sm:$0xff]
        %v869 = vld [vmem:[%s1 + $0xee8] sm:$0xff]
        %v870 = vld [vmem:[%s1 + $0xef0] sm:$0xff]
        %v871 = vld [vmem:[%s1 + $0xef8] sm:$0xff]
        %v872 = vld [vmem:[%s1 + $0xf00] sm:$0xff]
        %v873 = vld [vmem:[%s1 + $0xf08] sm:$0xff]
        %v874 = vld [vmem:[%s1 + $0xf10] sm:$0xff]
        %v875 = vld [vmem:[%s1 + $0xf18] sm:$0xff]
        %v876 = vld [vmem:[%s1 + $0xf20] sm:$0xff]
        %v877 = vld [vmem:[%s1 + $0xf28] sm:$0xff]
        %v878 = vld [vmem:[%s1 + $0xf30] sm:$0xff]
        %v879 = vld [vmem:[%s1 + $0xf38] sm:$0xff]
        %v880 = vld [vmem:[%s1 + $0xf40] sm:$0xff]
        %v881 = vld [vmem:[%s1 + $0xf48] sm:$0xff]
        %v882 = vld [vmem:[%s1 + $0xf50] sm:$0xff]
        %v883 = vld [vmem:[%s1 + $0xf58] sm:$0xff]
        %v884 = vld [vmem:[%s1 + $0xf60] sm:$0xff]
        %v885 = vld [vmem:[%s1 + $0xf68] sm:$0xff]
        %v886 = vld [vmem:[%s1 + $0xf70] sm:$0xff]
        %v887 = vld [vmem:[%s1 + $0xf78] sm:$0xff]
        %v888 = vld [vmem:[%s1 + $0xf80] sm:$0xff]
        %v889 = vld [vmem:[%s1 + $0xf88] sm:$0xff]
        %v890 = vld [vmem:[%s1 + $0xf90] sm:$0xff]
        %v891 = vld [vmem:[%s1 + $0xf98] sm:$0xff]
        %v892 = vld [vmem:[%s1 + $0xfa0] sm:$0xff]
        %v893 = vld [vmem:[%s1 + $0xfa8] sm:$0xff]
        %v894 = vld [vmem:[%s1 + $0xfb0] sm:$0xff]
        %v895 = vld [vmem:[%s1 + $0xfb8] sm:$0xff]
        %v896 = vld [vmem:[%s1 + $0xfc0] sm:$0xff]
        %v897 = vld [vmem:[%s1 + $0xfc8] sm:$0xff]
        %v898 = vld [vmem:[%s1 + $0xfd0] sm:$0xff]
        %v899 = vld [vmem:[%s1 + $0xfd8] sm:$0xff]
        %v900 = vld [vmem:[%s1 + $0xfe0] sm:$0xff]
        %v901 = vld [vmem:[%s1 + $0xfe8] sm:$0xff]
        %v902 = vld [vmem:[%s1 + $0xff0] sm:$0xff]
        %v903 = vld [vmem:[%s1 + $0xff8] sm:$0xff]
        %v904 = vld [vmem:[%s1 + $0x1000] sm:$0xff]
        %v905 = vld [vmem:[%s1 + $0x1008] sm:$0xff]
        %v906 = vld [vmem:[%s1 + $0x1010] sm:$0xff]
        %v907 = vld [vmem:[%s1 + $0x1018] sm:$0xff]
        %v908 = vld [vmem:[%s1 + $0x1020] sm:$0xff]
        %v909 = vld [vmem:[%s1 + $0x1028] sm:$0xff]
        %v910 = vld [vmem:[%s1 + $0x1030] sm:$0xff]
        %v911 = vld [vmem:[%s1 + $0x1038] sm:$0xff]
        %v912 = vld [vmem:[%s1 + $0x1040] sm:$0xff]
        %v913 = vld [vmem:[%s1 + $0x1048] sm:$0xff]
        %v914 = vld [vmem:[%s1 + $0x1050] sm:$0xff]
        %v915 = vld [vmem:[%s1 + $0x1058] sm:$0xff]
        %v916 = vld [vmem:[%s1 + $0x1060] sm:$0xff]
        %v917 = vld [vmem:[%s1 + $0x1068] sm:$0xff]
        %v918 = vld [vmem:[%s1 + $0x1070] sm:$0xff]
        %v919 = vld [vmem:[%s1 + $0x1078] sm:$0xff]
        %v920 = vld [vmem:[%s1 + $0x1080] sm:$0xff]
        %v921 = vld [vmem:[%s1 + $0x1088] sm:$0xff]
        %v922 = vld [vmem:[%s1 + $0x1090] sm:$0xff]
        %v923 = vld [vmem:[%s1 + $0x1098] sm:$0xff]
        %v924 = vld [vmem:[%s1 + $0x10a0] sm:$0xff]
        %v925 = vld [vmem:[%s1 + $0x10a8] sm:$0xff]
        %v926 = vld [vmem:[%s1 + $0x10b0] sm:$0xff]
        %v927 = vld [vmem:[%s1 + $0x10b8] sm:$0xff]
        %v928 = vld [vmem:[%s1 + $0x10c0] sm:$0xff]
        %v929 = vld [vmem:[%s1 + $0x10c8] sm:$0xff]
        %v930 = vld [vmem:[%s1 + $0x10d0] sm:$0xff]
        %v931 = vld [vmem:[%s1 + $0x10d8] sm:$0xff]
        %v932 = vld [vmem:[%s1 + $0x10e0] sm:$0xff]
        %v933 = vld [vmem:[%s1 + $0x10e8] sm:$0xff]
        %v934 = vld [vmem:[%s1 + $0x10f0] sm:$0xff]
        %v935 = vld [vmem:[%s1 + $0x10f8] sm:$0xff]
        %v936 = vld [vmem:[%s1 + $0x1100] sm:$0xff]
        %v937 = vld [vmem:[%s1 + $0x1108] sm:$0xff]
        %v938 = vld [vmem:[%s1 + $0x1110] sm:$0xff]
        %v939 = vld [vmem:[%s1 + $0x1118] sm:$0xff]
        %v940 = vld [vmem:[%s1 + $0x1120] sm:$0xff]
        %v941 = vld [vmem:[%s1 + $0x1128] sm:$0xff]
        %v942 = vld [vmem:[%s1 + $0x1130] sm:$0xff]
        %v943 = vld [vmem:[%s1 + $0x1138] sm:$0xff]
        %v944 = vld [vmem:[%s1 + $0x1140] sm:$0xff]
        %v945 = vld [vmem:[%s1 + $0x1148] sm:$0xff]
        %v946 = vld [vmem:[%s1 + $0x1150] sm:$0xff]
        %v947 = vld [vmem:[%s1 + $0x1158] sm:$0xff]
        %v948 = vld [vmem:[%s1 + $0x1160] sm:$0xff]
        %v949 = vld [vmem:[%s1 + $0x1168] sm:$0xff]
        %v950 = vld [vmem:[%s1 + $0x1170] sm:$0xff]
        %v951 = vld [vmem:[%s1 + $0x1178] sm:$0xff]
        %v952 = vld [vmem:[%s1 + $0x1180] sm:$0xff]
        %v953 = vld [vmem:[%s1 + $0x1188] sm:$0xff]
        %v954 = vld [vmem:[%s1 + $0x1190] sm:$0xff]
        %v955 = vld [vmem:[%s1 + $0x1198] sm:$0xff]
        %v956 = vld [vmem:[%s1 + $0x11a0] sm:$0xff]
        %v957 = vld [vmem:[%s1 + $0x11a8] sm:$0xff]
        %v958 = vld [vmem:[%s1 + $0x11b0] sm:$0xff]
        %v959 = vld [vmem:[%s1 + $0x11b8] sm:$0xff]
        %v960 = vld [vmem:[%s1 + $0x11c0] sm:$0xff]
        %v961 = vld [vmem:[%s1 + $0x11c8] sm:$0xff]
        %v962 = vld [vmem:[%s1 + $0x11d0] sm:$0xff]
        %v963 = vld [vmem:[%s1 + $0x11d8] sm:$0xff]
        %v964 = vld [vmem:[%s1 + $0x11e0] sm:$0xff]
        %v965 = vld [vmem:[%s1 + $0x11e8] sm:$0xff]
        %v966 = vld [vmem:[%s1 + $0x11f0] sm:$0xff]
        %v967 = vld [vmem:[%s1 + $0x11f8] sm:$0xff]
        %v968 = vld [vmem:[%s1 + $0x1200] sm:$0xff]
        %v969 = vld [vmem:[%s1 + $0x1208] sm:$0xff]
        %v970 = vld [vmem:[%s1 + $0x1210] sm:$0xff]
        %v971 = vld [vmem:[%s1 + $0x1218] sm:$0xff]
        %v972 = vld [vmem:[%s1 + $0x1220] sm:$0xff]
        %v973 = vld [vmem:[%s1 + $0x1228] sm:$0xff]
        %v974 = vld [vmem:[%s1 + $0x1230] sm:$0xff]
        %v975 = vld [vmem:[%s1 + $0x1238] sm:$0xff]
        %v976 = vld [vmem:[%s1 + $0x1240] sm:$0xff]
        %v977 = vld [vmem:[%s1 + $0x1248] sm:$0xff]
        %v978 = vld [vmem:[%s1 + $0x1250] sm:$0xff]
        %v979 = vld [vmem:[%s1 + $0x1258] sm:$0xff]
        %v980 = vld [vmem:[%s1 + $0x1260] sm:$0xff]
        %v981 = vld [vmem:[%s1 + $0x1268] sm:$0xff]
        %v982 = vld [vmem:[%s1 + $0x1270] sm:$0xff]
        %v983 = vld [vmem:[%s1 + $0x1278] sm:$0xff]
        %v984 = vld [vmem:[%s1 + $0x1280] sm:$0xff]
        %v985 = vld [vmem:[%s1 + $0x1288] sm:$0xff]
        %v986 = vld [vmem:[%s1 + $0x1290] sm:$0xff]
        %v987 = vld [vmem:[%s1 + $0x1298] sm:$0xff]
        %v988 = vld [vmem:[%s1 + $0x12a0] sm:$0xff]
        %v989 = vld [vmem:[%s1 + $0x12a8] sm:$0xff]
        %v990 = vld [vmem:[%s1 + $0x12b0] sm:$0xff]
        %v991 = vld [vmem:[%s1 + $0x12b8] sm:$0xff]
        %v992 = vld [vmem:[%s1 + $0x12c0] sm:$0xff]
        %v993 = vld [vmem:[%s1 + $0x12c8] sm:$0xff]
        %v994 = vld [vmem:[%s1 + $0x12d0] sm:$0xff]
        %v995 = vld [vmem:[%s1 + $0x12d8] sm:$0xff]
        %v996 = vld [vmem:[%s1 + $0x12e0] sm:$0xff]
        %v997 = vld [vmem:[%s1 + $0x12e8] sm:$0xff]
        %v998 = vld [vmem:[%s1 + $0x12f0] sm:$0xff]
        %v999 = vld [vmem:[%s1 + $0x12f8] sm:$0xff]
        %v1000 = vld [vmem:[%s1 + $0x1300] sm:$0xff]
        %v1001 = vld [vmem:[%s1 + $0x1308] sm:$0xff]
        %v1002 = vld [vmem:[%s1 + $0x1310] sm:$0xff]
        %v1003 = vld [vmem:[%s1 + $0x1318] sm:$0xff]
        %v1004 = vld [vmem:[%s1 + $0x1320] sm:$0xff]
        %v1005 = vld [vmem:[%s1 + $0x1328] sm:$0xff]
        %v1006 = vld [vmem:[%s1 + $0x1330] sm:$0xff]
        %v1007 = vld [vmem:[%s1 + $0x1338] sm:$0xff]
        %v1008 = vld [vmem:[%s1 + $0x1340] sm:$0xff]
        %v1009 = vld [vmem:[%s1 + $0x1348] sm:$0xff]
        %v1010 = vld [vmem:[%s1 + $0x1350] sm:$0xff]
        %v1011 = vld [vmem:[%s1 + $0x1358] sm:$0xff]
        %v1012 = vld [vmem:[%s1 + $0x1360] sm:$0xff]
        %v1013 = vld [vmem:[%s1 + $0x1368] sm:$0xff]
        %v1014 = vld [vmem:[%s1 + $0x1370] sm:$0xff]
        %v1015 = vld [vmem:[%s1 + $0x1378] sm:$0xff]
        %v1016 = vld [vmem:[%s1 + $0x1380] sm:$0xff]
        %v1017 = vld [vmem:[%s1 + $0x1388] sm:$0xff]
        %v1018 = vld [vmem:[%s1 + $0x1390] sm:$0xff]
        %v1019 = vld [vmem:[%s1 + $0x1398] sm:$0xff]
        %v1020 = vld [vmem:[%s1 + $0x13a0] sm:$0xff]
        %v1021 = vld [vmem:[%s1 + $0x13a8] sm:$0xff]
        %v1022 = vld [vmem:[%s1 + $0x13b0] sm:$0xff]
        %v1023 = vld [vmem:[%s1 + $0x13b8] sm:$0xff]
        %v1024 = vld [vmem:[%s1 + $0x13c0] sm:$0xff]
        %v1025 = vld [vmem:[%s1 + $0x13c8] sm:$0xff]
        %v1026 = vld [vmem:[%s1 + $0x13d0] sm:$0xff]
        %v1027 = vld [vmem:[%s1 + $0x13d8] sm:$0xff]
        %v1028 = vld [vmem:[%s1 + $0x13e0] sm:$0xff]
        %v1029 = vld [vmem:[%s1 + $0x13e8] sm:$0xff]
        %v1030 = vld [vmem:[%s1 + $0x13f0] sm:$0xff]
        %v1031 = vld [vmem:[%s1 + $0x13f8] sm:$0xff]
        %v1032 = vld [vmem:[%s1 + $0x1400] sm:$0xff]
        %v1033 = vld [vmem:[%s1 + $0x1408] sm:$0xff]
        %v1034 = vld [vmem:[%s1 + $0x1410] sm:$0xff]
        %v1035 = vld [vmem:[%s1 + $0x1418] sm:$0xff]
        %v1036 = vld [vmem:[%s1 + $0x1420] sm:$0xff]
        %v1037 = vld [vmem:[%s1 + $0x1428] sm:$0xff]
        %v1038 = vld [vmem:[%s1 + $0x1430] sm:$0xff]
        %v1039 = vld [vmem:[%s1 + $0x1438] sm:$0xff]
        %v1040 = vld [vmem:[%s1 + $0x1440] sm:$0xff]
        %v1041 = vld [vmem:[%s1 + $0x1448] sm:$0xff]
        %v1042 = vld [vmem:[%s1 + $0x1450] sm:$0xff]
        %v1043 = vld [vmem:[%s1 + $0x1458] sm:$0xff]
        %v1044 = vld [vmem:[%s1 + $0x1460] sm:$0xff]
        %v1045 = vld [vmem:[%s1 + $0x1468] sm:$0xff]
        %v1046 = vld [vmem:[%s1 + $0x1470] sm:$0xff]
        %v1047 = vld [vmem:[%s1 + $0x1478] sm:$0xff]
        %v1048 = vld [vmem:[%s1 + $0x1480] sm:$0xff]
        %v1049 = vld [vmem:[%s1 + $0x1488] sm:$0xff]
        %v1050 = vld [vmem:[%s1 + $0x1490] sm:$0xff]
        %v1051 = vld [vmem:[%s1 + $0x1498] sm:$0xff]
        %v1052 = vld [vmem:[%s1 + $0x14a0] sm:$0xff]
        %v1053 = vld [vmem:[%s1 + $0x14a8] sm:$0xff]
        %v1054 = vld [vmem:[%s1 + $0x14b0] sm:$0xff]
        %v1055 = vld [vmem:[%s1 + $0x14b8] sm:$0xff]
        %v1056 = vld [vmem:[%s1 + $0x14c0] sm:$0xff]
        %v1057 = vld [vmem:[%s1 + $0x14c8] sm:$0xff]
        %v1058 = vld [vmem:[%s1 + $0x14d0] sm:$0xff]
        %v1059 = vld [vmem:[%s1 + $0x14d8] sm:$0xff]
        %v1060 = vld [vmem:[%s1 + $0x14e0] sm:$0xff]
        %v1061 = vld [vmem:[%s1 + $0x14e8] sm:$0xff]
        %v1062 = vld [vmem:[%s1 + $0x14f0] sm:$0xff]
        %v1063 = vld [vmem:[%s1 + $0x14f8] sm:$0xff]
        %v1064 = vld [vmem:[%s1 + $0x1500] sm:$0xff]
        %v1065 = vld [vmem:[%s1 + $0x1508] sm:$0xff]
        %v1066 = vld [vmem:[%s1 + $0x1510] sm:$0xff]
        %v1067 = vld [vmem:[%s1 + $0x1518] sm:$0xff]
        %v1068 = vld [vmem:[%s1 + $0x1520] sm:$0xff]
        %v1069 = vld [vmem:[%s1 + $0x1528] sm:$0xff]
        %v1070 = vld [vmem:[%s1 + $0x1530] sm:$0xff]
        %v1071 = vld [vmem:[%s1 + $0x1538] sm:$0xff]
        %v1072 = vld [vmem:[%s1 + $0x1540] sm:$0xff]
        %v1073 = vld [vmem:[%s1 + $0x1548] sm:$0xff]
        %v1074 = vld [vmem:[%s1 + $0x1550] sm:$0xff]
        %v1075 = vld [vmem:[%s1 + $0x1558] sm:$0xff]
        %v1076 = vld [vmem:[%s1 + $0x1560] sm:$0xff]
        %v1077 = vld [vmem:[%s1 + $0x1568] sm:$0xff]
        %v1078 = vld [vmem:[%s1 + $0x1570] sm:$0xff]
        %v1079 = vld [vmem:[%s1 + $0x1578] sm:$0xff]
        %v1080 = vld [vmem:[%s1 + $0x1580] sm:$0xff]
        %v1081 = vld [vmem:[%s1 + $0x1588] sm:$0xff]
        %v1082 = vld [vmem:[%s1 + $0x1590] sm:$0xff]
        %v1083 = vld [vmem:[%s1 + $0x1598] sm:$0xff]
        %v1084 = vld [vmem:[%s1 + $0x15a0] sm:$0xff]
        %v1085 = vld [vmem:[%s1 + $0x15a8] sm:$0xff]
        %v1086 = vld [vmem:[%s1 + $0x15b0] sm:$0xff]
        %v1087 = vld [vmem:[%s1 + $0x15b8] sm:$0xff]
        %v1088 = vld [vmem:[%s1 + $0x15c0] sm:$0xff]
        %v1089 = vld [vmem:[%s1 + $0x15c8] sm:$0xff]
        %v1090 = vld [vmem:[%s1 + $0x15d0] sm:$0xff]
        %v1091 = vld [vmem:[%s1 + $0x15d8] sm:$0xff]
        %v1092 = vld [vmem:[%s1 + $0x15e0] sm:$0xff]
        %v1093 = vld [vmem:[%s1 + $0x15e8] sm:$0xff]
        %v1094 = vld [vmem:[%s1 + $0x15f0] sm:$0xff]
        %v1095 = vld [vmem:[%s1 + $0x15f8] sm:$0xff]
        %v1096 = vld [vmem:[%s1 + $0x1600] sm:$0xff]
        %v1097 = vld [vmem:[%s1 + $0x1608] sm:$0xff]
        %v1098 = vld [vmem:[%s1 + $0x1610] sm:$0xff]
        %v1099 = vld [vmem:[%s1 + $0x1618] sm:$0xff]
        %v1100 = vld [vmem:[%s1 + $0x1620] sm:$0xff]
        %v1101 = vld [vmem:[%s1 + $0x1628] sm:$0xff]
        %v1102 = vld [vmem:[%s1 + $0x1630] sm:$0xff]
        %v1103 = vld [vmem:[%s1 + $0x1638] sm:$0xff]
        %v1104 = vld [vmem:[%s1 + $0x1640] sm:$0xff]
        %v1105 = vld [vmem:[%s1 + $0x1648] sm:$0xff]
        %v1106 = vld [vmem:[%s1 + $0x1650] sm:$0xff]
        %v1107 = vld [vmem:[%s1 + $0x1658] sm:$0xff]
        %v1108 = vld [vmem:[%s1 + $0x1660] sm:$0xff]
        %v1109 = vld [vmem:[%s1 + $0x1668] sm:$0xff]
        %v1110 = vld [vmem:[%s1 + $0x1670] sm:$0xff]
        %v1111 = vld [vmem:[%s1 + $0x1678] sm:$0xff]
        %v1112 = vld [vmem:[%s1 + $0x1680] sm:$0xff]
        %v1113 = vld [vmem:[%s1 + $0x1688] sm:$0xff]
        %v1114 = vld [vmem:[%s1 + $0x1690] sm:$0xff]
        %v1115 = vld [vmem:[%s1 + $0x1698] sm:$0xff]
        %v1116 = vld [vmem:[%s1 + $0x16a0] sm:$0xff]
        %v1117 = vld [vmem:[%s1 + $0x16a8] sm:$0xff]
        %v1118 = vld [vmem:[%s1 + $0x16b0] sm:$0xff]
        %v1119 = vld [vmem:[%s1 + $0x16b8] sm:$0xff]
        %v1120 = vld [vmem:[%s1 + $0x16c0] sm:$0xff]
        %v1121 = vld [vmem:[%s1 + $0x16c8] sm:$0xff]
        %v1122 = vld [vmem:[%s1 + $0x16d0] sm:$0xff]
        %v1123 = vld [vmem:[%s1 + $0x16d8] sm:$0xff]
        %v1124 = vld [vmem:[%s1 + $0x16e0] sm:$0xff]
        %v1125 = vld [vmem:[%s1 + $0x16e8] sm:$0xff]
        %v1126 = vld [vmem:[%s1 + $0x16f0] sm:$0xff]
        %v1127 = vld [vmem:[%s1 + $0x16f8] sm:$0xff]
        %v1128 = vld [vmem:[%s1 + $0x1700] sm:$0xff]
        %v1129 = vld [vmem:[%s1 + $0x1708] sm:$0xff]
        %v1130 = vld [vmem:[%s1 + $0x1710] sm:$0xff]
        %v1131 = vld [vmem:[%s1 + $0x1718] sm:$0xff]
        %v1132 = vld [vmem:[%s1 + $0x1720] sm:$0xff]
        %v1133 = vld [vmem:[%s1 + $0x1728] sm:$0xff]
        %v1134 = vld [vmem:[%s1 + $0x1730] sm:$0xff]
        %v1135 = vld [vmem:[%s1 + $0x1738] sm:$0xff]
        %v1136 = vld [vmem:[%s1 + $0x1740] sm:$0xff]
        %v1137 = vld [vmem:[%s1 + $0x1748] sm:$0xff]
        %v1138 = vld [vmem:[%s1 + $0x1750] sm:$0xff]
        %v1139 = vld [vmem:[%s1 + $0x1758] sm:$0xff]
        %v1140 = vld [vmem:[%s1 + $0x1760] sm:$0xff]
        %v1141 = vld [vmem:[%s1 + $0x1768] sm:$0xff]
        %v1142 = vld [vmem:[%s1 + $0x1770] sm:$0xff]
        %v1143 = vld [vmem:[%s1 + $0x1778] sm:$0xff]
        %v1144 = vld [vmem:[%s1 + $0x1780] sm:$0xff]
        %v1145 = vld [vmem:[%s1 + $0x1788] sm:$0xff]
        %v1146 = vld [vmem:[%s1 + $0x1790] sm:$0xff]
        %v1147 = vld [vmem:[%s1 + $0x1798] sm:$0xff]
        %v1148 = vld [vmem:[%s1 + $0x17a0] sm:$0xff]
        %v1149 = vld [vmem:[%s1 + $0x17a8] sm:$0xff]
        %v1150 = vld [vmem:[%s1 + $0x17b0] sm:$0xff]
        %v1151 = vld [vmem:[%s1 + $0x17b8] sm:$0xff]
        %v1152 = vld [vmem:[%s1 + $0x17c0] sm:$0xff]
        %v1153 = vld [vmem:[%s1 + $0x17c8] sm:$0xff]
        %v1154 = vld [vmem:[%s1 + $0x17d0] sm:$0xff]
        %v1155 = vld [vmem:[%s1 + $0x17d8] sm:$0xff]
        %v1156 = vld [vmem:[%s1 + $0x17e0] sm:$0xff]
        %v1157 = vld [vmem:[%s1 + $0x17e8] sm:$0xff]
        %v1158 = vld [vmem:[%s1 + $0x17f0] sm:$0xff]
        %v1159 = vld [vmem:[%s1 + $0x17f8] sm:$0xff]
        %v1160 = vld [vmem:[%s2] sm:$0xf]
        %v1164 = vcombine.high %v389, %v389
        %v1166 = vunpack.c.l.s4 1966171168
        %v1167 = vunpack.c.0.s8 %v1166
        %v1168 = vlaneseq
        %v1169 = vshrl.u32 %v1168, 7
        %v1170 = vsub.s32 %v1167, %v1169
        %v1171 = vrot.slane %v389, %v1170
        %v1173 = vunpack.c.l.s4 1966171168
        %v1174 = vunpack.c.0.s8 %v1173
        %v1175 = vlaneseq
        %v1176 = vshrl.u32 %v1175, 7
        %v1177 = vsub.s32 %v1174, %v1176
        %v1178 = vrot.slane %v1164, %v1177
        %v1179 = vcombine.high %v1171, %v1171
        %v1180 = vcombine.high %v1178, %v1178
        %v1182 = vunpack.c.l.s4 1966171168
        %v1183 = vunpack.c.0.s8 %v1182
        %v1184 = vlaneseq
        %v1185 = vshrl.u32 %v1184, 7
        %v1186 = vsub.s32 %v1183, %v1185
        %v1187 = vrot.slane %v1171, %v1186
        %v1189 = vunpack.c.l.s4 1966171168
        %v1190 = vunpack.c.0.s8 %v1189
        %v1191 = vlaneseq
        %v1192 = vshrl.u32 %v1191, 7
        %v1193 = vsub.s32 %v1190, %v1192
        %v1194 = vrot.slane %v1178, %v1193
        %v1196 = vunpack.c.l.s4 1966171168
        %v1197 = vunpack.c.0.s8 %v1196
        %v1198 = vlaneseq
        %v1199 = vshrl.u32 %v1198, 7
        %v1200 = vsub.s32 %v1197, %v1199
        %v1201 = vrot.slane %v1179, %v1200
        %v1203 = vunpack.c.l.s4 1966171168
        %v1204 = vunpack.c.0.s8 %v1203
        %v1205 = vlaneseq
        %v1206 = vshrl.u32 %v1205, 7
        %v1207 = vsub.s32 %v1204, %v1206
        %v1208 = vrot.slane %v1180, %v1207
        %v1209 = vcombine.high %v1187, %v1187
        %v1210 = vcombine.high %v1194, %v1194
        %v1211 = vcombine.high %v1201, %v1201
        %v1212 = vcombine.high %v1208, %v1208
        %v1213 = vcombine.high %v390, %v390
        %v1215 = vunpack.c.l.s4 1966171168
        %v1216 = vunpack.c.0.s8 %v1215
        %v1217 = vlaneseq
        %v1218 = vshrl.u32 %v1217, 7
        %v1219 = vsub.s32 %v1216, %v1218
        %v1220 = vrot.slane %v390, %v1219
        %v1222 = vunpack.c.l.s4 1966171168
        %v1223 = vunpack.c.0.s8 %v1222
        %v1224 = vlaneseq
        %v1225 = vshrl.u32 %v1224, 7
        %v1226 = vsub.s32 %v1223, %v1225
        %v1227 = vrot.slane %v1213, %v1226
        %v1228 = vcombine.high %v1220, %v1220
        %v1229 = vcombine.high %v1227, %v1227
        %v1231 = vunpack.c.l.s4 1966171168
        %v1232 = vunpack.c.0.s8 %v1231
        %v1233 = vlaneseq
        %v1234 = vshrl.u32 %v1233, 7
        %v1235 = vsub.s32 %v1232, %v1234
        %v1236 = vrot.slane %v1220, %v1235
        %v1238 = vunpack.c.l.s4 1966171168
        %v1239 = vunpack.c.0.s8 %v1238
        %v1240 = vlaneseq
        %v1241 = vshrl.u32 %v1240, 7
        %v1242 = vsub.s32 %v1239, %v1241
        %v1243 = vrot.slane %v1227, %v1242
        %v1245 = vunpack.c.l.s4 1966171168
        %v1246 = vunpack.c.0.s8 %v1245
        %v1247 = vlaneseq
        %v1248 = vshrl.u32 %v1247, 7
        %v1249 = vsub.s32 %v1246, %v1248
        %v1250 = vrot.slane %v1228, %v1249
        %v1252 = vunpack.c.l.s4 1966171168
        %v1253 = vunpack.c.0.s8 %v1252
        %v1254 = vlaneseq
        %v1255 = vshrl.u32 %v1254, 7
        %v1256 = vsub.s32 %v1253, %v1255
        %v1257 = vrot.slane %v1229, %v1256
        %v1258 = vcombine.high %v1236, %v1236
        %v1259 = vcombine.high %v1243, %v1243
        %v1260 = vcombine.high %v1250, %v1250
        %v1261 = vcombine.high %v1257, %v1257
        %v1262 = vcombine.high %v391, %v391
        %v1264 = vunpack.c.l.s4 1966171168
        %v1265 = vunpack.c.0.s8 %v1264
        %v1266 = vlaneseq
        %v1267 = vshrl.u32 %v1266, 7
        %v1268 = vsub.s32 %v1265, %v1267
        %v1269 = vrot.slane %v391, %v1268
        %v1271 = vunpack.c.l.s4 1966171168
        %v1272 = vunpack.c.0.s8 %v1271
        %v1273 = vlaneseq
        %v1274 = vshrl.u32 %v1273, 7
        %v1275 = vsub.s32 %v1272, %v1274
        %v1276 = vrot.slane %v1262, %v1275
        %v1277 = vcombine.high %v1269, %v1269
        %v1278 = vcombine.high %v1276, %v1276
        %v1280 = vunpack.c.l.s4 1966171168
        %v1281 = vunpack.c.0.s8 %v1280
        %v1282 = vlaneseq
        %v1283 = vshrl.u32 %v1282, 7
        %v1284 = vsub.s32 %v1281, %v1283
        %v1285 = vrot.slane %v1269, %v1284
        %v1287 = vunpack.c.l.s4 1966171168
        %v1288 = vunpack.c.0.s8 %v1287
        %v1289 = vlaneseq
        %v1290 = vshrl.u32 %v1289, 7
        %v1291 = vsub.s32 %v1288, %v1290
        %v1292 = vrot.slane %v1276, %v1291
        %v1294 = vunpack.c.l.s4 1966171168
        %v1295 = vunpack.c.0.s8 %v1294
        %v1296 = vlaneseq
        %v1297 = vshrl.u32 %v1296, 7
        %v1298 = vsub.s32 %v1295, %v1297
        %v1299 = vrot.slane %v1277, %v1298
        %v1301 = vunpack.c.l.s4 1966171168
        %v1302 = vunpack.c.0.s8 %v1301
        %v1303 = vlaneseq
        %v1304 = vshrl.u32 %v1303, 7
        %v1305 = vsub.s32 %v1302, %v1304
        %v1306 = vrot.slane %v1278, %v1305
        %v1307 = vcombine.high %v1285, %v1285
        %v1308 = vcombine.high %v1292, %v1292
        %v1309 = vcombine.high %v1299, %v1299
        %v1310 = vcombine.high %v1306, %v1306
        %v2103 = vunpack.c.l.b16 %v392
        %v2104 = vunpack.c.h.b16 %v392
        %v2105 = vunpack.c.l.b16 %v393
        %v2106 = vunpack.c.h.b16 %v393
        %v2107 = vunpack.c.l.b16 %v394
        %v2108 = vunpack.c.h.b16 %v394
        %v2109 = vunpack.c.l.b16 %v395
        %v2110 = vunpack.c.h.b16 %v395
        %v2111 = vunpack.c.l.b16 %v396
        %v2112 = vunpack.c.h.b16 %v396
        %v2113 = vunpack.c.l.b16 %v397
        %v2114 = vunpack.c.h.b16 %v397
        %v2115 = vunpack.c.l.b16 %v398
        %v2116 = vunpack.c.h.b16 %v398
        %v2117 = vunpack.c.l.b16 %v399
        %v2118 = vunpack.c.h.b16 %v399
        %v2119 = vunpack.c.l.b16 %v400
        %v2120 = vunpack.c.h.b16 %v400
        %v2121 = vunpack.c.l.b16 %v401
        %v2122 = vunpack.c.h.b16 %v401
        %v2123 = vunpack.c.l.b16 %v402
        %v2124 = vunpack.c.h.b16 %v402
        %v2125 = vunpack.c.l.b16 %v403
        %v2126 = vunpack.c.h.b16 %v403
        %v2127 = vunpack.c.l.b16 %v404
        %v2128 = vunpack.c.h.b16 %v404
        %v2129 = vunpack.c.l.b16 %v405
        %v2130 = vunpack.c.h.b16 %v405
        %v2131 = vunpack.c.l.b16 %v406
        %v2132 = vunpack.c.h.b16 %v406
        %v2133 = vunpack.c.l.b16 %v407
        %v2134 = vunpack.c.h.b16 %v407
        %v2135 = vunpack.c.l.b16 %v408
        %v2136 = vunpack.c.h.b16 %v408
        %v2137 = vunpack.c.l.b16 %v409
        %v2138 = vunpack.c.h.b16 %v409
        %v2139 = vunpack.c.l.b16 %v410
        %v2140 = vunpack.c.h.b16 %v410
        %v2141 = vunpack.c.l.b16 %v411
        %v2142 = vunpack.c.h.b16 %v411
        %v2143 = vunpack.c.l.b16 %v412
        %v2144 = vunpack.c.h.b16 %v412
        %v2145 = vunpack.c.l.b16 %v413
        %v2146 = vunpack.c.h.b16 %v413
        %v2147 = vunpack.c.l.b16 %v414
        %v2148 = vunpack.c.h.b16 %v414
        %v2149 = vunpack.c.l.b16 %v415
        %v2150 = vunpack.c.h.b16 %v415
        %v2151 = vunpack.c.l.b16 %v416
        %v2152 = vunpack.c.h.b16 %v416
        %v2153 = vunpack.c.l.b16 %v417
        %v2154 = vunpack.c.h.b16 %v417
        %v2155 = vunpack.c.l.b16 %v418
        %v2156 = vunpack.c.h.b16 %v418
        %v2157 = vunpack.c.l.b16 %v419
        %v2158 = vunpack.c.h.b16 %v419
        %v2159 = vunpack.c.l.b16 %v420
        %v2160 = vunpack.c.h.b16 %v420
        %v2161 = vunpack.c.l.b16 %v421
        %v2162 = vunpack.c.h.b16 %v421
        %v2163 = vunpack.c.l.b16 %v422
        %v2164 = vunpack.c.h.b16 %v422
        %v2165 = vunpack.c.l.b16 %v423
        %v2166 = vunpack.c.h.b16 %v423
        %v2167 = vunpack.c.l.b16 %v424
        %v2168 = vunpack.c.h.b16 %v424
        %v2169 = vunpack.c.l.b16 %v425
        %v2170 = vunpack.c.h.b16 %v425
        %v2171 = vunpack.c.l.b16 %v426
        %v2172 = vunpack.c.h.b16 %v426
        %v2173 = vunpack.c.l.b16 %v427
        %v2174 = vunpack.c.h.b16 %v427
        %v2175 = vunpack.c.l.b16 %v428
        %v2176 = vunpack.c.h.b16 %v428
        %v2177 = vunpack.c.l.b16 %v429
        %v2178 = vunpack.c.h.b16 %v429
        %v2179 = vunpack.c.l.b16 %v430
        %v2180 = vunpack.c.h.b16 %v430
        %v2181 = vunpack.c.l.b16 %v431
        %v2182 = vunpack.c.h.b16 %v431
        %v2183 = vunpack.c.l.b16 %v432
        %v2184 = vunpack.c.h.b16 %v432
        %v2185 = vunpack.c.l.b16 %v433
        %v2186 = vunpack.c.h.b16 %v433
        %v2187 = vunpack.c.l.b16 %v434
        %v2188 = vunpack.c.h.b16 %v434
        %v2189 = vunpack.c.l.b16 %v435
        %v2190 = vunpack.c.h.b16 %v435
        %v2191 = vunpack.c.l.b16 %v436
        %v2192 = vunpack.c.h.b16 %v436
        %v2193 = vunpack.c.l.b16 %v437
        %v2194 = vunpack.c.h.b16 %v437
        %v2195 = vunpack.c.l.b16 %v438
        %v2196 = vunpack.c.h.b16 %v438
        %v2197 = vunpack.c.l.b16 %v439
        %v2198 = vunpack.c.h.b16 %v439
        %v2199 = vunpack.c.l.b16 %v440
        %v2200 = vunpack.c.h.b16 %v440
        %v2201 = vunpack.c.l.b16 %v441
        %v2202 = vunpack.c.h.b16 %v441
        %v2203 = vunpack.c.l.b16 %v442
        %v2204 = vunpack.c.h.b16 %v442
        %v2205 = vunpack.c.l.b16 %v443
        %v2206 = vunpack.c.h.b16 %v443
        %v2207 = vunpack.c.l.b16 %v444
        %v2208 = vunpack.c.h.b16 %v444
        %v2209 = vunpack.c.l.b16 %v445
        %v2210 = vunpack.c.h.b16 %v445
        %v2211 = vunpack.c.l.b16 %v446
        %v2212 = vunpack.c.h.b16 %v446
        %v2213 = vunpack.c.l.b16 %v447
        %v2214 = vunpack.c.h.b16 %v447
        %v2215 = vunpack.c.l.b16 %v448
        %v2216 = vunpack.c.h.b16 %v448
        %v2217 = vunpack.c.l.b16 %v449
        %v2218 = vunpack.c.h.b16 %v449
        %v2219 = vunpack.c.l.b16 %v450
        %v2220 = vunpack.c.h.b16 %v450
        %v2221 = vunpack.c.l.b16 %v451
        %v2222 = vunpack.c.h.b16 %v451
        %v2223 = vunpack.c.l.b16 %v452
        %v2224 = vunpack.c.h.b16 %v452
        %v2225 = vunpack.c.l.b16 %v453
        %v2226 = vunpack.c.h.b16 %v453
        %v2227 = vunpack.c.l.b16 %v454
        %v2228 = vunpack.c.h.b16 %v454
        %v2229 = vunpack.c.l.b16 %v455
        %v2230 = vunpack.c.h.b16 %v455
        %v2231 = vunpack.c.l.b16 %v456
        %v2232 = vunpack.c.h.b16 %v456
        %v2233 = vunpack.c.l.b16 %v457
        %v2234 = vunpack.c.h.b16 %v457
        %v2235 = vunpack.c.l.b16 %v458
        %v2236 = vunpack.c.h.b16 %v458
        %v2237 = vunpack.c.l.b16 %v459
        %v2238 = vunpack.c.h.b16 %v459
        %v2239 = vunpack.c.l.b16 %v460
        %v2240 = vunpack.c.h.b16 %v460
        %v2241 = vunpack.c.l.b16 %v461
        %v2242 = vunpack.c.h.b16 %v461
        %v2243 = vunpack.c.l.b16 %v462
        %v2244 = vunpack.c.h.b16 %v462
        %v2245 = vunpack.c.l.b16 %v463
        %v2246 = vunpack.c.h.b16 %v463
        %v2247 = vunpack.c.l.b16 %v464
        %v2248 = vunpack.c.h.b16 %v464
        %v2249 = vunpack.c.l.b16 %v465
        %v2250 = vunpack.c.h.b16 %v465
        %v2251 = vunpack.c.l.b16 %v466
        %v2252 = vunpack.c.h.b16 %v466
        %v2253 = vunpack.c.l.b16 %v467
        %v2254 = vunpack.c.h.b16 %v467
        %v2255 = vunpack.c.l.b16 %v468
        %v2256 = vunpack.c.h.b16 %v468
        %v2257 = vunpack.c.l.b16 %v469
        %v2258 = vunpack.c.h.b16 %v469
        %v2259 = vunpack.c.l.b16 %v470
        %v2260 = vunpack.c.h.b16 %v470
        %v2261 = vunpack.c.l.b16 %v471
        %v2262 = vunpack.c.h.b16 %v471
        %v2263 = vunpack.c.l.b16 %v472
        %v2264 = vunpack.c.h.b16 %v472
        %v2265 = vunpack.c.l.b16 %v473
        %v2266 = vunpack.c.h.b16 %v473
        %v2267 = vunpack.c.l.b16 %v474
        %v2268 = vunpack.c.h.b16 %v474
        %v2269 = vunpack.c.l.b16 %v475
        %v2270 = vunpack.c.h.b16 %v475
        %v2271 = vunpack.c.l.b16 %v476
        %v2272 = vunpack.c.h.b16 %v476
        %v2273 = vunpack.c.l.b16 %v477
        %v2274 = vunpack.c.h.b16 %v477
        %v2275 = vunpack.c.l.b16 %v478
        %v2276 = vunpack.c.h.b16 %v478
        %v2277 = vunpack.c.l.b16 %v479
        %v2278 = vunpack.c.h.b16 %v479
        %v2279 = vunpack.c.l.b16 %v480
        %v2280 = vunpack.c.h.b16 %v480
        %v2281 = vunpack.c.l.b16 %v481
        %v2282 = vunpack.c.h.b16 %v481
        %v2283 = vunpack.c.l.b16 %v482
        %v2284 = vunpack.c.h.b16 %v482
        %v2285 = vunpack.c.l.b16 %v483
        %v2286 = vunpack.c.h.b16 %v483
        %v2287 = vunpack.c.l.b16 %v484
        %v2288 = vunpack.c.h.b16 %v484
        %v2289 = vunpack.c.l.b16 %v485
        %v2290 = vunpack.c.h.b16 %v485
        %v2291 = vunpack.c.l.b16 %v486
        %v2292 = vunpack.c.h.b16 %v486
        %v2293 = vunpack.c.l.b16 %v487
        %v2294 = vunpack.c.h.b16 %v487
        %v2295 = vunpack.c.l.b16 %v488
        %v2296 = vunpack.c.h.b16 %v488
        %v2297 = vunpack.c.l.b16 %v489
        %v2298 = vunpack.c.h.b16 %v489
        %v2299 = vunpack.c.l.b16 %v490
        %v2300 = vunpack.c.h.b16 %v490
        %v2301 = vunpack.c.l.b16 %v491
        %v2302 = vunpack.c.h.b16 %v491
        %v2303 = vunpack.c.l.b16 %v492
        %v2304 = vunpack.c.h.b16 %v492
        %v2305 = vunpack.c.l.b16 %v493
        %v2306 = vunpack.c.h.b16 %v493
        %v2307 = vunpack.c.l.b16 %v494
        %v2308 = vunpack.c.h.b16 %v494
        %v2309 = vunpack.c.l.b16 %v495
        %v2310 = vunpack.c.h.b16 %v495
        %v2311 = vunpack.c.l.b16 %v496
        %v2312 = vunpack.c.h.b16 %v496
        %v2313 = vunpack.c.l.b16 %v497
        %v2314 = vunpack.c.h.b16 %v497
        %v2315 = vunpack.c.l.b16 %v498
        %v2316 = vunpack.c.h.b16 %v498
        %v2317 = vunpack.c.l.b16 %v499
        %v2318 = vunpack.c.h.b16 %v499
        %v2319 = vunpack.c.l.b16 %v500
        %v2320 = vunpack.c.h.b16 %v500
        %v2321 = vunpack.c.l.b16 %v501
        %v2322 = vunpack.c.h.b16 %v501
        %v2323 = vunpack.c.l.b16 %v502
        %v2324 = vunpack.c.h.b16 %v502
        %v2325 = vunpack.c.l.b16 %v503
        %v2326 = vunpack.c.h.b16 %v503
        %v2327 = vunpack.c.l.b16 %v504
        %v2328 = vunpack.c.h.b16 %v504
        %v2329 = vunpack.c.l.b16 %v505
        %v2330 = vunpack.c.h.b16 %v505
        %v2331 = vunpack.c.l.b16 %v506
        %v2332 = vunpack.c.h.b16 %v506
        %v2333 = vunpack.c.l.b16 %v507
        %v2334 = vunpack.c.h.b16 %v507
        %v2335 = vunpack.c.l.b16 %v508
        %v2336 = vunpack.c.h.b16 %v508
        %v2337 = vunpack.c.l.b16 %v509
        %v2338 = vunpack.c.h.b16 %v509
        %v2339 = vunpack.c.l.b16 %v510
        %v2340 = vunpack.c.h.b16 %v510
        %v2341 = vunpack.c.l.b16 %v511
        %v2342 = vunpack.c.h.b16 %v511
        %v2343 = vunpack.c.l.b16 %v512
        %v2344 = vunpack.c.h.b16 %v512
        %v2345 = vunpack.c.l.b16 %v513
        %v2346 = vunpack.c.h.b16 %v513
        %v2347 = vunpack.c.l.b16 %v514
        %v2348 = vunpack.c.h.b16 %v514
        %v2349 = vunpack.c.l.b16 %v515
        %v2350 = vunpack.c.h.b16 %v515
        %v2351 = vunpack.c.l.b16 %v516
        %v2352 = vunpack.c.h.b16 %v516
        %v2353 = vunpack.c.l.b16 %v517
        %v2354 = vunpack.c.h.b16 %v517
        %v2355 = vunpack.c.l.b16 %v518
        %v2356 = vunpack.c.h.b16 %v518
        %v2357 = vunpack.c.l.b16 %v519
        %v2358 = vunpack.c.h.b16 %v519
        %v2359 = vunpack.c.l.b16 %v520
        %v2360 = vunpack.c.h.b16 %v520
        %v2361 = vunpack.c.l.b16 %v521
        %v2362 = vunpack.c.h.b16 %v521
        %v2363 = vunpack.c.l.b16 %v522
        %v2364 = vunpack.c.h.b16 %v522
        %v2365 = vunpack.c.l.b16 %v523
        %v2366 = vunpack.c.h.b16 %v523
        %v2367 = vunpack.c.l.b16 %v524
        %v2368 = vunpack.c.h.b16 %v524
        %v2369 = vunpack.c.l.b16 %v525
        %v2370 = vunpack.c.h.b16 %v525
        %v2371 = vunpack.c.l.b16 %v526
        %v2372 = vunpack.c.h.b16 %v526
        %v2373 = vunpack.c.l.b16 %v527
        %v2374 = vunpack.c.h.b16 %v527
        %v2375 = vunpack.c.l.b16 %v528
        %v2376 = vunpack.c.h.b16 %v528
        %v2377 = vunpack.c.l.b16 %v529
        %v2378 = vunpack.c.h.b16 %v529
        %v2379 = vunpack.c.l.b16 %v530
        %v2380 = vunpack.c.h.b16 %v530
        %v2381 = vunpack.c.l.b16 %v531
        %v2382 = vunpack.c.h.b16 %v531
        %v2383 = vunpack.c.l.b16 %v532
        %v2384 = vunpack.c.h.b16 %v532
        %v2385 = vunpack.c.l.b16 %v533
        %v2386 = vunpack.c.h.b16 %v533
        %v2387 = vunpack.c.l.b16 %v534
        %v2388 = vunpack.c.h.b16 %v534
        %v2389 = vunpack.c.l.b16 %v535
        %v2390 = vunpack.c.h.b16 %v535
        %v2391 = vunpack.c.l.b16 %v536
        %v2392 = vunpack.c.h.b16 %v536
        %v2393 = vunpack.c.l.b16 %v537
        %v2394 = vunpack.c.h.b16 %v537
        %v2395 = vunpack.c.l.b16 %v538
        %v2396 = vunpack.c.h.b16 %v538
        %v2397 = vunpack.c.l.b16 %v539
        %v2398 = vunpack.c.h.b16 %v539
        %v2399 = vunpack.c.l.b16 %v540
        %v2400 = vunpack.c.h.b16 %v540
        %v2401 = vunpack.c.l.b16 %v541
        %v2402 = vunpack.c.h.b16 %v541
        %v2403 = vunpack.c.l.b16 %v542
        %v2404 = vunpack.c.h.b16 %v542
        %v2405 = vunpack.c.l.b16 %v543
        %v2406 = vunpack.c.h.b16 %v543
        %v2407 = vunpack.c.l.b16 %v544
        %v2408 = vunpack.c.h.b16 %v544
        %v2409 = vunpack.c.l.b16 %v545
        %v2410 = vunpack.c.h.b16 %v545
        %v2411 = vunpack.c.l.b16 %v546
        %v2412 = vunpack.c.h.b16 %v546
        %v2413 = vunpack.c.l.b16 %v547
        %v2414 = vunpack.c.h.b16 %v547
        %v2415 = vunpack.c.l.b16 %v548
        %v2416 = vunpack.c.h.b16 %v548
        %v2417 = vunpack.c.l.b16 %v549
        %v2418 = vunpack.c.h.b16 %v549
        %v2419 = vunpack.c.l.b16 %v550
        %v2420 = vunpack.c.h.b16 %v550
        %v2421 = vunpack.c.l.b16 %v551
        %v2422 = vunpack.c.h.b16 %v551
        %v2423 = vunpack.c.l.b16 %v552
        %v2424 = vunpack.c.h.b16 %v552
        %v2425 = vunpack.c.l.b16 %v553
        %v2426 = vunpack.c.h.b16 %v553
        %v2427 = vunpack.c.l.b16 %v554
        %v2428 = vunpack.c.h.b16 %v554
        %v2429 = vunpack.c.l.b16 %v555
        %v2430 = vunpack.c.h.b16 %v555
        %v2431 = vunpack.c.l.b16 %v556
        %v2432 = vunpack.c.h.b16 %v556
        %v2433 = vunpack.c.l.b16 %v557
        %v2434 = vunpack.c.h.b16 %v557
        %v2435 = vunpack.c.l.b16 %v558
        %v2436 = vunpack.c.h.b16 %v558
        %v2437 = vunpack.c.l.b16 %v559
        %v2438 = vunpack.c.h.b16 %v559
        %v2439 = vunpack.c.l.b16 %v560
        %v2440 = vunpack.c.h.b16 %v560
        %v2441 = vunpack.c.l.b16 %v561
        %v2442 = vunpack.c.h.b16 %v561
        %v2443 = vunpack.c.l.b16 %v562
        %v2444 = vunpack.c.h.b16 %v562
        %v2445 = vunpack.c.l.b16 %v563
        %v2446 = vunpack.c.h.b16 %v563
        %v2447 = vunpack.c.l.b16 %v564
        %v2448 = vunpack.c.h.b16 %v564
        %v2449 = vunpack.c.l.b16 %v565
        %v2450 = vunpack.c.h.b16 %v565
        %v2451 = vunpack.c.l.b16 %v566
        %v2452 = vunpack.c.h.b16 %v566
        %v2453 = vunpack.c.l.b16 %v567
        %v2454 = vunpack.c.h.b16 %v567
        %v2455 = vunpack.c.l.b16 %v568
        %v2456 = vunpack.c.h.b16 %v568
        %v2457 = vunpack.c.l.b16 %v569
        %v2458 = vunpack.c.h.b16 %v569
        %v2459 = vunpack.c.l.b16 %v570
        %v2460 = vunpack.c.h.b16 %v570
        %v2461 = vunpack.c.l.b16 %v571
        %v2462 = vunpack.c.h.b16 %v571
        %v2463 = vunpack.c.l.b16 %v572
        %v2464 = vunpack.c.h.b16 %v572
        %v2465 = vunpack.c.l.b16 %v573
        %v2466 = vunpack.c.h.b16 %v573
        %v2467 = vunpack.c.l.b16 %v574
        %v2468 = vunpack.c.h.b16 %v574
        %v2469 = vunpack.c.l.b16 %v575
        %v2470 = vunpack.c.h.b16 %v575
        %v2471 = vunpack.c.l.b16 %v576
        %v2472 = vunpack.c.h.b16 %v576
        %v2473 = vunpack.c.l.b16 %v577
        %v2474 = vunpack.c.h.b16 %v577
        %v2475 = vunpack.c.l.b16 %v578
        %v2476 = vunpack.c.h.b16 %v578
        %v2477 = vunpack.c.l.b16 %v579
        %v2478 = vunpack.c.h.b16 %v579
        %v2479 = vunpack.c.l.b16 %v580
        %v2480 = vunpack.c.h.b16 %v580
        %v2481 = vunpack.c.l.b16 %v581
        %v2482 = vunpack.c.h.b16 %v581
        %v2483 = vunpack.c.l.b16 %v582
        %v2484 = vunpack.c.h.b16 %v582
        %v2485 = vunpack.c.l.b16 %v583
        %v2486 = vunpack.c.h.b16 %v583
        %v2487 = vunpack.c.l.b16 %v584
        %v2488 = vunpack.c.h.b16 %v584
        %v2489 = vunpack.c.l.b16 %v585
        %v2490 = vunpack.c.h.b16 %v585
        %v2491 = vunpack.c.l.b16 %v586
        %v2492 = vunpack.c.h.b16 %v586
        %v2493 = vunpack.c.l.b16 %v587
        %v2494 = vunpack.c.h.b16 %v587
        %v2495 = vunpack.c.l.b16 %v588
        %v2496 = vunpack.c.h.b16 %v588
        %v2497 = vunpack.c.l.b16 %v589
        %v2498 = vunpack.c.h.b16 %v589
        %v2499 = vunpack.c.l.b16 %v590
        %v2500 = vunpack.c.h.b16 %v590
        %v2501 = vunpack.c.l.b16 %v591
        %v2502 = vunpack.c.h.b16 %v591
        %v2503 = vunpack.c.l.b16 %v592
        %v2504 = vunpack.c.h.b16 %v592
        %v2505 = vunpack.c.l.b16 %v593
        %v2506 = vunpack.c.h.b16 %v593
        %v2507 = vunpack.c.l.b16 %v594
        %v2508 = vunpack.c.h.b16 %v594
        %v2509 = vunpack.c.l.b16 %v595
        %v2510 = vunpack.c.h.b16 %v595
        %v2511 = vunpack.c.l.b16 %v596
        %v2512 = vunpack.c.h.b16 %v596
        %v2513 = vunpack.c.l.b16 %v597
        %v2514 = vunpack.c.h.b16 %v597
        %v2515 = vunpack.c.l.b16 %v598
        %v2516 = vunpack.c.h.b16 %v598
        %v2517 = vunpack.c.l.b16 %v599
        %v2518 = vunpack.c.h.b16 %v599
        %v2519 = vunpack.c.l.b16 %v600
        %v2520 = vunpack.c.h.b16 %v600
        %v2521 = vunpack.c.l.b16 %v601
        %v2522 = vunpack.c.h.b16 %v601
        %v2523 = vunpack.c.l.b16 %v602
        %v2524 = vunpack.c.h.b16 %v602
        %v2525 = vunpack.c.l.b16 %v603
        %v2526 = vunpack.c.h.b16 %v603
        %v2527 = vunpack.c.l.b16 %v604
        %v2528 = vunpack.c.h.b16 %v604
        %v2529 = vunpack.c.l.b16 %v605
        %v2530 = vunpack.c.h.b16 %v605
        %v2531 = vunpack.c.l.b16 %v606
        %v2532 = vunpack.c.h.b16 %v606
        %v2533 = vunpack.c.l.b16 %v607
        %v2534 = vunpack.c.h.b16 %v607
        %v2535 = vunpack.c.l.b16 %v608
        %v2536 = vunpack.c.h.b16 %v608
        %v2537 = vunpack.c.l.b16 %v609
        %v2538 = vunpack.c.h.b16 %v609
        %v2539 = vunpack.c.l.b16 %v610
        %v2540 = vunpack.c.h.b16 %v610
        %v2541 = vunpack.c.l.b16 %v611
        %v2542 = vunpack.c.h.b16 %v611
        %v2543 = vunpack.c.l.b16 %v612
        %v2544 = vunpack.c.h.b16 %v612
        %v2545 = vunpack.c.l.b16 %v613
        %v2546 = vunpack.c.h.b16 %v613
        %v2547 = vunpack.c.l.b16 %v614
        %v2548 = vunpack.c.h.b16 %v614
        %v2549 = vunpack.c.l.b16 %v615
        %v2550 = vunpack.c.h.b16 %v615
        %v2551 = vunpack.c.l.b16 %v616
        %v2552 = vunpack.c.h.b16 %v616
        %v2553 = vunpack.c.l.b16 %v617
        %v2554 = vunpack.c.h.b16 %v617
        %v2555 = vunpack.c.l.b16 %v618
        %v2556 = vunpack.c.h.b16 %v618
        %v2557 = vunpack.c.l.b16 %v619
        %v2558 = vunpack.c.h.b16 %v619
        %v2559 = vunpack.c.l.b16 %v620
        %v2560 = vunpack.c.h.b16 %v620
        %v2561 = vunpack.c.l.b16 %v621
        %v2562 = vunpack.c.h.b16 %v621
        %v2563 = vunpack.c.l.b16 %v622
        %v2564 = vunpack.c.h.b16 %v622
        %v2565 = vunpack.c.l.b16 %v623
        %v2566 = vunpack.c.h.b16 %v623
        %v2567 = vunpack.c.l.b16 %v624
        %v2568 = vunpack.c.h.b16 %v624
        %v2569 = vunpack.c.l.b16 %v625
        %v2570 = vunpack.c.h.b16 %v625
        %v2571 = vunpack.c.l.b16 %v626
        %v2572 = vunpack.c.h.b16 %v626
        %v2573 = vunpack.c.l.b16 %v627
        %v2574 = vunpack.c.h.b16 %v627
        %v2575 = vunpack.c.l.b16 %v628
        %v2576 = vunpack.c.h.b16 %v628
        %v2577 = vunpack.c.l.b16 %v629
        %v2578 = vunpack.c.h.b16 %v629
        %v2579 = vunpack.c.l.b16 %v630
        %v2580 = vunpack.c.h.b16 %v630
        %v2581 = vunpack.c.l.b16 %v631
        %v2582 = vunpack.c.h.b16 %v631
        %v2583 = vunpack.c.l.b16 %v632
        %v2584 = vunpack.c.h.b16 %v632
        %v2585 = vunpack.c.l.b16 %v633
        %v2586 = vunpack.c.h.b16 %v633
        %v2587 = vunpack.c.l.b16 %v634
        %v2588 = vunpack.c.h.b16 %v634
        %v2589 = vunpack.c.l.b16 %v635
        %v2590 = vunpack.c.h.b16 %v635
        %v2591 = vunpack.c.l.b16 %v636
        %v2592 = vunpack.c.h.b16 %v636
        %v2593 = vunpack.c.l.b16 %v637
        %v2594 = vunpack.c.h.b16 %v637
        %v2595 = vunpack.c.l.b16 %v638
        %v2596 = vunpack.c.h.b16 %v638
        %v2597 = vunpack.c.l.b16 %v639
        %v2598 = vunpack.c.h.b16 %v639
        %v2599 = vunpack.c.l.b16 %v640
        %v2600 = vunpack.c.h.b16 %v640
        %v2601 = vunpack.c.l.b16 %v641
        %v2602 = vunpack.c.h.b16 %v641
        %v2603 = vunpack.c.l.b16 %v642
        %v2604 = vunpack.c.h.b16 %v642
        %v2605 = vunpack.c.l.b16 %v643
        %v2606 = vunpack.c.h.b16 %v643
        %v2607 = vunpack.c.l.b16 %v644
        %v2608 = vunpack.c.h.b16 %v644
        %v2609 = vunpack.c.l.b16 %v645
        %v2610 = vunpack.c.h.b16 %v645
        %v2611 = vunpack.c.l.b16 %v646
        %v2612 = vunpack.c.h.b16 %v646
        %v2613 = vunpack.c.l.b16 %v647
        %v2614 = vunpack.c.h.b16 %v647
        %v2615 = vunpack.c.l.b16 %v648
        %v2616 = vunpack.c.h.b16 %v648
        %v2617 = vunpack.c.l.b16 %v649
        %v2618 = vunpack.c.h.b16 %v649
        %v2619 = vunpack.c.l.b16 %v650
        %v2620 = vunpack.c.h.b16 %v650
        %v2621 = vunpack.c.l.b16 %v651
        %v2622 = vunpack.c.h.b16 %v651
        %v2623 = vunpack.c.l.b16 %v652
        %v2624 = vunpack.c.h.b16 %v652
        %v2625 = vunpack.c.l.b16 %v653
        %v2626 = vunpack.c.h.b16 %v653
        %v2627 = vunpack.c.l.b16 %v654
        %v2628 = vunpack.c.h.b16 %v654
        %v2629 = vunpack.c.l.b16 %v655
        %v2630 = vunpack.c.h.b16 %v655
        %v2631 = vunpack.c.l.b16 %v656
        %v2632 = vunpack.c.h.b16 %v656
        %v2633 = vunpack.c.l.b16 %v657
        %v2634 = vunpack.c.h.b16 %v657
        %v2635 = vunpack.c.l.b16 %v658
        %v2636 = vunpack.c.h.b16 %v658
        %v2637 = vunpack.c.l.b16 %v659
        %v2638 = vunpack.c.h.b16 %v659
        %v2639 = vunpack.c.l.b16 %v660
        %v2640 = vunpack.c.h.b16 %v660
        %v2641 = vunpack.c.l.b16 %v661
        %v2642 = vunpack.c.h.b16 %v661
        %v2643 = vunpack.c.l.b16 %v662
        %v2644 = vunpack.c.h.b16 %v662
        %v2645 = vunpack.c.l.b16 %v663
        %v2646 = vunpack.c.h.b16 %v663
        %v2647 = vunpack.c.l.b16 %v664
        %v2648 = vunpack.c.h.b16 %v664
        %v2649 = vunpack.c.l.b16 %v665
        %v2650 = vunpack.c.h.b16 %v665
        %v2651 = vunpack.c.l.b16 %v666
        %v2652 = vunpack.c.h.b16 %v666
        %v2653 = vunpack.c.l.b16 %v667
        %v2654 = vunpack.c.h.b16 %v667
        %v2655 = vunpack.c.l.b16 %v668
        %v2656 = vunpack.c.h.b16 %v668
        %v2657 = vunpack.c.l.b16 %v669
        %v2658 = vunpack.c.h.b16 %v669
        %v2659 = vunpack.c.l.b16 %v670
        %v2660 = vunpack.c.h.b16 %v670
        %v2661 = vunpack.c.l.b16 %v671
        %v2662 = vunpack.c.h.b16 %v671
        %v2663 = vunpack.c.l.b16 %v672
        %v2664 = vunpack.c.h.b16 %v672
        %v2665 = vunpack.c.l.b16 %v673
        %v2666 = vunpack.c.h.b16 %v673
        %v2667 = vunpack.c.l.b16 %v674
        %v2668 = vunpack.c.h.b16 %v674
        %v2669 = vunpack.c.l.b16 %v675
        %v2670 = vunpack.c.h.b16 %v675
        %v2671 = vunpack.c.l.b16 %v676
        %v2672 = vunpack.c.h.b16 %v676
        %v2673 = vunpack.c.l.b16 %v677
        %v2674 = vunpack.c.h.b16 %v677
        %v2675 = vunpack.c.l.b16 %v678
        %v2676 = vunpack.c.h.b16 %v678
        %v2677 = vunpack.c.l.b16 %v679
        %v2678 = vunpack.c.h.b16 %v679
        %v2679 = vunpack.c.l.b16 %v680
        %v2680 = vunpack.c.h.b16 %v680
        %v2681 = vunpack.c.l.b16 %v681
        %v2682 = vunpack.c.h.b16 %v681
        %v2683 = vunpack.c.l.b16 %v682
        %v2684 = vunpack.c.h.b16 %v682
        %v2685 = vunpack.c.l.b16 %v683
        %v2686 = vunpack.c.h.b16 %v683
        %v2687 = vunpack.c.l.b16 %v684
        %v2688 = vunpack.c.h.b16 %v684
        %v2689 = vunpack.c.l.b16 %v685
        %v2690 = vunpack.c.h.b16 %v685
        %v2691 = vunpack.c.l.b16 %v686
        %v2692 = vunpack.c.h.b16 %v686
        %v2693 = vunpack.c.l.b16 %v687
        %v2694 = vunpack.c.h.b16 %v687
        %v2695 = vunpack.c.l.b16 %v688
        %v2696 = vunpack.c.h.b16 %v688
        %v2697 = vunpack.c.l.b16 %v689
        %v2698 = vunpack.c.h.b16 %v689
        %v2699 = vunpack.c.l.b16 %v690
        %v2700 = vunpack.c.h.b16 %v690
        %v2701 = vunpack.c.l.b16 %v691
        %v2702 = vunpack.c.h.b16 %v691
        %v2703 = vunpack.c.l.b16 %v692
        %v2704 = vunpack.c.h.b16 %v692
        %v2705 = vunpack.c.l.b16 %v693
        %v2706 = vunpack.c.h.b16 %v693
        %v2707 = vunpack.c.l.b16 %v694
        %v2708 = vunpack.c.h.b16 %v694
        %v2709 = vunpack.c.l.b16 %v695
        %v2710 = vunpack.c.h.b16 %v695
        %v2711 = vunpack.c.l.b16 %v696
        %v2712 = vunpack.c.h.b16 %v696
        %v2713 = vunpack.c.l.b16 %v697
        %v2714 = vunpack.c.h.b16 %v697
        %v2715 = vunpack.c.l.b16 %v698
        %v2716 = vunpack.c.h.b16 %v698
        %v2717 = vunpack.c.l.b16 %v699
        %v2718 = vunpack.c.h.b16 %v699
        %v2719 = vunpack.c.l.b16 %v700
        %v2720 = vunpack.c.h.b16 %v700
        %v2721 = vunpack.c.l.b16 %v701
        %v2722 = vunpack.c.h.b16 %v701
        %v2723 = vunpack.c.l.b16 %v702
        %v2724 = vunpack.c.h.b16 %v702
        %v2725 = vunpack.c.l.b16 %v703
        %v2726 = vunpack.c.h.b16 %v703
        %v2727 = vunpack.c.l.b16 %v704
        %v2728 = vunpack.c.h.b16 %v704
        %v2729 = vunpack.c.l.b16 %v705
        %v2730 = vunpack.c.h.b16 %v705
        %v2731 = vunpack.c.l.b16 %v706
        %v2732 = vunpack.c.h.b16 %v706
        %v2733 = vunpack.c.l.b16 %v707
        %v2734 = vunpack.c.h.b16 %v707
        %v2735 = vunpack.c.l.b16 %v708
        %v2736 = vunpack.c.h.b16 %v708
        %v2737 = vunpack.c.l.b16 %v709
        %v2738 = vunpack.c.h.b16 %v709
        %v2739 = vunpack.c.l.b16 %v710
        %v2740 = vunpack.c.h.b16 %v710
        %v2741 = vunpack.c.l.b16 %v711
        %v2742 = vunpack.c.h.b16 %v711
        %v2743 = vunpack.c.l.b16 %v712
        %v2744 = vunpack.c.h.b16 %v712
        %v2745 = vunpack.c.l.b16 %v713
        %v2746 = vunpack.c.h.b16 %v713
        %v2747 = vunpack.c.l.b16 %v714
        %v2748 = vunpack.c.h.b16 %v714
        %v2749 = vunpack.c.l.b16 %v715
        %v2750 = vunpack.c.h.b16 %v715
        %v2751 = vunpack.c.l.b16 %v716
        %v2752 = vunpack.c.h.b16 %v716
        %v2753 = vunpack.c.l.b16 %v717
        %v2754 = vunpack.c.h.b16 %v717
        %v2755 = vunpack.c.l.b16 %v718
        %v2756 = vunpack.c.h.b16 %v718
        %v2757 = vunpack.c.l.b16 %v719
        %v2758 = vunpack.c.h.b16 %v719
        %v2759 = vunpack.c.l.b16 %v720
        %v2760 = vunpack.c.h.b16 %v720
        %v2761 = vunpack.c.l.b16 %v721
        %v2762 = vunpack.c.h.b16 %v721
        %v2763 = vunpack.c.l.b16 %v722
        %v2764 = vunpack.c.h.b16 %v722
        %v2765 = vunpack.c.l.b16 %v723
        %v2766 = vunpack.c.h.b16 %v723
        %v2767 = vunpack.c.l.b16 %v724
        %v2768 = vunpack.c.h.b16 %v724
        %v2769 = vunpack.c.l.b16 %v725
        %v2770 = vunpack.c.h.b16 %v725
        %v2771 = vunpack.c.l.b16 %v726
        %v2772 = vunpack.c.h.b16 %v726
        %v2773 = vunpack.c.l.b16 %v727
        %v2774 = vunpack.c.h.b16 %v727
        %v2775 = vunpack.c.l.b16 %v728
        %v2776 = vunpack.c.h.b16 %v728
        %v2777 = vunpack.c.l.b16 %v729
        %v2778 = vunpack.c.h.b16 %v729
        %v2779 = vunpack.c.l.b16 %v730
        %v2780 = vunpack.c.h.b16 %v730
        %v2781 = vunpack.c.l.b16 %v731
        %v2782 = vunpack.c.h.b16 %v731
        %v2783 = vunpack.c.l.b16 %v732
        %v2784 = vunpack.c.h.b16 %v732
        %v2785 = vunpack.c.l.b16 %v733
        %v2786 = vunpack.c.h.b16 %v733
        %v2787 = vunpack.c.l.b16 %v734
        %v2788 = vunpack.c.h.b16 %v734
        %v2789 = vunpack.c.l.b16 %v735
        %v2790 = vunpack.c.h.b16 %v735
        %v2791 = vunpack.c.l.b16 %v736
        %v2792 = vunpack.c.h.b16 %v736
        %v2793 = vunpack.c.l.b16 %v737
        %v2794 = vunpack.c.h.b16 %v737
        %v2795 = vunpack.c.l.b16 %v738
        %v2796 = vunpack.c.h.b16 %v738
        %v2797 = vunpack.c.l.b16 %v739
        %v2798 = vunpack.c.h.b16 %v739
        %v2799 = vunpack.c.l.b16 %v740
        %v2800 = vunpack.c.h.b16 %v740
        %v2801 = vunpack.c.l.b16 %v741
        %v2802 = vunpack.c.h.b16 %v741
        %v2803 = vunpack.c.l.b16 %v742
        %v2804 = vunpack.c.h.b16 %v742
        %v2805 = vunpack.c.l.b16 %v743
        %v2806 = vunpack.c.h.b16 %v743
        %v2807 = vunpack.c.l.b16 %v744
        %v2808 = vunpack.c.h.b16 %v744
        %v2809 = vunpack.c.l.b16 %v745
        %v2810 = vunpack.c.h.b16 %v745
        %v2811 = vunpack.c.l.b16 %v746
        %v2812 = vunpack.c.h.b16 %v746
        %v2813 = vunpack.c.l.b16 %v747
        %v2814 = vunpack.c.h.b16 %v747
        %v2815 = vunpack.c.l.b16 %v748
        %v2816 = vunpack.c.h.b16 %v748
        %v2817 = vunpack.c.l.b16 %v749
        %v2818 = vunpack.c.h.b16 %v749
        %v2819 = vunpack.c.l.b16 %v750
        %v2820 = vunpack.c.h.b16 %v750
        %v2821 = vunpack.c.l.b16 %v751
        %v2822 = vunpack.c.h.b16 %v751
        %v2823 = vunpack.c.l.b16 %v752
        %v2824 = vunpack.c.h.b16 %v752
        %v2825 = vunpack.c.l.b16 %v753
        %v2826 = vunpack.c.h.b16 %v753
        %v2827 = vunpack.c.l.b16 %v754
        %v2828 = vunpack.c.h.b16 %v754
        %v2829 = vunpack.c.l.b16 %v755
        %v2830 = vunpack.c.h.b16 %v755
        %v2831 = vunpack.c.l.b16 %v756
        %v2832 = vunpack.c.h.b16 %v756
        %v2833 = vunpack.c.l.b16 %v757
        %v2834 = vunpack.c.h.b16 %v757
        %v2835 = vunpack.c.l.b16 %v758
        %v2836 = vunpack.c.h.b16 %v758
        %v2837 = vunpack.c.l.b16 %v759
        %v2838 = vunpack.c.h.b16 %v759
        %v2839 = vunpack.c.l.b16 %v760
        %v2840 = vunpack.c.h.b16 %v760
        %v2841 = vunpack.c.l.b16 %v761
        %v2842 = vunpack.c.h.b16 %v761
        %v2843 = vunpack.c.l.b16 %v762
        %v2844 = vunpack.c.h.b16 %v762
        %v2845 = vunpack.c.l.b16 %v763
        %v2846 = vunpack.c.h.b16 %v763
        %v2847 = vunpack.c.l.b16 %v764
        %v2848 = vunpack.c.h.b16 %v764
        %v2849 = vunpack.c.l.b16 %v765
        %v2850 = vunpack.c.h.b16 %v765
        %v2851 = vunpack.c.l.b16 %v766
        %v2852 = vunpack.c.h.b16 %v766
        %v2853 = vunpack.c.l.b16 %v767
        %v2854 = vunpack.c.h.b16 %v767
        %v2855 = vunpack.c.l.b16 %v768
        %v2856 = vunpack.c.h.b16 %v768
        %v2857 = vunpack.c.l.b16 %v769
        %v2858 = vunpack.c.h.b16 %v769
        %v2859 = vunpack.c.l.b16 %v770
        %v2860 = vunpack.c.h.b16 %v770
        %v2861 = vunpack.c.l.b16 %v771
        %v2862 = vunpack.c.h.b16 %v771
        %v2863 = vunpack.c.l.b16 %v772
        %v2864 = vunpack.c.h.b16 %v772
        %v2865 = vunpack.c.l.b16 %v773
        %v2866 = vunpack.c.h.b16 %v773
        %v2867 = vunpack.c.l.b16 %v774
        %v2868 = vunpack.c.h.b16 %v774
        %v2869 = vunpack.c.l.b16 %v775
        %v2870 = vunpack.c.h.b16 %v775
        %v2871 = vunpack.c.l.b16 %v776
        %v2872 = vunpack.c.h.b16 %v776
        %v2873 = vunpack.c.l.b16 %v777
        %v2874 = vunpack.c.h.b16 %v777
        %v2875 = vunpack.c.l.b16 %v778
        %v2876 = vunpack.c.h.b16 %v778
        %v2877 = vunpack.c.l.b16 %v779
        %v2878 = vunpack.c.h.b16 %v779
        %v2879 = vunpack.c.l.b16 %v780
        %v2880 = vunpack.c.h.b16 %v780
        %v2881 = vunpack.c.l.b16 %v781
        %v2882 = vunpack.c.h.b16 %v781
        %v2883 = vunpack.c.l.b16 %v782
        %v2884 = vunpack.c.h.b16 %v782
        %v2885 = vunpack.c.l.b16 %v783
        %v2886 = vunpack.c.h.b16 %v783
        %v2887 = vunpack.c.l.b16 %v784
        %v2888 = vunpack.c.h.b16 %v784
        %v2889 = vunpack.c.l.b16 %v785
        %v2890 = vunpack.c.h.b16 %v785
        %v2891 = vunpack.c.l.b16 %v786
        %v2892 = vunpack.c.h.b16 %v786
        %v2893 = vunpack.c.l.b16 %v787
        %v2894 = vunpack.c.h.b16 %v787
        %v2895 = vunpack.c.l.b16 %v788
        %v2896 = vunpack.c.h.b16 %v788
        %v2897 = vunpack.c.l.b16 %v789
        %v2898 = vunpack.c.h.b16 %v789
        %v2899 = vunpack.c.l.b16 %v790
        %v2900 = vunpack.c.h.b16 %v790
        %v2901 = vunpack.c.l.b16 %v791
        %v2902 = vunpack.c.h.b16 %v791
        %v2903 = vunpack.c.l.b16 %v792
        %v2904 = vunpack.c.h.b16 %v792
        %v2905 = vunpack.c.l.b16 %v793
        %v2906 = vunpack.c.h.b16 %v793
        %v2907 = vunpack.c.l.b16 %v794
        %v2908 = vunpack.c.h.b16 %v794
        %v2909 = vunpack.c.l.b16 %v795
        %v2910 = vunpack.c.h.b16 %v795
        %v2911 = vunpack.c.l.b16 %v796
        %v2912 = vunpack.c.h.b16 %v796
        %v2913 = vunpack.c.l.b16 %v797
        %v2914 = vunpack.c.h.b16 %v797
        %v2915 = vunpack.c.l.b16 %v798
        %v2916 = vunpack.c.h.b16 %v798
        %v2917 = vunpack.c.l.b16 %v799
        %v2918 = vunpack.c.h.b16 %v799
        %v2919 = vunpack.c.l.b16 %v800
        %v2920 = vunpack.c.h.b16 %v800
        %v2921 = vunpack.c.l.b16 %v801
        %v2922 = vunpack.c.h.b16 %v801
        %v2923 = vunpack.c.l.b16 %v802
        %v2924 = vunpack.c.h.b16 %v802
        %v2925 = vunpack.c.l.b16 %v803
        %v2926 = vunpack.c.h.b16 %v803
        %v2927 = vunpack.c.l.b16 %v804
        %v2928 = vunpack.c.h.b16 %v804
        %v2929 = vunpack.c.l.b16 %v805
        %v2930 = vunpack.c.h.b16 %v805
        %v2931 = vunpack.c.l.b16 %v806
        %v2932 = vunpack.c.h.b16 %v806
        %v2933 = vunpack.c.l.b16 %v807
        %v2934 = vunpack.c.h.b16 %v807
        %v2935 = vunpack.c.l.b16 %v808
        %v2936 = vunpack.c.h.b16 %v808
        %v2937 = vunpack.c.l.b16 %v809
        %v2938 = vunpack.c.h.b16 %v809
        %v2939 = vunpack.c.l.b16 %v810
        %v2940 = vunpack.c.h.b16 %v810
        %v2941 = vunpack.c.l.b16 %v811
        %v2942 = vunpack.c.h.b16 %v811
        %v2943 = vunpack.c.l.b16 %v812
        %v2944 = vunpack.c.h.b16 %v812
        %v2945 = vunpack.c.l.b16 %v813
        %v2946 = vunpack.c.h.b16 %v813
        %v2947 = vunpack.c.l.b16 %v814
        %v2948 = vunpack.c.h.b16 %v814
        %v2949 = vunpack.c.l.b16 %v815
        %v2950 = vunpack.c.h.b16 %v815
        %v2951 = vunpack.c.l.b16 %v816
        %v2952 = vunpack.c.h.b16 %v816
        %v2953 = vunpack.c.l.b16 %v817
        %v2954 = vunpack.c.h.b16 %v817
        %v2955 = vunpack.c.l.b16 %v818
        %v2956 = vunpack.c.h.b16 %v818
        %v2957 = vunpack.c.l.b16 %v819
        %v2958 = vunpack.c.h.b16 %v819
        %v2959 = vunpack.c.l.b16 %v820
        %v2960 = vunpack.c.h.b16 %v820
        %v2961 = vunpack.c.l.b16 %v821
        %v2962 = vunpack.c.h.b16 %v821
        %v2963 = vunpack.c.l.b16 %v822
        %v2964 = vunpack.c.h.b16 %v822
        %v2965 = vunpack.c.l.b16 %v823
        %v2966 = vunpack.c.h.b16 %v823
        %v2967 = vunpack.c.l.b16 %v824
        %v2968 = vunpack.c.h.b16 %v824
        %v2969 = vunpack.c.l.b16 %v825
        %v2970 = vunpack.c.h.b16 %v825
        %v2971 = vunpack.c.l.b16 %v826
        %v2972 = vunpack.c.h.b16 %v826
        %v2973 = vunpack.c.l.b16 %v827
        %v2974 = vunpack.c.h.b16 %v827
        %v2975 = vunpack.c.l.b16 %v828
        %v2976 = vunpack.c.h.b16 %v828
        %v2977 = vunpack.c.l.b16 %v829
        %v2978 = vunpack.c.h.b16 %v829
        %v2979 = vunpack.c.l.b16 %v830
        %v2980 = vunpack.c.h.b16 %v830
        %v2981 = vunpack.c.l.b16 %v831
        %v2982 = vunpack.c.h.b16 %v831
        %v2983 = vunpack.c.l.b16 %v832
        %v2984 = vunpack.c.h.b16 %v832
        %v2985 = vunpack.c.l.b16 %v833
        %v2986 = vunpack.c.h.b16 %v833
        %v2987 = vunpack.c.l.b16 %v834
        %v2988 = vunpack.c.h.b16 %v834
        %v2989 = vunpack.c.l.b16 %v835
        %v2990 = vunpack.c.h.b16 %v835
        %v2991 = vunpack.c.l.b16 %v836
        %v2992 = vunpack.c.h.b16 %v836
        %v2993 = vunpack.c.l.b16 %v837
        %v2994 = vunpack.c.h.b16 %v837
        %v2995 = vunpack.c.l.b16 %v838
        %v2996 = vunpack.c.h.b16 %v838
        %v2997 = vunpack.c.l.b16 %v839
        %v2998 = vunpack.c.h.b16 %v839
        %v2999 = vunpack.c.l.b16 %v840
        %v3000 = vunpack.c.h.b16 %v840
        %v3001 = vunpack.c.l.b16 %v841
        %v3002 = vunpack.c.h.b16 %v841
        %v3003 = vunpack.c.l.b16 %v842
        %v3004 = vunpack.c.h.b16 %v842
        %v3005 = vunpack.c.l.b16 %v843
        %v3006 = vunpack.c.h.b16 %v843
        %v3007 = vunpack.c.l.b16 %v844
        %v3008 = vunpack.c.h.b16 %v844
        %v3009 = vunpack.c.l.b16 %v845
        %v3010 = vunpack.c.h.b16 %v845
        %v3011 = vunpack.c.l.b16 %v846
        %v3012 = vunpack.c.h.b16 %v846
        %v3013 = vunpack.c.l.b16 %v847
        %v3014 = vunpack.c.h.b16 %v847
        %v3015 = vunpack.c.l.b16 %v848
        %v3016 = vunpack.c.h.b16 %v848
        %v3017 = vunpack.c.l.b16 %v849
        %v3018 = vunpack.c.h.b16 %v849
        %v3019 = vunpack.c.l.b16 %v850
        %v3020 = vunpack.c.h.b16 %v850
        %v3021 = vunpack.c.l.b16 %v851
        %v3022 = vunpack.c.h.b16 %v851
        %v3023 = vunpack.c.l.b16 %v852
        %v3024 = vunpack.c.h.b16 %v852
        %v3025 = vunpack.c.l.b16 %v853
        %v3026 = vunpack.c.h.b16 %v853
        %v3027 = vunpack.c.l.b16 %v854
        %v3028 = vunpack.c.h.b16 %v854
        %v3029 = vunpack.c.l.b16 %v855
        %v3030 = vunpack.c.h.b16 %v855
        %v3031 = vunpack.c.l.b16 %v856
        %v3032 = vunpack.c.h.b16 %v856
        %v3033 = vunpack.c.l.b16 %v857
        %v3034 = vunpack.c.h.b16 %v857
        %v3035 = vunpack.c.l.b16 %v858
        %v3036 = vunpack.c.h.b16 %v858
        %v3037 = vunpack.c.l.b16 %v859
        %v3038 = vunpack.c.h.b16 %v859
        %v3039 = vunpack.c.l.b16 %v860
        %v3040 = vunpack.c.h.b16 %v860
        %v3041 = vunpack.c.l.b16 %v861
        %v3042 = vunpack.c.h.b16 %v861
        %v3043 = vunpack.c.l.b16 %v862
        %v3044 = vunpack.c.h.b16 %v862
        %v3045 = vunpack.c.l.b16 %v863
        %v3046 = vunpack.c.h.b16 %v863
        %v3047 = vunpack.c.l.b16 %v864
        %v3048 = vunpack.c.h.b16 %v864
        %v3049 = vunpack.c.l.b16 %v865
        %v3050 = vunpack.c.h.b16 %v865
        %v3051 = vunpack.c.l.b16 %v866
        %v3052 = vunpack.c.h.b16 %v866
        %v3053 = vunpack.c.l.b16 %v867
        %v3054 = vunpack.c.h.b16 %v867
        %v3055 = vunpack.c.l.b16 %v868
        %v3056 = vunpack.c.h.b16 %v868
        %v3057 = vunpack.c.l.b16 %v869
        %v3058 = vunpack.c.h.b16 %v869
        %v3059 = vunpack.c.l.b16 %v870
        %v3060 = vunpack.c.h.b16 %v870
        %v3061 = vunpack.c.l.b16 %v871
        %v3062 = vunpack.c.h.b16 %v871
        %v3063 = vunpack.c.l.b16 %v872
        %v3064 = vunpack.c.h.b16 %v872
        %v3065 = vunpack.c.l.b16 %v873
        %v3066 = vunpack.c.h.b16 %v873
        %v3067 = vunpack.c.l.b16 %v874
        %v3068 = vunpack.c.h.b16 %v874
        %v3069 = vunpack.c.l.b16 %v875
        %v3070 = vunpack.c.h.b16 %v875
        %v3071 = vunpack.c.l.b16 %v876
        %v3072 = vunpack.c.h.b16 %v876
        %v3073 = vunpack.c.l.b16 %v877
        %v3074 = vunpack.c.h.b16 %v877
        %v3075 = vunpack.c.l.b16 %v878
        %v3076 = vunpack.c.h.b16 %v878
        %v3077 = vunpack.c.l.b16 %v879
        %v3078 = vunpack.c.h.b16 %v879
        %v3079 = vunpack.c.l.b16 %v880
        %v3080 = vunpack.c.h.b16 %v880
        %v3081 = vunpack.c.l.b16 %v881
        %v3082 = vunpack.c.h.b16 %v881
        %v3083 = vunpack.c.l.b16 %v882
        %v3084 = vunpack.c.h.b16 %v882
        %v3085 = vunpack.c.l.b16 %v883
        %v3086 = vunpack.c.h.b16 %v883
        %v3087 = vunpack.c.l.b16 %v884
        %v3088 = vunpack.c.h.b16 %v884
        %v3089 = vunpack.c.l.b16 %v885
        %v3090 = vunpack.c.h.b16 %v885
        %v3091 = vunpack.c.l.b16 %v886
        %v3092 = vunpack.c.h.b16 %v886
        %v3093 = vunpack.c.l.b16 %v887
        %v3094 = vunpack.c.h.b16 %v887
        %v3095 = vunpack.c.l.b16 %v888
        %v3096 = vunpack.c.h.b16 %v888
        %v3097 = vunpack.c.l.b16 %v889
        %v3098 = vunpack.c.h.b16 %v889
        %v3099 = vunpack.c.l.b16 %v890
        %v3100 = vunpack.c.h.b16 %v890
        %v3101 = vunpack.c.l.b16 %v891
        %v3102 = vunpack.c.h.b16 %v891
        %v3103 = vunpack.c.l.b16 %v892
        %v3104 = vunpack.c.h.b16 %v892
        %v3105 = vunpack.c.l.b16 %v893
        %v3106 = vunpack.c.h.b16 %v893
        %v3107 = vunpack.c.l.b16 %v894
        %v3108 = vunpack.c.h.b16 %v894
        %v3109 = vunpack.c.l.b16 %v895
        %v3110 = vunpack.c.h.b16 %v895
        %v3111 = vunpack.c.l.b16 %v896
        %v3112 = vunpack.c.h.b16 %v896
        %v3113 = vunpack.c.l.b16 %v897
        %v3114 = vunpack.c.h.b16 %v897
        %v3115 = vunpack.c.l.b16 %v898
        %v3116 = vunpack.c.h.b16 %v898
        %v3117 = vunpack.c.l.b16 %v899
        %v3118 = vunpack.c.h.b16 %v899
        %v3119 = vunpack.c.l.b16 %v900
        %v3120 = vunpack.c.h.b16 %v900
        %v3121 = vunpack.c.l.b16 %v901
        %v3122 = vunpack.c.h.b16 %v901
        %v3123 = vunpack.c.l.b16 %v902
        %v3124 = vunpack.c.h.b16 %v902
        %v3125 = vunpack.c.l.b16 %v903
        %v3126 = vunpack.c.h.b16 %v903
        %v3127 = vunpack.c.l.b16 %v904
        %v3128 = vunpack.c.h.b16 %v904
        %v3129 = vunpack.c.l.b16 %v905
        %v3130 = vunpack.c.h.b16 %v905
        %v3131 = vunpack.c.l.b16 %v906
        %v3132 = vunpack.c.h.b16 %v906
        %v3133 = vunpack.c.l.b16 %v907
        %v3134 = vunpack.c.h.b16 %v907
        %v3135 = vunpack.c.l.b16 %v908
        %v3136 = vunpack.c.h.b16 %v908
        %v3137 = vunpack.c.l.b16 %v909
        %v3138 = vunpack.c.h.b16 %v909
        %v3139 = vunpack.c.l.b16 %v910
        %v3140 = vunpack.c.h.b16 %v910
        %v3141 = vunpack.c.l.b16 %v911
        %v3142 = vunpack.c.h.b16 %v911
        %v3143 = vunpack.c.l.b16 %v912
        %v3144 = vunpack.c.h.b16 %v912
        %v3145 = vunpack.c.l.b16 %v913
        %v3146 = vunpack.c.h.b16 %v913
        %v3147 = vunpack.c.l.b16 %v914
        %v3148 = vunpack.c.h.b16 %v914
        %v3149 = vunpack.c.l.b16 %v915
        %v3150 = vunpack.c.h.b16 %v915
        %v3151 = vunpack.c.l.b16 %v916
        %v3152 = vunpack.c.h.b16 %v916
        %v3153 = vunpack.c.l.b16 %v917
        %v3154 = vunpack.c.h.b16 %v917
        %v3155 = vunpack.c.l.b16 %v918
        %v3156 = vunpack.c.h.b16 %v918
        %v3157 = vunpack.c.l.b16 %v919
        %v3158 = vunpack.c.h.b16 %v919
        %v3159 = vunpack.c.l.b16 %v920
        %v3160 = vunpack.c.h.b16 %v920
        %v3161 = vunpack.c.l.b16 %v921
        %v3162 = vunpack.c.h.b16 %v921
        %v3163 = vunpack.c.l.b16 %v922
        %v3164 = vunpack.c.h.b16 %v922
        %v3165 = vunpack.c.l.b16 %v923
        %v3166 = vunpack.c.h.b16 %v923
        %v3167 = vunpack.c.l.b16 %v924
        %v3168 = vunpack.c.h.b16 %v924
        %v3169 = vunpack.c.l.b16 %v925
        %v3170 = vunpack.c.h.b16 %v925
        %v3171 = vunpack.c.l.b16 %v926
        %v3172 = vunpack.c.h.b16 %v926
        %v3173 = vunpack.c.l.b16 %v927
        %v3174 = vunpack.c.h.b16 %v927
        %v3175 = vunpack.c.l.b16 %v928
        %v3176 = vunpack.c.h.b16 %v928
        %v3177 = vunpack.c.l.b16 %v929
        %v3178 = vunpack.c.h.b16 %v929
        %v3179 = vunpack.c.l.b16 %v930
        %v3180 = vunpack.c.h.b16 %v930
        %v3181 = vunpack.c.l.b16 %v931
        %v3182 = vunpack.c.h.b16 %v931
        %v3183 = vunpack.c.l.b16 %v932
        %v3184 = vunpack.c.h.b16 %v932
        %v3185 = vunpack.c.l.b16 %v933
        %v3186 = vunpack.c.h.b16 %v933
        %v3187 = vunpack.c.l.b16 %v934
        %v3188 = vunpack.c.h.b16 %v934
        %v3189 = vunpack.c.l.b16 %v935
        %v3190 = vunpack.c.h.b16 %v935
        %v3191 = vunpack.c.l.b16 %v936
        %v3192 = vunpack.c.h.b16 %v936
        %v3193 = vunpack.c.l.b16 %v937
        %v3194 = vunpack.c.h.b16 %v937
        %v3195 = vunpack.c.l.b16 %v938
        %v3196 = vunpack.c.h.b16 %v938
        %v3197 = vunpack.c.l.b16 %v939
        %v3198 = vunpack.c.h.b16 %v939
        %v3199 = vunpack.c.l.b16 %v940
        %v3200 = vunpack.c.h.b16 %v940
        %v3201 = vunpack.c.l.b16 %v941
        %v3202 = vunpack.c.h.b16 %v941
        %v3203 = vunpack.c.l.b16 %v942
        %v3204 = vunpack.c.h.b16 %v942
        %v3205 = vunpack.c.l.b16 %v943
        %v3206 = vunpack.c.h.b16 %v943
        %v3207 = vunpack.c.l.b16 %v944
        %v3208 = vunpack.c.h.b16 %v944
        %v3209 = vunpack.c.l.b16 %v945
        %v3210 = vunpack.c.h.b16 %v945
        %v3211 = vunpack.c.l.b16 %v946
        %v3212 = vunpack.c.h.b16 %v946
        %v3213 = vunpack.c.l.b16 %v947
        %v3214 = vunpack.c.h.b16 %v947
        %v3215 = vunpack.c.l.b16 %v948
        %v3216 = vunpack.c.h.b16 %v948
        %v3217 = vunpack.c.l.b16 %v949
        %v3218 = vunpack.c.h.b16 %v949
        %v3219 = vunpack.c.l.b16 %v950
        %v3220 = vunpack.c.h.b16 %v950
        %v3221 = vunpack.c.l.b16 %v951
        %v3222 = vunpack.c.h.b16 %v951
        %v3223 = vunpack.c.l.b16 %v952
        %v3224 = vunpack.c.h.b16 %v952
        %v3225 = vunpack.c.l.b16 %v953
        %v3226 = vunpack.c.h.b16 %v953
        %v3227 = vunpack.c.l.b16 %v954
        %v3228 = vunpack.c.h.b16 %v954
        %v3229 = vunpack.c.l.b16 %v955
        %v3230 = vunpack.c.h.b16 %v955
        %v3231 = vunpack.c.l.b16 %v956
        %v3232 = vunpack.c.h.b16 %v956
        %v3233 = vunpack.c.l.b16 %v957
        %v3234 = vunpack.c.h.b16 %v957
        %v3235 = vunpack.c.l.b16 %v958
        %v3236 = vunpack.c.h.b16 %v958
        %v3237 = vunpack.c.l.b16 %v959
        %v3238 = vunpack.c.h.b16 %v959
        %v3239 = vunpack.c.l.b16 %v960
        %v3240 = vunpack.c.h.b16 %v960
        %v3241 = vunpack.c.l.b16 %v961
        %v3242 = vunpack.c.h.b16 %v961
        %v3243 = vunpack.c.l.b16 %v962
        %v3244 = vunpack.c.h.b16 %v962
        %v3245 = vunpack.c.l.b16 %v963
        %v3246 = vunpack.c.h.b16 %v963
        %v3247 = vunpack.c.l.b16 %v964
        %v3248 = vunpack.c.h.b16 %v964
        %v3249 = vunpack.c.l.b16 %v965
        %v3250 = vunpack.c.h.b16 %v965
        %v3251 = vunpack.c.l.b16 %v966
        %v3252 = vunpack.c.h.b16 %v966
        %v3253 = vunpack.c.l.b16 %v967
        %v3254 = vunpack.c.h.b16 %v967
        %v3255 = vunpack.c.l.b16 %v968
        %v3256 = vunpack.c.h.b16 %v968
        %v3257 = vunpack.c.l.b16 %v969
        %v3258 = vunpack.c.h.b16 %v969
        %v3259 = vunpack.c.l.b16 %v970
        %v3260 = vunpack.c.h.b16 %v970
        %v3261 = vunpack.c.l.b16 %v971
        %v3262 = vunpack.c.h.b16 %v971
        %v3263 = vunpack.c.l.b16 %v972
        %v3264 = vunpack.c.h.b16 %v972
        %v3265 = vunpack.c.l.b16 %v973
        %v3266 = vunpack.c.h.b16 %v973
        %v3267 = vunpack.c.l.b16 %v974
        %v3268 = vunpack.c.h.b16 %v974
        %v3269 = vunpack.c.l.b16 %v975
        %v3270 = vunpack.c.h.b16 %v975
        %v3271 = vunpack.c.l.b16 %v976
        %v3272 = vunpack.c.h.b16 %v976
        %v3273 = vunpack.c.l.b16 %v977
        %v3274 = vunpack.c.h.b16 %v977
        %v3275 = vunpack.c.l.b16 %v978
        %v3276 = vunpack.c.h.b16 %v978
        %v3277 = vunpack.c.l.b16 %v979
        %v3278 = vunpack.c.h.b16 %v979
        %v3279 = vunpack.c.l.b16 %v980
        %v3280 = vunpack.c.h.b16 %v980
        %v3281 = vunpack.c.l.b16 %v981
        %v3282 = vunpack.c.h.b16 %v981
        %v3283 = vunpack.c.l.b16 %v982
        %v3284 = vunpack.c.h.b16 %v982
        %v3285 = vunpack.c.l.b16 %v983
        %v3286 = vunpack.c.h.b16 %v983
        %v3287 = vunpack.c.l.b16 %v984
        %v3288 = vunpack.c.h.b16 %v984
        %v3289 = vunpack.c.l.b16 %v985
        %v3290 = vunpack.c.h.b16 %v985
        %v3291 = vunpack.c.l.b16 %v986
        %v3292 = vunpack.c.h.b16 %v986
        %v3293 = vunpack.c.l.b16 %v987
        %v3294 = vunpack.c.h.b16 %v987
        %v3295 = vunpack.c.l.b16 %v988
        %v3296 = vunpack.c.h.b16 %v988
        %v3297 = vunpack.c.l.b16 %v989
        %v3298 = vunpack.c.h.b16 %v989
        %v3299 = vunpack.c.l.b16 %v990
        %v3300 = vunpack.c.h.b16 %v990
        %v3301 = vunpack.c.l.b16 %v991
        %v3302 = vunpack.c.h.b16 %v991
        %v3303 = vunpack.c.l.b16 %v992
        %v3304 = vunpack.c.h.b16 %v992
        %v3305 = vunpack.c.l.b16 %v993
        %v3306 = vunpack.c.h.b16 %v993
        %v3307 = vunpack.c.l.b16 %v994
        %v3308 = vunpack.c.h.b16 %v994
        %v3309 = vunpack.c.l.b16 %v995
        %v3310 = vunpack.c.h.b16 %v995
        %v3311 = vunpack.c.l.b16 %v996
        %v3312 = vunpack.c.h.b16 %v996
        %v3313 = vunpack.c.l.b16 %v997
        %v3314 = vunpack.c.h.b16 %v997
        %v3315 = vunpack.c.l.b16 %v998
        %v3316 = vunpack.c.h.b16 %v998
        %v3317 = vunpack.c.l.b16 %v999
        %v3318 = vunpack.c.h.b16 %v999
        %v3319 = vunpack.c.l.b16 %v1000
        %v3320 = vunpack.c.h.b16 %v1000
        %v3321 = vunpack.c.l.b16 %v1001
        %v3322 = vunpack.c.h.b16 %v1001
        %v3323 = vunpack.c.l.b16 %v1002
        %v3324 = vunpack.c.h.b16 %v1002
        %v3325 = vunpack.c.l.b16 %v1003
        %v3326 = vunpack.c.h.b16 %v1003
        %v3327 = vunpack.c.l.b16 %v1004
        %v3328 = vunpack.c.h.b16 %v1004
        %v3329 = vunpack.c.l.b16 %v1005
        %v3330 = vunpack.c.h.b16 %v1005
        %v3331 = vunpack.c.l.b16 %v1006
        %v3332 = vunpack.c.h.b16 %v1006
        %v3333 = vunpack.c.l.b16 %v1007
        %v3334 = vunpack.c.h.b16 %v1007
        %v3335 = vunpack.c.l.b16 %v1008
        %v3336 = vunpack.c.h.b16 %v1008
        %v3337 = vunpack.c.l.b16 %v1009
        %v3338 = vunpack.c.h.b16 %v1009
        %v3339 = vunpack.c.l.b16 %v1010
        %v3340 = vunpack.c.h.b16 %v1010
        %v3341 = vunpack.c.l.b16 %v1011
        %v3342 = vunpack.c.h.b16 %v1011
        %v3343 = vunpack.c.l.b16 %v1012
        %v3344 = vunpack.c.h.b16 %v1012
        %v3345 = vunpack.c.l.b16 %v1013
        %v3346 = vunpack.c.h.b16 %v1013
        %v3347 = vunpack.c.l.b16 %v1014
        %v3348 = vunpack.c.h.b16 %v1014
        %v3349 = vunpack.c.l.b16 %v1015
        %v3350 = vunpack.c.h.b16 %v1015
        %v3351 = vunpack.c.l.b16 %v1016
        %v3352 = vunpack.c.h.b16 %v1016
        %v3353 = vunpack.c.l.b16 %v1017
        %v3354 = vunpack.c.h.b16 %v1017
        %v3355 = vunpack.c.l.b16 %v1018
        %v3356 = vunpack.c.h.b16 %v1018
        %v3357 = vunpack.c.l.b16 %v1019
        %v3358 = vunpack.c.h.b16 %v1019
        %v3359 = vunpack.c.l.b16 %v1020
        %v3360 = vunpack.c.h.b16 %v1020
        %v3361 = vunpack.c.l.b16 %v1021
        %v3362 = vunpack.c.h.b16 %v1021
        %v3363 = vunpack.c.l.b16 %v1022
        %v3364 = vunpack.c.h.b16 %v1022
        %v3365 = vunpack.c.l.b16 %v1023
        %v3366 = vunpack.c.h.b16 %v1023
        %v3367 = vunpack.c.l.b16 %v1024
        %v3368 = vunpack.c.h.b16 %v1024
        %v3369 = vunpack.c.l.b16 %v1025
        %v3370 = vunpack.c.h.b16 %v1025
        %v3371 = vunpack.c.l.b16 %v1026
        %v3372 = vunpack.c.h.b16 %v1026
        %v3373 = vunpack.c.l.b16 %v1027
        %v3374 = vunpack.c.h.b16 %v1027
        %v3375 = vunpack.c.l.b16 %v1028
        %v3376 = vunpack.c.h.b16 %v1028
        %v3377 = vunpack.c.l.b16 %v1029
        %v3378 = vunpack.c.h.b16 %v1029
        %v3379 = vunpack.c.l.b16 %v1030
        %v3380 = vunpack.c.h.b16 %v1030
        %v3381 = vunpack.c.l.b16 %v1031
        %v3382 = vunpack.c.h.b16 %v1031
        %v3383 = vunpack.c.l.b16 %v1032
        %v3384 = vunpack.c.h.b16 %v1032
        %v3385 = vunpack.c.l.b16 %v1033
        %v3386 = vunpack.c.h.b16 %v1033
        %v3387 = vunpack.c.l.b16 %v1034
        %v3388 = vunpack.c.h.b16 %v1034
        %v3389 = vunpack.c.l.b16 %v1035
        %v3390 = vunpack.c.h.b16 %v1035
        %v3391 = vunpack.c.l.b16 %v1036
        %v3392 = vunpack.c.h.b16 %v1036
        %v3393 = vunpack.c.l.b16 %v1037
        %v3394 = vunpack.c.h.b16 %v1037
        %v3395 = vunpack.c.l.b16 %v1038
        %v3396 = vunpack.c.h.b16 %v1038
        %v3397 = vunpack.c.l.b16 %v1039
        %v3398 = vunpack.c.h.b16 %v1039
        %v3399 = vunpack.c.l.b16 %v1040
        %v3400 = vunpack.c.h.b16 %v1040
        %v3401 = vunpack.c.l.b16 %v1041
        %v3402 = vunpack.c.h.b16 %v1041
        %v3403 = vunpack.c.l.b16 %v1042
        %v3404 = vunpack.c.h.b16 %v1042
        %v3405 = vunpack.c.l.b16 %v1043
        %v3406 = vunpack.c.h.b16 %v1043
        %v3407 = vunpack.c.l.b16 %v1044
        %v3408 = vunpack.c.h.b16 %v1044
        %v3409 = vunpack.c.l.b16 %v1045
        %v3410 = vunpack.c.h.b16 %v1045
        %v3411 = vunpack.c.l.b16 %v1046
        %v3412 = vunpack.c.h.b16 %v1046
        %v3413 = vunpack.c.l.b16 %v1047
        %v3414 = vunpack.c.h.b16 %v1047
        %v3415 = vunpack.c.l.b16 %v1048
        %v3416 = vunpack.c.h.b16 %v1048
        %v3417 = vunpack.c.l.b16 %v1049
        %v3418 = vunpack.c.h.b16 %v1049
        %v3419 = vunpack.c.l.b16 %v1050
        %v3420 = vunpack.c.h.b16 %v1050
        %v3421 = vunpack.c.l.b16 %v1051
        %v3422 = vunpack.c.h.b16 %v1051
        %v3423 = vunpack.c.l.b16 %v1052
        %v3424 = vunpack.c.h.b16 %v1052
        %v3425 = vunpack.c.l.b16 %v1053
        %v3426 = vunpack.c.h.b16 %v1053
        %v3427 = vunpack.c.l.b16 %v1054
        %v3428 = vunpack.c.h.b16 %v1054
        %v3429 = vunpack.c.l.b16 %v1055
        %v3430 = vunpack.c.h.b16 %v1055
        %v3431 = vunpack.c.l.b16 %v1056
        %v3432 = vunpack.c.h.b16 %v1056
        %v3433 = vunpack.c.l.b16 %v1057
        %v3434 = vunpack.c.h.b16 %v1057
        %v3435 = vunpack.c.l.b16 %v1058
        %v3436 = vunpack.c.h.b16 %v1058
        %v3437 = vunpack.c.l.b16 %v1059
        %v3438 = vunpack.c.h.b16 %v1059
        %v3439 = vunpack.c.l.b16 %v1060
        %v3440 = vunpack.c.h.b16 %v1060
        %v3441 = vunpack.c.l.b16 %v1061
        %v3442 = vunpack.c.h.b16 %v1061
        %v3443 = vunpack.c.l.b16 %v1062
        %v3444 = vunpack.c.h.b16 %v1062
        %v3445 = vunpack.c.l.b16 %v1063
        %v3446 = vunpack.c.h.b16 %v1063
        %v3447 = vunpack.c.l.b16 %v1064
        %v3448 = vunpack.c.h.b16 %v1064
        %v3449 = vunpack.c.l.b16 %v1065
        %v3450 = vunpack.c.h.b16 %v1065
        %v3451 = vunpack.c.l.b16 %v1066
        %v3452 = vunpack.c.h.b16 %v1066
        %v3453 = vunpack.c.l.b16 %v1067
        %v3454 = vunpack.c.h.b16 %v1067
        %v3455 = vunpack.c.l.b16 %v1068
        %v3456 = vunpack.c.h.b16 %v1068
        %v3457 = vunpack.c.l.b16 %v1069
        %v3458 = vunpack.c.h.b16 %v1069
        %v3459 = vunpack.c.l.b16 %v1070
        %v3460 = vunpack.c.h.b16 %v1070
        %v3461 = vunpack.c.l.b16 %v1071
        %v3462 = vunpack.c.h.b16 %v1071
        %v3463 = vunpack.c.l.b16 %v1072
        %v3464 = vunpack.c.h.b16 %v1072
        %v3465 = vunpack.c.l.b16 %v1073
        %v3466 = vunpack.c.h.b16 %v1073
        %v3467 = vunpack.c.l.b16 %v1074
        %v3468 = vunpack.c.h.b16 %v1074
        %v3469 = vunpack.c.l.b16 %v1075
        %v3470 = vunpack.c.h.b16 %v1075
        %v3471 = vunpack.c.l.b16 %v1076
        %v3472 = vunpack.c.h.b16 %v1076
        %v3473 = vunpack.c.l.b16 %v1077
        %v3474 = vunpack.c.h.b16 %v1077
        %v3475 = vunpack.c.l.b16 %v1078
        %v3476 = vunpack.c.h.b16 %v1078
        %v3477 = vunpack.c.l.b16 %v1079
        %v3478 = vunpack.c.h.b16 %v1079
        %v3479 = vunpack.c.l.b16 %v1080
        %v3480 = vunpack.c.h.b16 %v1080
        %v3481 = vunpack.c.l.b16 %v1081
        %v3482 = vunpack.c.h.b16 %v1081
        %v3483 = vunpack.c.l.b16 %v1082
        %v3484 = vunpack.c.h.b16 %v1082
        %v3485 = vunpack.c.l.b16 %v1083
        %v3486 = vunpack.c.h.b16 %v1083
        %v3487 = vunpack.c.l.b16 %v1084
        %v3488 = vunpack.c.h.b16 %v1084
        %v3489 = vunpack.c.l.b16 %v1085
        %v3490 = vunpack.c.h.b16 %v1085
        %v3491 = vunpack.c.l.b16 %v1086
        %v3492 = vunpack.c.h.b16 %v1086
        %v3493 = vunpack.c.l.b16 %v1087
        %v3494 = vunpack.c.h.b16 %v1087
        %v3495 = vunpack.c.l.b16 %v1088
        %v3496 = vunpack.c.h.b16 %v1088
        %v3497 = vunpack.c.l.b16 %v1089
        %v3498 = vunpack.c.h.b16 %v1089
        %v3499 = vunpack.c.l.b16 %v1090
        %v3500 = vunpack.c.h.b16 %v1090
        %v3501 = vunpack.c.l.b16 %v1091
        %v3502 = vunpack.c.h.b16 %v1091
        %v3503 = vunpack.c.l.b16 %v1092
        %v3504 = vunpack.c.h.b16 %v1092
        %v3505 = vunpack.c.l.b16 %v1093
        %v3506 = vunpack.c.h.b16 %v1093
        %v3507 = vunpack.c.l.b16 %v1094
        %v3508 = vunpack.c.h.b16 %v1094
        %v3509 = vunpack.c.l.b16 %v1095
        %v3510 = vunpack.c.h.b16 %v1095
        %v3511 = vunpack.c.l.b16 %v1096
        %v3512 = vunpack.c.h.b16 %v1096
        %v3513 = vunpack.c.l.b16 %v1097
        %v3514 = vunpack.c.h.b16 %v1097
        %v3515 = vunpack.c.l.b16 %v1098
        %v3516 = vunpack.c.h.b16 %v1098
        %v3517 = vunpack.c.l.b16 %v1099
        %v3518 = vunpack.c.h.b16 %v1099
        %v3519 = vunpack.c.l.b16 %v1100
        %v3520 = vunpack.c.h.b16 %v1100
        %v3521 = vunpack.c.l.b16 %v1101
        %v3522 = vunpack.c.h.b16 %v1101
        %v3523 = vunpack.c.l.b16 %v1102
        %v3524 = vunpack.c.h.b16 %v1102
        %v3525 = vunpack.c.l.b16 %v1103
        %v3526 = vunpack.c.h.b16 %v1103
        %v3527 = vunpack.c.l.b16 %v1104
        %v3528 = vunpack.c.h.b16 %v1104
        %v3529 = vunpack.c.l.b16 %v1105
        %v3530 = vunpack.c.h.b16 %v1105
        %v3531 = vunpack.c.l.b16 %v1106
        %v3532 = vunpack.c.h.b16 %v1106
        %v3533 = vunpack.c.l.b16 %v1107
        %v3534 = vunpack.c.h.b16 %v1107
        %v3535 = vunpack.c.l.b16 %v1108
        %v3536 = vunpack.c.h.b16 %v1108
        %v3537 = vunpack.c.l.b16 %v1109
        %v3538 = vunpack.c.h.b16 %v1109
        %v3539 = vunpack.c.l.b16 %v1110
        %v3540 = vunpack.c.h.b16 %v1110
        %v3541 = vunpack.c.l.b16 %v1111
        %v3542 = vunpack.c.h.b16 %v1111
        %v3543 = vunpack.c.l.b16 %v1112
        %v3544 = vunpack.c.h.b16 %v1112
        %v3545 = vunpack.c.l.b16 %v1113
        %v3546 = vunpack.c.h.b16 %v1113
        %v3547 = vunpack.c.l.b16 %v1114
        %v3548 = vunpack.c.h.b16 %v1114
        %v3549 = vunpack.c.l.b16 %v1115
        %v3550 = vunpack.c.h.b16 %v1115
        %v3551 = vunpack.c.l.b16 %v1116
        %v3552 = vunpack.c.h.b16 %v1116
        %v3553 = vunpack.c.l.b16 %v1117
        %v3554 = vunpack.c.h.b16 %v1117
        %v3555 = vunpack.c.l.b16 %v1118
        %v3556 = vunpack.c.h.b16 %v1118
        %v3557 = vunpack.c.l.b16 %v1119
        %v3558 = vunpack.c.h.b16 %v1119
        %v3559 = vunpack.c.l.b16 %v1120
        %v3560 = vunpack.c.h.b16 %v1120
        %v3561 = vunpack.c.l.b16 %v1121
        %v3562 = vunpack.c.h.b16 %v1121
        %v3563 = vunpack.c.l.b16 %v1122
        %v3564 = vunpack.c.h.b16 %v1122
        %v3565 = vunpack.c.l.b16 %v1123
        %v3566 = vunpack.c.h.b16 %v1123
        %v3567 = vunpack.c.l.b16 %v1124
        %v3568 = vunpack.c.h.b16 %v1124
        %v3569 = vunpack.c.l.b16 %v1125
        %v3570 = vunpack.c.h.b16 %v1125
        %v3571 = vunpack.c.l.b16 %v1126
        %v3572 = vunpack.c.h.b16 %v1126
        %v3573 = vunpack.c.l.b16 %v1127
        %v3574 = vunpack.c.h.b16 %v1127
        %v3575 = vunpack.c.l.b16 %v1128
        %v3576 = vunpack.c.h.b16 %v1128
        %v3577 = vunpack.c.l.b16 %v1129
        %v3578 = vunpack.c.h.b16 %v1129
        %v3579 = vunpack.c.l.b16 %v1130
        %v3580 = vunpack.c.h.b16 %v1130
        %v3581 = vunpack.c.l.b16 %v1131
        %v3582 = vunpack.c.h.b16 %v1131
        %v3583 = vunpack.c.l.b16 %v1132
        %v3584 = vunpack.c.h.b16 %v1132
        %v3585 = vunpack.c.l.b16 %v1133
        %v3586 = vunpack.c.h.b16 %v1133
        %v3587 = vunpack.c.l.b16 %v1134
        %v3588 = vunpack.c.h.b16 %v1134
        %v3589 = vunpack.c.l.b16 %v1135
        %v3590 = vunpack.c.h.b16 %v1135
        %v3591 = vunpack.c.l.b16 %v1136
        %v3592 = vunpack.c.h.b16 %v1136
        %v3593 = vunpack.c.l.b16 %v1137
        %v3594 = vunpack.c.h.b16 %v1137
        %v3595 = vunpack.c.l.b16 %v1138
        %v3596 = vunpack.c.h.b16 %v1138
        %v3597 = vunpack.c.l.b16 %v1139
        %v3598 = vunpack.c.h.b16 %v1139
        %v3599 = vunpack.c.l.b16 %v1140
        %v3600 = vunpack.c.h.b16 %v1140
        %v3601 = vunpack.c.l.b16 %v1141
        %v3602 = vunpack.c.h.b16 %v1141
        %v3603 = vunpack.c.l.b16 %v1142
        %v3604 = vunpack.c.h.b16 %v1142
        %v3605 = vunpack.c.l.b16 %v1143
        %v3606 = vunpack.c.h.b16 %v1143
        %v3607 = vunpack.c.l.b16 %v1144
        %v3608 = vunpack.c.h.b16 %v1144
        %v3609 = vunpack.c.l.b16 %v1145
        %v3610 = vunpack.c.h.b16 %v1145
        %v3611 = vunpack.c.l.b16 %v1146
        %v3612 = vunpack.c.h.b16 %v1146
        %v3613 = vunpack.c.l.b16 %v1147
        %v3614 = vunpack.c.h.b16 %v1147
        %v3615 = vunpack.c.l.b16 %v1148
        %v3616 = vunpack.c.h.b16 %v1148
        %v3617 = vunpack.c.l.b16 %v1149
        %v3618 = vunpack.c.h.b16 %v1149
        %v3619 = vunpack.c.l.b16 %v1150
        %v3620 = vunpack.c.h.b16 %v1150
        %v3621 = vunpack.c.l.b16 %v1151
        %v3622 = vunpack.c.h.b16 %v1151
        %v3623 = vunpack.c.l.b16 %v1152
        %v3624 = vunpack.c.h.b16 %v1152
        %v3625 = vunpack.c.l.b16 %v1153
        %v3626 = vunpack.c.h.b16 %v1153
        %v3627 = vunpack.c.l.b16 %v1154
        %v3628 = vunpack.c.h.b16 %v1154
        %v3629 = vunpack.c.l.b16 %v1155
        %v3630 = vunpack.c.h.b16 %v1155
        %v3631 = vunpack.c.l.b16 %v1156
        %v3632 = vunpack.c.h.b16 %v1156
        %v3633 = vunpack.c.l.b16 %v1157
        %v3634 = vunpack.c.h.b16 %v1157
        %v3635 = vunpack.c.l.b16 %v1158
        %v3636 = vunpack.c.h.b16 %v1158
        %v3637 = vunpack.c.l.b16 %v1159
        %v3638 = vunpack.c.h.b16 %v1159
        %v3639 = vpack.c.b16 %v2107, %v2103
        %v3640 = vpack.c.b16 %v2108, %v2104
        %v3641 = vpack.c.b16 %v2109, %v2105
        %v3642 = vpack.c.b16 %v2110, %v2106
        %v3643 = vpack.c.b16 %v2115, %v2111
        %v3644 = vpack.c.b16 %v2116, %v2112
        %v3645 = vpack.c.b16 %v2117, %v2113
        %v3646 = vpack.c.b16 %v2118, %v2114
        %v3647 = vpack.c.b16 %v2123, %v2119
        %v3648 = vpack.c.b16 %v2124, %v2120
        %v3649 = vpack.c.b16 %v2125, %v2121
        %v3650 = vpack.c.b16 %v2126, %v2122
        %v3651 = vpack.c.b16 %v2131, %v2127
        %v3652 = vpack.c.b16 %v2132, %v2128
        %v3653 = vpack.c.b16 %v2133, %v2129
        %v3654 = vpack.c.b16 %v2134, %v2130
        %v3655 = vpack.c.b16 %v2139, %v2135
        %v3656 = vpack.c.b16 %v2140, %v2136
        %v3657 = vpack.c.b16 %v2141, %v2137
        %v3658 = vpack.c.b16 %v2142, %v2138
        %v3659 = vpack.c.b16 %v2147, %v2143
        %v3660 = vpack.c.b16 %v2148, %v2144
        %v3661 = vpack.c.b16 %v2149, %v2145
        %v3662 = vpack.c.b16 %v2150, %v2146
        %v3663 = vpack.c.b16 %v2155, %v2151
        %v3664 = vpack.c.b16 %v2156, %v2152
        %v3665 = vpack.c.b16 %v2157, %v2153
        %v3666 = vpack.c.b16 %v2158, %v2154
        %v3667 = vpack.c.b16 %v2163, %v2159
        %v3668 = vpack.c.b16 %v2164, %v2160
        %v3669 = vpack.c.b16 %v2165, %v2161
        %v3670 = vpack.c.b16 %v2166, %v2162
        %v3671 = vpack.c.b16 %v2171, %v2167
        %v3672 = vpack.c.b16 %v2172, %v2168
        %v3673 = vpack.c.b16 %v2173, %v2169
        %v3674 = vpack.c.b16 %v2174, %v2170
        %v3675 = vpack.c.b16 %v2179, %v2175
        %v3676 = vpack.c.b16 %v2180, %v2176
        %v3677 = vpack.c.b16 %v2181, %v2177
        %v3678 = vpack.c.b16 %v2182, %v2178
        %v3679 = vpack.c.b16 %v2187, %v2183
        %v3680 = vpack.c.b16 %v2188, %v2184
        %v3681 = vpack.c.b16 %v2189, %v2185
        %v3682 = vpack.c.b16 %v2190, %v2186
        %v3683 = vpack.c.b16 %v2195, %v2191
        %v3684 = vpack.c.b16 %v2196, %v2192
        %v3685 = vpack.c.b16 %v2197, %v2193
        %v3686 = vpack.c.b16 %v2198, %v2194
        %v3687 = vpack.c.b16 %v2203, %v2199
        %v3688 = vpack.c.b16 %v2204, %v2200
        %v3689 = vpack.c.b16 %v2205, %v2201
        %v3690 = vpack.c.b16 %v2206, %v2202
        %v3691 = vpack.c.b16 %v2211, %v2207
        %v3692 = vpack.c.b16 %v2212, %v2208
        %v3693 = vpack.c.b16 %v2213, %v2209
        %v3694 = vpack.c.b16 %v2214, %v2210
        %v3695 = vpack.c.b16 %v2219, %v2215
        %v3696 = vpack.c.b16 %v2220, %v2216
        %v3697 = vpack.c.b16 %v2221, %v2217
        %v3698 = vpack.c.b16 %v2222, %v2218
        %v3699 = vpack.c.b16 %v2227, %v2223
        %v3700 = vpack.c.b16 %v2228, %v2224
        %v3701 = vpack.c.b16 %v2229, %v2225
        %v3702 = vpack.c.b16 %v2230, %v2226
        %v3703 = vpack.c.b16 %v2235, %v2231
        %v3704 = vpack.c.b16 %v2236, %v2232
        %v3705 = vpack.c.b16 %v2237, %v2233
        %v3706 = vpack.c.b16 %v2238, %v2234
        %v3707 = vpack.c.b16 %v2243, %v2239
        %v3708 = vpack.c.b16 %v2244, %v2240
        %v3709 = vpack.c.b16 %v2245, %v2241
        %v3710 = vpack.c.b16 %v2246, %v2242
        %v3711 = vpack.c.b16 %v2251, %v2247
        %v3712 = vpack.c.b16 %v2252, %v2248
        %v3713 = vpack.c.b16 %v2253, %v2249
        %v3714 = vpack.c.b16 %v2254, %v2250
        %v3715 = vpack.c.b16 %v2259, %v2255
        %v3716 = vpack.c.b16 %v2260, %v2256
        %v3717 = vpack.c.b16 %v2261, %v2257
        %v3718 = vpack.c.b16 %v2262, %v2258
        %v3719 = vpack.c.b16 %v2267, %v2263
        %v3720 = vpack.c.b16 %v2268, %v2264
        %v3721 = vpack.c.b16 %v2269, %v2265
        %v3722 = vpack.c.b16 %v2270, %v2266
        %v3723 = vpack.c.b16 %v2275, %v2271
        %v3724 = vpack.c.b16 %v2276, %v2272
        %v3725 = vpack.c.b16 %v2277, %v2273
        %v3726 = vpack.c.b16 %v2278, %v2274
        %v3727 = vpack.c.b16 %v2283, %v2279
        %v3728 = vpack.c.b16 %v2284, %v2280
        %v3729 = vpack.c.b16 %v2285, %v2281
        %v3730 = vpack.c.b16 %v2286, %v2282
        %v3731 = vpack.c.b16 %v2291, %v2287
        %v3732 = vpack.c.b16 %v2292, %v2288
        %v3733 = vpack.c.b16 %v2293, %v2289
        %v3734 = vpack.c.b16 %v2294, %v2290
        %v3735 = vpack.c.b16 %v2299, %v2295
        %v3736 = vpack.c.b16 %v2300, %v2296
        %v3737 = vpack.c.b16 %v2301, %v2297
        %v3738 = vpack.c.b16 %v2302, %v2298
        %v3739 = vpack.c.b16 %v2307, %v2303
        %v3740 = vpack.c.b16 %v2308, %v2304
        %v3741 = vpack.c.b16 %v2309, %v2305
        %v3742 = vpack.c.b16 %v2310, %v2306
        %v3743 = vpack.c.b16 %v2315, %v2311
        %v3744 = vpack.c.b16 %v2316, %v2312
        %v3745 = vpack.c.b16 %v2317, %v2313
        %v3746 = vpack.c.b16 %v2318, %v2314
        %v3747 = vpack.c.b16 %v2323, %v2319
        %v3748 = vpack.c.b16 %v2324, %v2320
        %v3749 = vpack.c.b16 %v2325, %v2321
        %v3750 = vpack.c.b16 %v2326, %v2322
        %v3751 = vpack.c.b16 %v2331, %v2327
        %v3752 = vpack.c.b16 %v2332, %v2328
        %v3753 = vpack.c.b16 %v2333, %v2329
        %v3754 = vpack.c.b16 %v2334, %v2330
        %v3755 = vpack.c.b16 %v2339, %v2335
        %v3756 = vpack.c.b16 %v2340, %v2336
        %v3757 = vpack.c.b16 %v2341, %v2337
        %v3758 = vpack.c.b16 %v2342, %v2338
        %v3759 = vpack.c.b16 %v2347, %v2343
        %v3760 = vpack.c.b16 %v2348, %v2344
        %v3761 = vpack.c.b16 %v2349, %v2345
        %v3762 = vpack.c.b16 %v2350, %v2346
        %v3763 = vpack.c.b16 %v2355, %v2351
        %v3764 = vpack.c.b16 %v2356, %v2352
        %v3765 = vpack.c.b16 %v2357, %v2353
        %v3766 = vpack.c.b16 %v2358, %v2354
        %v3767 = vpack.c.b16 %v2363, %v2359
        %v3768 = vpack.c.b16 %v2364, %v2360
        %v3769 = vpack.c.b16 %v2365, %v2361
        %v3770 = vpack.c.b16 %v2366, %v2362
        %v3771 = vpack.c.b16 %v2371, %v2367
        %v3772 = vpack.c.b16 %v2372, %v2368
        %v3773 = vpack.c.b16 %v2373, %v2369
        %v3774 = vpack.c.b16 %v2374, %v2370
        %v3775 = vpack.c.b16 %v2379, %v2375
        %v3776 = vpack.c.b16 %v2380, %v2376
        %v3777 = vpack.c.b16 %v2381, %v2377
        %v3778 = vpack.c.b16 %v2382, %v2378
        %v3779 = vpack.c.b16 %v2387, %v2383
        %v3780 = vpack.c.b16 %v2388, %v2384
        %v3781 = vpack.c.b16 %v2389, %v2385
        %v3782 = vpack.c.b16 %v2390, %v2386
        %v3783 = vpack.c.b16 %v2395, %v2391
        %v3784 = vpack.c.b16 %v2396, %v2392
        %v3785 = vpack.c.b16 %v2397, %v2393
        %v3786 = vpack.c.b16 %v2398, %v2394
        %v3787 = vpack.c.b16 %v2403, %v2399
        %v3788 = vpack.c.b16 %v2404, %v2400
        %v3789 = vpack.c.b16 %v2405, %v2401
        %v3790 = vpack.c.b16 %v2406, %v2402
        %v3791 = vpack.c.b16 %v2411, %v2407
        %v3792 = vpack.c.b16 %v2412, %v2408
        %v3793 = vpack.c.b16 %v2413, %v2409
        %v3794 = vpack.c.b16 %v2414, %v2410
        %v3795 = vpack.c.b16 %v2419, %v2415
        %v3796 = vpack.c.b16 %v2420, %v2416
        %v3797 = vpack.c.b16 %v2421, %v2417
        %v3798 = vpack.c.b16 %v2422, %v2418
        %v3799 = vpack.c.b16 %v2427, %v2423
        %v3800 = vpack.c.b16 %v2428, %v2424
        %v3801 = vpack.c.b16 %v2429, %v2425
        %v3802 = vpack.c.b16 %v2430, %v2426
        %v3803 = vpack.c.b16 %v2435, %v2431
        %v3804 = vpack.c.b16 %v2436, %v2432
        %v3805 = vpack.c.b16 %v2437, %v2433
        %v3806 = vpack.c.b16 %v2438, %v2434
        %v3807 = vpack.c.b16 %v2443, %v2439
        %v3808 = vpack.c.b16 %v2444, %v2440
        %v3809 = vpack.c.b16 %v2445, %v2441
        %v3810 = vpack.c.b16 %v2446, %v2442
        %v3811 = vpack.c.b16 %v2451, %v2447
        %v3812 = vpack.c.b16 %v2452, %v2448
        %v3813 = vpack.c.b16 %v2453, %v2449
        %v3814 = vpack.c.b16 %v2454, %v2450
        %v3815 = vpack.c.b16 %v2459, %v2455
        %v3816 = vpack.c.b16 %v2460, %v2456
        %v3817 = vpack.c.b16 %v2461, %v2457
        %v3818 = vpack.c.b16 %v2462, %v2458
        %v3819 = vpack.c.b16 %v2467, %v2463
        %v3820 = vpack.c.b16 %v2468, %v2464
        %v3821 = vpack.c.b16 %v2469, %v2465
        %v3822 = vpack.c.b16 %v2470, %v2466
        %v3823 = vpack.c.b16 %v2475, %v2471
        %v3824 = vpack.c.b16 %v2476, %v2472
        %v3825 = vpack.c.b16 %v2477, %v2473
        %v3826 = vpack.c.b16 %v2478, %v2474
        %v3827 = vpack.c.b16 %v2483, %v2479
        %v3828 = vpack.c.b16 %v2484, %v2480
        %v3829 = vpack.c.b16 %v2485, %v2481
        %v3830 = vpack.c.b16 %v2486, %v2482
        %v3831 = vpack.c.b16 %v2491, %v2487
        %v3832 = vpack.c.b16 %v2492, %v2488
        %v3833 = vpack.c.b16 %v2493, %v2489
        %v3834 = vpack.c.b16 %v2494, %v2490
        %v3835 = vpack.c.b16 %v2499, %v2495
        %v3836 = vpack.c.b16 %v2500, %v2496
        %v3837 = vpack.c.b16 %v2501, %v2497
        %v3838 = vpack.c.b16 %v2502, %v2498
        %v3839 = vpack.c.b16 %v2507, %v2503
        %v3840 = vpack.c.b16 %v2508, %v2504
        %v3841 = vpack.c.b16 %v2509, %v2505
        %v3842 = vpack.c.b16 %v2510, %v2506
        %v3843 = vpack.c.b16 %v2515, %v2511
        %v3844 = vpack.c.b16 %v2516, %v2512
        %v3845 = vpack.c.b16 %v2517, %v2513
        %v3846 = vpack.c.b16 %v2518, %v2514
        %v3847 = vpack.c.b16 %v2523, %v2519
        %v3848 = vpack.c.b16 %v2524, %v2520
        %v3849 = vpack.c.b16 %v2525, %v2521
        %v3850 = vpack.c.b16 %v2526, %v2522
        %v3851 = vpack.c.b16 %v2531, %v2527
        %v3852 = vpack.c.b16 %v2532, %v2528
        %v3853 = vpack.c.b16 %v2533, %v2529
        %v3854 = vpack.c.b16 %v2534, %v2530
        %v3855 = vpack.c.b16 %v2539, %v2535
        %v3856 = vpack.c.b16 %v2540, %v2536
        %v3857 = vpack.c.b16 %v2541, %v2537
        %v3858 = vpack.c.b16 %v2542, %v2538
        %v3859 = vpack.c.b16 %v2547, %v2543
        %v3860 = vpack.c.b16 %v2548, %v2544
        %v3861 = vpack.c.b16 %v2549, %v2545
        %v3862 = vpack.c.b16 %v2550, %v2546
        %v3863 = vpack.c.b16 %v2555, %v2551
        %v3864 = vpack.c.b16 %v2556, %v2552
        %v3865 = vpack.c.b16 %v2557, %v2553
        %v3866 = vpack.c.b16 %v2558, %v2554
        %v3867 = vpack.c.b16 %v2563, %v2559
        %v3868 = vpack.c.b16 %v2564, %v2560
        %v3869 = vpack.c.b16 %v2565, %v2561
        %v3870 = vpack.c.b16 %v2566, %v2562
        %v3871 = vpack.c.b16 %v2571, %v2567
        %v3872 = vpack.c.b16 %v2572, %v2568
        %v3873 = vpack.c.b16 %v2573, %v2569
        %v3874 = vpack.c.b16 %v2574, %v2570
        %v3875 = vpack.c.b16 %v2579, %v2575
        %v3876 = vpack.c.b16 %v2580, %v2576
        %v3877 = vpack.c.b16 %v2581, %v2577
        %v3878 = vpack.c.b16 %v2582, %v2578
        %v3879 = vpack.c.b16 %v2587, %v2583
        %v3880 = vpack.c.b16 %v2588, %v2584
        %v3881 = vpack.c.b16 %v2589, %v2585
        %v3882 = vpack.c.b16 %v2590, %v2586
        %v3883 = vpack.c.b16 %v2595, %v2591
        %v3884 = vpack.c.b16 %v2596, %v2592
        %v3885 = vpack.c.b16 %v2597, %v2593
        %v3886 = vpack.c.b16 %v2598, %v2594
        %v3887 = vpack.c.b16 %v2603, %v2599
        %v3888 = vpack.c.b16 %v2604, %v2600
        %v3889 = vpack.c.b16 %v2605, %v2601
        %v3890 = vpack.c.b16 %v2606, %v2602
        %v3891 = vpack.c.b16 %v2611, %v2607
        %v3892 = vpack.c.b16 %v2612, %v2608
        %v3893 = vpack.c.b16 %v2613, %v2609
        %v3894 = vpack.c.b16 %v2614, %v2610
        %v3895 = vpack.c.b16 %v2619, %v2615
        %v3896 = vpack.c.b16 %v2620, %v2616
        %v3897 = vpack.c.b16 %v2621, %v2617
        %v3898 = vpack.c.b16 %v2622, %v2618
        %v3899 = vpack.c.b16 %v2627, %v2623
        %v3900 = vpack.c.b16 %v2628, %v2624
        %v3901 = vpack.c.b16 %v2629, %v2625
        %v3902 = vpack.c.b16 %v2630, %v2626
        %v3903 = vpack.c.b16 %v2635, %v2631
        %v3904 = vpack.c.b16 %v2636, %v2632
        %v3905 = vpack.c.b16 %v2637, %v2633
        %v3906 = vpack.c.b16 %v2638, %v2634
        %v3907 = vpack.c.b16 %v2643, %v2639
        %v3908 = vpack.c.b16 %v2644, %v2640
        %v3909 = vpack.c.b16 %v2645, %v2641
        %v3910 = vpack.c.b16 %v2646, %v2642
        %v3911 = vpack.c.b16 %v2651, %v2647
        %v3912 = vpack.c.b16 %v2652, %v2648
        %v3913 = vpack.c.b16 %v2653, %v2649
        %v3914 = vpack.c.b16 %v2654, %v2650
        %v3915 = vpack.c.b16 %v2659, %v2655
        %v3916 = vpack.c.b16 %v2660, %v2656
        %v3917 = vpack.c.b16 %v2661, %v2657
        %v3918 = vpack.c.b16 %v2662, %v2658
        %v3919 = vpack.c.b16 %v2667, %v2663
        %v3920 = vpack.c.b16 %v2668, %v2664
        %v3921 = vpack.c.b16 %v2669, %v2665
        %v3922 = vpack.c.b16 %v2670, %v2666
        %v3923 = vpack.c.b16 %v2675, %v2671
        %v3924 = vpack.c.b16 %v2676, %v2672
        %v3925 = vpack.c.b16 %v2677, %v2673
        %v3926 = vpack.c.b16 %v2678, %v2674
        %v3927 = vpack.c.b16 %v2683, %v2679
        %v3928 = vpack.c.b16 %v2684, %v2680
        %v3929 = vpack.c.b16 %v2685, %v2681
        %v3930 = vpack.c.b16 %v2686, %v2682
        %v3931 = vpack.c.b16 %v2691, %v2687
        %v3932 = vpack.c.b16 %v2692, %v2688
        %v3933 = vpack.c.b16 %v2693, %v2689
        %v3934 = vpack.c.b16 %v2694, %v2690
        %v3935 = vpack.c.b16 %v2699, %v2695
        %v3936 = vpack.c.b16 %v2700, %v2696
        %v3937 = vpack.c.b16 %v2701, %v2697
        %v3938 = vpack.c.b16 %v2702, %v2698
        %v3939 = vpack.c.b16 %v2707, %v2703
        %v3940 = vpack.c.b16 %v2708, %v2704
        %v3941 = vpack.c.b16 %v2709, %v2705
        %v3942 = vpack.c.b16 %v2710, %v2706
        %v3943 = vpack.c.b16 %v2715, %v2711
        %v3944 = vpack.c.b16 %v2716, %v2712
        %v3945 = vpack.c.b16 %v2717, %v2713
        %v3946 = vpack.c.b16 %v2718, %v2714
        %v3947 = vpack.c.b16 %v2723, %v2719
        %v3948 = vpack.c.b16 %v2724, %v2720
        %v3949 = vpack.c.b16 %v2725, %v2721
        %v3950 = vpack.c.b16 %v2726, %v2722
        %v3951 = vpack.c.b16 %v2731, %v2727
        %v3952 = vpack.c.b16 %v2732, %v2728
        %v3953 = vpack.c.b16 %v2733, %v2729
        %v3954 = vpack.c.b16 %v2734, %v2730
        %v3955 = vpack.c.b16 %v2739, %v2735
        %v3956 = vpack.c.b16 %v2740, %v2736
        %v3957 = vpack.c.b16 %v2741, %v2737
        %v3958 = vpack.c.b16 %v2742, %v2738
        %v3959 = vpack.c.b16 %v2747, %v2743
        %v3960 = vpack.c.b16 %v2748, %v2744
        %v3961 = vpack.c.b16 %v2749, %v2745
        %v3962 = vpack.c.b16 %v2750, %v2746
        %v3963 = vpack.c.b16 %v2755, %v2751
        %v3964 = vpack.c.b16 %v2756, %v2752
        %v3965 = vpack.c.b16 %v2757, %v2753
        %v3966 = vpack.c.b16 %v2758, %v2754
        %v3967 = vpack.c.b16 %v2763, %v2759
        %v3968 = vpack.c.b16 %v2764, %v2760
        %v3969 = vpack.c.b16 %v2765, %v2761
        %v3970 = vpack.c.b16 %v2766, %v2762
        %v3971 = vpack.c.b16 %v2771, %v2767
        %v3972 = vpack.c.b16 %v2772, %v2768
        %v3973 = vpack.c.b16 %v2773, %v2769
        %v3974 = vpack.c.b16 %v2774, %v2770
        %v3975 = vpack.c.b16 %v2779, %v2775
        %v3976 = vpack.c.b16 %v2780, %v2776
        %v3977 = vpack.c.b16 %v2781, %v2777
        %v3978 = vpack.c.b16 %v2782, %v2778
        %v3979 = vpack.c.b16 %v2787, %v2783
        %v3980 = vpack.c.b16 %v2788, %v2784
        %v3981 = vpack.c.b16 %v2789, %v2785
        %v3982 = vpack.c.b16 %v2790, %v2786
        %v3983 = vpack.c.b16 %v2795, %v2791
        %v3984 = vpack.c.b16 %v2796, %v2792
        %v3985 = vpack.c.b16 %v2797, %v2793
        %v3986 = vpack.c.b16 %v2798, %v2794
        %v3987 = vpack.c.b16 %v2803, %v2799
        %v3988 = vpack.c.b16 %v2804, %v2800
        %v3989 = vpack.c.b16 %v2805, %v2801
        %v3990 = vpack.c.b16 %v2806, %v2802
        %v3991 = vpack.c.b16 %v2811, %v2807
        %v3992 = vpack.c.b16 %v2812, %v2808
        %v3993 = vpack.c.b16 %v2813, %v2809
        %v3994 = vpack.c.b16 %v2814, %v2810
        %v3995 = vpack.c.b16 %v2819, %v2815
        %v3996 = vpack.c.b16 %v2820, %v2816
        %v3997 = vpack.c.b16 %v2821, %v2817
        %v3998 = vpack.c.b16 %v2822, %v2818
        %v3999 = vpack.c.b16 %v2827, %v2823
        %v4000 = vpack.c.b16 %v2828, %v2824
        %v4001 = vpack.c.b16 %v2829, %v2825
        %v4002 = vpack.c.b16 %v2830, %v2826
        %v4003 = vpack.c.b16 %v2835, %v2831
        %v4004 = vpack.c.b16 %v2836, %v2832
        %v4005 = vpack.c.b16 %v2837, %v2833
        %v4006 = vpack.c.b16 %v2838, %v2834
        %v4007 = vpack.c.b16 %v2843, %v2839
        %v4008 = vpack.c.b16 %v2844, %v2840
        %v4009 = vpack.c.b16 %v2845, %v2841
        %v4010 = vpack.c.b16 %v2846, %v2842
        %v4011 = vpack.c.b16 %v2851, %v2847
        %v4012 = vpack.c.b16 %v2852, %v2848
        %v4013 = vpack.c.b16 %v2853, %v2849
        %v4014 = vpack.c.b16 %v2854, %v2850
        %v4015 = vpack.c.b16 %v2859, %v2855
        %v4016 = vpack.c.b16 %v2860, %v2856
        %v4017 = vpack.c.b16 %v2861, %v2857
        %v4018 = vpack.c.b16 %v2862, %v2858
        %v4019 = vpack.c.b16 %v2867, %v2863
        %v4020 = vpack.c.b16 %v2868, %v2864
        %v4021 = vpack.c.b16 %v2869, %v2865
        %v4022 = vpack.c.b16 %v2870, %v2866
        %v4023 = vpack.c.b16 %v2875, %v2871
        %v4024 = vpack.c.b16 %v2876, %v2872
        %v4025 = vpack.c.b16 %v2877, %v2873
        %v4026 = vpack.c.b16 %v2878, %v2874
        %v4027 = vpack.c.b16 %v2883, %v2879
        %v4028 = vpack.c.b16 %v2884, %v2880
        %v4029 = vpack.c.b16 %v2885, %v2881
        %v4030 = vpack.c.b16 %v2886, %v2882
        %v4031 = vpack.c.b16 %v2891, %v2887
        %v4032 = vpack.c.b16 %v2892, %v2888
        %v4033 = vpack.c.b16 %v2893, %v2889
        %v4034 = vpack.c.b16 %v2894, %v2890
        %v4035 = vpack.c.b16 %v2899, %v2895
        %v4036 = vpack.c.b16 %v2900, %v2896
        %v4037 = vpack.c.b16 %v2901, %v2897
        %v4038 = vpack.c.b16 %v2902, %v2898
        %v4039 = vpack.c.b16 %v2907, %v2903
        %v4040 = vpack.c.b16 %v2908, %v2904
        %v4041 = vpack.c.b16 %v2909, %v2905
        %v4042 = vpack.c.b16 %v2910, %v2906
        %v4043 = vpack.c.b16 %v2915, %v2911
        %v4044 = vpack.c.b16 %v2916, %v2912
        %v4045 = vpack.c.b16 %v2917, %v2913
        %v4046 = vpack.c.b16 %v2918, %v2914
        %v4047 = vpack.c.b16 %v2923, %v2919
        %v4048 = vpack.c.b16 %v2924, %v2920
        %v4049 = vpack.c.b16 %v2925, %v2921
        %v4050 = vpack.c.b16 %v2926, %v2922
        %v4051 = vpack.c.b16 %v2931, %v2927
        %v4052 = vpack.c.b16 %v2932, %v2928
        %v4053 = vpack.c.b16 %v2933, %v2929
        %v4054 = vpack.c.b16 %v2934, %v2930
        %v4055 = vpack.c.b16 %v2939, %v2935
        %v4056 = vpack.c.b16 %v2940, %v2936
        %v4057 = vpack.c.b16 %v2941, %v2937
        %v4058 = vpack.c.b16 %v2942, %v2938
        %v4059 = vpack.c.b16 %v2947, %v2943
        %v4060 = vpack.c.b16 %v2948, %v2944
        %v4061 = vpack.c.b16 %v2949, %v2945
        %v4062 = vpack.c.b16 %v2950, %v2946
        %v4063 = vpack.c.b16 %v2955, %v2951
        %v4064 = vpack.c.b16 %v2956, %v2952
        %v4065 = vpack.c.b16 %v2957, %v2953
        %v4066 = vpack.c.b16 %v2958, %v2954
        %v4067 = vpack.c.b16 %v2963, %v2959
        %v4068 = vpack.c.b16 %v2964, %v2960
        %v4069 = vpack.c.b16 %v2965, %v2961
        %v4070 = vpack.c.b16 %v2966, %v2962
        %v4071 = vpack.c.b16 %v2971, %v2967
        %v4072 = vpack.c.b16 %v2972, %v2968
        %v4073 = vpack.c.b16 %v2973, %v2969
        %v4074 = vpack.c.b16 %v2974, %v2970
        %v4075 = vpack.c.b16 %v2979, %v2975
        %v4076 = vpack.c.b16 %v2980, %v2976
        %v4077 = vpack.c.b16 %v2981, %v2977
        %v4078 = vpack.c.b16 %v2982, %v2978
        %v4079 = vpack.c.b16 %v2987, %v2983
        %v4080 = vpack.c.b16 %v2988, %v2984
        %v4081 = vpack.c.b16 %v2989, %v2985
        %v4082 = vpack.c.b16 %v2990, %v2986
        %v4083 = vpack.c.b16 %v2995, %v2991
        %v4084 = vpack.c.b16 %v2996, %v2992
        %v4085 = vpack.c.b16 %v2997, %v2993
        %v4086 = vpack.c.b16 %v2998, %v2994
        %v4087 = vpack.c.b16 %v3003, %v2999
        %v4088 = vpack.c.b16 %v3004, %v3000
        %v4089 = vpack.c.b16 %v3005, %v3001
        %v4090 = vpack.c.b16 %v3006, %v3002
        %v4091 = vpack.c.b16 %v3011, %v3007
        %v4092 = vpack.c.b16 %v3012, %v3008
        %v4093 = vpack.c.b16 %v3013, %v3009
        %v4094 = vpack.c.b16 %v3014, %v3010
        %v4095 = vpack.c.b16 %v3019, %v3015
        %v4096 = vpack.c.b16 %v3020, %v3016
        %v4097 = vpack.c.b16 %v3021, %v3017
        %v4098 = vpack.c.b16 %v3022, %v3018
        %v4099 = vpack.c.b16 %v3027, %v3023
        %v4100 = vpack.c.b16 %v3028, %v3024
        %v4101 = vpack.c.b16 %v3029, %v3025
        %v4102 = vpack.c.b16 %v3030, %v3026
        %v4103 = vpack.c.b16 %v3035, %v3031
        %v4104 = vpack.c.b16 %v3036, %v3032
        %v4105 = vpack.c.b16 %v3037, %v3033
        %v4106 = vpack.c.b16 %v3038, %v3034
        %v4107 = vpack.c.b16 %v3043, %v3039
        %v4108 = vpack.c.b16 %v3044, %v3040
        %v4109 = vpack.c.b16 %v3045, %v3041
        %v4110 = vpack.c.b16 %v3046, %v3042
        %v4111 = vpack.c.b16 %v3051, %v3047
        %v4112 = vpack.c.b16 %v3052, %v3048
        %v4113 = vpack.c.b16 %v3053, %v3049
        %v4114 = vpack.c.b16 %v3054, %v3050
        %v4115 = vpack.c.b16 %v3059, %v3055
        %v4116 = vpack.c.b16 %v3060, %v3056
        %v4117 = vpack.c.b16 %v3061, %v3057
        %v4118 = vpack.c.b16 %v3062, %v3058
        %v4119 = vpack.c.b16 %v3067, %v3063
        %v4120 = vpack.c.b16 %v3068, %v3064
        %v4121 = vpack.c.b16 %v3069, %v3065
        %v4122 = vpack.c.b16 %v3070, %v3066
        %v4123 = vpack.c.b16 %v3075, %v3071
        %v4124 = vpack.c.b16 %v3076, %v3072
        %v4125 = vpack.c.b16 %v3077, %v3073
        %v4126 = vpack.c.b16 %v3078, %v3074
        %v4127 = vpack.c.b16 %v3083, %v3079
        %v4128 = vpack.c.b16 %v3084, %v3080
        %v4129 = vpack.c.b16 %v3085, %v3081
        %v4130 = vpack.c.b16 %v3086, %v3082
        %v4131 = vpack.c.b16 %v3091, %v3087
        %v4132 = vpack.c.b16 %v3092, %v3088
        %v4133 = vpack.c.b16 %v3093, %v3089
        %v4134 = vpack.c.b16 %v3094, %v3090
        %v4135 = vpack.c.b16 %v3099, %v3095
        %v4136 = vpack.c.b16 %v3100, %v3096
        %v4137 = vpack.c.b16 %v3101, %v3097
        %v4138 = vpack.c.b16 %v3102, %v3098
        %v4139 = vpack.c.b16 %v3107, %v3103
        %v4140 = vpack.c.b16 %v3108, %v3104
        %v4141 = vpack.c.b16 %v3109, %v3105
        %v4142 = vpack.c.b16 %v3110, %v3106
        %v4143 = vpack.c.b16 %v3115, %v3111
        %v4144 = vpack.c.b16 %v3116, %v3112
        %v4145 = vpack.c.b16 %v3117, %v3113
        %v4146 = vpack.c.b16 %v3118, %v3114
        %v4147 = vpack.c.b16 %v3123, %v3119
        %v4148 = vpack.c.b16 %v3124, %v3120
        %v4149 = vpack.c.b16 %v3125, %v3121
        %v4150 = vpack.c.b16 %v3126, %v3122
        %v4151 = vpack.c.b16 %v3131, %v3127
        %v4152 = vpack.c.b16 %v3132, %v3128
        %v4153 = vpack.c.b16 %v3133, %v3129
        %v4154 = vpack.c.b16 %v3134, %v3130
        %v4155 = vpack.c.b16 %v3139, %v3135
        %v4156 = vpack.c.b16 %v3140, %v3136
        %v4157 = vpack.c.b16 %v3141, %v3137
        %v4158 = vpack.c.b16 %v3142, %v3138
        %v4159 = vpack.c.b16 %v3147, %v3143
        %v4160 = vpack.c.b16 %v3148, %v3144
        %v4161 = vpack.c.b16 %v3149, %v3145
        %v4162 = vpack.c.b16 %v3150, %v3146
        %v4163 = vpack.c.b16 %v3155, %v3151
        %v4164 = vpack.c.b16 %v3156, %v3152
        %v4165 = vpack.c.b16 %v3157, %v3153
        %v4166 = vpack.c.b16 %v3158, %v3154
        %v4167 = vpack.c.b16 %v3163, %v3159
        %v4168 = vpack.c.b16 %v3164, %v3160
        %v4169 = vpack.c.b16 %v3165, %v3161
        %v4170 = vpack.c.b16 %v3166, %v3162
        %v4171 = vpack.c.b16 %v3171, %v3167
        %v4172 = vpack.c.b16 %v3172, %v3168
        %v4173 = vpack.c.b16 %v3173, %v3169
        %v4174 = vpack.c.b16 %v3174, %v3170
        %v4175 = vpack.c.b16 %v3179, %v3175
        %v4176 = vpack.c.b16 %v3180, %v3176
        %v4177 = vpack.c.b16 %v3181, %v3177
        %v4178 = vpack.c.b16 %v3182, %v3178
        %v4179 = vpack.c.b16 %v3187, %v3183
        %v4180 = vpack.c.b16 %v3188, %v3184
        %v4181 = vpack.c.b16 %v3189, %v3185
        %v4182 = vpack.c.b16 %v3190, %v3186
        %v4183 = vpack.c.b16 %v3195, %v3191
        %v4184 = vpack.c.b16 %v3196, %v3192
        %v4185 = vpack.c.b16 %v3197, %v3193
        %v4186 = vpack.c.b16 %v3198, %v3194
        %v4187 = vpack.c.b16 %v3203, %v3199
        %v4188 = vpack.c.b16 %v3204, %v3200
        %v4189 = vpack.c.b16 %v3205, %v3201
        %v4190 = vpack.c.b16 %v3206, %v3202
        %v4191 = vpack.c.b16 %v3211, %v3207
        %v4192 = vpack.c.b16 %v3212, %v3208
        %v4193 = vpack.c.b16 %v3213, %v3209
        %v4194 = vpack.c.b16 %v3214, %v3210
        %v4195 = vpack.c.b16 %v3219, %v3215
        %v4196 = vpack.c.b16 %v3220, %v3216
        %v4197 = vpack.c.b16 %v3221, %v3217
        %v4198 = vpack.c.b16 %v3222, %v3218
        %v4199 = vpack.c.b16 %v3227, %v3223
        %v4200 = vpack.c.b16 %v3228, %v3224
        %v4201 = vpack.c.b16 %v3229, %v3225
        %v4202 = vpack.c.b16 %v3230, %v3226
        %v4203 = vpack.c.b16 %v3235, %v3231
        %v4204 = vpack.c.b16 %v3236, %v3232
        %v4205 = vpack.c.b16 %v3237, %v3233
        %v4206 = vpack.c.b16 %v3238, %v3234
        %v4207 = vpack.c.b16 %v3243, %v3239
        %v4208 = vpack.c.b16 %v3244, %v3240
        %v4209 = vpack.c.b16 %v3245, %v3241
        %v4210 = vpack.c.b16 %v3246, %v3242
        %v4211 = vpack.c.b16 %v3251, %v3247
        %v4212 = vpack.c.b16 %v3252, %v3248
        %v4213 = vpack.c.b16 %v3253, %v3249
        %v4214 = vpack.c.b16 %v3254, %v3250
        %v4215 = vpack.c.b16 %v3259, %v3255
        %v4216 = vpack.c.b16 %v3260, %v3256
        %v4217 = vpack.c.b16 %v3261, %v3257
        %v4218 = vpack.c.b16 %v3262, %v3258
        %v4219 = vpack.c.b16 %v3267, %v3263
        %v4220 = vpack.c.b16 %v3268, %v3264
        %v4221 = vpack.c.b16 %v3269, %v3265
        %v4222 = vpack.c.b16 %v3270, %v3266
        %v4223 = vpack.c.b16 %v3275, %v3271
        %v4224 = vpack.c.b16 %v3276, %v3272
        %v4225 = vpack.c.b16 %v3277, %v3273
        %v4226 = vpack.c.b16 %v3278, %v3274
        %v4227 = vpack.c.b16 %v3283, %v3279
        %v4228 = vpack.c.b16 %v3284, %v3280
        %v4229 = vpack.c.b16 %v3285, %v3281
        %v4230 = vpack.c.b16 %v3286, %v3282
        %v4231 = vpack.c.b16 %v3291, %v3287
        %v4232 = vpack.c.b16 %v3292, %v3288
        %v4233 = vpack.c.b16 %v3293, %v3289
        %v4234 = vpack.c.b16 %v3294, %v3290
        %v4235 = vpack.c.b16 %v3299, %v3295
        %v4236 = vpack.c.b16 %v3300, %v3296
        %v4237 = vpack.c.b16 %v3301, %v3297
        %v4238 = vpack.c.b16 %v3302, %v3298
        %v4239 = vpack.c.b16 %v3307, %v3303
        %v4240 = vpack.c.b16 %v3308, %v3304
        %v4241 = vpack.c.b16 %v3309, %v3305
        %v4242 = vpack.c.b16 %v3310, %v3306
        %v4243 = vpack.c.b16 %v3315, %v3311
        %v4244 = vpack.c.b16 %v3316, %v3312
        %v4245 = vpack.c.b16 %v3317, %v3313
        %v4246 = vpack.c.b16 %v3318, %v3314
        %v4247 = vpack.c.b16 %v3323, %v3319
        %v4248 = vpack.c.b16 %v3324, %v3320
        %v4249 = vpack.c.b16 %v3325, %v3321
        %v4250 = vpack.c.b16 %v3326, %v3322
        %v4251 = vpack.c.b16 %v3331, %v3327
        %v4252 = vpack.c.b16 %v3332, %v3328
        %v4253 = vpack.c.b16 %v3333, %v3329
        %v4254 = vpack.c.b16 %v3334, %v3330
        %v4255 = vpack.c.b16 %v3339, %v3335
        %v4256 = vpack.c.b16 %v3340, %v3336
        %v4257 = vpack.c.b16 %v3341, %v3337
        %v4258 = vpack.c.b16 %v3342, %v3338
        %v4259 = vpack.c.b16 %v3347, %v3343
        %v4260 = vpack.c.b16 %v3348, %v3344
        %v4261 = vpack.c.b16 %v3349, %v3345
        %v4262 = vpack.c.b16 %v3350, %v3346
        %v4263 = vpack.c.b16 %v3355, %v3351
        %v4264 = vpack.c.b16 %v3356, %v3352
        %v4265 = vpack.c.b16 %v3357, %v3353
        %v4266 = vpack.c.b16 %v3358, %v3354
        %v4267 = vpack.c.b16 %v3363, %v3359
        %v4268 = vpack.c.b16 %v3364, %v3360
        %v4269 = vpack.c.b16 %v3365, %v3361
        %v4270 = vpack.c.b16 %v3366, %v3362
        %v4271 = vpack.c.b16 %v3371, %v3367
        %v4272 = vpack.c.b16 %v3372, %v3368
        %v4273 = vpack.c.b16 %v3373, %v3369
        %v4274 = vpack.c.b16 %v3374, %v3370
        %v4275 = vpack.c.b16 %v3379, %v3375
        %v4276 = vpack.c.b16 %v3380, %v3376
        %v4277 = vpack.c.b16 %v3381, %v3377
        %v4278 = vpack.c.b16 %v3382, %v3378
        %v4279 = vpack.c.b16 %v3387, %v3383
        %v4280 = vpack.c.b16 %v3388, %v3384
        %v4281 = vpack.c.b16 %v3389, %v3385
        %v4282 = vpack.c.b16 %v3390, %v3386
        %v4283 = vpack.c.b16 %v3395, %v3391
        %v4284 = vpack.c.b16 %v3396, %v3392
        %v4285 = vpack.c.b16 %v3397, %v3393
        %v4286 = vpack.c.b16 %v3398, %v3394
        %v4287 = vpack.c.b16 %v3403, %v3399
        %v4288 = vpack.c.b16 %v3404, %v3400
        %v4289 = vpack.c.b16 %v3405, %v3401
        %v4290 = vpack.c.b16 %v3406, %v3402
        %v4291 = vpack.c.b16 %v3411, %v3407
        %v4292 = vpack.c.b16 %v3412, %v3408
        %v4293 = vpack.c.b16 %v3413, %v3409
        %v4294 = vpack.c.b16 %v3414, %v3410
        %v4295 = vpack.c.b16 %v3419, %v3415
        %v4296 = vpack.c.b16 %v3420, %v3416
        %v4297 = vpack.c.b16 %v3421, %v3417
        %v4298 = vpack.c.b16 %v3422, %v3418
        %v4299 = vpack.c.b16 %v3427, %v3423
        %v4300 = vpack.c.b16 %v3428, %v3424
        %v4301 = vpack.c.b16 %v3429, %v3425
        %v4302 = vpack.c.b16 %v3430, %v3426
        %v4303 = vpack.c.b16 %v3435, %v3431
        %v4304 = vpack.c.b16 %v3436, %v3432
        %v4305 = vpack.c.b16 %v3437, %v3433
        %v4306 = vpack.c.b16 %v3438, %v3434
        %v4307 = vpack.c.b16 %v3443, %v3439
        %v4308 = vpack.c.b16 %v3444, %v3440
        %v4309 = vpack.c.b16 %v3445, %v3441
        %v4310 = vpack.c.b16 %v3446, %v3442
        %v4311 = vpack.c.b16 %v3451, %v3447
        %v4312 = vpack.c.b16 %v3452, %v3448
        %v4313 = vpack.c.b16 %v3453, %v3449
        %v4314 = vpack.c.b16 %v3454, %v3450
        %v4315 = vpack.c.b16 %v3459, %v3455
        %v4316 = vpack.c.b16 %v3460, %v3456
        %v4317 = vpack.c.b16 %v3461, %v3457
        %v4318 = vpack.c.b16 %v3462, %v3458
        %v4319 = vpack.c.b16 %v3467, %v3463
        %v4320 = vpack.c.b16 %v3468, %v3464
        %v4321 = vpack.c.b16 %v3469, %v3465
        %v4322 = vpack.c.b16 %v3470, %v3466
        %v4323 = vpack.c.b16 %v3475, %v3471
        %v4324 = vpack.c.b16 %v3476, %v3472
        %v4325 = vpack.c.b16 %v3477, %v3473
        %v4326 = vpack.c.b16 %v3478, %v3474
        %v4327 = vpack.c.b16 %v3483, %v3479
        %v4328 = vpack.c.b16 %v3484, %v3480
        %v4329 = vpack.c.b16 %v3485, %v3481
        %v4330 = vpack.c.b16 %v3486, %v3482
        %v4331 = vpack.c.b16 %v3491, %v3487
        %v4332 = vpack.c.b16 %v3492, %v3488
        %v4333 = vpack.c.b16 %v3493, %v3489
        %v4334 = vpack.c.b16 %v3494, %v3490
        %v4335 = vpack.c.b16 %v3499, %v3495
        %v4336 = vpack.c.b16 %v3500, %v3496
        %v4337 = vpack.c.b16 %v3501, %v3497
        %v4338 = vpack.c.b16 %v3502, %v3498
        %v4339 = vpack.c.b16 %v3507, %v3503
        %v4340 = vpack.c.b16 %v3508, %v3504
        %v4341 = vpack.c.b16 %v3509, %v3505
        %v4342 = vpack.c.b16 %v3510, %v3506
        %v4343 = vpack.c.b16 %v3515, %v3511
        %v4344 = vpack.c.b16 %v3516, %v3512
        %v4345 = vpack.c.b16 %v3517, %v3513
        %v4346 = vpack.c.b16 %v3518, %v3514
        %v4347 = vpack.c.b16 %v3523, %v3519
        %v4348 = vpack.c.b16 %v3524, %v3520
        %v4349 = vpack.c.b16 %v3525, %v3521
        %v4350 = vpack.c.b16 %v3526, %v3522
        %v4351 = vpack.c.b16 %v3531, %v3527
        %v4352 = vpack.c.b16 %v3532, %v3528
        %v4353 = vpack.c.b16 %v3533, %v3529
        %v4354 = vpack.c.b16 %v3534, %v3530
        %v4355 = vpack.c.b16 %v3539, %v3535
        %v4356 = vpack.c.b16 %v3540, %v3536
        %v4357 = vpack.c.b16 %v3541, %v3537
        %v4358 = vpack.c.b16 %v3542, %v3538
        %v4359 = vpack.c.b16 %v3547, %v3543
        %v4360 = vpack.c.b16 %v3548, %v3544
        %v4361 = vpack.c.b16 %v3549, %v3545
        %v4362 = vpack.c.b16 %v3550, %v3546
        %v4363 = vpack.c.b16 %v3555, %v3551
        %v4364 = vpack.c.b16 %v3556, %v3552
        %v4365 = vpack.c.b16 %v3557, %v3553
        %v4366 = vpack.c.b16 %v3558, %v3554
        %v4367 = vpack.c.b16 %v3563, %v3559
        %v4368 = vpack.c.b16 %v3564, %v3560
        %v4369 = vpack.c.b16 %v3565, %v3561
        %v4370 = vpack.c.b16 %v3566, %v3562
        %v4371 = vpack.c.b16 %v3571, %v3567
        %v4372 = vpack.c.b16 %v3572, %v3568
        %v4373 = vpack.c.b16 %v3573, %v3569
        %v4374 = vpack.c.b16 %v3574, %v3570
        %v4375 = vpack.c.b16 %v3579, %v3575
        %v4376 = vpack.c.b16 %v3580, %v3576
        %v4377 = vpack.c.b16 %v3581, %v3577
        %v4378 = vpack.c.b16 %v3582, %v3578
        %v4379 = vpack.c.b16 %v3587, %v3583
        %v4380 = vpack.c.b16 %v3588, %v3584
        %v4381 = vpack.c.b16 %v3589, %v3585
        %v4382 = vpack.c.b16 %v3590, %v3586
        %v4383 = vpack.c.b16 %v3595, %v3591
        %v4384 = vpack.c.b16 %v3596, %v3592
        %v4385 = vpack.c.b16 %v3597, %v3593
        %v4386 = vpack.c.b16 %v3598, %v3594
        %v4387 = vpack.c.b16 %v3603, %v3599
        %v4388 = vpack.c.b16 %v3604, %v3600
        %v4389 = vpack.c.b16 %v3605, %v3601
        %v4390 = vpack.c.b16 %v3606, %v3602
        %v4391 = vpack.c.b16 %v3611, %v3607
        %v4392 = vpack.c.b16 %v3612, %v3608
        %v4393 = vpack.c.b16 %v3613, %v3609
        %v4394 = vpack.c.b16 %v3614, %v3610
        %v4395 = vpack.c.b16 %v3619, %v3615
        %v4396 = vpack.c.b16 %v3620, %v3616
        %v4397 = vpack.c.b16 %v3621, %v3617
        %v4398 = vpack.c.b16 %v3622, %v3618
        %v4399 = vpack.c.b16 %v3627, %v3623
        %v4400 = vpack.c.b16 %v3628, %v3624
        %v4401 = vpack.c.b16 %v3629, %v3625
        %v4402 = vpack.c.b16 %v3630, %v3626
        %v4403 = vpack.c.b16 %v3635, %v3631
        %v4404 = vpack.c.b16 %v3636, %v3632
        %v4405 = vpack.c.b16 %v3637, %v3633
        %v4406 = vpack.c.b16 %v3638, %v3634
        %v5176 = vlaneseq
        %v5177 = vshrl.u32 %v5176, 7
        %v5178 = vsub.s32 0, %v5177
        %v5179 = vrot.slane %v1160, %v5178
        %v5180 = vlaneseq
        %v5181 = vshrl.u32 %v5180, 7
        %v5182 = vsub.s32 1, %v5181
        %v5183 = vrot.slane %v1160, %v5182
        %v5184 = vlaneseq
        %v5185 = vshrl.u32 %v5184, 7
        %v5186 = vsub.s32 2, %v5185
        %v5187 = vrot.slane %v1160, %v5186
        %v5188 = vlaneseq
        %v5189 = vshrl.u32 %v5188, 7
        %v5190 = vsub.s32 3, %v5189
        %v5191 = vrot.slane %v1160, %v5190
        %5196 = vmatprep.subr.bf16.mxu0 %v3668
        %5197 = vmatpush1.bf16.msra.mxu0 %v3667
        %5198 = vmatprep.subr.bf16.mxu0 %v3664
        %5199 = vmatpush1.bf16.msra.mxu0 %v3663
        %5200 = vmatprep.subr.bf16.mxu0 %v3660
        %5201 = vmatpush1.bf16.msra.mxu0 %v3659
        %5202 = vmatprep.subr.bf16.mxu0 %v3656
        %5203 = vmatpush1.bf16.msra.mxu0 %v3655
        %5204 = vmatprep.subr.bf16.mxu0 %v3652
        %5205 = vmatpush1.bf16.msra.mxu0 %v3651
        %5206 = vmatprep.subr.bf16.mxu0 %v3648
        %5207 = vmatpush1.bf16.msra.mxu0 %v3647
        %5208 = vmatprep.subr.bf16.mxu0 %v3644
        %5209 = vmatpush1.bf16.msra.mxu0 %v3643
        %5210 = vmatprep.subr.bf16.mxu0 %v3640
        %5211 = vmatpush1.bf16.msra.mxu0 %v3639
        %5212 = vmatprep.subr.bf16.mxu0 %v3700
        %5213 = vmatpush2.bf16.msra.mxu0 %v3699
        %5214 = vmatprep.subr.bf16.mxu0 %v3696
        %5215 = vmatpush2.bf16.msra.mxu0 %v3695
        %5216 = vmatprep.subr.bf16.mxu0 %v3692
        %5217 = vmatpush2.bf16.msra.mxu0 %v3691
        %5218 = vmatprep.subr.bf16.mxu0 %v3688
        %5219 = vmatpush2.bf16.msra.mxu0 %v3687
        %5220 = vmatprep.subr.bf16.mxu0 %v3684
        %5221 = vmatpush2.bf16.msra.mxu0 %v3683
        %5222 = vmatprep.subr.bf16.mxu0 %v3680
        %5223 = vmatpush2.bf16.msra.mxu0 %v3679
        %5224 = vmatprep.subr.bf16.mxu0 %v3676
        %5225 = vmatpush2.bf16.msra.mxu0 %v3675
        %5226 = vmatprep.subr.bf16.mxu0 %v3672
        %5227 = vmatpush2.bf16.msra.mxu0 %v3671
        %5228 = vmatprep.mubr.bf16.mxu0 %v1201
        %5229 = vmatmul.mubr.bf16.gmra.mxu0 %v1187
        %v5230 = vpop.f32.mrf.mxu0
        %v5231 = vadd.f32 %v5179, %v5230
        %v5232 = vpop.f32.mrf.mxu0
        %v5233 = vadd.f32 %v5183, %v5232
        %v5234 = vpop.f32.mrf.mxu0
        %v5235 = vpop.f32.mrf.mxu0
        %5236 = vdwg.mxu0
        %5237 = vmatprep.subr.bf16.mxu0 %v3732
        %5238 = vmatpush1.bf16.msra.mxu0 %v3731
        %5239 = vmatprep.subr.bf16.mxu0 %v3728
        %5240 = vmatpush1.bf16.msra.mxu0 %v3727
        %5241 = vmatprep.subr.bf16.mxu0 %v3724
        %5242 = vmatpush1.bf16.msra.mxu0 %v3723
        %5243 = vmatprep.subr.bf16.mxu0 %v3720
        %5244 = vmatpush1.bf16.msra.mxu0 %v3719
        %5245 = vmatprep.subr.bf16.mxu0 %v3716
        %5246 = vmatpush1.bf16.msra.mxu0 %v3715
        %5247 = vmatprep.subr.bf16.mxu0 %v3712
        %5248 = vmatpush1.bf16.msra.mxu0 %v3711
        %5249 = vmatprep.subr.bf16.mxu0 %v3708
        %5250 = vmatpush1.bf16.msra.mxu0 %v3707
        %5251 = vmatprep.subr.bf16.mxu0 %v3704
        %5252 = vmatpush1.bf16.msra.mxu0 %v3703
        %5253 = vmatprep.subr.bf16.mxu0 %v3764
        %5254 = vmatpush2.bf16.msra.mxu0 %v3763
        %5255 = vmatprep.subr.bf16.mxu0 %v3760
        %5256 = vmatpush2.bf16.msra.mxu0 %v3759
        %5257 = vmatprep.subr.bf16.mxu0 %v3756
        %5258 = vmatpush2.bf16.msra.mxu0 %v3755
        %5259 = vmatprep.subr.bf16.mxu0 %v3752
        %5260 = vmatpush2.bf16.msra.mxu0 %v3751
        %5261 = vmatprep.subr.bf16.mxu0 %v3748
        %5262 = vmatpush2.bf16.msra.mxu0 %v3747
        %5263 = vmatprep.subr.bf16.mxu0 %v3744
        %5264 = vmatpush2.bf16.msra.mxu0 %v3743
        %5265 = vmatprep.subr.bf16.mxu0 %v3740
        %5266 = vmatpush2.bf16.msra.mxu0 %v3739
        %5267 = vmatprep.subr.bf16.mxu0 %v3736
        %5268 = vmatpush2.bf16.msra.mxu0 %v3735
        %5269 = vmatprep.mubr.bf16.mxu0 %v1211
        %5270 = vmatmul.mubr.bf16.gmra.mxu0 %v1209
        %v5271 = vpop.f32.mrf.mxu0
        %v5272 = vadd.f32 %v5231, %v5271
        %v5273 = vpop.f32.mrf.mxu0
        %v5274 = vadd.f32 %v5233, %v5273
        %v5275 = vpop.f32.mrf.mxu0
        %v5276 = vpop.f32.mrf.mxu0
        %5277 = vdwg.mxu0
        %5278 = vmatprep.subr.bf16.mxu0 %v3796
        %5279 = vmatpush1.bf16.msra.mxu0 %v3795
        %5280 = vmatprep.subr.bf16.mxu0 %v3792
        %5281 = vmatpush1.bf16.msra.mxu0 %v3791
        %5282 = vmatprep.subr.bf16.mxu0 %v3788
        %5283 = vmatpush1.bf16.msra.mxu0 %v3787
        %5284 = vmatprep.subr.bf16.mxu0 %v3784
        %5285 = vmatpush1.bf16.msra.mxu0 %v3783
        %5286 = vmatprep.subr.bf16.mxu0 %v3780
        %5287 = vmatpush1.bf16.msra.mxu0 %v3779
        %5288 = vmatprep.subr.bf16.mxu0 %v3776
        %5289 = vmatpush1.bf16.msra.mxu0 %v3775
        %5290 = vmatprep.subr.bf16.mxu0 %v3772
        %5291 = vmatpush1.bf16.msra.mxu0 %v3771
        %5292 = vmatprep.subr.bf16.mxu0 %v3768
        %5293 = vmatpush1.bf16.msra.mxu0 %v3767
        %5294 = vmatprep.subr.bf16.mxu0 %v3828
        %5295 = vmatpush2.bf16.msra.mxu0 %v3827
        %5296 = vmatprep.subr.bf16.mxu0 %v3824
        %5297 = vmatpush2.bf16.msra.mxu0 %v3823
        %5298 = vmatprep.subr.bf16.mxu0 %v3820
        %5299 = vmatpush2.bf16.msra.mxu0 %v3819
        %5300 = vmatprep.subr.bf16.mxu0 %v3816
        %5301 = vmatpush2.bf16.msra.mxu0 %v3815
        %5302 = vmatprep.subr.bf16.mxu0 %v3812
        %5303 = vmatpush2.bf16.msra.mxu0 %v3811
        %5304 = vmatprep.subr.bf16.mxu0 %v3808
        %5305 = vmatpush2.bf16.msra.mxu0 %v3807
        %5306 = vmatprep.subr.bf16.mxu0 %v3804
        %5307 = vmatpush2.bf16.msra.mxu0 %v3803
        %5308 = vmatprep.subr.bf16.mxu0 %v3800
        %5309 = vmatpush2.bf16.msra.mxu0 %v3799
        %5310 = vmatprep.mubr.bf16.mxu0 %v1208
        %5311 = vmatmul.mubr.bf16.gmra.mxu0 %v1194
        %v5312 = vpop.f32.mrf.mxu0
        %v5313 = vadd.f32 %v5272, %v5312
        %v5314 = vpop.f32.mrf.mxu0
        %v5315 = vadd.f32 %v5274, %v5314
        %v5316 = vpop.f32.mrf.mxu0
        %v5317 = vpop.f32.mrf.mxu0
        %5318 = vdwg.mxu0
        %5319 = vmatprep.subr.bf16.mxu0 %v3860
        %5320 = vmatpush1.bf16.msra.mxu0 %v3859
        %5321 = vmatprep.subr.bf16.mxu0 %v3856
        %5322 = vmatpush1.bf16.msra.mxu0 %v3855
        %5323 = vmatprep.subr.bf16.mxu0 %v3852
        %5324 = vmatpush1.bf16.msra.mxu0 %v3851
        %5325 = vmatprep.subr.bf16.mxu0 %v3848
        %5326 = vmatpush1.bf16.msra.mxu0 %v3847
        %5327 = vmatprep.subr.bf16.mxu0 %v3844
        %5328 = vmatpush1.bf16.msra.mxu0 %v3843
        %5329 = vmatprep.subr.bf16.mxu0 %v3840
        %5330 = vmatpush1.bf16.msra.mxu0 %v3839
        %5331 = vmatprep.subr.bf16.mxu0 %v3836
        %5332 = vmatpush1.bf16.msra.mxu0 %v3835
        %5333 = vmatprep.subr.bf16.mxu0 %v3832
        %5334 = vmatpush1.bf16.msra.mxu0 %v3831
        %5335 = vmatprep.subr.bf16.mxu0 %v3892
        %5336 = vmatpush2.bf16.msra.mxu0 %v3891
        %5337 = vmatprep.subr.bf16.mxu0 %v3888
        %5338 = vmatpush2.bf16.msra.mxu0 %v3887
        %5339 = vmatprep.subr.bf16.mxu0 %v3884
        %5340 = vmatpush2.bf16.msra.mxu0 %v3883
        %5341 = vmatprep.subr.bf16.mxu0 %v3880
        %5342 = vmatpush2.bf16.msra.mxu0 %v3879
        %5343 = vmatprep.subr.bf16.mxu0 %v3876
        %5344 = vmatpush2.bf16.msra.mxu0 %v3875
        %5345 = vmatprep.subr.bf16.mxu0 %v3872
        %5346 = vmatpush2.bf16.msra.mxu0 %v3871
        %5347 = vmatprep.subr.bf16.mxu0 %v3868
        %5348 = vmatpush2.bf16.msra.mxu0 %v3867
        %5349 = vmatprep.subr.bf16.mxu0 %v3864
        %5350 = vmatpush2.bf16.msra.mxu0 %v3863
        %5351 = vmatprep.mubr.bf16.mxu0 %v1212
        %5352 = vmatmul.mubr.bf16.gmra.mxu0 %v1210
        %v5353 = vpop.f32.mrf.mxu0
        %v5354 = vadd.f32 %v5313, %v5353
        %v5355 = vpop.f32.mrf.mxu0
        %v5356 = vadd.f32 %v5315, %v5355
        %v5357 = vpop.f32.mrf.mxu0
        %v5358 = vpop.f32.mrf.mxu0
        %5359 = vdwg.mxu0
        %5360 = vmatprep.subr.bf16.mxu0 %v3924
        %5361 = vmatpush1.bf16.msra.mxu0 %v3923
        %5362 = vmatprep.subr.bf16.mxu0 %v3920
        %5363 = vmatpush1.bf16.msra.mxu0 %v3919
        %5364 = vmatprep.subr.bf16.mxu0 %v3916
        %5365 = vmatpush1.bf16.msra.mxu0 %v3915
        %5366 = vmatprep.subr.bf16.mxu0 %v3912
        %5367 = vmatpush1.bf16.msra.mxu0 %v3911
        %5368 = vmatprep.subr.bf16.mxu0 %v3908
        %5369 = vmatpush1.bf16.msra.mxu0 %v3907
        %5370 = vmatprep.subr.bf16.mxu0 %v3904
        %5371 = vmatpush1.bf16.msra.mxu0 %v3903
        %5372 = vmatprep.subr.bf16.mxu0 %v3900
        %5373 = vmatpush1.bf16.msra.mxu0 %v3899
        %5374 = vmatprep.subr.bf16.mxu0 %v3896
        %5375 = vmatpush1.bf16.msra.mxu0 %v3895
        %5376 = vmatprep.subr.bf16.mxu0 %v3956
        %5377 = vmatpush2.bf16.msra.mxu0 %v3955
        %5378 = vmatprep.subr.bf16.mxu0 %v3952
        %5379 = vmatpush2.bf16.msra.mxu0 %v3951
        %5380 = vmatprep.subr.bf16.mxu0 %v3948
        %5381 = vmatpush2.bf16.msra.mxu0 %v3947
        %5382 = vmatprep.subr.bf16.mxu0 %v3944
        %5383 = vmatpush2.bf16.msra.mxu0 %v3943
        %5384 = vmatprep.subr.bf16.mxu0 %v3940
        %5385 = vmatpush2.bf16.msra.mxu0 %v3939
        %5386 = vmatprep.subr.bf16.mxu0 %v3936
        %5387 = vmatpush2.bf16.msra.mxu0 %v3935
        %5388 = vmatprep.subr.bf16.mxu0 %v3932
        %5389 = vmatpush2.bf16.msra.mxu0 %v3931
        %5390 = vmatprep.subr.bf16.mxu0 %v3928
        %5391 = vmatpush2.bf16.msra.mxu0 %v3927
        %5392 = vmatprep.mubr.bf16.mxu0 %v1250
        %5393 = vmatmul.mubr.bf16.gmra.mxu0 %v1236
        %v5394 = vpop.f32.mrf.mxu0
        %v5395 = vadd.f32 %v5354, %v5394
        %v5396 = vpop.f32.mrf.mxu0
        %v5397 = vadd.f32 %v5356, %v5396
        %v5398 = vpop.f32.mrf.mxu0
        %v5399 = vpop.f32.mrf.mxu0
        %5400 = vdwg.mxu0
        %5401 = vmatprep.subr.bf16.mxu0 %v3988
        %5402 = vmatpush1.bf16.msra.mxu0 %v3987
        %5403 = vmatprep.subr.bf16.mxu0 %v3984
        %5404 = vmatpush1.bf16.msra.mxu0 %v3983
        %5405 = vmatprep.subr.bf16.mxu0 %v3980
        %5406 = vmatpush1.bf16.msra.mxu0 %v3979
        %5407 = vmatprep.subr.bf16.mxu0 %v3976
        %5408 = vmatpush1.bf16.msra.mxu0 %v3975
        %5409 = vmatprep.subr.bf16.mxu0 %v3972
        %5410 = vmatpush1.bf16.msra.mxu0 %v3971
        %5411 = vmatprep.subr.bf16.mxu0 %v3968
        %5412 = vmatpush1.bf16.msra.mxu0 %v3967
        %5413 = vmatprep.subr.bf16.mxu0 %v3964
        %5414 = vmatpush1.bf16.msra.mxu0 %v3963
        %5415 = vmatprep.subr.bf16.mxu0 %v3960
        %5416 = vmatpush1.bf16.msra.mxu0 %v3959
        %5417 = vmatprep.subr.bf16.mxu0 %v4020
        %5418 = vmatpush2.bf16.msra.mxu0 %v4019
        %5419 = vmatprep.subr.bf16.mxu0 %v4016
        %5420 = vmatpush2.bf16.msra.mxu0 %v4015
        %5421 = vmatprep.subr.bf16.mxu0 %v4012
        %5422 = vmatpush2.bf16.msra.mxu0 %v4011
        %5423 = vmatprep.subr.bf16.mxu0 %v4008
        %5424 = vmatpush2.bf16.msra.mxu0 %v4007
        %5425 = vmatprep.subr.bf16.mxu0 %v4004
        %5426 = vmatpush2.bf16.msra.mxu0 %v4003
        %5427 = vmatprep.subr.bf16.mxu0 %v4000
        %5428 = vmatpush2.bf16.msra.mxu0 %v3999
        %5429 = vmatprep.subr.bf16.mxu0 %v3996
        %5430 = vmatpush2.bf16.msra.mxu0 %v3995
        %5431 = vmatprep.subr.bf16.mxu0 %v3992
        %5432 = vmatpush2.bf16.msra.mxu0 %v3991
        %5433 = vmatprep.mubr.bf16.mxu0 %v1260
        %5434 = vmatmul.mubr.bf16.gmra.mxu0 %v1258
        %v5435 = vpop.f32.mrf.mxu0
        %v5436 = vadd.f32 %v5395, %v5435
        %v5437 = vpop.f32.mrf.mxu0
        %v5438 = vadd.f32 %v5397, %v5437
        %v5439 = vpop.f32.mrf.mxu0
        %v5440 = vpop.f32.mrf.mxu0
        %5441 = vdwg.mxu0
        %5442 = vmatprep.subr.bf16.mxu0 %v4052
        %5443 = vmatpush1.bf16.msra.mxu0 %v4051
        %5444 = vmatprep.subr.bf16.mxu0 %v4048
        %5445 = vmatpush1.bf16.msra.mxu0 %v4047
        %5446 = vmatprep.subr.bf16.mxu0 %v4044
        %5447 = vmatpush1.bf16.msra.mxu0 %v4043
        %5448 = vmatprep.subr.bf16.mxu0 %v4040
        %5449 = vmatpush1.bf16.msra.mxu0 %v4039
        %5450 = vmatprep.subr.bf16.mxu0 %v4036
        %5451 = vmatpush1.bf16.msra.mxu0 %v4035
        %5452 = vmatprep.subr.bf16.mxu0 %v4032
        %5453 = vmatpush1.bf16.msra.mxu0 %v4031
        %5454 = vmatprep.subr.bf16.mxu0 %v4028
        %5455 = vmatpush1.bf16.msra.mxu0 %v4027
        %5456 = vmatprep.subr.bf16.mxu0 %v4024
        %5457 = vmatpush1.bf16.msra.mxu0 %v4023
        %5458 = vmatprep.subr.bf16.mxu0 %v4084
        %5459 = vmatpush2.bf16.msra.mxu0 %v4083
        %5460 = vmatprep.subr.bf16.mxu0 %v4080
        %5461 = vmatpush2.bf16.msra.mxu0 %v4079
        %5462 = vmatprep.subr.bf16.mxu0 %v4076
        %5463 = vmatpush2.bf16.msra.mxu0 %v4075
        %5464 = vmatprep.subr.bf16.mxu0 %v4072
        %5465 = vmatpush2.bf16.msra.mxu0 %v4071
        %5466 = vmatprep.subr.bf16.mxu0 %v4068
        %5467 = vmatpush2.bf16.msra.mxu0 %v4067
        %5468 = vmatprep.subr.bf16.mxu0 %v4064
        %5469 = vmatpush2.bf16.msra.mxu0 %v4063
        %5470 = vmatprep.subr.bf16.mxu0 %v4060
        %5471 = vmatpush2.bf16.msra.mxu0 %v4059
        %5472 = vmatprep.subr.bf16.mxu0 %v4056
        %5473 = vmatpush2.bf16.msra.mxu0 %v4055
        %5474 = vmatprep.mubr.bf16.mxu0 %v1257
        %5475 = vmatmul.mubr.bf16.gmra.mxu0 %v1243
        %v5476 = vpop.f32.mrf.mxu0
        %v5477 = vadd.f32 %v5436, %v5476
        %v5478 = vpop.f32.mrf.mxu0
        %v5479 = vadd.f32 %v5438, %v5478
        %v5480 = vpop.f32.mrf.mxu0
        %v5481 = vpop.f32.mrf.mxu0
        %5482 = vdwg.mxu0
        %5483 = vmatprep.subr.bf16.mxu0 %v4116
        %5484 = vmatpush1.bf16.msra.mxu0 %v4115
        %5485 = vmatprep.subr.bf16.mxu0 %v4112
        %5486 = vmatpush1.bf16.msra.mxu0 %v4111
        %5487 = vmatprep.subr.bf16.mxu0 %v4108
        %5488 = vmatpush1.bf16.msra.mxu0 %v4107
        %5489 = vmatprep.subr.bf16.mxu0 %v4104
        %5490 = vmatpush1.bf16.msra.mxu0 %v4103
        %5491 = vmatprep.subr.bf16.mxu0 %v4100
        %5492 = vmatpush1.bf16.msra.mxu0 %v4099
        %5493 = vmatprep.subr.bf16.mxu0 %v4096
        %5494 = vmatpush1.bf16.msra.mxu0 %v4095
        %5495 = vmatprep.subr.bf16.mxu0 %v4092
        %5496 = vmatpush1.bf16.msra.mxu0 %v4091
        %5497 = vmatprep.subr.bf16.mxu0 %v4088
        %5498 = vmatpush1.bf16.msra.mxu0 %v4087
        %5499 = vmatprep.subr.bf16.mxu0 %v4148
        %5500 = vmatpush2.bf16.msra.mxu0 %v4147
        %5501 = vmatprep.subr.bf16.mxu0 %v4144
        %5502 = vmatpush2.bf16.msra.mxu0 %v4143
        %5503 = vmatprep.subr.bf16.mxu0 %v4140
        %5504 = vmatpush2.bf16.msra.mxu0 %v4139
        %5505 = vmatprep.subr.bf16.mxu0 %v4136
        %5506 = vmatpush2.bf16.msra.mxu0 %v4135
        %5507 = vmatprep.subr.bf16.mxu0 %v4132
        %5508 = vmatpush2.bf16.msra.mxu0 %v4131
        %5509 = vmatprep.subr.bf16.mxu0 %v4128
        %5510 = vmatpush2.bf16.msra.mxu0 %v4127
        %5511 = vmatprep.subr.bf16.mxu0 %v4124
        %5512 = vmatpush2.bf16.msra.mxu0 %v4123
        %5513 = vmatprep.subr.bf16.mxu0 %v4120
        %5514 = vmatpush2.bf16.msra.mxu0 %v4119
        %5515 = vmatprep.mubr.bf16.mxu0 %v1261
        %5516 = vmatmul.mubr.bf16.gmra.mxu0 %v1259
        %v5517 = vpop.f32.mrf.mxu0
        %v5518 = vadd.f32 %v5477, %v5517
        %v5519 = vpop.f32.mrf.mxu0
        %v5520 = vadd.f32 %v5479, %v5519
        %v5521 = vpop.f32.mrf.mxu0
        %v5522 = vpop.f32.mrf.mxu0
        %5523 = vdwg.mxu0
        %5524 = vmatprep.subr.bf16.mxu0 %v4180
        %5525 = vmatpush1.bf16.msra.mxu0 %v4179
        %5526 = vmatprep.subr.bf16.mxu0 %v4176
        %5527 = vmatpush1.bf16.msra.mxu0 %v4175
        %5528 = vmatprep.subr.bf16.mxu0 %v4172
        %5529 = vmatpush1.bf16.msra.mxu0 %v4171
        %5530 = vmatprep.subr.bf16.mxu0 %v4168
        %5531 = vmatpush1.bf16.msra.mxu0 %v4167
        %5532 = vmatprep.subr.bf16.mxu0 %v4164
        %5533 = vmatpush1.bf16.msra.mxu0 %v4163
        %5534 = vmatprep.subr.bf16.mxu0 %v4160
        %5535 = vmatpush1.bf16.msra.mxu0 %v4159
        %5536 = vmatprep.subr.bf16.mxu0 %v4156
        %5537 = vmatpush1.bf16.msra.mxu0 %v4155
        %5538 = vmatprep.subr.bf16.mxu0 %v4152
        %5539 = vmatpush1.bf16.msra.mxu0 %v4151
        %5540 = vmatprep.subr.bf16.mxu0 %v4212
        %5541 = vmatpush2.bf16.msra.mxu0 %v4211
        %5542 = vmatprep.subr.bf16.mxu0 %v4208
        %5543 = vmatpush2.bf16.msra.mxu0 %v4207
        %5544 = vmatprep.subr.bf16.mxu0 %v4204
        %5545 = vmatpush2.bf16.msra.mxu0 %v4203
        %5546 = vmatprep.subr.bf16.mxu0 %v4200
        %5547 = vmatpush2.bf16.msra.mxu0 %v4199
        %5548 = vmatprep.subr.bf16.mxu0 %v4196
        %5549 = vmatpush2.bf16.msra.mxu0 %v4195
        %5550 = vmatprep.subr.bf16.mxu0 %v4192
        %5551 = vmatpush2.bf16.msra.mxu0 %v4191
        %5552 = vmatprep.subr.bf16.mxu0 %v4188
        %5553 = vmatpush2.bf16.msra.mxu0 %v4187
        %5554 = vmatprep.subr.bf16.mxu0 %v4184
        %5555 = vmatpush2.bf16.msra.mxu0 %v4183
        %5556 = vmatprep.mubr.bf16.mxu0 %v1299
        %5557 = vmatmul.mubr.bf16.gmra.mxu0 %v1285
        %v5558 = vpop.f32.mrf.mxu0
        %v5559 = vadd.f32 %v5518, %v5558
        %v5560 = vpop.f32.mrf.mxu0
        %v5561 = vadd.f32 %v5520, %v5560
        %v5562 = vpop.f32.mrf.mxu0
        %v5563 = vpop.f32.mrf.mxu0
        %5564 = vdwg.mxu0
        %5565 = vmatprep.subr.bf16.mxu0 %v4244
        %5566 = vmatpush1.bf16.msra.mxu0 %v4243
        %5567 = vmatprep.subr.bf16.mxu0 %v4240
        %5568 = vmatpush1.bf16.msra.mxu0 %v4239
        %5569 = vmatprep.subr.bf16.mxu0 %v4236
        %5570 = vmatpush1.bf16.msra.mxu0 %v4235
        %5571 = vmatprep.subr.bf16.mxu0 %v4232
        %5572 = vmatpush1.bf16.msra.mxu0 %v4231
        %5573 = vmatprep.subr.bf16.mxu0 %v4228
        %5574 = vmatpush1.bf16.msra.mxu0 %v4227
        %5575 = vmatprep.subr.bf16.mxu0 %v4224
        %5576 = vmatpush1.bf16.msra.mxu0 %v4223
        %5577 = vmatprep.subr.bf16.mxu0 %v4220
        %5578 = vmatpush1.bf16.msra.mxu0 %v4219
        %5579 = vmatprep.subr.bf16.mxu0 %v4216
        %5580 = vmatpush1.bf16.msra.mxu0 %v4215
        %5581 = vmatprep.subr.bf16.mxu0 %v4276
        %5582 = vmatpush2.bf16.msra.mxu0 %v4275
        %5583 = vmatprep.subr.bf16.mxu0 %v4272
        %5584 = vmatpush2.bf16.msra.mxu0 %v4271
        %5585 = vmatprep.subr.bf16.mxu0 %v4268
        %5586 = vmatpush2.bf16.msra.mxu0 %v4267
        %5587 = vmatprep.subr.bf16.mxu0 %v4264
        %5588 = vmatpush2.bf16.msra.mxu0 %v4263
        %5589 = vmatprep.subr.bf16.mxu0 %v4260
        %5590 = vmatpush2.bf16.msra.mxu0 %v4259
        %5591 = vmatprep.subr.bf16.mxu0 %v4256
        %5592 = vmatpush2.bf16.msra.mxu0 %v4255
        %5593 = vmatprep.subr.bf16.mxu0 %v4252
        %5594 = vmatpush2.bf16.msra.mxu0 %v4251
        %5595 = vmatprep.subr.bf16.mxu0 %v4248
        %5596 = vmatpush2.bf16.msra.mxu0 %v4247
        %5597 = vmatprep.mubr.bf16.mxu0 %v1309
        %5598 = vmatmul.mubr.bf16.gmra.mxu0 %v1307
        %v5599 = vpop.f32.mrf.mxu0
        %v5600 = vadd.f32 %v5559, %v5599
        %v5601 = vpop.f32.mrf.mxu0
        %v5602 = vadd.f32 %v5561, %v5601
        %v5603 = vpop.f32.mrf.mxu0
        %v5604 = vpop.f32.mrf.mxu0
        %5605 = vdwg.mxu0
        %5606 = vmatprep.subr.bf16.mxu0 %v4308
        %5607 = vmatpush1.bf16.msra.mxu0 %v4307
        %5608 = vmatprep.subr.bf16.mxu0 %v4304
        %5609 = vmatpush1.bf16.msra.mxu0 %v4303
        %5610 = vmatprep.subr.bf16.mxu0 %v4300
        %5611 = vmatpush1.bf16.msra.mxu0 %v4299
        %5612 = vmatprep.subr.bf16.mxu0 %v4296
        %5613 = vmatpush1.bf16.msra.mxu0 %v4295
        %5614 = vmatprep.subr.bf16.mxu0 %v4292
        %5615 = vmatpush1.bf16.msra.mxu0 %v4291
        %5616 = vmatprep.subr.bf16.mxu0 %v4288
        %5617 = vmatpush1.bf16.msra.mxu0 %v4287
        %5618 = vmatprep.subr.bf16.mxu0 %v4284
        %5619 = vmatpush1.bf16.msra.mxu0 %v4283
        %5620 = vmatprep.subr.bf16.mxu0 %v4280
        %5621 = vmatpush1.bf16.msra.mxu0 %v4279
        %5622 = vmatprep.subr.bf16.mxu0 %v4340
        %5623 = vmatpush2.bf16.msra.mxu0 %v4339
        %5624 = vmatprep.subr.bf16.mxu0 %v4336
        %5625 = vmatpush2.bf16.msra.mxu0 %v4335
        %5626 = vmatprep.subr.bf16.mxu0 %v4332
        %5627 = vmatpush2.bf16.msra.mxu0 %v4331
        %5628 = vmatprep.subr.bf16.mxu0 %v4328
        %5629 = vmatpush2.bf16.msra.mxu0 %v4327
        %5630 = vmatprep.subr.bf16.mxu0 %v4324
        %5631 = vmatpush2.bf16.msra.mxu0 %v4323
        %5632 = vmatprep.subr.bf16.mxu0 %v4320
        %5633 = vmatpush2.bf16.msra.mxu0 %v4319
        %5634 = vmatprep.subr.bf16.mxu0 %v4316
        %5635 = vmatpush2.bf16.msra.mxu0 %v4315
        %5636 = vmatprep.subr.bf16.mxu0 %v4312
        %5637 = vmatpush2.bf16.msra.mxu0 %v4311
        %5638 = vmatprep.mubr.bf16.mxu0 %v1306
        %5639 = vmatmul.mubr.bf16.gmra.mxu0 %v1292
        %v5640 = vpop.f32.mrf.mxu0
        %v5641 = vadd.f32 %v5600, %v5640
        %v5642 = vpop.f32.mrf.mxu0
        %v5643 = vadd.f32 %v5602, %v5642
        %v5644 = vpop.f32.mrf.mxu0
        %v5645 = vpop.f32.mrf.mxu0
        %5646 = vdwg.mxu0
        %5647 = vmatprep.subr.bf16.mxu0 %v4372
        %5648 = vmatpush1.bf16.msra.mxu0 %v4371
        %5649 = vmatprep.subr.bf16.mxu0 %v4368
        %5650 = vmatpush1.bf16.msra.mxu0 %v4367
        %5651 = vmatprep.subr.bf16.mxu0 %v4364
        %5652 = vmatpush1.bf16.msra.mxu0 %v4363
        %5653 = vmatprep.subr.bf16.mxu0 %v4360
        %5654 = vmatpush1.bf16.msra.mxu0 %v4359
        %5655 = vmatprep.subr.bf16.mxu0 %v4356
        %5656 = vmatpush1.bf16.msra.mxu0 %v4355
        %5657 = vmatprep.subr.bf16.mxu0 %v4352
        %5658 = vmatpush1.bf16.msra.mxu0 %v4351
        %5659 = vmatprep.subr.bf16.mxu0 %v4348
        %5660 = vmatpush1.bf16.msra.mxu0 %v4347
        %5661 = vmatprep.subr.bf16.mxu0 %v4344
        %5662 = vmatpush1.bf16.msra.mxu0 %v4343
        %5663 = vmatprep.subr.bf16.mxu0 %v4404
        %5664 = vmatpush2.bf16.msra.mxu0 %v4403
        %5665 = vmatprep.subr.bf16.mxu0 %v4400
        %5666 = vmatpush2.bf16.msra.mxu0 %v4399
        %5667 = vmatprep.subr.bf16.mxu0 %v4396
        %5668 = vmatpush2.bf16.msra.mxu0 %v4395
        %5669 = vmatprep.subr.bf16.mxu0 %v4392
        %5670 = vmatpush2.bf16.msra.mxu0 %v4391
        %5671 = vmatprep.subr.bf16.mxu0 %v4388
        %5672 = vmatpush2.bf16.msra.mxu0 %v4387
        %5673 = vmatprep.subr.bf16.mxu0 %v4384
        %5674 = vmatpush2.bf16.msra.mxu0 %v4383
        %5675 = vmatprep.subr.bf16.mxu0 %v4380
        %5676 = vmatpush2.bf16.msra.mxu0 %v4379
        %5677 = vmatprep.subr.bf16.mxu0 %v4376
        %5678 = vmatpush2.bf16.msra.mxu0 %v4375
        %5679 = vmatprep.mubr.bf16.mxu0 %v1310
        %5680 = vmatmul.mubr.bf16.gmra.mxu0 %v1308
        %v5681 = vpop.f32.mrf.mxu0
        %v5682 = vadd.f32 %v5641, %v5681
        %v5683 = vpop.f32.mrf.mxu0
        %v5684 = vadd.f32 %v5643, %v5683
        %v5685 = vpop.f32.mrf.mxu0
        %v5686 = vpop.f32.mrf.mxu0
        %5687 = vdwg.mxu0
        %5688 = vmatprep.subr.bf16.mxu0 %v3670
        %5689 = vmatpush1.bf16.msra.mxu0 %v3669
        %5690 = vmatprep.subr.bf16.mxu0 %v3666
        %5691 = vmatpush1.bf16.msra.mxu0 %v3665
        %5692 = vmatprep.subr.bf16.mxu0 %v3662
        %5693 = vmatpush1.bf16.msra.mxu0 %v3661
        %5694 = vmatprep.subr.bf16.mxu0 %v3658
        %5695 = vmatpush1.bf16.msra.mxu0 %v3657
        %5696 = vmatprep.subr.bf16.mxu0 %v3654
        %5697 = vmatpush1.bf16.msra.mxu0 %v3653
        %5698 = vmatprep.subr.bf16.mxu0 %v3650
        %5699 = vmatpush1.bf16.msra.mxu0 %v3649
        %5700 = vmatprep.subr.bf16.mxu0 %v3646
        %5701 = vmatpush1.bf16.msra.mxu0 %v3645
        %5702 = vmatprep.subr.bf16.mxu0 %v3642
        %5703 = vmatpush1.bf16.msra.mxu0 %v3641
        %5704 = vmatprep.subr.bf16.mxu0 %v3702
        %5705 = vmatpush2.bf16.msra.mxu0 %v3701
        %5706 = vmatprep.subr.bf16.mxu0 %v3698
        %5707 = vmatpush2.bf16.msra.mxu0 %v3697
        %5708 = vmatprep.subr.bf16.mxu0 %v3694
        %5709 = vmatpush2.bf16.msra.mxu0 %v3693
        %5710 = vmatprep.subr.bf16.mxu0 %v3690
        %5711 = vmatpush2.bf16.msra.mxu0 %v3689
        %5712 = vmatprep.subr.bf16.mxu0 %v3686
        %5713 = vmatpush2.bf16.msra.mxu0 %v3685
        %5714 = vmatprep.subr.bf16.mxu0 %v3682
        %5715 = vmatpush2.bf16.msra.mxu0 %v3681
        %5716 = vmatprep.subr.bf16.mxu0 %v3678
        %5717 = vmatpush2.bf16.msra.mxu0 %v3677
        %5718 = vmatprep.subr.bf16.mxu0 %v3674
        %5719 = vmatpush2.bf16.msra.mxu0 %v3673
        %5720 = vmatprep.mubr.bf16.mxu0 %v1201
        %5721 = vmatmul.mubr.bf16.gmra.mxu0 %v1187
        %v5722 = vpop.f32.mrf.mxu0
        %v5723 = vadd.f32 %v5187, %v5722
        %v5724 = vpop.f32.mrf.mxu0
        %v5725 = vadd.f32 %v5191, %v5724
        %v5726 = vpop.f32.mrf.mxu0
        %v5727 = vpop.f32.mrf.mxu0
        %5728 = vdwg.mxu0
        %5729 = vmatprep.subr.bf16.mxu0 %v3734
        %5730 = vmatpush1.bf16.msra.mxu0 %v3733
        %5731 = vmatprep.subr.bf16.mxu0 %v3730
        %5732 = vmatpush1.bf16.msra.mxu0 %v3729
        %5733 = vmatprep.subr.bf16.mxu0 %v3726
        %5734 = vmatpush1.bf16.msra.mxu0 %v3725
        %5735 = vmatprep.subr.bf16.mxu0 %v3722
        %5736 = vmatpush1.bf16.msra.mxu0 %v3721
        %5737 = vmatprep.subr.bf16.mxu0 %v3718
        %5738 = vmatpush1.bf16.msra.mxu0 %v3717
        %5739 = vmatprep.subr.bf16.mxu0 %v3714
        %5740 = vmatpush1.bf16.msra.mxu0 %v3713
        %5741 = vmatprep.subr.bf16.mxu0 %v3710
        %5742 = vmatpush1.bf16.msra.mxu0 %v3709
        %5743 = vmatprep.subr.bf16.mxu0 %v3706
        %5744 = vmatpush1.bf16.msra.mxu0 %v3705
        %5745 = vmatprep.subr.bf16.mxu0 %v3766
        %5746 = vmatpush2.bf16.msra.mxu0 %v3765
        %5747 = vmatprep.subr.bf16.mxu0 %v3762
        %5748 = vmatpush2.bf16.msra.mxu0 %v3761
        %5749 = vmatprep.subr.bf16.mxu0 %v3758
        %5750 = vmatpush2.bf16.msra.mxu0 %v3757
        %5751 = vmatprep.subr.bf16.mxu0 %v3754
        %5752 = vmatpush2.bf16.msra.mxu0 %v3753
        %5753 = vmatprep.subr.bf16.mxu0 %v3750
        %5754 = vmatpush2.bf16.msra.mxu0 %v3749
        %5755 = vmatprep.subr.bf16.mxu0 %v3746
        %5756 = vmatpush2.bf16.msra.mxu0 %v3745
        %5757 = vmatprep.subr.bf16.mxu0 %v3742
        %5758 = vmatpush2.bf16.msra.mxu0 %v3741
        %5759 = vmatprep.subr.bf16.mxu0 %v3738
        %5760 = vmatpush2.bf16.msra.mxu0 %v3737
        %5761 = vmatprep.mubr.bf16.mxu0 %v1211
        %5762 = vmatmul.mubr.bf16.gmra.mxu0 %v1209
        %v5763 = vpop.f32.mrf.mxu0
        %v5764 = vadd.f32 %v5723, %v5763
        %v5765 = vpop.f32.mrf.mxu0
        %v5766 = vadd.f32 %v5725, %v5765
        %v5767 = vpop.f32.mrf.mxu0
        %v5768 = vpop.f32.mrf.mxu0
        %5769 = vdwg.mxu0
        %5770 = vmatprep.subr.bf16.mxu0 %v3798
        %5771 = vmatpush1.bf16.msra.mxu0 %v3797
        %5772 = vmatprep.subr.bf16.mxu0 %v3794
        %5773 = vmatpush1.bf16.msra.mxu0 %v3793
        %5774 = vmatprep.subr.bf16.mxu0 %v3790
        %5775 = vmatpush1.bf16.msra.mxu0 %v3789
        %5776 = vmatprep.subr.bf16.mxu0 %v3786
        %5777 = vmatpush1.bf16.msra.mxu0 %v3785
        %5778 = vmatprep.subr.bf16.mxu0 %v3782
        %5779 = vmatpush1.bf16.msra.mxu0 %v3781
        %5780 = vmatprep.subr.bf16.mxu0 %v3778
        %5781 = vmatpush1.bf16.msra.mxu0 %v3777
        %5782 = vmatprep.subr.bf16.mxu0 %v3774
        %5783 = vmatpush1.bf16.msra.mxu0 %v3773
        %5784 = vmatprep.subr.bf16.mxu0 %v3770
        %5785 = vmatpush1.bf16.msra.mxu0 %v3769
        %5786 = vmatprep.subr.bf16.mxu0 %v3830
        %5787 = vmatpush2.bf16.msra.mxu0 %v3829
        %5788 = vmatprep.subr.bf16.mxu0 %v3826
        %5789 = vmatpush2.bf16.msra.mxu0 %v3825
        %5790 = vmatprep.subr.bf16.mxu0 %v3822
        %5791 = vmatpush2.bf16.msra.mxu0 %v3821
        %5792 = vmatprep.subr.bf16.mxu0 %v3818
        %5793 = vmatpush2.bf16.msra.mxu0 %v3817
        %5794 = vmatprep.subr.bf16.mxu0 %v3814
        %5795 = vmatpush2.bf16.msra.mxu0 %v3813
        %5796 = vmatprep.subr.bf16.mxu0 %v3810
        %5797 = vmatpush2.bf16.msra.mxu0 %v3809
        %5798 = vmatprep.subr.bf16.mxu0 %v3806
        %5799 = vmatpush2.bf16.msra.mxu0 %v3805
        %5800 = vmatprep.subr.bf16.mxu0 %v3802
        %5801 = vmatpush2.bf16.msra.mxu0 %v3801
        %5802 = vmatprep.mubr.bf16.mxu0 %v1208
        %5803 = vmatmul.mubr.bf16.gmra.mxu0 %v1194
        %v5804 = vpop.f32.mrf.mxu0
        %v5805 = vadd.f32 %v5764, %v5804
        %v5806 = vpop.f32.mrf.mxu0
        %v5807 = vadd.f32 %v5766, %v5806
        %v5808 = vpop.f32.mrf.mxu0
        %v5809 = vpop.f32.mrf.mxu0
        %5810 = vdwg.mxu0
        %5811 = vmatprep.subr.bf16.mxu0 %v3862
        %5812 = vmatpush1.bf16.msra.mxu0 %v3861
        %5813 = vmatprep.subr.bf16.mxu0 %v3858
        %5814 = vmatpush1.bf16.msra.mxu0 %v3857
        %5815 = vmatprep.subr.bf16.mxu0 %v3854
        %5816 = vmatpush1.bf16.msra.mxu0 %v3853
        %5817 = vmatprep.subr.bf16.mxu0 %v3850
        %5818 = vmatpush1.bf16.msra.mxu0 %v3849
        %5819 = vmatprep.subr.bf16.mxu0 %v3846
        %5820 = vmatpush1.bf16.msra.mxu0 %v3845
        %5821 = vmatprep.subr.bf16.mxu0 %v3842
        %5822 = vmatpush1.bf16.msra.mxu0 %v3841
        %5823 = vmatprep.subr.bf16.mxu0 %v3838
        %5824 = vmatpush1.bf16.msra.mxu0 %v3837
        %5825 = vmatprep.subr.bf16.mxu0 %v3834
        %5826 = vmatpush1.bf16.msra.mxu0 %v3833
        %5827 = vmatprep.subr.bf16.mxu0 %v3894
        %5828 = vmatpush2.bf16.msra.mxu0 %v3893
        %5829 = vmatprep.subr.bf16.mxu0 %v3890
        %5830 = vmatpush2.bf16.msra.mxu0 %v3889
        %5831 = vmatprep.subr.bf16.mxu0 %v3886
        %5832 = vmatpush2.bf16.msra.mxu0 %v3885
        %5833 = vmatprep.subr.bf16.mxu0 %v3882
        %5834 = vmatpush2.bf16.msra.mxu0 %v3881
        %5835 = vmatprep.subr.bf16.mxu0 %v3878
        %5836 = vmatpush2.bf16.msra.mxu0 %v3877
        %5837 = vmatprep.subr.bf16.mxu0 %v3874
        %5838 = vmatpush2.bf16.msra.mxu0 %v3873
        %5839 = vmatprep.subr.bf16.mxu0 %v3870
        %5840 = vmatpush2.bf16.msra.mxu0 %v3869
        %5841 = vmatprep.subr.bf16.mxu0 %v3866
        %5842 = vmatpush2.bf16.msra.mxu0 %v3865
        %5843 = vmatprep.mubr.bf16.mxu0 %v1212
        %5844 = vmatmul.mubr.bf16.gmra.mxu0 %v1210
        %v5845 = vpop.f32.mrf.mxu0
        %v5846 = vadd.f32 %v5805, %v5845
        %v5847 = vpop.f32.mrf.mxu0
        %v5848 = vadd.f32 %v5807, %v5847
        %v5849 = vpop.f32.mrf.mxu0
        %v5850 = vpop.f32.mrf.mxu0
        %5851 = vdwg.mxu0
        %5852 = vmatprep.subr.bf16.mxu0 %v3926
        %5853 = vmatpush1.bf16.msra.mxu0 %v3925
        %5854 = vmatprep.subr.bf16.mxu0 %v3922
        %5855 = vmatpush1.bf16.msra.mxu0 %v3921
        %5856 = vmatprep.subr.bf16.mxu0 %v3918
        %5857 = vmatpush1.bf16.msra.mxu0 %v3917
        %5858 = vmatprep.subr.bf16.mxu0 %v3914
        %5859 = vmatpush1.bf16.msra.mxu0 %v3913
        %5860 = vmatprep.subr.bf16.mxu0 %v3910
        %5861 = vmatpush1.bf16.msra.mxu0 %v3909
        %5862 = vmatprep.subr.bf16.mxu0 %v3906
        %5863 = vmatpush1.bf16.msra.mxu0 %v3905
        %5864 = vmatprep.subr.bf16.mxu0 %v3902
        %5865 = vmatpush1.bf16.msra.mxu0 %v3901
        %5866 = vmatprep.subr.bf16.mxu0 %v3898
        %5867 = vmatpush1.bf16.msra.mxu0 %v3897
        %5868 = vmatprep.subr.bf16.mxu0 %v3958
        %5869 = vmatpush2.bf16.msra.mxu0 %v3957
        %5870 = vmatprep.subr.bf16.mxu0 %v3954
        %5871 = vmatpush2.bf16.msra.mxu0 %v3953
        %5872 = vmatprep.subr.bf16.mxu0 %v3950
        %5873 = vmatpush2.bf16.msra.mxu0 %v3949
        %5874 = vmatprep.subr.bf16.mxu0 %v3946
        %5875 = vmatpush2.bf16.msra.mxu0 %v3945
        %5876 = vmatprep.subr.bf16.mxu0 %v3942
        %5877 = vmatpush2.bf16.msra.mxu0 %v3941
        %5878 = vmatprep.subr.bf16.mxu0 %v3938
        %5879 = vmatpush2.bf16.msra.mxu0 %v3937
        %5880 = vmatprep.subr.bf16.mxu0 %v3934
        %5881 = vmatpush2.bf16.msra.mxu0 %v3933
        %5882 = vmatprep.subr.bf16.mxu0 %v3930
        %5883 = vmatpush2.bf16.msra.mxu0 %v3929
        %5884 = vmatprep.mubr.bf16.mxu0 %v1250
        %5885 = vmatmul.mubr.bf16.gmra.mxu0 %v1236
        %v5886 = vpop.f32.mrf.mxu0
        %v5887 = vadd.f32 %v5846, %v5886
        %v5888 = vpop.f32.mrf.mxu0
        %v5889 = vadd.f32 %v5848, %v5888
        %v5890 = vpop.f32.mrf.mxu0
        %v5891 = vpop.f32.mrf.mxu0
        %5892 = vdwg.mxu0
        %5893 = vmatprep.subr.bf16.mxu0 %v3990
        %5894 = vmatpush1.bf16.msra.mxu0 %v3989
        %5895 = vmatprep.subr.bf16.mxu0 %v3986
        %5896 = vmatpush1.bf16.msra.mxu0 %v3985
        %5897 = vmatprep.subr.bf16.mxu0 %v3982
        %5898 = vmatpush1.bf16.msra.mxu0 %v3981
        %5899 = vmatprep.subr.bf16.mxu0 %v3978
        %5900 = vmatpush1.bf16.msra.mxu0 %v3977
        %5901 = vmatprep.subr.bf16.mxu0 %v3974
        %5902 = vmatpush1.bf16.msra.mxu0 %v3973
        %5903 = vmatprep.subr.bf16.mxu0 %v3970
        %5904 = vmatpush1.bf16.msra.mxu0 %v3969
        %5905 = vmatprep.subr.bf16.mxu0 %v3966
        %5906 = vmatpush1.bf16.msra.mxu0 %v3965
        %5907 = vmatprep.subr.bf16.mxu0 %v3962
        %5908 = vmatpush1.bf16.msra.mxu0 %v3961
        %5909 = vmatprep.subr.bf16.mxu0 %v4022
        %5910 = vmatpush2.bf16.msra.mxu0 %v4021
        %5911 = vmatprep.subr.bf16.mxu0 %v4018
        %5912 = vmatpush2.bf16.msra.mxu0 %v4017
        %5913 = vmatprep.subr.bf16.mxu0 %v4014
        %5914 = vmatpush2.bf16.msra.mxu0 %v4013
        %5915 = vmatprep.subr.bf16.mxu0 %v4010
        %5916 = vmatpush2.bf16.msra.mxu0 %v4009
        %5917 = vmatprep.subr.bf16.mxu0 %v4006
        %5918 = vmatpush2.bf16.msra.mxu0 %v4005
        %5919 = vmatprep.subr.bf16.mxu0 %v4002
        %5920 = vmatpush2.bf16.msra.mxu0 %v4001
        %5921 = vmatprep.subr.bf16.mxu0 %v3998
        %5922 = vmatpush2.bf16.msra.mxu0 %v3997
        %5923 = vmatprep.subr.bf16.mxu0 %v3994
        %5924 = vmatpush2.bf16.msra.mxu0 %v3993
        %5925 = vmatprep.mubr.bf16.mxu0 %v1260
        %5926 = vmatmul.mubr.bf16.gmra.mxu0 %v1258
        %v5927 = vpop.f32.mrf.mxu0
        %v5928 = vadd.f32 %v5887, %v5927
        %v5929 = vpop.f32.mrf.mxu0
        %v5930 = vadd.f32 %v5889, %v5929
        %v5931 = vpop.f32.mrf.mxu0
        %v5932 = vpop.f32.mrf.mxu0
        %5933 = vdwg.mxu0
        %5934 = vmatprep.subr.bf16.mxu0 %v4054
        %5935 = vmatpush1.bf16.msra.mxu0 %v4053
        %5936 = vmatprep.subr.bf16.mxu0 %v4050
        %5937 = vmatpush1.bf16.msra.mxu0 %v4049
        %5938 = vmatprep.subr.bf16.mxu0 %v4046
        %5939 = vmatpush1.bf16.msra.mxu0 %v4045
        %5940 = vmatprep.subr.bf16.mxu0 %v4042
        %5941 = vmatpush1.bf16.msra.mxu0 %v4041
        %5942 = vmatprep.subr.bf16.mxu0 %v4038
        %5943 = vmatpush1.bf16.msra.mxu0 %v4037
        %5944 = vmatprep.subr.bf16.mxu0 %v4034
        %5945 = vmatpush1.bf16.msra.mxu0 %v4033
        %5946 = vmatprep.subr.bf16.mxu0 %v4030
        %5947 = vmatpush1.bf16.msra.mxu0 %v4029
        %5948 = vmatprep.subr.bf16.mxu0 %v4026
        %5949 = vmatpush1.bf16.msra.mxu0 %v4025
        %5950 = vmatprep.subr.bf16.mxu0 %v4086
        %5951 = vmatpush2.bf16.msra.mxu0 %v4085
        %5952 = vmatprep.subr.bf16.mxu0 %v4082
        %5953 = vmatpush2.bf16.msra.mxu0 %v4081
        %5954 = vmatprep.subr.bf16.mxu0 %v4078
        %5955 = vmatpush2.bf16.msra.mxu0 %v4077
        %5956 = vmatprep.subr.bf16.mxu0 %v4074
        %5957 = vmatpush2.bf16.msra.mxu0 %v4073
        %5958 = vmatprep.subr.bf16.mxu0 %v4070
        %5959 = vmatpush2.bf16.msra.mxu0 %v4069
        %5960 = vmatprep.subr.bf16.mxu0 %v4066
        %5961 = vmatpush2.bf16.msra.mxu0 %v4065
        %5962 = vmatprep.subr.bf16.mxu0 %v4062
        %5963 = vmatpush2.bf16.msra.mxu0 %v4061
        %5964 = vmatprep.subr.bf16.mxu0 %v4058
        %5965 = vmatpush2.bf16.msra.mxu0 %v4057
        %5966 = vmatprep.mubr.bf16.mxu0 %v1257
        %5967 = vmatmul.mubr.bf16.gmra.mxu0 %v1243
        %v5968 = vpop.f32.mrf.mxu0
        %v5969 = vadd.f32 %v5928, %v5968
        %v5970 = vpop.f32.mrf.mxu0
        %v5971 = vadd.f32 %v5930, %v5970
        %v5972 = vpop.f32.mrf.mxu0
        %v5973 = vpop.f32.mrf.mxu0
        %5974 = vdwg.mxu0
        %5975 = vmatprep.subr.bf16.mxu0 %v4118
        %5976 = vmatpush1.bf16.msra.mxu0 %v4117
        %5977 = vmatprep.subr.bf16.mxu0 %v4114
        %5978 = vmatpush1.bf16.msra.mxu0 %v4113
        %5979 = vmatprep.subr.bf16.mxu0 %v4110
        %5980 = vmatpush1.bf16.msra.mxu0 %v4109
        %5981 = vmatprep.subr.bf16.mxu0 %v4106
        %5982 = vmatpush1.bf16.msra.mxu0 %v4105
        %5983 = vmatprep.subr.bf16.mxu0 %v4102
        %5984 = vmatpush1.bf16.msra.mxu0 %v4101
        %5985 = vmatprep.subr.bf16.mxu0 %v4098
        %5986 = vmatpush1.bf16.msra.mxu0 %v4097
        %5987 = vmatprep.subr.bf16.mxu0 %v4094
        %5988 = vmatpush1.bf16.msra.mxu0 %v4093
        %5989 = vmatprep.subr.bf16.mxu0 %v4090
        %5990 = vmatpush1.bf16.msra.mxu0 %v4089
        %5991 = vmatprep.subr.bf16.mxu0 %v4150
        %5992 = vmatpush2.bf16.msra.mxu0 %v4149
        %5993 = vmatprep.subr.bf16.mxu0 %v4146
        %5994 = vmatpush2.bf16.msra.mxu0 %v4145
        %5995 = vmatprep.subr.bf16.mxu0 %v4142
        %5996 = vmatpush2.bf16.msra.mxu0 %v4141
        %5997 = vmatprep.subr.bf16.mxu0 %v4138
        %5998 = vmatpush2.bf16.msra.mxu0 %v4137
        %5999 = vmatprep.subr.bf16.mxu0 %v4134
        %6000 = vmatpush2.bf16.msra.mxu0 %v4133
        %6001 = vmatprep.subr.bf16.mxu0 %v4130
        %6002 = vmatpush2.bf16.msra.mxu0 %v4129
        %6003 = vmatprep.subr.bf16.mxu0 %v4126
        %6004 = vmatpush2.bf16.msra.mxu0 %v4125
        %6005 = vmatprep.subr.bf16.mxu0 %v4122
        %6006 = vmatpush2.bf16.msra.mxu0 %v4121
        %6007 = vmatprep.mubr.bf16.mxu0 %v1261
        %6008 = vmatmul.mubr.bf16.gmra.mxu0 %v1259
        %v6009 = vpop.f32.mrf.mxu0
        %v6010 = vadd.f32 %v5969, %v6009
        %v6011 = vpop.f32.mrf.mxu0
        %v6012 = vadd.f32 %v5971, %v6011
        %v6013 = vpop.f32.mrf.mxu0
        %v6014 = vpop.f32.mrf.mxu0
        %6015 = vdwg.mxu0
        %6016 = vmatprep.subr.bf16.mxu0 %v4182
        %6017 = vmatpush1.bf16.msra.mxu0 %v4181
        %6018 = vmatprep.subr.bf16.mxu0 %v4178
        %6019 = vmatpush1.bf16.msra.mxu0 %v4177
        %6020 = vmatprep.subr.bf16.mxu0 %v4174
        %6021 = vmatpush1.bf16.msra.mxu0 %v4173
        %6022 = vmatprep.subr.bf16.mxu0 %v4170
        %6023 = vmatpush1.bf16.msra.mxu0 %v4169
        %6024 = vmatprep.subr.bf16.mxu0 %v4166
        %6025 = vmatpush1.bf16.msra.mxu0 %v4165
        %6026 = vmatprep.subr.bf16.mxu0 %v4162
        %6027 = vmatpush1.bf16.msra.mxu0 %v4161
        %6028 = vmatprep.subr.bf16.mxu0 %v4158
        %6029 = vmatpush1.bf16.msra.mxu0 %v4157
        %6030 = vmatprep.subr.bf16.mxu0 %v4154
        %6031 = vmatpush1.bf16.msra.mxu0 %v4153
        %6032 = vmatprep.subr.bf16.mxu0 %v4214
        %6033 = vmatpush2.bf16.msra.mxu0 %v4213
        %6034 = vmatprep.subr.bf16.mxu0 %v4210
        %6035 = vmatpush2.bf16.msra.mxu0 %v4209
        %6036 = vmatprep.subr.bf16.mxu0 %v4206
        %6037 = vmatpush2.bf16.msra.mxu0 %v4205
        %6038 = vmatprep.subr.bf16.mxu0 %v4202
        %6039 = vmatpush2.bf16.msra.mxu0 %v4201
        %6040 = vmatprep.subr.bf16.mxu0 %v4198
        %6041 = vmatpush2.bf16.msra.mxu0 %v4197
        %6042 = vmatprep.subr.bf16.mxu0 %v4194
        %6043 = vmatpush2.bf16.msra.mxu0 %v4193
        %6044 = vmatprep.subr.bf16.mxu0 %v4190
        %6045 = vmatpush2.bf16.msra.mxu0 %v4189
        %6046 = vmatprep.subr.bf16.mxu0 %v4186
        %6047 = vmatpush2.bf16.msra.mxu0 %v4185
        %6048 = vmatprep.mubr.bf16.mxu0 %v1299
        %6049 = vmatmul.mubr.bf16.gmra.mxu0 %v1285
        %v6050 = vpop.f32.mrf.mxu0
        %v6051 = vadd.f32 %v6010, %v6050
        %v6052 = vpop.f32.mrf.mxu0
        %v6053 = vadd.f32 %v6012, %v6052
        %v6054 = vpop.f32.mrf.mxu0
        %v6055 = vpop.f32.mrf.mxu0
        %6056 = vdwg.mxu0
        %6057 = vmatprep.subr.bf16.mxu0 %v4246
        %6058 = vmatpush1.bf16.msra.mxu0 %v4245
        %6059 = vmatprep.subr.bf16.mxu0 %v4242
        %6060 = vmatpush1.bf16.msra.mxu0 %v4241
        %6061 = vmatprep.subr.bf16.mxu0 %v4238
        %6062 = vmatpush1.bf16.msra.mxu0 %v4237
        %6063 = vmatprep.subr.bf16.mxu0 %v4234
        %6064 = vmatpush1.bf16.msra.mxu0 %v4233
        %6065 = vmatprep.subr.bf16.mxu0 %v4230
        %6066 = vmatpush1.bf16.msra.mxu0 %v4229
        %6067 = vmatprep.subr.bf16.mxu0 %v4226
        %6068 = vmatpush1.bf16.msra.mxu0 %v4225
        %6069 = vmatprep.subr.bf16.mxu0 %v4222
        %6070 = vmatpush1.bf16.msra.mxu0 %v4221
        %6071 = vmatprep.subr.bf16.mxu0 %v4218
        %6072 = vmatpush1.bf16.msra.mxu0 %v4217
        %6073 = vmatprep.subr.bf16.mxu0 %v4278
        %6074 = vmatpush2.bf16.msra.mxu0 %v4277
        %6075 = vmatprep.subr.bf16.mxu0 %v4274
        %6076 = vmatpush2.bf16.msra.mxu0 %v4273
        %6077 = vmatprep.subr.bf16.mxu0 %v4270
        %6078 = vmatpush2.bf16.msra.mxu0 %v4269
        %6079 = vmatprep.subr.bf16.mxu0 %v4266
        %6080 = vmatpush2.bf16.msra.mxu0 %v4265
        %6081 = vmatprep.subr.bf16.mxu0 %v4262
        %6082 = vmatpush2.bf16.msra.mxu0 %v4261
        %6083 = vmatprep.subr.bf16.mxu0 %v4258
        %6084 = vmatpush2.bf16.msra.mxu0 %v4257
        %6085 = vmatprep.subr.bf16.mxu0 %v4254
        %6086 = vmatpush2.bf16.msra.mxu0 %v4253
        %6087 = vmatprep.subr.bf16.mxu0 %v4250
        %6088 = vmatpush2.bf16.msra.mxu0 %v4249
        %6089 = vmatprep.mubr.bf16.mxu0 %v1309
        %6090 = vmatmul.mubr.bf16.gmra.mxu0 %v1307
        %v6091 = vpop.f32.mrf.mxu0
        %v6092 = vadd.f32 %v6051, %v6091
        %v6093 = vpop.f32.mrf.mxu0
        %v6094 = vadd.f32 %v6053, %v6093
        %v6095 = vpop.f32.mrf.mxu0
        %v6096 = vpop.f32.mrf.mxu0
        %6097 = vdwg.mxu0
        %6098 = vmatprep.subr.bf16.mxu0 %v4310
        %6099 = vmatpush1.bf16.msra.mxu0 %v4309
        %6100 = vmatprep.subr.bf16.mxu0 %v4306
        %6101 = vmatpush1.bf16.msra.mxu0 %v4305
        %6102 = vmatprep.subr.bf16.mxu0 %v4302
        %6103 = vmatpush1.bf16.msra.mxu0 %v4301
        %6104 = vmatprep.subr.bf16.mxu0 %v4298
        %6105 = vmatpush1.bf16.msra.mxu0 %v4297
        %6106 = vmatprep.subr.bf16.mxu0 %v4294
        %6107 = vmatpush1.bf16.msra.mxu0 %v4293
        %6108 = vmatprep.subr.bf16.mxu0 %v4290
        %6109 = vmatpush1.bf16.msra.mxu0 %v4289
        %6110 = vmatprep.subr.bf16.mxu0 %v4286
        %6111 = vmatpush1.bf16.msra.mxu0 %v4285
        %6112 = vmatprep.subr.bf16.mxu0 %v4282
        %6113 = vmatpush1.bf16.msra.mxu0 %v4281
        %6114 = vmatprep.subr.bf16.mxu0 %v4342
        %6115 = vmatpush2.bf16.msra.mxu0 %v4341
        %6116 = vmatprep.subr.bf16.mxu0 %v4338
        %6117 = vmatpush2.bf16.msra.mxu0 %v4337
        %6118 = vmatprep.subr.bf16.mxu0 %v4334
        %6119 = vmatpush2.bf16.msra.mxu0 %v4333
        %6120 = vmatprep.subr.bf16.mxu0 %v4330
        %6121 = vmatpush2.bf16.msra.mxu0 %v4329
        %6122 = vmatprep.subr.bf16.mxu0 %v4326
        %6123 = vmatpush2.bf16.msra.mxu0 %v4325
        %6124 = vmatprep.subr.bf16.mxu0 %v4322
        %6125 = vmatpush2.bf16.msra.mxu0 %v4321
        %6126 = vmatprep.subr.bf16.mxu0 %v4318
        %6127 = vmatpush2.bf16.msra.mxu0 %v4317
        %6128 = vmatprep.subr.bf16.mxu0 %v4314
        %6129 = vmatpush2.bf16.msra.mxu0 %v4313
        %6130 = vmatprep.mubr.bf16.mxu0 %v1306
        %6131 = vmatmul.mubr.bf16.gmra.mxu0 %v1292
        %v6132 = vpop.f32.mrf.mxu0
        %v6133 = vadd.f32 %v6092, %v6132
        %v6134 = vpop.f32.mrf.mxu0
        %v6135 = vadd.f32 %v6094, %v6134
        %v6136 = vpop.f32.mrf.mxu0
        %v6137 = vpop.f32.mrf.mxu0
        %6138 = vdwg.mxu0
        %6139 = vmatprep.subr.bf16.mxu0 %v4374
        %6140 = vmatpush1.bf16.msra.mxu0 %v4373
        %6141 = vmatprep.subr.bf16.mxu0 %v4370
        %6142 = vmatpush1.bf16.msra.mxu0 %v4369
        %6143 = vmatprep.subr.bf16.mxu0 %v4366
        %6144 = vmatpush1.bf16.msra.mxu0 %v4365
        %6145 = vmatprep.subr.bf16.mxu0 %v4362
        %6146 = vmatpush1.bf16.msra.mxu0 %v4361
        %6147 = vmatprep.subr.bf16.mxu0 %v4358
        %6148 = vmatpush1.bf16.msra.mxu0 %v4357
        %6149 = vmatprep.subr.bf16.mxu0 %v4354
        %6150 = vmatpush1.bf16.msra.mxu0 %v4353
        %6151 = vmatprep.subr.bf16.mxu0 %v4350
        %6152 = vmatpush1.bf16.msra.mxu0 %v4349
        %6153 = vmatprep.subr.bf16.mxu0 %v4346
        %6154 = vmatpush1.bf16.msra.mxu0 %v4345
        %6155 = vmatprep.subr.bf16.mxu0 %v4406
        %6156 = vmatpush2.bf16.msra.mxu0 %v4405
        %6157 = vmatprep.subr.bf16.mxu0 %v4402
        %6158 = vmatpush2.bf16.msra.mxu0 %v4401
        %6159 = vmatprep.subr.bf16.mxu0 %v4398
        %6160 = vmatpush2.bf16.msra.mxu0 %v4397
        %6161 = vmatprep.subr.bf16.mxu0 %v4394
        %6162 = vmatpush2.bf16.msra.mxu0 %v4393
        %6163 = vmatprep.subr.bf16.mxu0 %v4390
        %6164 = vmatpush2.bf16.msra.mxu0 %v4389
        %6165 = vmatprep.subr.bf16.mxu0 %v4386
        %6166 = vmatpush2.bf16.msra.mxu0 %v4385
        %6167 = vmatprep.subr.bf16.mxu0 %v4382
        %6168 = vmatpush2.bf16.msra.mxu0 %v4381
        %6169 = vmatprep.subr.bf16.mxu0 %v4378
        %6170 = vmatpush2.bf16.msra.mxu0 %v4377
        %6171 = vmatprep.mubr.bf16.mxu0 %v1310
        %6172 = vmatmul.mubr.bf16.gmra.mxu0 %v1308
        %v6173 = vpop.f32.mrf.mxu0
        %v6174 = vadd.f32 %v6133, %v6173
        %v6175 = vpop.f32.mrf.mxu0
        %v6176 = vadd.f32 %v6135, %v6175
        %v6177 = vpop.f32.mrf.mxu0
        %v6178 = vpop.f32.mrf.mxu0
        %6179 = vdwg.mxu0
        %v6180 = vmax.f32 %v5682, 0.0
        %v6181 = vmax.f32 %v5684, 0.0
        %v6182 = vmax.f32 %v6174, 0.0
        %v6183 = vmax.f32 %v6176, 0.0
        %v6184 = vpack.c.bf16 %v6180, %v6180
        %v6185 = vpack.c.bf16 %v6181, %v6181
        %v6186 = vpack.c.bf16 %v6182, %v6182
        %v6187 = vpack.c.bf16 %v6183, %v6183
        %v6188 = vld [vmem:[#allocation2] sm:$0xff]
        %v6189 = vld [vmem:[#allocation2 + $0x8] sm:$0xff]
        %v6190 = vld [vmem:[%s376] sm:$0xff]
        %v6191 = vld [vmem:[%s376 + $0x8] sm:$0xff]
        %v6192 = vld [vmem:[%s376 + $0x10] sm:$0xff]
        %v6193 = vld [vmem:[%s376 + $0x18] sm:$0xff]
        %v6194 = vld [vmem:[%s376 + $0x20] sm:$0xff]
        %v6195 = vld [vmem:[%s376 + $0x28] sm:$0xff]
        %v6196 = vld [vmem:[%s376 + $0x30] sm:$0xff]
        %v6197 = vld [vmem:[%s376 + $0x38] sm:$0xff]
        %v6198 = vld [vmem:[%s376 + $0x40] sm:$0xff]
        %v6199 = vld [vmem:[%s376 + $0x48] sm:$0xff]
        %v6200 = vld [vmem:[%s376 + $0x50] sm:$0xff]
        %v6201 = vld [vmem:[%s376 + $0x58] sm:$0xff]
        %v6202 = vld [vmem:[%s376 + $0x60] sm:$0xff]
        %v6203 = vld [vmem:[%s376 + $0x68] sm:$0xff]
        %v6204 = vld [vmem:[%s376 + $0x70] sm:$0xff]
        %v6205 = vld [vmem:[%s376 + $0x78] sm:$0xff]
        %v6206 = vld [vmem:[%s376 + $0x80] sm:$0xff]
        %v6207 = vld [vmem:[%s376 + $0x88] sm:$0xff]
        %v6208 = vld [vmem:[%s376 + $0x90] sm:$0xff]
        %v6209 = vld [vmem:[%s376 + $0x98] sm:$0xff]
        %v6210 = vld [vmem:[%s376 + $0xa0] sm:$0xff]
        %v6211 = vld [vmem:[%s376 + $0xa8] sm:$0xff]
        %v6212 = vld [vmem:[%s376 + $0xb0] sm:$0xff]
        %v6213 = vld [vmem:[%s376 + $0xb8] sm:$0xff]
        %v6214 = vld [vmem:[%s376 + $0xc0] sm:$0xff]
        %v6215 = vld [vmem:[%s376 + $0xc8] sm:$0xff]
        %v6216 = vld [vmem:[%s376 + $0xd0] sm:$0xff]
        %v6217 = vld [vmem:[%s376 + $0xd8] sm:$0xff]
        %v6218 = vld [vmem:[%s376 + $0xe0] sm:$0xff]
        %v6219 = vld [vmem:[%s376 + $0xe8] sm:$0xff]
        %v6220 = vld [vmem:[%s376 + $0xf0] sm:$0xff]
        %v6221 = vld [vmem:[%s376 + $0xf8] sm:$0xff]
        %v6222 = vld [vmem:[%s376 + $0x100] sm:$0xff]
        %v6223 = vld [vmem:[%s376 + $0x108] sm:$0xff]
        %v6224 = vld [vmem:[%s376 + $0x110] sm:$0xff]
        %v6225 = vld [vmem:[%s376 + $0x118] sm:$0xff]
        %v6226 = vld [vmem:[%s376 + $0x120] sm:$0xff]
        %v6227 = vld [vmem:[%s376 + $0x128] sm:$0xff]
        %v6228 = vld [vmem:[%s376 + $0x130] sm:$0xff]
        %v6229 = vld [vmem:[%s376 + $0x138] sm:$0xff]
        %v6230 = vld [vmem:[%s376 + $0x140] sm:$0xff]
        %v6231 = vld [vmem:[%s376 + $0x148] sm:$0xff]
        %v6232 = vld [vmem:[%s376 + $0x150] sm:$0xff]
        %v6233 = vld [vmem:[%s376 + $0x158] sm:$0xff]
        %v6234 = vld [vmem:[%s376 + $0x160] sm:$0xff]
        %v6235 = vld [vmem:[%s376 + $0x168] sm:$0xff]
        %v6236 = vld [vmem:[%s376 + $0x170] sm:$0xff]
        %v6237 = vld [vmem:[%s376 + $0x178] sm:$0xff]
        %v6238 = vld [vmem:[%s376 + $0x180] sm:$0xff]
        %v6239 = vld [vmem:[%s376 + $0x188] sm:$0xff]
        %v6240 = vld [vmem:[%s376 + $0x190] sm:$0xff]
        %v6241 = vld [vmem:[%s376 + $0x198] sm:$0xff]
        %v6242 = vld [vmem:[%s376 + $0x1a0] sm:$0xff]
        %v6243 = vld [vmem:[%s376 + $0x1a8] sm:$0xff]
        %v6244 = vld [vmem:[%s376 + $0x1b0] sm:$0xff]
        %v6245 = vld [vmem:[%s376 + $0x1b8] sm:$0xff]
        %v6246 = vld [vmem:[%s376 + $0x1c0] sm:$0xff]
        %v6247 = vld [vmem:[%s376 + $0x1c8] sm:$0xff]
        %v6248 = vld [vmem:[%s376 + $0x1d0] sm:$0xff]
        %v6249 = vld [vmem:[%s376 + $0x1d8] sm:$0xff]
        %v6250 = vld [vmem:[%s376 + $0x1e0] sm:$0xff]
        %v6251 = vld [vmem:[%s376 + $0x1e8] sm:$0xff]
        %v6252 = vld [vmem:[%s376 + $0x1f0] sm:$0xff]
        %v6253 = vld [vmem:[%s376 + $0x1f8] sm:$0xff]
        %v6254 = vld [vmem:[%s376 + $0x200] sm:$0xff]
        %v6255 = vld [vmem:[%s376 + $0x208] sm:$0xff]
        %v6256 = vld [vmem:[%s376 + $0x210] sm:$0xff]
        %v6257 = vld [vmem:[%s376 + $0x218] sm:$0xff]
        %v6258 = vld [vmem:[%s376 + $0x220] sm:$0xff]
        %v6259 = vld [vmem:[%s376 + $0x228] sm:$0xff]
        %v6260 = vld [vmem:[%s376 + $0x230] sm:$0xff]
        %v6261 = vld [vmem:[%s376 + $0x238] sm:$0xff]
        %v6262 = vld [vmem:[%s376 + $0x240] sm:$0xff]
        %v6263 = vld [vmem:[%s376 + $0x248] sm:$0xff]
        %v6264 = vld [vmem:[%s376 + $0x250] sm:$0xff]
        %v6265 = vld [vmem:[%s376 + $0x258] sm:$0xff]
        %v6266 = vld [vmem:[%s376 + $0x260] sm:$0xff]
        %v6267 = vld [vmem:[%s376 + $0x268] sm:$0xff]
        %v6268 = vld [vmem:[%s376 + $0x270] sm:$0xff]
        %v6269 = vld [vmem:[%s376 + $0x278] sm:$0xff]
        %v6270 = vld [vmem:[%s376 + $0x280] sm:$0xff]
        %v6271 = vld [vmem:[%s376 + $0x288] sm:$0xff]
        %v6272 = vld [vmem:[%s376 + $0x290] sm:$0xff]
        %v6273 = vld [vmem:[%s376 + $0x298] sm:$0xff]
        %v6274 = vld [vmem:[%s376 + $0x2a0] sm:$0xff]
        %v6275 = vld [vmem:[%s376 + $0x2a8] sm:$0xff]
        %v6276 = vld [vmem:[%s376 + $0x2b0] sm:$0xff]
        %v6277 = vld [vmem:[%s376 + $0x2b8] sm:$0xff]
        %v6278 = vld [vmem:[%s376 + $0x2c0] sm:$0xff]
        %v6279 = vld [vmem:[%s376 + $0x2c8] sm:$0xff]
        %v6280 = vld [vmem:[%s376 + $0x2d0] sm:$0xff]
        %v6281 = vld [vmem:[%s376 + $0x2d8] sm:$0xff]
        %v6282 = vld [vmem:[%s376 + $0x2e0] sm:$0xff]
        %v6283 = vld [vmem:[%s376 + $0x2e8] sm:$0xff]
        %v6284 = vld [vmem:[%s376 + $0x2f0] sm:$0xff]
        %v6285 = vld [vmem:[%s376 + $0x2f8] sm:$0xff]
        %v6286 = vld [vmem:[%s376 + $0x300] sm:$0xff]
        %v6287 = vld [vmem:[%s376 + $0x308] sm:$0xff]
        %v6288 = vld [vmem:[%s376 + $0x310] sm:$0xff]
        %v6289 = vld [vmem:[%s376 + $0x318] sm:$0xff]
        %v6290 = vld [vmem:[%s376 + $0x320] sm:$0xff]
        %v6291 = vld [vmem:[%s376 + $0x328] sm:$0xff]
        %v6292 = vld [vmem:[%s376 + $0x330] sm:$0xff]
        %v6293 = vld [vmem:[%s376 + $0x338] sm:$0xff]
        %v6294 = vld [vmem:[%s376 + $0x340] sm:$0xff]
        %v6295 = vld [vmem:[%s376 + $0x348] sm:$0xff]
        %v6296 = vld [vmem:[%s376 + $0x350] sm:$0xff]
        %v6297 = vld [vmem:[%s376 + $0x358] sm:$0xff]
        %v6298 = vld [vmem:[%s376 + $0x360] sm:$0xff]
        %v6299 = vld [vmem:[%s376 + $0x368] sm:$0xff]
        %v6300 = vld [vmem:[%s376 + $0x370] sm:$0xff]
        %v6301 = vld [vmem:[%s376 + $0x378] sm:$0xff]
        %v6302 = vld [vmem:[%s376 + $0x380] sm:$0xff]
        %v6303 = vld [vmem:[%s376 + $0x388] sm:$0xff]
        %v6304 = vld [vmem:[%s376 + $0x390] sm:$0xff]
        %v6305 = vld [vmem:[%s376 + $0x398] sm:$0xff]
        %v6306 = vld [vmem:[%s376 + $0x3a0] sm:$0xff]
        %v6307 = vld [vmem:[%s376 + $0x3a8] sm:$0xff]
        %v6308 = vld [vmem:[%s376 + $0x3b0] sm:$0xff]
        %v6309 = vld [vmem:[%s376 + $0x3b8] sm:$0xff]
        %v6310 = vld [vmem:[%s376 + $0x3c0] sm:$0xff]
        %v6311 = vld [vmem:[%s376 + $0x3c8] sm:$0xff]
        %v6312 = vld [vmem:[%s376 + $0x3d0] sm:$0xff]
        %v6313 = vld [vmem:[%s376 + $0x3d8] sm:$0xff]
        %v6314 = vld [vmem:[%s376 + $0x3e0] sm:$0xff]
        %v6315 = vld [vmem:[%s376 + $0x3e8] sm:$0xff]
        %v6316 = vld [vmem:[%s376 + $0x3f0] sm:$0xff]
        %v6317 = vld [vmem:[%s376 + $0x3f8] sm:$0xff]
        %v6318 = vld [vmem:[%s376 + $0x400] sm:$0xff]
        %v6319 = vld [vmem:[%s376 + $0x408] sm:$0xff]
        %v6320 = vld [vmem:[%s376 + $0x410] sm:$0xff]
        %v6321 = vld [vmem:[%s376 + $0x418] sm:$0xff]
        %v6322 = vld [vmem:[%s376 + $0x420] sm:$0xff]
        %v6323 = vld [vmem:[%s376 + $0x428] sm:$0xff]
        %v6324 = vld [vmem:[%s376 + $0x430] sm:$0xff]
        %v6325 = vld [vmem:[%s376 + $0x438] sm:$0xff]
        %v6326 = vld [vmem:[%s376 + $0x440] sm:$0xff]
        %v6327 = vld [vmem:[%s376 + $0x448] sm:$0xff]
        %v6328 = vld [vmem:[%s376 + $0x450] sm:$0xff]
        %v6329 = vld [vmem:[%s376 + $0x458] sm:$0xff]
        %v6330 = vld [vmem:[%s376 + $0x460] sm:$0xff]
        %v6331 = vld [vmem:[%s376 + $0x468] sm:$0xff]
        %v6332 = vld [vmem:[%s376 + $0x470] sm:$0xff]
        %v6333 = vld [vmem:[%s376 + $0x478] sm:$0xff]
        %v6334 = vld [vmem:[%s376 + $0x480] sm:$0xff]
        %v6335 = vld [vmem:[%s376 + $0x488] sm:$0xff]
        %v6336 = vld [vmem:[%s376 + $0x490] sm:$0xff]
        %v6337 = vld [vmem:[%s376 + $0x498] sm:$0xff]
        %v6338 = vld [vmem:[%s376 + $0x4a0] sm:$0xff]
        %v6339 = vld [vmem:[%s376 + $0x4a8] sm:$0xff]
        %v6340 = vld [vmem:[%s376 + $0x4b0] sm:$0xff]
        %v6341 = vld [vmem:[%s376 + $0x4b8] sm:$0xff]
        %v6342 = vld [vmem:[%s376 + $0x4c0] sm:$0xff]
        %v6343 = vld [vmem:[%s376 + $0x4c8] sm:$0xff]
        %v6344 = vld [vmem:[%s376 + $0x4d0] sm:$0xff]
        %v6345 = vld [vmem:[%s376 + $0x4d8] sm:$0xff]
        %v6346 = vld [vmem:[%s376 + $0x4e0] sm:$0xff]
        %v6347 = vld [vmem:[%s376 + $0x4e8] sm:$0xff]
        %v6348 = vld [vmem:[%s376 + $0x4f0] sm:$0xff]
        %v6349 = vld [vmem:[%s376 + $0x4f8] sm:$0xff]
        %v6350 = vld [vmem:[%s376 + $0x500] sm:$0xff]
        %v6351 = vld [vmem:[%s376 + $0x508] sm:$0xff]
        %v6352 = vld [vmem:[%s376 + $0x510] sm:$0xff]
        %v6353 = vld [vmem:[%s376 + $0x518] sm:$0xff]
        %v6354 = vld [vmem:[%s376 + $0x520] sm:$0xff]
        %v6355 = vld [vmem:[%s376 + $0x528] sm:$0xff]
        %v6356 = vld [vmem:[%s376 + $0x530] sm:$0xff]
        %v6357 = vld [vmem:[%s376 + $0x538] sm:$0xff]
        %v6358 = vld [vmem:[%s376 + $0x540] sm:$0xff]
        %v6359 = vld [vmem:[%s376 + $0x548] sm:$0xff]
        %v6360 = vld [vmem:[%s376 + $0x550] sm:$0xff]
        %v6361 = vld [vmem:[%s376 + $0x558] sm:$0xff]
        %v6362 = vld [vmem:[%s376 + $0x560] sm:$0xff]
        %v6363 = vld [vmem:[%s376 + $0x568] sm:$0xff]
        %v6364 = vld [vmem:[%s376 + $0x570] sm:$0xff]
        %v6365 = vld [vmem:[%s376 + $0x578] sm:$0xff]
        %v6366 = vld [vmem:[%s376 + $0x580] sm:$0xff]
        %v6367 = vld [vmem:[%s376 + $0x588] sm:$0xff]
        %v6368 = vld [vmem:[%s376 + $0x590] sm:$0xff]
        %v6369 = vld [vmem:[%s376 + $0x598] sm:$0xff]
        %v6370 = vld [vmem:[%s376 + $0x5a0] sm:$0xff]
        %v6371 = vld [vmem:[%s376 + $0x5a8] sm:$0xff]
        %v6372 = vld [vmem:[%s376 + $0x5b0] sm:$0xff]
        %v6373 = vld [vmem:[%s376 + $0x5b8] sm:$0xff]
        %v6374 = vld [vmem:[%s376 + $0x5c0] sm:$0xff]
        %v6375 = vld [vmem:[%s376 + $0x5c8] sm:$0xff]
        %v6376 = vld [vmem:[%s376 + $0x5d0] sm:$0xff]
        %v6377 = vld [vmem:[%s376 + $0x5d8] sm:$0xff]
        %v6378 = vld [vmem:[%s376 + $0x5e0] sm:$0xff]
        %v6379 = vld [vmem:[%s376 + $0x5e8] sm:$0xff]
        %v6380 = vld [vmem:[%s376 + $0x5f0] sm:$0xff]
        %v6381 = vld [vmem:[%s376 + $0x5f8] sm:$0xff]
        %v6382 = vld [vmem:[%s376 + $0x600] sm:$0xff]
        %v6383 = vld [vmem:[%s376 + $0x608] sm:$0xff]
        %v6384 = vld [vmem:[%s376 + $0x610] sm:$0xff]
        %v6385 = vld [vmem:[%s376 + $0x618] sm:$0xff]
        %v6386 = vld [vmem:[%s376 + $0x620] sm:$0xff]
        %v6387 = vld [vmem:[%s376 + $0x628] sm:$0xff]
        %v6388 = vld [vmem:[%s376 + $0x630] sm:$0xff]
        %v6389 = vld [vmem:[%s376 + $0x638] sm:$0xff]
        %v6390 = vld [vmem:[%s376 + $0x640] sm:$0xff]
        %v6391 = vld [vmem:[%s376 + $0x648] sm:$0xff]
        %v6392 = vld [vmem:[%s376 + $0x650] sm:$0xff]
        %v6393 = vld [vmem:[%s376 + $0x658] sm:$0xff]
        %v6394 = vld [vmem:[%s376 + $0x660] sm:$0xff]
        %v6395 = vld [vmem:[%s376 + $0x668] sm:$0xff]
        %v6396 = vld [vmem:[%s376 + $0x670] sm:$0xff]
        %v6397 = vld [vmem:[%s376 + $0x678] sm:$0xff]
        %v6398 = vld [vmem:[%s376 + $0x680] sm:$0xff]
        %v6399 = vld [vmem:[%s376 + $0x688] sm:$0xff]
        %v6400 = vld [vmem:[%s376 + $0x690] sm:$0xff]
        %v6401 = vld [vmem:[%s376 + $0x698] sm:$0xff]
        %v6402 = vld [vmem:[%s376 + $0x6a0] sm:$0xff]
        %v6403 = vld [vmem:[%s376 + $0x6a8] sm:$0xff]
        %v6404 = vld [vmem:[%s376 + $0x6b0] sm:$0xff]
        %v6405 = vld [vmem:[%s376 + $0x6b8] sm:$0xff]
        %v6406 = vld [vmem:[%s376 + $0x6c0] sm:$0xff]
        %v6407 = vld [vmem:[%s376 + $0x6c8] sm:$0xff]
        %v6408 = vld [vmem:[%s376 + $0x6d0] sm:$0xff]
        %v6409 = vld [vmem:[%s376 + $0x6d8] sm:$0xff]
        %v6410 = vld [vmem:[%s376 + $0x6e0] sm:$0xff]
        %v6411 = vld [vmem:[%s376 + $0x6e8] sm:$0xff]
        %v6412 = vld [vmem:[%s376 + $0x6f0] sm:$0xff]
        %v6413 = vld [vmem:[%s376 + $0x6f8] sm:$0xff]
        %v6414 = vld [vmem:[%s376 + $0x700] sm:$0xff]
        %v6415 = vld [vmem:[%s376 + $0x708] sm:$0xff]
        %v6416 = vld [vmem:[%s376 + $0x710] sm:$0xff]
        %v6417 = vld [vmem:[%s376 + $0x718] sm:$0xff]
        %v6418 = vld [vmem:[%s376 + $0x720] sm:$0xff]
        %v6419 = vld [vmem:[%s376 + $0x728] sm:$0xff]
        %v6420 = vld [vmem:[%s376 + $0x730] sm:$0xff]
        %v6421 = vld [vmem:[%s376 + $0x738] sm:$0xff]
        %v6422 = vld [vmem:[%s376 + $0x740] sm:$0xff]
        %v6423 = vld [vmem:[%s376 + $0x748] sm:$0xff]
        %v6424 = vld [vmem:[%s376 + $0x750] sm:$0xff]
        %v6425 = vld [vmem:[%s376 + $0x758] sm:$0xff]
        %v6426 = vld [vmem:[%s376 + $0x760] sm:$0xff]
        %v6427 = vld [vmem:[%s376 + $0x768] sm:$0xff]
        %v6428 = vld [vmem:[%s376 + $0x770] sm:$0xff]
        %v6429 = vld [vmem:[%s376 + $0x778] sm:$0xff]
        %v6430 = vld [vmem:[%s376 + $0x780] sm:$0xff]
        %v6431 = vld [vmem:[%s376 + $0x788] sm:$0xff]
        %v6432 = vld [vmem:[%s376 + $0x790] sm:$0xff]
        %v6433 = vld [vmem:[%s376 + $0x798] sm:$0xff]
        %v6434 = vld [vmem:[%s376 + $0x7a0] sm:$0xff]
        %v6435 = vld [vmem:[%s376 + $0x7a8] sm:$0xff]
        %v6436 = vld [vmem:[%s376 + $0x7b0] sm:$0xff]
        %v6437 = vld [vmem:[%s376 + $0x7b8] sm:$0xff]
        %v6438 = vld [vmem:[%s376 + $0x7c0] sm:$0xff]
        %v6439 = vld [vmem:[%s376 + $0x7c8] sm:$0xff]
        %v6440 = vld [vmem:[%s376 + $0x7d0] sm:$0xff]
        %v6441 = vld [vmem:[%s376 + $0x7d8] sm:$0xff]
        %v6442 = vld [vmem:[%s376 + $0x7e0] sm:$0xff]
        %v6443 = vld [vmem:[%s376 + $0x7e8] sm:$0xff]
        %v6444 = vld [vmem:[%s376 + $0x7f0] sm:$0xff]
        %v6445 = vld [vmem:[%s376 + $0x7f8] sm:$0xff]
        %v6446 = vld [vmem:[%s376 + $0x800] sm:$0xff]
        %v6447 = vld [vmem:[%s376 + $0x808] sm:$0xff]
        %v6448 = vld [vmem:[%s376 + $0x810] sm:$0xff]
        %v6449 = vld [vmem:[%s376 + $0x818] sm:$0xff]
        %v6450 = vld [vmem:[%s376 + $0x820] sm:$0xff]
        %v6451 = vld [vmem:[%s376 + $0x828] sm:$0xff]
        %v6452 = vld [vmem:[%s376 + $0x830] sm:$0xff]
        %v6453 = vld [vmem:[%s376 + $0x838] sm:$0xff]
        %v6454 = vld [vmem:[%s376 + $0x840] sm:$0xff]
        %v6455 = vld [vmem:[%s376 + $0x848] sm:$0xff]
        %v6456 = vld [vmem:[%s376 + $0x850] sm:$0xff]
        %v6457 = vld [vmem:[%s376 + $0x858] sm:$0xff]
        %v6458 = vld [vmem:[%s376 + $0x860] sm:$0xff]
        %v6459 = vld [vmem:[%s376 + $0x868] sm:$0xff]
        %v6460 = vld [vmem:[%s376 + $0x870] sm:$0xff]
        %v6461 = vld [vmem:[%s376 + $0x878] sm:$0xff]
        %v6462 = vld [vmem:[%s376 + $0x880] sm:$0xff]
        %v6463 = vld [vmem:[%s376 + $0x888] sm:$0xff]
        %v6464 = vld [vmem:[%s376 + $0x890] sm:$0xff]
        %v6465 = vld [vmem:[%s376 + $0x898] sm:$0xff]
        %v6466 = vld [vmem:[%s376 + $0x8a0] sm:$0xff]
        %v6467 = vld [vmem:[%s376 + $0x8a8] sm:$0xff]
        %v6468 = vld [vmem:[%s376 + $0x8b0] sm:$0xff]
        %v6469 = vld [vmem:[%s376 + $0x8b8] sm:$0xff]
        %v6470 = vld [vmem:[%s376 + $0x8c0] sm:$0xff]
        %v6471 = vld [vmem:[%s376 + $0x8c8] sm:$0xff]
        %v6472 = vld [vmem:[%s376 + $0x8d0] sm:$0xff]
        %v6473 = vld [vmem:[%s376 + $0x8d8] sm:$0xff]
        %v6474 = vld [vmem:[%s376 + $0x8e0] sm:$0xff]
        %v6475 = vld [vmem:[%s376 + $0x8e8] sm:$0xff]
        %v6476 = vld [vmem:[%s376 + $0x8f0] sm:$0xff]
        %v6477 = vld [vmem:[%s376 + $0x8f8] sm:$0xff]
        %v6478 = vld [vmem:[%s376 + $0x900] sm:$0xff]
        %v6479 = vld [vmem:[%s376 + $0x908] sm:$0xff]
        %v6480 = vld [vmem:[%s376 + $0x910] sm:$0xff]
        %v6481 = vld [vmem:[%s376 + $0x918] sm:$0xff]
        %v6482 = vld [vmem:[%s376 + $0x920] sm:$0xff]
        %v6483 = vld [vmem:[%s376 + $0x928] sm:$0xff]
        %v6484 = vld [vmem:[%s376 + $0x930] sm:$0xff]
        %v6485 = vld [vmem:[%s376 + $0x938] sm:$0xff]
        %v6486 = vld [vmem:[%s376 + $0x940] sm:$0xff]
        %v6487 = vld [vmem:[%s376 + $0x948] sm:$0xff]
        %v6488 = vld [vmem:[%s376 + $0x950] sm:$0xff]
        %v6489 = vld [vmem:[%s376 + $0x958] sm:$0xff]
        %v6490 = vld [vmem:[%s376 + $0x960] sm:$0xff]
        %v6491 = vld [vmem:[%s376 + $0x968] sm:$0xff]
        %v6492 = vld [vmem:[%s376 + $0x970] sm:$0xff]
        %v6493 = vld [vmem:[%s376 + $0x978] sm:$0xff]
        %v6494 = vld [vmem:[%s376 + $0x980] sm:$0xff]
        %v6495 = vld [vmem:[%s376 + $0x988] sm:$0xff]
        %v6496 = vld [vmem:[%s376 + $0x990] sm:$0xff]
        %v6497 = vld [vmem:[%s376 + $0x998] sm:$0xff]
        %v6498 = vld [vmem:[%s376 + $0x9a0] sm:$0xff]
        %v6499 = vld [vmem:[%s376 + $0x9a8] sm:$0xff]
        %v6500 = vld [vmem:[%s376 + $0x9b0] sm:$0xff]
        %v6501 = vld [vmem:[%s376 + $0x9b8] sm:$0xff]
        %v6502 = vld [vmem:[%s376 + $0x9c0] sm:$0xff]
        %v6503 = vld [vmem:[%s376 + $0x9c8] sm:$0xff]
        %v6504 = vld [vmem:[%s376 + $0x9d0] sm:$0xff]
        %v6505 = vld [vmem:[%s376 + $0x9d8] sm:$0xff]
        %v6506 = vld [vmem:[%s376 + $0x9e0] sm:$0xff]
        %v6507 = vld [vmem:[%s376 + $0x9e8] sm:$0xff]
        %v6508 = vld [vmem:[%s376 + $0x9f0] sm:$0xff]
        %v6509 = vld [vmem:[%s376 + $0x9f8] sm:$0xff]
        %v6510 = vld [vmem:[%s376 + $0xa00] sm:$0xff]
        %v6511 = vld [vmem:[%s376 + $0xa08] sm:$0xff]
        %v6512 = vld [vmem:[%s376 + $0xa10] sm:$0xff]
        %v6513 = vld [vmem:[%s376 + $0xa18] sm:$0xff]
        %v6514 = vld [vmem:[%s376 + $0xa20] sm:$0xff]
        %v6515 = vld [vmem:[%s376 + $0xa28] sm:$0xff]
        %v6516 = vld [vmem:[%s376 + $0xa30] sm:$0xff]
        %v6517 = vld [vmem:[%s376 + $0xa38] sm:$0xff]
        %v6518 = vld [vmem:[%s376 + $0xa40] sm:$0xff]
        %v6519 = vld [vmem:[%s376 + $0xa48] sm:$0xff]
        %v6520 = vld [vmem:[%s376 + $0xa50] sm:$0xff]
        %v6521 = vld [vmem:[%s376 + $0xa58] sm:$0xff]
        %v6522 = vld [vmem:[%s376 + $0xa60] sm:$0xff]
        %v6523 = vld [vmem:[%s376 + $0xa68] sm:$0xff]
        %v6524 = vld [vmem:[%s376 + $0xa70] sm:$0xff]
        %v6525 = vld [vmem:[%s376 + $0xa78] sm:$0xff]
        %v6526 = vld [vmem:[%s376 + $0xa80] sm:$0xff]
        %v6527 = vld [vmem:[%s376 + $0xa88] sm:$0xff]
        %v6528 = vld [vmem:[%s376 + $0xa90] sm:$0xff]
        %v6529 = vld [vmem:[%s376 + $0xa98] sm:$0xff]
        %v6530 = vld [vmem:[%s376 + $0xaa0] sm:$0xff]
        %v6531 = vld [vmem:[%s376 + $0xaa8] sm:$0xff]
        %v6532 = vld [vmem:[%s376 + $0xab0] sm:$0xff]
        %v6533 = vld [vmem:[%s376 + $0xab8] sm:$0xff]
        %v6534 = vld [vmem:[%s376 + $0xac0] sm:$0xff]
        %v6535 = vld [vmem:[%s376 + $0xac8] sm:$0xff]
        %v6536 = vld [vmem:[%s376 + $0xad0] sm:$0xff]
        %v6537 = vld [vmem:[%s376 + $0xad8] sm:$0xff]
        %v6538 = vld [vmem:[%s376 + $0xae0] sm:$0xff]
        %v6539 = vld [vmem:[%s376 + $0xae8] sm:$0xff]
        %v6540 = vld [vmem:[%s376 + $0xaf0] sm:$0xff]
        %v6541 = vld [vmem:[%s376 + $0xaf8] sm:$0xff]
        %v6542 = vld [vmem:[%s376 + $0xb00] sm:$0xff]
        %v6543 = vld [vmem:[%s376 + $0xb08] sm:$0xff]
        %v6544 = vld [vmem:[%s376 + $0xb10] sm:$0xff]
        %v6545 = vld [vmem:[%s376 + $0xb18] sm:$0xff]
        %v6546 = vld [vmem:[%s376 + $0xb20] sm:$0xff]
        %v6547 = vld [vmem:[%s376 + $0xb28] sm:$0xff]
        %v6548 = vld [vmem:[%s376 + $0xb30] sm:$0xff]
        %v6549 = vld [vmem:[%s376 + $0xb38] sm:$0xff]
        %v6550 = vld [vmem:[%s376 + $0xb40] sm:$0xff]
        %v6551 = vld [vmem:[%s376 + $0xb48] sm:$0xff]
        %v6552 = vld [vmem:[%s376 + $0xb50] sm:$0xff]
        %v6553 = vld [vmem:[%s376 + $0xb58] sm:$0xff]
        %v6554 = vld [vmem:[%s376 + $0xb60] sm:$0xff]
        %v6555 = vld [vmem:[%s376 + $0xb68] sm:$0xff]
        %v6556 = vld [vmem:[%s376 + $0xb70] sm:$0xff]
        %v6557 = vld [vmem:[%s376 + $0xb78] sm:$0xff]
        %v6558 = vld [vmem:[%s376 + $0xb80] sm:$0xff]
        %v6559 = vld [vmem:[%s376 + $0xb88] sm:$0xff]
        %v6560 = vld [vmem:[%s376 + $0xb90] sm:$0xff]
        %v6561 = vld [vmem:[%s376 + $0xb98] sm:$0xff]
        %v6562 = vld [vmem:[%s376 + $0xba0] sm:$0xff]
        %v6563 = vld [vmem:[%s376 + $0xba8] sm:$0xff]
        %v6564 = vld [vmem:[%s376 + $0xbb0] sm:$0xff]
        %v6565 = vld [vmem:[%s376 + $0xbb8] sm:$0xff]
        %v6566 = vld [vmem:[%s376 + $0xbc0] sm:$0xff]
        %v6567 = vld [vmem:[%s376 + $0xbc8] sm:$0xff]
        %v6568 = vld [vmem:[%s376 + $0xbd0] sm:$0xff]
        %v6569 = vld [vmem:[%s376 + $0xbd8] sm:$0xff]
        %v6570 = vld [vmem:[%s376 + $0xbe0] sm:$0xff]
        %v6571 = vld [vmem:[%s376 + $0xbe8] sm:$0xff]
        %v6572 = vld [vmem:[%s376 + $0xbf0] sm:$0xff]
        %v6573 = vld [vmem:[%s376 + $0xbf8] sm:$0xff]
        %v6574 = vld [vmem:[%s376 + $0xc00] sm:$0xff]
        %v6575 = vld [vmem:[%s376 + $0xc08] sm:$0xff]
        %v6576 = vld [vmem:[%s376 + $0xc10] sm:$0xff]
        %v6577 = vld [vmem:[%s376 + $0xc18] sm:$0xff]
        %v6578 = vld [vmem:[%s376 + $0xc20] sm:$0xff]
        %v6579 = vld [vmem:[%s376 + $0xc28] sm:$0xff]
        %v6580 = vld [vmem:[%s376 + $0xc30] sm:$0xff]
        %v6581 = vld [vmem:[%s376 + $0xc38] sm:$0xff]
        %v6582 = vld [vmem:[%s376 + $0xc40] sm:$0xff]
        %v6583 = vld [vmem:[%s376 + $0xc48] sm:$0xff]
        %v6584 = vld [vmem:[%s376 + $0xc50] sm:$0xff]
        %v6585 = vld [vmem:[%s376 + $0xc58] sm:$0xff]
        %v6586 = vld [vmem:[%s376 + $0xc60] sm:$0xff]
        %v6587 = vld [vmem:[%s376 + $0xc68] sm:$0xff]
        %v6588 = vld [vmem:[%s376 + $0xc70] sm:$0xff]
        %v6589 = vld [vmem:[%s376 + $0xc78] sm:$0xff]
        %v6590 = vld [vmem:[%s376 + $0xc80] sm:$0xff]
        %v6591 = vld [vmem:[%s376 + $0xc88] sm:$0xff]
        %v6592 = vld [vmem:[%s376 + $0xc90] sm:$0xff]
        %v6593 = vld [vmem:[%s376 + $0xc98] sm:$0xff]
        %v6594 = vld [vmem:[%s376 + $0xca0] sm:$0xff]
        %v6595 = vld [vmem:[%s376 + $0xca8] sm:$0xff]
        %v6596 = vld [vmem:[%s376 + $0xcb0] sm:$0xff]
        %v6597 = vld [vmem:[%s376 + $0xcb8] sm:$0xff]
        %v6598 = vld [vmem:[%s376 + $0xcc0] sm:$0xff]
        %v6599 = vld [vmem:[%s376 + $0xcc8] sm:$0xff]
        %v6600 = vld [vmem:[%s376 + $0xcd0] sm:$0xff]
        %v6601 = vld [vmem:[%s376 + $0xcd8] sm:$0xff]
        %v6602 = vld [vmem:[%s376 + $0xce0] sm:$0xff]
        %v6603 = vld [vmem:[%s376 + $0xce8] sm:$0xff]
        %v6604 = vld [vmem:[%s376 + $0xcf0] sm:$0xff]
        %v6605 = vld [vmem:[%s376 + $0xcf8] sm:$0xff]
        %v6606 = vld [vmem:[%s376 + $0xd00] sm:$0xff]
        %v6607 = vld [vmem:[%s376 + $0xd08] sm:$0xff]
        %v6608 = vld [vmem:[%s376 + $0xd10] sm:$0xff]
        %v6609 = vld [vmem:[%s376 + $0xd18] sm:$0xff]
        %v6610 = vld [vmem:[%s376 + $0xd20] sm:$0xff]
        %v6611 = vld [vmem:[%s376 + $0xd28] sm:$0xff]
        %v6612 = vld [vmem:[%s376 + $0xd30] sm:$0xff]
        %v6613 = vld [vmem:[%s376 + $0xd38] sm:$0xff]
        %v6614 = vld [vmem:[%s376 + $0xd40] sm:$0xff]
        %v6615 = vld [vmem:[%s376 + $0xd48] sm:$0xff]
        %v6616 = vld [vmem:[%s376 + $0xd50] sm:$0xff]
        %v6617 = vld [vmem:[%s376 + $0xd58] sm:$0xff]
        %v6618 = vld [vmem:[%s376 + $0xd60] sm:$0xff]
        %v6619 = vld [vmem:[%s376 + $0xd68] sm:$0xff]
        %v6620 = vld [vmem:[%s376 + $0xd70] sm:$0xff]
        %v6621 = vld [vmem:[%s376 + $0xd78] sm:$0xff]
        %v6622 = vld [vmem:[%s376 + $0xd80] sm:$0xff]
        %v6623 = vld [vmem:[%s376 + $0xd88] sm:$0xff]
        %v6624 = vld [vmem:[%s376 + $0xd90] sm:$0xff]
        %v6625 = vld [vmem:[%s376 + $0xd98] sm:$0xff]
        %v6626 = vld [vmem:[%s376 + $0xda0] sm:$0xff]
        %v6627 = vld [vmem:[%s376 + $0xda8] sm:$0xff]
        %v6628 = vld [vmem:[%s376 + $0xdb0] sm:$0xff]
        %v6629 = vld [vmem:[%s376 + $0xdb8] sm:$0xff]
        %v6630 = vld [vmem:[%s376 + $0xdc0] sm:$0xff]
        %v6631 = vld [vmem:[%s376 + $0xdc8] sm:$0xff]
        %v6632 = vld [vmem:[%s376 + $0xdd0] sm:$0xff]
        %v6633 = vld [vmem:[%s376 + $0xdd8] sm:$0xff]
        %v6634 = vld [vmem:[%s376 + $0xde0] sm:$0xff]
        %v6635 = vld [vmem:[%s376 + $0xde8] sm:$0xff]
        %v6636 = vld [vmem:[%s376 + $0xdf0] sm:$0xff]
        %v6637 = vld [vmem:[%s376 + $0xdf8] sm:$0xff]
        %v6638 = vld [vmem:[%s376 + $0xe00] sm:$0xff]
        %v6639 = vld [vmem:[%s376 + $0xe08] sm:$0xff]
        %v6640 = vld [vmem:[%s376 + $0xe10] sm:$0xff]
        %v6641 = vld [vmem:[%s376 + $0xe18] sm:$0xff]
        %v6642 = vld [vmem:[%s376 + $0xe20] sm:$0xff]
        %v6643 = vld [vmem:[%s376 + $0xe28] sm:$0xff]
        %v6644 = vld [vmem:[%s376 + $0xe30] sm:$0xff]
        %v6645 = vld [vmem:[%s376 + $0xe38] sm:$0xff]
        %v6646 = vld [vmem:[%s376 + $0xe40] sm:$0xff]
        %v6647 = vld [vmem:[%s376 + $0xe48] sm:$0xff]
        %v6648 = vld [vmem:[%s376 + $0xe50] sm:$0xff]
        %v6649 = vld [vmem:[%s376 + $0xe58] sm:$0xff]
        %v6650 = vld [vmem:[%s376 + $0xe60] sm:$0xff]
        %v6651 = vld [vmem:[%s376 + $0xe68] sm:$0xff]
        %v6652 = vld [vmem:[%s376 + $0xe70] sm:$0xff]
        %v6653 = vld [vmem:[%s376 + $0xe78] sm:$0xff]
        %v6654 = vld [vmem:[%s376 + $0xe80] sm:$0xff]
        %v6655 = vld [vmem:[%s376 + $0xe88] sm:$0xff]
        %v6656 = vld [vmem:[%s376 + $0xe90] sm:$0xff]
        %v6657 = vld [vmem:[%s376 + $0xe98] sm:$0xff]
        %v6658 = vld [vmem:[%s376 + $0xea0] sm:$0xff]
        %v6659 = vld [vmem:[%s376 + $0xea8] sm:$0xff]
        %v6660 = vld [vmem:[%s376 + $0xeb0] sm:$0xff]
        %v6661 = vld [vmem:[%s376 + $0xeb8] sm:$0xff]
        %v6662 = vld [vmem:[%s376 + $0xec0] sm:$0xff]
        %v6663 = vld [vmem:[%s376 + $0xec8] sm:$0xff]
        %v6664 = vld [vmem:[%s376 + $0xed0] sm:$0xff]
        %v6665 = vld [vmem:[%s376 + $0xed8] sm:$0xff]
        %v6666 = vld [vmem:[%s376 + $0xee0] sm:$0xff]
        %v6667 = vld [vmem:[%s376 + $0xee8] sm:$0xff]
        %v6668 = vld [vmem:[%s376 + $0xef0] sm:$0xff]
        %v6669 = vld [vmem:[%s376 + $0xef8] sm:$0xff]
        %v6670 = vld [vmem:[%s376 + $0xf00] sm:$0xff]
        %v6671 = vld [vmem:[%s376 + $0xf08] sm:$0xff]
        %v6672 = vld [vmem:[%s376 + $0xf10] sm:$0xff]
        %v6673 = vld [vmem:[%s376 + $0xf18] sm:$0xff]
        %v6674 = vld [vmem:[%s376 + $0xf20] sm:$0xff]
        %v6675 = vld [vmem:[%s376 + $0xf28] sm:$0xff]
        %v6676 = vld [vmem:[%s376 + $0xf30] sm:$0xff]
        %v6677 = vld [vmem:[%s376 + $0xf38] sm:$0xff]
        %v6678 = vld [vmem:[%s376 + $0xf40] sm:$0xff]
        %v6679 = vld [vmem:[%s376 + $0xf48] sm:$0xff]
        %v6680 = vld [vmem:[%s376 + $0xf50] sm:$0xff]
        %v6681 = vld [vmem:[%s376 + $0xf58] sm:$0xff]
        %v6682 = vld [vmem:[%s376 + $0xf60] sm:$0xff]
        %v6683 = vld [vmem:[%s376 + $0xf68] sm:$0xff]
        %v6684 = vld [vmem:[%s376 + $0xf70] sm:$0xff]
        %v6685 = vld [vmem:[%s376 + $0xf78] sm:$0xff]
        %v6686 = vld [vmem:[%s376 + $0xf80] sm:$0xff]
        %v6687 = vld [vmem:[%s376 + $0xf88] sm:$0xff]
        %v6688 = vld [vmem:[%s376 + $0xf90] sm:$0xff]
        %v6689 = vld [vmem:[%s376 + $0xf98] sm:$0xff]
        %v6690 = vld [vmem:[%s376 + $0xfa0] sm:$0xff]
        %v6691 = vld [vmem:[%s376 + $0xfa8] sm:$0xff]
        %v6692 = vld [vmem:[%s376 + $0xfb0] sm:$0xff]
        %v6693 = vld [vmem:[%s376 + $0xfb8] sm:$0xff]
        %v6694 = vld [vmem:[%s376 + $0xfc0] sm:$0xff]
        %v6695 = vld [vmem:[%s376 + $0xfc8] sm:$0xff]
        %v6696 = vld [vmem:[%s376 + $0xfd0] sm:$0xff]
        %v6697 = vld [vmem:[%s376 + $0xfd8] sm:$0xff]
        %v6698 = vld [vmem:[%s376 + $0xfe0] sm:$0xff]
        %v6699 = vld [vmem:[%s376 + $0xfe8] sm:$0xff]
        %v6700 = vld [vmem:[%s376 + $0xff0] sm:$0xff]
        %v6701 = vld [vmem:[%s376 + $0xff8] sm:$0xff]
        %v7214 = vunpack.c.l.b16 %v6190
        %v7215 = vunpack.c.h.b16 %v6190
        %v7216 = vunpack.c.l.b16 %v6191
        %v7217 = vunpack.c.h.b16 %v6191
        %v7218 = vunpack.c.l.b16 %v6192
        %v7219 = vunpack.c.h.b16 %v6192
        %v7220 = vunpack.c.l.b16 %v6193
        %v7221 = vunpack.c.h.b16 %v6193
        %v7222 = vunpack.c.l.b16 %v6194
        %v7223 = vunpack.c.h.b16 %v6194
        %v7224 = vunpack.c.l.b16 %v6195
        %v7225 = vunpack.c.h.b16 %v6195
        %v7226 = vunpack.c.l.b16 %v6196
        %v7227 = vunpack.c.h.b16 %v6196
        %v7228 = vunpack.c.l.b16 %v6197
        %v7229 = vunpack.c.h.b16 %v6197
        %v7230 = vunpack.c.l.b16 %v6198
        %v7231 = vunpack.c.h.b16 %v6198
        %v7232 = vunpack.c.l.b16 %v6199
        %v7233 = vunpack.c.h.b16 %v6199
        %v7234 = vunpack.c.l.b16 %v6200
        %v7235 = vunpack.c.h.b16 %v6200
        %v7236 = vunpack.c.l.b16 %v6201
        %v7237 = vunpack.c.h.b16 %v6201
        %v7238 = vunpack.c.l.b16 %v6202
        %v7239 = vunpack.c.h.b16 %v6202
        %v7240 = vunpack.c.l.b16 %v6203
        %v7241 = vunpack.c.h.b16 %v6203
        %v7242 = vunpack.c.l.b16 %v6204
        %v7243 = vunpack.c.h.b16 %v6204
        %v7244 = vunpack.c.l.b16 %v6205
        %v7245 = vunpack.c.h.b16 %v6205
        %v7246 = vunpack.c.l.b16 %v6206
        %v7247 = vunpack.c.h.b16 %v6206
        %v7248 = vunpack.c.l.b16 %v6207
        %v7249 = vunpack.c.h.b16 %v6207
        %v7250 = vunpack.c.l.b16 %v6208
        %v7251 = vunpack.c.h.b16 %v6208
        %v7252 = vunpack.c.l.b16 %v6209
        %v7253 = vunpack.c.h.b16 %v6209
        %v7254 = vunpack.c.l.b16 %v6210
        %v7255 = vunpack.c.h.b16 %v6210
        %v7256 = vunpack.c.l.b16 %v6211
        %v7257 = vunpack.c.h.b16 %v6211
        %v7258 = vunpack.c.l.b16 %v6212
        %v7259 = vunpack.c.h.b16 %v6212
        %v7260 = vunpack.c.l.b16 %v6213
        %v7261 = vunpack.c.h.b16 %v6213
        %v7262 = vunpack.c.l.b16 %v6214
        %v7263 = vunpack.c.h.b16 %v6214
        %v7264 = vunpack.c.l.b16 %v6215
        %v7265 = vunpack.c.h.b16 %v6215
        %v7266 = vunpack.c.l.b16 %v6216
        %v7267 = vunpack.c.h.b16 %v6216
        %v7268 = vunpack.c.l.b16 %v6217
        %v7269 = vunpack.c.h.b16 %v6217
        %v7270 = vunpack.c.l.b16 %v6218
        %v7271 = vunpack.c.h.b16 %v6218
        %v7272 = vunpack.c.l.b16 %v6219
        %v7273 = vunpack.c.h.b16 %v6219
        %v7274 = vunpack.c.l.b16 %v6220
        %v7275 = vunpack.c.h.b16 %v6220
        %v7276 = vunpack.c.l.b16 %v6221
        %v7277 = vunpack.c.h.b16 %v6221
        %v7278 = vunpack.c.l.b16 %v6222
        %v7279 = vunpack.c.h.b16 %v6222
        %v7280 = vunpack.c.l.b16 %v6223
        %v7281 = vunpack.c.h.b16 %v6223
        %v7282 = vunpack.c.l.b16 %v6224
        %v7283 = vunpack.c.h.b16 %v6224
        %v7284 = vunpack.c.l.b16 %v6225
        %v7285 = vunpack.c.h.b16 %v6225
        %v7286 = vunpack.c.l.b16 %v6226
        %v7287 = vunpack.c.h.b16 %v6226
        %v7288 = vunpack.c.l.b16 %v6227
        %v7289 = vunpack.c.h.b16 %v6227
        %v7290 = vunpack.c.l.b16 %v6228
        %v7291 = vunpack.c.h.b16 %v6228
        %v7292 = vunpack.c.l.b16 %v6229
        %v7293 = vunpack.c.h.b16 %v6229
        %v7294 = vunpack.c.l.b16 %v6230
        %v7295 = vunpack.c.h.b16 %v6230
        %v7296 = vunpack.c.l.b16 %v6231
        %v7297 = vunpack.c.h.b16 %v6231
        %v7298 = vunpack.c.l.b16 %v6232
        %v7299 = vunpack.c.h.b16 %v6232
        %v7300 = vunpack.c.l.b16 %v6233
        %v7301 = vunpack.c.h.b16 %v6233
        %v7302 = vunpack.c.l.b16 %v6234
        %v7303 = vunpack.c.h.b16 %v6234
        %v7304 = vunpack.c.l.b16 %v6235
        %v7305 = vunpack.c.h.b16 %v6235
        %v7306 = vunpack.c.l.b16 %v6236
        %v7307 = vunpack.c.h.b16 %v6236
        %v7308 = vunpack.c.l.b16 %v6237
        %v7309 = vunpack.c.h.b16 %v6237
        %v7310 = vunpack.c.l.b16 %v6238
        %v7311 = vunpack.c.h.b16 %v6238
        %v7312 = vunpack.c.l.b16 %v6239
        %v7313 = vunpack.c.h.b16 %v6239
        %v7314 = vunpack.c.l.b16 %v6240
        %v7315 = vunpack.c.h.b16 %v6240
        %v7316 = vunpack.c.l.b16 %v6241
        %v7317 = vunpack.c.h.b16 %v6241
        %v7318 = vunpack.c.l.b16 %v6242
        %v7319 = vunpack.c.h.b16 %v6242
        %v7320 = vunpack.c.l.b16 %v6243
        %v7321 = vunpack.c.h.b16 %v6243
        %v7322 = vunpack.c.l.b16 %v6244
        %v7323 = vunpack.c.h.b16 %v6244
        %v7324 = vunpack.c.l.b16 %v6245
        %v7325 = vunpack.c.h.b16 %v6245
        %v7326 = vunpack.c.l.b16 %v6246
        %v7327 = vunpack.c.h.b16 %v6246
        %v7328 = vunpack.c.l.b16 %v6247
        %v7329 = vunpack.c.h.b16 %v6247
        %v7330 = vunpack.c.l.b16 %v6248
        %v7331 = vunpack.c.h.b16 %v6248
        %v7332 = vunpack.c.l.b16 %v6249
        %v7333 = vunpack.c.h.b16 %v6249
        %v7334 = vunpack.c.l.b16 %v6250
        %v7335 = vunpack.c.h.b16 %v6250
        %v7336 = vunpack.c.l.b16 %v6251
        %v7337 = vunpack.c.h.b16 %v6251
        %v7338 = vunpack.c.l.b16 %v6252
        %v7339 = vunpack.c.h.b16 %v6252
        %v7340 = vunpack.c.l.b16 %v6253
        %v7341 = vunpack.c.h.b16 %v6253
        %v7342 = vunpack.c.l.b16 %v6254
        %v7343 = vunpack.c.h.b16 %v6254
        %v7344 = vunpack.c.l.b16 %v6255
        %v7345 = vunpack.c.h.b16 %v6255
        %v7346 = vunpack.c.l.b16 %v6256
        %v7347 = vunpack.c.h.b16 %v6256
        %v7348 = vunpack.c.l.b16 %v6257
        %v7349 = vunpack.c.h.b16 %v6257
        %v7350 = vunpack.c.l.b16 %v6258
        %v7351 = vunpack.c.h.b16 %v6258
        %v7352 = vunpack.c.l.b16 %v6259
        %v7353 = vunpack.c.h.b16 %v6259
        %v7354 = vunpack.c.l.b16 %v6260
        %v7355 = vunpack.c.h.b16 %v6260
        %v7356 = vunpack.c.l.b16 %v6261
        %v7357 = vunpack.c.h.b16 %v6261
        %v7358 = vunpack.c.l.b16 %v6262
        %v7359 = vunpack.c.h.b16 %v6262
        %v7360 = vunpack.c.l.b16 %v6263
        %v7361 = vunpack.c.h.b16 %v6263
        %v7362 = vunpack.c.l.b16 %v6264
        %v7363 = vunpack.c.h.b16 %v6264
        %v7364 = vunpack.c.l.b16 %v6265
        %v7365 = vunpack.c.h.b16 %v6265
        %v7366 = vunpack.c.l.b16 %v6266
        %v7367 = vunpack.c.h.b16 %v6266
        %v7368 = vunpack.c.l.b16 %v6267
        %v7369 = vunpack.c.h.b16 %v6267
        %v7370 = vunpack.c.l.b16 %v6268
        %v7371 = vunpack.c.h.b16 %v6268
        %v7372 = vunpack.c.l.b16 %v6269
        %v7373 = vunpack.c.h.b16 %v6269
        %v7374 = vunpack.c.l.b16 %v6270
        %v7375 = vunpack.c.h.b16 %v6270
        %v7376 = vunpack.c.l.b16 %v6271
        %v7377 = vunpack.c.h.b16 %v6271
        %v7378 = vunpack.c.l.b16 %v6272
        %v7379 = vunpack.c.h.b16 %v6272
        %v7380 = vunpack.c.l.b16 %v6273
        %v7381 = vunpack.c.h.b16 %v6273
        %v7382 = vunpack.c.l.b16 %v6274
        %v7383 = vunpack.c.h.b16 %v6274
        %v7384 = vunpack.c.l.b16 %v6275
        %v7385 = vunpack.c.h.b16 %v6275
        %v7386 = vunpack.c.l.b16 %v6276
        %v7387 = vunpack.c.h.b16 %v6276
        %v7388 = vunpack.c.l.b16 %v6277
        %v7389 = vunpack.c.h.b16 %v6277
        %v7390 = vunpack.c.l.b16 %v6278
        %v7391 = vunpack.c.h.b16 %v6278
        %v7392 = vunpack.c.l.b16 %v6279
        %v7393 = vunpack.c.h.b16 %v6279
        %v7394 = vunpack.c.l.b16 %v6280
        %v7395 = vunpack.c.h.b16 %v6280
        %v7396 = vunpack.c.l.b16 %v6281
        %v7397 = vunpack.c.h.b16 %v6281
        %v7398 = vunpack.c.l.b16 %v6282
        %v7399 = vunpack.c.h.b16 %v6282
        %v7400 = vunpack.c.l.b16 %v6283
        %v7401 = vunpack.c.h.b16 %v6283
        %v7402 = vunpack.c.l.b16 %v6284
        %v7403 = vunpack.c.h.b16 %v6284
        %v7404 = vunpack.c.l.b16 %v6285
        %v7405 = vunpack.c.h.b16 %v6285
        %v7406 = vunpack.c.l.b16 %v6286
        %v7407 = vunpack.c.h.b16 %v6286
        %v7408 = vunpack.c.l.b16 %v6287
        %v7409 = vunpack.c.h.b16 %v6287
        %v7410 = vunpack.c.l.b16 %v6288
        %v7411 = vunpack.c.h.b16 %v6288
        %v7412 = vunpack.c.l.b16 %v6289
        %v7413 = vunpack.c.h.b16 %v6289
        %v7414 = vunpack.c.l.b16 %v6290
        %v7415 = vunpack.c.h.b16 %v6290
        %v7416 = vunpack.c.l.b16 %v6291
        %v7417 = vunpack.c.h.b16 %v6291
        %v7418 = vunpack.c.l.b16 %v6292
        %v7419 = vunpack.c.h.b16 %v6292
        %v7420 = vunpack.c.l.b16 %v6293
        %v7421 = vunpack.c.h.b16 %v6293
        %v7422 = vunpack.c.l.b16 %v6294
        %v7423 = vunpack.c.h.b16 %v6294
        %v7424 = vunpack.c.l.b16 %v6295
        %v7425 = vunpack.c.h.b16 %v6295
        %v7426 = vunpack.c.l.b16 %v6296
        %v7427 = vunpack.c.h.b16 %v6296
        %v7428 = vunpack.c.l.b16 %v6297
        %v7429 = vunpack.c.h.b16 %v6297
        %v7430 = vunpack.c.l.b16 %v6298
        %v7431 = vunpack.c.h.b16 %v6298
        %v7432 = vunpack.c.l.b16 %v6299
        %v7433 = vunpack.c.h.b16 %v6299
        %v7434 = vunpack.c.l.b16 %v6300
        %v7435 = vunpack.c.h.b16 %v6300
        %v7436 = vunpack.c.l.b16 %v6301
        %v7437 = vunpack.c.h.b16 %v6301
        %v7438 = vunpack.c.l.b16 %v6302
        %v7439 = vunpack.c.h.b16 %v6302
        %v7440 = vunpack.c.l.b16 %v6303
        %v7441 = vunpack.c.h.b16 %v6303
        %v7442 = vunpack.c.l.b16 %v6304
        %v7443 = vunpack.c.h.b16 %v6304
        %v7444 = vunpack.c.l.b16 %v6305
        %v7445 = vunpack.c.h.b16 %v6305
        %v7446 = vunpack.c.l.b16 %v6306
        %v7447 = vunpack.c.h.b16 %v6306
        %v7448 = vunpack.c.l.b16 %v6307
        %v7449 = vunpack.c.h.b16 %v6307
        %v7450 = vunpack.c.l.b16 %v6308
        %v7451 = vunpack.c.h.b16 %v6308
        %v7452 = vunpack.c.l.b16 %v6309
        %v7453 = vunpack.c.h.b16 %v6309
        %v7454 = vunpack.c.l.b16 %v6310
        %v7455 = vunpack.c.h.b16 %v6310
        %v7456 = vunpack.c.l.b16 %v6311
        %v7457 = vunpack.c.h.b16 %v6311
        %v7458 = vunpack.c.l.b16 %v6312
        %v7459 = vunpack.c.h.b16 %v6312
        %v7460 = vunpack.c.l.b16 %v6313
        %v7461 = vunpack.c.h.b16 %v6313
        %v7462 = vunpack.c.l.b16 %v6314
        %v7463 = vunpack.c.h.b16 %v6314
        %v7464 = vunpack.c.l.b16 %v6315
        %v7465 = vunpack.c.h.b16 %v6315
        %v7466 = vunpack.c.l.b16 %v6316
        %v7467 = vunpack.c.h.b16 %v6316
        %v7468 = vunpack.c.l.b16 %v6317
        %v7469 = vunpack.c.h.b16 %v6317
        %v7470 = vunpack.c.l.b16 %v6318
        %v7471 = vunpack.c.h.b16 %v6318
        %v7472 = vunpack.c.l.b16 %v6319
        %v7473 = vunpack.c.h.b16 %v6319
        %v7474 = vunpack.c.l.b16 %v6320
        %v7475 = vunpack.c.h.b16 %v6320
        %v7476 = vunpack.c.l.b16 %v6321
        %v7477 = vunpack.c.h.b16 %v6321
        %v7478 = vunpack.c.l.b16 %v6322
        %v7479 = vunpack.c.h.b16 %v6322
        %v7480 = vunpack.c.l.b16 %v6323
        %v7481 = vunpack.c.h.b16 %v6323
        %v7482 = vunpack.c.l.b16 %v6324
        %v7483 = vunpack.c.h.b16 %v6324
        %v7484 = vunpack.c.l.b16 %v6325
        %v7485 = vunpack.c.h.b16 %v6325
        %v7486 = vunpack.c.l.b16 %v6326
        %v7487 = vunpack.c.h.b16 %v6326
        %v7488 = vunpack.c.l.b16 %v6327
        %v7489 = vunpack.c.h.b16 %v6327
        %v7490 = vunpack.c.l.b16 %v6328
        %v7491 = vunpack.c.h.b16 %v6328
        %v7492 = vunpack.c.l.b16 %v6329
        %v7493 = vunpack.c.h.b16 %v6329
        %v7494 = vunpack.c.l.b16 %v6330
        %v7495 = vunpack.c.h.b16 %v6330
        %v7496 = vunpack.c.l.b16 %v6331
        %v7497 = vunpack.c.h.b16 %v6331
        %v7498 = vunpack.c.l.b16 %v6332
        %v7499 = vunpack.c.h.b16 %v6332
        %v7500 = vunpack.c.l.b16 %v6333
        %v7501 = vunpack.c.h.b16 %v6333
        %v7502 = vunpack.c.l.b16 %v6334
        %v7503 = vunpack.c.h.b16 %v6334
        %v7504 = vunpack.c.l.b16 %v6335
        %v7505 = vunpack.c.h.b16 %v6335
        %v7506 = vunpack.c.l.b16 %v6336
        %v7507 = vunpack.c.h.b16 %v6336
        %v7508 = vunpack.c.l.b16 %v6337
        %v7509 = vunpack.c.h.b16 %v6337
        %v7510 = vunpack.c.l.b16 %v6338
        %v7511 = vunpack.c.h.b16 %v6338
        %v7512 = vunpack.c.l.b16 %v6339
        %v7513 = vunpack.c.h.b16 %v6339
        %v7514 = vunpack.c.l.b16 %v6340
        %v7515 = vunpack.c.h.b16 %v6340
        %v7516 = vunpack.c.l.b16 %v6341
        %v7517 = vunpack.c.h.b16 %v6341
        %v7518 = vunpack.c.l.b16 %v6342
        %v7519 = vunpack.c.h.b16 %v6342
        %v7520 = vunpack.c.l.b16 %v6343
        %v7521 = vunpack.c.h.b16 %v6343
        %v7522 = vunpack.c.l.b16 %v6344
        %v7523 = vunpack.c.h.b16 %v6344
        %v7524 = vunpack.c.l.b16 %v6345
        %v7525 = vunpack.c.h.b16 %v6345
        %v7526 = vunpack.c.l.b16 %v6346
        %v7527 = vunpack.c.h.b16 %v6346
        %v7528 = vunpack.c.l.b16 %v6347
        %v7529 = vunpack.c.h.b16 %v6347
        %v7530 = vunpack.c.l.b16 %v6348
        %v7531 = vunpack.c.h.b16 %v6348
        %v7532 = vunpack.c.l.b16 %v6349
        %v7533 = vunpack.c.h.b16 %v6349
        %v7534 = vunpack.c.l.b16 %v6350
        %v7535 = vunpack.c.h.b16 %v6350
        %v7536 = vunpack.c.l.b16 %v6351
        %v7537 = vunpack.c.h.b16 %v6351
        %v7538 = vunpack.c.l.b16 %v6352
        %v7539 = vunpack.c.h.b16 %v6352
        %v7540 = vunpack.c.l.b16 %v6353
        %v7541 = vunpack.c.h.b16 %v6353
        %v7542 = vunpack.c.l.b16 %v6354
        %v7543 = vunpack.c.h.b16 %v6354
        %v7544 = vunpack.c.l.b16 %v6355
        %v7545 = vunpack.c.h.b16 %v6355
        %v7546 = vunpack.c.l.b16 %v6356
        %v7547 = vunpack.c.h.b16 %v6356
        %v7548 = vunpack.c.l.b16 %v6357
        %v7549 = vunpack.c.h.b16 %v6357
        %v7550 = vunpack.c.l.b16 %v6358
        %v7551 = vunpack.c.h.b16 %v6358
        %v7552 = vunpack.c.l.b16 %v6359
        %v7553 = vunpack.c.h.b16 %v6359
        %v7554 = vunpack.c.l.b16 %v6360
        %v7555 = vunpack.c.h.b16 %v6360
        %v7556 = vunpack.c.l.b16 %v6361
        %v7557 = vunpack.c.h.b16 %v6361
        %v7558 = vunpack.c.l.b16 %v6362
        %v7559 = vunpack.c.h.b16 %v6362
        %v7560 = vunpack.c.l.b16 %v6363
        %v7561 = vunpack.c.h.b16 %v6363
        %v7562 = vunpack.c.l.b16 %v6364
        %v7563 = vunpack.c.h.b16 %v6364
        %v7564 = vunpack.c.l.b16 %v6365
        %v7565 = vunpack.c.h.b16 %v6365
        %v7566 = vunpack.c.l.b16 %v6366
        %v7567 = vunpack.c.h.b16 %v6366
        %v7568 = vunpack.c.l.b16 %v6367
        %v7569 = vunpack.c.h.b16 %v6367
        %v7570 = vunpack.c.l.b16 %v6368
        %v7571 = vunpack.c.h.b16 %v6368
        %v7572 = vunpack.c.l.b16 %v6369
        %v7573 = vunpack.c.h.b16 %v6369
        %v7574 = vunpack.c.l.b16 %v6370
        %v7575 = vunpack.c.h.b16 %v6370
        %v7576 = vunpack.c.l.b16 %v6371
        %v7577 = vunpack.c.h.b16 %v6371
        %v7578 = vunpack.c.l.b16 %v6372
        %v7579 = vunpack.c.h.b16 %v6372
        %v7580 = vunpack.c.l.b16 %v6373
        %v7581 = vunpack.c.h.b16 %v6373
        %v7582 = vunpack.c.l.b16 %v6374
        %v7583 = vunpack.c.h.b16 %v6374
        %v7584 = vunpack.c.l.b16 %v6375
        %v7585 = vunpack.c.h.b16 %v6375
        %v7586 = vunpack.c.l.b16 %v6376
        %v7587 = vunpack.c.h.b16 %v6376
        %v7588 = vunpack.c.l.b16 %v6377
        %v7589 = vunpack.c.h.b16 %v6377
        %v7590 = vunpack.c.l.b16 %v6378
        %v7591 = vunpack.c.h.b16 %v6378
        %v7592 = vunpack.c.l.b16 %v6379
        %v7593 = vunpack.c.h.b16 %v6379
        %v7594 = vunpack.c.l.b16 %v6380
        %v7595 = vunpack.c.h.b16 %v6380
        %v7596 = vunpack.c.l.b16 %v6381
        %v7597 = vunpack.c.h.b16 %v6381
        %v7598 = vunpack.c.l.b16 %v6382
        %v7599 = vunpack.c.h.b16 %v6382
        %v7600 = vunpack.c.l.b16 %v6383
        %v7601 = vunpack.c.h.b16 %v6383
        %v7602 = vunpack.c.l.b16 %v6384
        %v7603 = vunpack.c.h.b16 %v6384
        %v7604 = vunpack.c.l.b16 %v6385
        %v7605 = vunpack.c.h.b16 %v6385
        %v7606 = vunpack.c.l.b16 %v6386
        %v7607 = vunpack.c.h.b16 %v6386
        %v7608 = vunpack.c.l.b16 %v6387
        %v7609 = vunpack.c.h.b16 %v6387
        %v7610 = vunpack.c.l.b16 %v6388
        %v7611 = vunpack.c.h.b16 %v6388
        %v7612 = vunpack.c.l.b16 %v6389
        %v7613 = vunpack.c.h.b16 %v6389
        %v7614 = vunpack.c.l.b16 %v6390
        %v7615 = vunpack.c.h.b16 %v6390
        %v7616 = vunpack.c.l.b16 %v6391
        %v7617 = vunpack.c.h.b16 %v6391
        %v7618 = vunpack.c.l.b16 %v6392
        %v7619 = vunpack.c.h.b16 %v6392
        %v7620 = vunpack.c.l.b16 %v6393
        %v7621 = vunpack.c.h.b16 %v6393
        %v7622 = vunpack.c.l.b16 %v6394
        %v7623 = vunpack.c.h.b16 %v6394
        %v7624 = vunpack.c.l.b16 %v6395
        %v7625 = vunpack.c.h.b16 %v6395
        %v7626 = vunpack.c.l.b16 %v6396
        %v7627 = vunpack.c.h.b16 %v6396
        %v7628 = vunpack.c.l.b16 %v6397
        %v7629 = vunpack.c.h.b16 %v6397
        %v7630 = vunpack.c.l.b16 %v6398
        %v7631 = vunpack.c.h.b16 %v6398
        %v7632 = vunpack.c.l.b16 %v6399
        %v7633 = vunpack.c.h.b16 %v6399
        %v7634 = vunpack.c.l.b16 %v6400
        %v7635 = vunpack.c.h.b16 %v6400
        %v7636 = vunpack.c.l.b16 %v6401
        %v7637 = vunpack.c.h.b16 %v6401
        %v7638 = vunpack.c.l.b16 %v6402
        %v7639 = vunpack.c.h.b16 %v6402
        %v7640 = vunpack.c.l.b16 %v6403
        %v7641 = vunpack.c.h.b16 %v6403
        %v7642 = vunpack.c.l.b16 %v6404
        %v7643 = vunpack.c.h.b16 %v6404
        %v7644 = vunpack.c.l.b16 %v6405
        %v7645 = vunpack.c.h.b16 %v6405
        %v7646 = vunpack.c.l.b16 %v6406
        %v7647 = vunpack.c.h.b16 %v6406
        %v7648 = vunpack.c.l.b16 %v6407
        %v7649 = vunpack.c.h.b16 %v6407
        %v7650 = vunpack.c.l.b16 %v6408
        %v7651 = vunpack.c.h.b16 %v6408
        %v7652 = vunpack.c.l.b16 %v6409
        %v7653 = vunpack.c.h.b16 %v6409
        %v7654 = vunpack.c.l.b16 %v6410
        %v7655 = vunpack.c.h.b16 %v6410
        %v7656 = vunpack.c.l.b16 %v6411
        %v7657 = vunpack.c.h.b16 %v6411
        %v7658 = vunpack.c.l.b16 %v6412
        %v7659 = vunpack.c.h.b16 %v6412
        %v7660 = vunpack.c.l.b16 %v6413
        %v7661 = vunpack.c.h.b16 %v6413
        %v7662 = vunpack.c.l.b16 %v6414
        %v7663 = vunpack.c.h.b16 %v6414
        %v7664 = vunpack.c.l.b16 %v6415
        %v7665 = vunpack.c.h.b16 %v6415
        %v7666 = vunpack.c.l.b16 %v6416
        %v7667 = vunpack.c.h.b16 %v6416
        %v7668 = vunpack.c.l.b16 %v6417
        %v7669 = vunpack.c.h.b16 %v6417
        %v7670 = vunpack.c.l.b16 %v6418
        %v7671 = vunpack.c.h.b16 %v6418
        %v7672 = vunpack.c.l.b16 %v6419
        %v7673 = vunpack.c.h.b16 %v6419
        %v7674 = vunpack.c.l.b16 %v6420
        %v7675 = vunpack.c.h.b16 %v6420
        %v7676 = vunpack.c.l.b16 %v6421
        %v7677 = vunpack.c.h.b16 %v6421
        %v7678 = vunpack.c.l.b16 %v6422
        %v7679 = vunpack.c.h.b16 %v6422
        %v7680 = vunpack.c.l.b16 %v6423
        %v7681 = vunpack.c.h.b16 %v6423
        %v7682 = vunpack.c.l.b16 %v6424
        %v7683 = vunpack.c.h.b16 %v6424
        %v7684 = vunpack.c.l.b16 %v6425
        %v7685 = vunpack.c.h.b16 %v6425
        %v7686 = vunpack.c.l.b16 %v6426
        %v7687 = vunpack.c.h.b16 %v6426
        %v7688 = vunpack.c.l.b16 %v6427
        %v7689 = vunpack.c.h.b16 %v6427
        %v7690 = vunpack.c.l.b16 %v6428
        %v7691 = vunpack.c.h.b16 %v6428
        %v7692 = vunpack.c.l.b16 %v6429
        %v7693 = vunpack.c.h.b16 %v6429
        %v7694 = vunpack.c.l.b16 %v6430
        %v7695 = vunpack.c.h.b16 %v6430
        %v7696 = vunpack.c.l.b16 %v6431
        %v7697 = vunpack.c.h.b16 %v6431
        %v7698 = vunpack.c.l.b16 %v6432
        %v7699 = vunpack.c.h.b16 %v6432
        %v7700 = vunpack.c.l.b16 %v6433
        %v7701 = vunpack.c.h.b16 %v6433
        %v7702 = vunpack.c.l.b16 %v6434
        %v7703 = vunpack.c.h.b16 %v6434
        %v7704 = vunpack.c.l.b16 %v6435
        %v7705 = vunpack.c.h.b16 %v6435
        %v7706 = vunpack.c.l.b16 %v6436
        %v7707 = vunpack.c.h.b16 %v6436
        %v7708 = vunpack.c.l.b16 %v6437
        %v7709 = vunpack.c.h.b16 %v6437
        %v7710 = vunpack.c.l.b16 %v6438
        %v7711 = vunpack.c.h.b16 %v6438
        %v7712 = vunpack.c.l.b16 %v6439
        %v7713 = vunpack.c.h.b16 %v6439
        %v7714 = vunpack.c.l.b16 %v6440
        %v7715 = vunpack.c.h.b16 %v6440
        %v7716 = vunpack.c.l.b16 %v6441
        %v7717 = vunpack.c.h.b16 %v6441
        %v7718 = vunpack.c.l.b16 %v6442
        %v7719 = vunpack.c.h.b16 %v6442
        %v7720 = vunpack.c.l.b16 %v6443
        %v7721 = vunpack.c.h.b16 %v6443
        %v7722 = vunpack.c.l.b16 %v6444
        %v7723 = vunpack.c.h.b16 %v6444
        %v7724 = vunpack.c.l.b16 %v6445
        %v7725 = vunpack.c.h.b16 %v6445
        %v7726 = vunpack.c.l.b16 %v6446
        %v7727 = vunpack.c.h.b16 %v6446
        %v7728 = vunpack.c.l.b16 %v6447
        %v7729 = vunpack.c.h.b16 %v6447
        %v7730 = vunpack.c.l.b16 %v6448
        %v7731 = vunpack.c.h.b16 %v6448
        %v7732 = vunpack.c.l.b16 %v6449
        %v7733 = vunpack.c.h.b16 %v6449
        %v7734 = vunpack.c.l.b16 %v6450
        %v7735 = vunpack.c.h.b16 %v6450
        %v7736 = vunpack.c.l.b16 %v6451
        %v7737 = vunpack.c.h.b16 %v6451
        %v7738 = vunpack.c.l.b16 %v6452
        %v7739 = vunpack.c.h.b16 %v6452
        %v7740 = vunpack.c.l.b16 %v6453
        %v7741 = vunpack.c.h.b16 %v6453
        %v7742 = vunpack.c.l.b16 %v6454
        %v7743 = vunpack.c.h.b16 %v6454
        %v7744 = vunpack.c.l.b16 %v6455
        %v7745 = vunpack.c.h.b16 %v6455
        %v7746 = vunpack.c.l.b16 %v6456
        %v7747 = vunpack.c.h.b16 %v6456
        %v7748 = vunpack.c.l.b16 %v6457
        %v7749 = vunpack.c.h.b16 %v6457
        %v7750 = vunpack.c.l.b16 %v6458
        %v7751 = vunpack.c.h.b16 %v6458
        %v7752 = vunpack.c.l.b16 %v6459
        %v7753 = vunpack.c.h.b16 %v6459
        %v7754 = vunpack.c.l.b16 %v6460
        %v7755 = vunpack.c.h.b16 %v6460
        %v7756 = vunpack.c.l.b16 %v6461
        %v7757 = vunpack.c.h.b16 %v6461
        %v7758 = vunpack.c.l.b16 %v6462
        %v7759 = vunpack.c.h.b16 %v6462
        %v7760 = vunpack.c.l.b16 %v6463
        %v7761 = vunpack.c.h.b16 %v6463
        %v7762 = vunpack.c.l.b16 %v6464
        %v7763 = vunpack.c.h.b16 %v6464
        %v7764 = vunpack.c.l.b16 %v6465
        %v7765 = vunpack.c.h.b16 %v6465
        %v7766 = vunpack.c.l.b16 %v6466
        %v7767 = vunpack.c.h.b16 %v6466
        %v7768 = vunpack.c.l.b16 %v6467
        %v7769 = vunpack.c.h.b16 %v6467
        %v7770 = vunpack.c.l.b16 %v6468
        %v7771 = vunpack.c.h.b16 %v6468
        %v7772 = vunpack.c.l.b16 %v6469
        %v7773 = vunpack.c.h.b16 %v6469
        %v7774 = vunpack.c.l.b16 %v6470
        %v7775 = vunpack.c.h.b16 %v6470
        %v7776 = vunpack.c.l.b16 %v6471
        %v7777 = vunpack.c.h.b16 %v6471
        %v7778 = vunpack.c.l.b16 %v6472
        %v7779 = vunpack.c.h.b16 %v6472
        %v7780 = vunpack.c.l.b16 %v6473
        %v7781 = vunpack.c.h.b16 %v6473
        %v7782 = vunpack.c.l.b16 %v6474
        %v7783 = vunpack.c.h.b16 %v6474
        %v7784 = vunpack.c.l.b16 %v6475
        %v7785 = vunpack.c.h.b16 %v6475
        %v7786 = vunpack.c.l.b16 %v6476
        %v7787 = vunpack.c.h.b16 %v6476
        %v7788 = vunpack.c.l.b16 %v6477
        %v7789 = vunpack.c.h.b16 %v6477
        %v7790 = vunpack.c.l.b16 %v6478
        %v7791 = vunpack.c.h.b16 %v6478
        %v7792 = vunpack.c.l.b16 %v6479
        %v7793 = vunpack.c.h.b16 %v6479
        %v7794 = vunpack.c.l.b16 %v6480
        %v7795 = vunpack.c.h.b16 %v6480
        %v7796 = vunpack.c.l.b16 %v6481
        %v7797 = vunpack.c.h.b16 %v6481
        %v7798 = vunpack.c.l.b16 %v6482
        %v7799 = vunpack.c.h.b16 %v6482
        %v7800 = vunpack.c.l.b16 %v6483
        %v7801 = vunpack.c.h.b16 %v6483
        %v7802 = vunpack.c.l.b16 %v6484
        %v7803 = vunpack.c.h.b16 %v6484
        %v7804 = vunpack.c.l.b16 %v6485
        %v7805 = vunpack.c.h.b16 %v6485
        %v7806 = vunpack.c.l.b16 %v6486
        %v7807 = vunpack.c.h.b16 %v6486
        %v7808 = vunpack.c.l.b16 %v6487
        %v7809 = vunpack.c.h.b16 %v6487
        %v7810 = vunpack.c.l.b16 %v6488
        %v7811 = vunpack.c.h.b16 %v6488
        %v7812 = vunpack.c.l.b16 %v6489
        %v7813 = vunpack.c.h.b16 %v6489
        %v7814 = vunpack.c.l.b16 %v6490
        %v7815 = vunpack.c.h.b16 %v6490
        %v7816 = vunpack.c.l.b16 %v6491
        %v7817 = vunpack.c.h.b16 %v6491
        %v7818 = vunpack.c.l.b16 %v6492
        %v7819 = vunpack.c.h.b16 %v6492
        %v7820 = vunpack.c.l.b16 %v6493
        %v7821 = vunpack.c.h.b16 %v6493
        %v7822 = vunpack.c.l.b16 %v6494
        %v7823 = vunpack.c.h.b16 %v6494
        %v7824 = vunpack.c.l.b16 %v6495
        %v7825 = vunpack.c.h.b16 %v6495
        %v7826 = vunpack.c.l.b16 %v6496
        %v7827 = vunpack.c.h.b16 %v6496
        %v7828 = vunpack.c.l.b16 %v6497
        %v7829 = vunpack.c.h.b16 %v6497
        %v7830 = vunpack.c.l.b16 %v6498
        %v7831 = vunpack.c.h.b16 %v6498
        %v7832 = vunpack.c.l.b16 %v6499
        %v7833 = vunpack.c.h.b16 %v6499
        %v7834 = vunpack.c.l.b16 %v6500
        %v7835 = vunpack.c.h.b16 %v6500
        %v7836 = vunpack.c.l.b16 %v6501
        %v7837 = vunpack.c.h.b16 %v6501
        %v7838 = vunpack.c.l.b16 %v6502
        %v7839 = vunpack.c.h.b16 %v6502
        %v7840 = vunpack.c.l.b16 %v6503
        %v7841 = vunpack.c.h.b16 %v6503
        %v7842 = vunpack.c.l.b16 %v6504
        %v7843 = vunpack.c.h.b16 %v6504
        %v7844 = vunpack.c.l.b16 %v6505
        %v7845 = vunpack.c.h.b16 %v6505
        %v7846 = vunpack.c.l.b16 %v6506
        %v7847 = vunpack.c.h.b16 %v6506
        %v7848 = vunpack.c.l.b16 %v6507
        %v7849 = vunpack.c.h.b16 %v6507
        %v7850 = vunpack.c.l.b16 %v6508
        %v7851 = vunpack.c.h.b16 %v6508
        %v7852 = vunpack.c.l.b16 %v6509
        %v7853 = vunpack.c.h.b16 %v6509
        %v7854 = vunpack.c.l.b16 %v6510
        %v7855 = vunpack.c.h.b16 %v6510
        %v7856 = vunpack.c.l.b16 %v6511
        %v7857 = vunpack.c.h.b16 %v6511
        %v7858 = vunpack.c.l.b16 %v6512
        %v7859 = vunpack.c.h.b16 %v6512
        %v7860 = vunpack.c.l.b16 %v6513
        %v7861 = vunpack.c.h.b16 %v6513
        %v7862 = vunpack.c.l.b16 %v6514
        %v7863 = vunpack.c.h.b16 %v6514
        %v7864 = vunpack.c.l.b16 %v6515
        %v7865 = vunpack.c.h.b16 %v6515
        %v7866 = vunpack.c.l.b16 %v6516
        %v7867 = vunpack.c.h.b16 %v6516
        %v7868 = vunpack.c.l.b16 %v6517
        %v7869 = vunpack.c.h.b16 %v6517
        %v7870 = vunpack.c.l.b16 %v6518
        %v7871 = vunpack.c.h.b16 %v6518
        %v7872 = vunpack.c.l.b16 %v6519
        %v7873 = vunpack.c.h.b16 %v6519
        %v7874 = vunpack.c.l.b16 %v6520
        %v7875 = vunpack.c.h.b16 %v6520
        %v7876 = vunpack.c.l.b16 %v6521
        %v7877 = vunpack.c.h.b16 %v6521
        %v7878 = vunpack.c.l.b16 %v6522
        %v7879 = vunpack.c.h.b16 %v6522
        %v7880 = vunpack.c.l.b16 %v6523
        %v7881 = vunpack.c.h.b16 %v6523
        %v7882 = vunpack.c.l.b16 %v6524
        %v7883 = vunpack.c.h.b16 %v6524
        %v7884 = vunpack.c.l.b16 %v6525
        %v7885 = vunpack.c.h.b16 %v6525
        %v7886 = vunpack.c.l.b16 %v6526
        %v7887 = vunpack.c.h.b16 %v6526
        %v7888 = vunpack.c.l.b16 %v6527
        %v7889 = vunpack.c.h.b16 %v6527
        %v7890 = vunpack.c.l.b16 %v6528
        %v7891 = vunpack.c.h.b16 %v6528
        %v7892 = vunpack.c.l.b16 %v6529
        %v7893 = vunpack.c.h.b16 %v6529
        %v7894 = vunpack.c.l.b16 %v6530
        %v7895 = vunpack.c.h.b16 %v6530
        %v7896 = vunpack.c.l.b16 %v6531
        %v7897 = vunpack.c.h.b16 %v6531
        %v7898 = vunpack.c.l.b16 %v6532
        %v7899 = vunpack.c.h.b16 %v6532
        %v7900 = vunpack.c.l.b16 %v6533
        %v7901 = vunpack.c.h.b16 %v6533
        %v7902 = vunpack.c.l.b16 %v6534
        %v7903 = vunpack.c.h.b16 %v6534
        %v7904 = vunpack.c.l.b16 %v6535
        %v7905 = vunpack.c.h.b16 %v6535
        %v7906 = vunpack.c.l.b16 %v6536
        %v7907 = vunpack.c.h.b16 %v6536
        %v7908 = vunpack.c.l.b16 %v6537
        %v7909 = vunpack.c.h.b16 %v6537
        %v7910 = vunpack.c.l.b16 %v6538
        %v7911 = vunpack.c.h.b16 %v6538
        %v7912 = vunpack.c.l.b16 %v6539
        %v7913 = vunpack.c.h.b16 %v6539
        %v7914 = vunpack.c.l.b16 %v6540
        %v7915 = vunpack.c.h.b16 %v6540
        %v7916 = vunpack.c.l.b16 %v6541
        %v7917 = vunpack.c.h.b16 %v6541
        %v7918 = vunpack.c.l.b16 %v6542
        %v7919 = vunpack.c.h.b16 %v6542
        %v7920 = vunpack.c.l.b16 %v6543
        %v7921 = vunpack.c.h.b16 %v6543
        %v7922 = vunpack.c.l.b16 %v6544
        %v7923 = vunpack.c.h.b16 %v6544
        %v7924 = vunpack.c.l.b16 %v6545
        %v7925 = vunpack.c.h.b16 %v6545
        %v7926 = vunpack.c.l.b16 %v6546
        %v7927 = vunpack.c.h.b16 %v6546
        %v7928 = vunpack.c.l.b16 %v6547
        %v7929 = vunpack.c.h.b16 %v6547
        %v7930 = vunpack.c.l.b16 %v6548
        %v7931 = vunpack.c.h.b16 %v6548
        %v7932 = vunpack.c.l.b16 %v6549
        %v7933 = vunpack.c.h.b16 %v6549
        %v7934 = vunpack.c.l.b16 %v6550
        %v7935 = vunpack.c.h.b16 %v6550
        %v7936 = vunpack.c.l.b16 %v6551
        %v7937 = vunpack.c.h.b16 %v6551
        %v7938 = vunpack.c.l.b16 %v6552
        %v7939 = vunpack.c.h.b16 %v6552
        %v7940 = vunpack.c.l.b16 %v6553
        %v7941 = vunpack.c.h.b16 %v6553
        %v7942 = vunpack.c.l.b16 %v6554
        %v7943 = vunpack.c.h.b16 %v6554
        %v7944 = vunpack.c.l.b16 %v6555
        %v7945 = vunpack.c.h.b16 %v6555
        %v7946 = vunpack.c.l.b16 %v6556
        %v7947 = vunpack.c.h.b16 %v6556
        %v7948 = vunpack.c.l.b16 %v6557
        %v7949 = vunpack.c.h.b16 %v6557
        %v7950 = vunpack.c.l.b16 %v6558
        %v7951 = vunpack.c.h.b16 %v6558
        %v7952 = vunpack.c.l.b16 %v6559
        %v7953 = vunpack.c.h.b16 %v6559
        %v7954 = vunpack.c.l.b16 %v6560
        %v7955 = vunpack.c.h.b16 %v6560
        %v7956 = vunpack.c.l.b16 %v6561
        %v7957 = vunpack.c.h.b16 %v6561
        %v7958 = vunpack.c.l.b16 %v6562
        %v7959 = vunpack.c.h.b16 %v6562
        %v7960 = vunpack.c.l.b16 %v6563
        %v7961 = vunpack.c.h.b16 %v6563
        %v7962 = vunpack.c.l.b16 %v6564
        %v7963 = vunpack.c.h.b16 %v6564
        %v7964 = vunpack.c.l.b16 %v6565
        %v7965 = vunpack.c.h.b16 %v6565
        %v7966 = vunpack.c.l.b16 %v6566
        %v7967 = vunpack.c.h.b16 %v6566
        %v7968 = vunpack.c.l.b16 %v6567
        %v7969 = vunpack.c.h.b16 %v6567
        %v7970 = vunpack.c.l.b16 %v6568
        %v7971 = vunpack.c.h.b16 %v6568
        %v7972 = vunpack.c.l.b16 %v6569
        %v7973 = vunpack.c.h.b16 %v6569
        %v7974 = vunpack.c.l.b16 %v6570
        %v7975 = vunpack.c.h.b16 %v6570
        %v7976 = vunpack.c.l.b16 %v6571
        %v7977 = vunpack.c.h.b16 %v6571
        %v7978 = vunpack.c.l.b16 %v6572
        %v7979 = vunpack.c.h.b16 %v6572
        %v7980 = vunpack.c.l.b16 %v6573
        %v7981 = vunpack.c.h.b16 %v6573
        %v7982 = vunpack.c.l.b16 %v6574
        %v7983 = vunpack.c.h.b16 %v6574
        %v7984 = vunpack.c.l.b16 %v6575
        %v7985 = vunpack.c.h.b16 %v6575
        %v7986 = vunpack.c.l.b16 %v6576
        %v7987 = vunpack.c.h.b16 %v6576
        %v7988 = vunpack.c.l.b16 %v6577
        %v7989 = vunpack.c.h.b16 %v6577
        %v7990 = vunpack.c.l.b16 %v6578
        %v7991 = vunpack.c.h.b16 %v6578
        %v7992 = vunpack.c.l.b16 %v6579
        %v7993 = vunpack.c.h.b16 %v6579
        %v7994 = vunpack.c.l.b16 %v6580
        %v7995 = vunpack.c.h.b16 %v6580
        %v7996 = vunpack.c.l.b16 %v6581
        %v7997 = vunpack.c.h.b16 %v6581
        %v7998 = vunpack.c.l.b16 %v6582
        %v7999 = vunpack.c.h.b16 %v6582
        %v8000 = vunpack.c.l.b16 %v6583
        %v8001 = vunpack.c.h.b16 %v6583
        %v8002 = vunpack.c.l.b16 %v6584
        %v8003 = vunpack.c.h.b16 %v6584
        %v8004 = vunpack.c.l.b16 %v6585
        %v8005 = vunpack.c.h.b16 %v6585
        %v8006 = vunpack.c.l.b16 %v6586
        %v8007 = vunpack.c.h.b16 %v6586
        %v8008 = vunpack.c.l.b16 %v6587
        %v8009 = vunpack.c.h.b16 %v6587
        %v8010 = vunpack.c.l.b16 %v6588
        %v8011 = vunpack.c.h.b16 %v6588
        %v8012 = vunpack.c.l.b16 %v6589
        %v8013 = vunpack.c.h.b16 %v6589
        %v8014 = vunpack.c.l.b16 %v6590
        %v8015 = vunpack.c.h.b16 %v6590
        %v8016 = vunpack.c.l.b16 %v6591
        %v8017 = vunpack.c.h.b16 %v6591
        %v8018 = vunpack.c.l.b16 %v6592
        %v8019 = vunpack.c.h.b16 %v6592
        %v8020 = vunpack.c.l.b16 %v6593
        %v8021 = vunpack.c.h.b16 %v6593
        %v8022 = vunpack.c.l.b16 %v6594
        %v8023 = vunpack.c.h.b16 %v6594
        %v8024 = vunpack.c.l.b16 %v6595
        %v8025 = vunpack.c.h.b16 %v6595
        %v8026 = vunpack.c.l.b16 %v6596
        %v8027 = vunpack.c.h.b16 %v6596
        %v8028 = vunpack.c.l.b16 %v6597
        %v8029 = vunpack.c.h.b16 %v6597
        %v8030 = vunpack.c.l.b16 %v6598
        %v8031 = vunpack.c.h.b16 %v6598
        %v8032 = vunpack.c.l.b16 %v6599
        %v8033 = vunpack.c.h.b16 %v6599
        %v8034 = vunpack.c.l.b16 %v6600
        %v8035 = vunpack.c.h.b16 %v6600
        %v8036 = vunpack.c.l.b16 %v6601
        %v8037 = vunpack.c.h.b16 %v6601
        %v8038 = vunpack.c.l.b16 %v6602
        %v8039 = vunpack.c.h.b16 %v6602
        %v8040 = vunpack.c.l.b16 %v6603
        %v8041 = vunpack.c.h.b16 %v6603
        %v8042 = vunpack.c.l.b16 %v6604
        %v8043 = vunpack.c.h.b16 %v6604
        %v8044 = vunpack.c.l.b16 %v6605
        %v8045 = vunpack.c.h.b16 %v6605
        %v8046 = vunpack.c.l.b16 %v6606
        %v8047 = vunpack.c.h.b16 %v6606
        %v8048 = vunpack.c.l.b16 %v6607
        %v8049 = vunpack.c.h.b16 %v6607
        %v8050 = vunpack.c.l.b16 %v6608
        %v8051 = vunpack.c.h.b16 %v6608
        %v8052 = vunpack.c.l.b16 %v6609
        %v8053 = vunpack.c.h.b16 %v6609
        %v8054 = vunpack.c.l.b16 %v6610
        %v8055 = vunpack.c.h.b16 %v6610
        %v8056 = vunpack.c.l.b16 %v6611
        %v8057 = vunpack.c.h.b16 %v6611
        %v8058 = vunpack.c.l.b16 %v6612
        %v8059 = vunpack.c.h.b16 %v6612
        %v8060 = vunpack.c.l.b16 %v6613
        %v8061 = vunpack.c.h.b16 %v6613
        %v8062 = vunpack.c.l.b16 %v6614
        %v8063 = vunpack.c.h.b16 %v6614
        %v8064 = vunpack.c.l.b16 %v6615
        %v8065 = vunpack.c.h.b16 %v6615
        %v8066 = vunpack.c.l.b16 %v6616
        %v8067 = vunpack.c.h.b16 %v6616
        %v8068 = vunpack.c.l.b16 %v6617
        %v8069 = vunpack.c.h.b16 %v6617
        %v8070 = vunpack.c.l.b16 %v6618
        %v8071 = vunpack.c.h.b16 %v6618
        %v8072 = vunpack.c.l.b16 %v6619
        %v8073 = vunpack.c.h.b16 %v6619
        %v8074 = vunpack.c.l.b16 %v6620
        %v8075 = vunpack.c.h.b16 %v6620
        %v8076 = vunpack.c.l.b16 %v6621
        %v8077 = vunpack.c.h.b16 %v6621
        %v8078 = vunpack.c.l.b16 %v6622
        %v8079 = vunpack.c.h.b16 %v6622
        %v8080 = vunpack.c.l.b16 %v6623
        %v8081 = vunpack.c.h.b16 %v6623
        %v8082 = vunpack.c.l.b16 %v6624
        %v8083 = vunpack.c.h.b16 %v6624
        %v8084 = vunpack.c.l.b16 %v6625
        %v8085 = vunpack.c.h.b16 %v6625
        %v8086 = vunpack.c.l.b16 %v6626
        %v8087 = vunpack.c.h.b16 %v6626
        %v8088 = vunpack.c.l.b16 %v6627
        %v8089 = vunpack.c.h.b16 %v6627
        %v8090 = vunpack.c.l.b16 %v6628
        %v8091 = vunpack.c.h.b16 %v6628
        %v8092 = vunpack.c.l.b16 %v6629
        %v8093 = vunpack.c.h.b16 %v6629
        %v8094 = vunpack.c.l.b16 %v6630
        %v8095 = vunpack.c.h.b16 %v6630
        %v8096 = vunpack.c.l.b16 %v6631
        %v8097 = vunpack.c.h.b16 %v6631
        %v8098 = vunpack.c.l.b16 %v6632
        %v8099 = vunpack.c.h.b16 %v6632
        %v8100 = vunpack.c.l.b16 %v6633
        %v8101 = vunpack.c.h.b16 %v6633
        %v8102 = vunpack.c.l.b16 %v6634
        %v8103 = vunpack.c.h.b16 %v6634
        %v8104 = vunpack.c.l.b16 %v6635
        %v8105 = vunpack.c.h.b16 %v6635
        %v8106 = vunpack.c.l.b16 %v6636
        %v8107 = vunpack.c.h.b16 %v6636
        %v8108 = vunpack.c.l.b16 %v6637
        %v8109 = vunpack.c.h.b16 %v6637
        %v8110 = vunpack.c.l.b16 %v6638
        %v8111 = vunpack.c.h.b16 %v6638
        %v8112 = vunpack.c.l.b16 %v6639
        %v8113 = vunpack.c.h.b16 %v6639
        %v8114 = vunpack.c.l.b16 %v6640
        %v8115 = vunpack.c.h.b16 %v6640
        %v8116 = vunpack.c.l.b16 %v6641
        %v8117 = vunpack.c.h.b16 %v6641
        %v8118 = vunpack.c.l.b16 %v6642
        %v8119 = vunpack.c.h.b16 %v6642
        %v8120 = vunpack.c.l.b16 %v6643
        %v8121 = vunpack.c.h.b16 %v6643
        %v8122 = vunpack.c.l.b16 %v6644
        %v8123 = vunpack.c.h.b16 %v6644
        %v8124 = vunpack.c.l.b16 %v6645
        %v8125 = vunpack.c.h.b16 %v6645
        %v8126 = vunpack.c.l.b16 %v6646
        %v8127 = vunpack.c.h.b16 %v6646
        %v8128 = vunpack.c.l.b16 %v6647
        %v8129 = vunpack.c.h.b16 %v6647
        %v8130 = vunpack.c.l.b16 %v6648
        %v8131 = vunpack.c.h.b16 %v6648
        %v8132 = vunpack.c.l.b16 %v6649
        %v8133 = vunpack.c.h.b16 %v6649
        %v8134 = vunpack.c.l.b16 %v6650
        %v8135 = vunpack.c.h.b16 %v6650
        %v8136 = vunpack.c.l.b16 %v6651
        %v8137 = vunpack.c.h.b16 %v6651
        %v8138 = vunpack.c.l.b16 %v6652
        %v8139 = vunpack.c.h.b16 %v6652
        %v8140 = vunpack.c.l.b16 %v6653
        %v8141 = vunpack.c.h.b16 %v6653
        %v8142 = vunpack.c.l.b16 %v6654
        %v8143 = vunpack.c.h.b16 %v6654
        %v8144 = vunpack.c.l.b16 %v6655
        %v8145 = vunpack.c.h.b16 %v6655
        %v8146 = vunpack.c.l.b16 %v6656
        %v8147 = vunpack.c.h.b16 %v6656
        %v8148 = vunpack.c.l.b16 %v6657
        %v8149 = vunpack.c.h.b16 %v6657
        %v8150 = vunpack.c.l.b16 %v6658
        %v8151 = vunpack.c.h.b16 %v6658
        %v8152 = vunpack.c.l.b16 %v6659
        %v8153 = vunpack.c.h.b16 %v6659
        %v8154 = vunpack.c.l.b16 %v6660
        %v8155 = vunpack.c.h.b16 %v6660
        %v8156 = vunpack.c.l.b16 %v6661
        %v8157 = vunpack.c.h.b16 %v6661
        %v8158 = vunpack.c.l.b16 %v6662
        %v8159 = vunpack.c.h.b16 %v6662
        %v8160 = vunpack.c.l.b16 %v6663
        %v8161 = vunpack.c.h.b16 %v6663
        %v8162 = vunpack.c.l.b16 %v6664
        %v8163 = vunpack.c.h.b16 %v6664
        %v8164 = vunpack.c.l.b16 %v6665
        %v8165 = vunpack.c.h.b16 %v6665
        %v8166 = vunpack.c.l.b16 %v6666
        %v8167 = vunpack.c.h.b16 %v6666
        %v8168 = vunpack.c.l.b16 %v6667
        %v8169 = vunpack.c.h.b16 %v6667
        %v8170 = vunpack.c.l.b16 %v6668
        %v8171 = vunpack.c.h.b16 %v6668
        %v8172 = vunpack.c.l.b16 %v6669
        %v8173 = vunpack.c.h.b16 %v6669
        %v8174 = vunpack.c.l.b16 %v6670
        %v8175 = vunpack.c.h.b16 %v6670
        %v8176 = vunpack.c.l.b16 %v6671
        %v8177 = vunpack.c.h.b16 %v6671
        %v8178 = vunpack.c.l.b16 %v6672
        %v8179 = vunpack.c.h.b16 %v6672
        %v8180 = vunpack.c.l.b16 %v6673
        %v8181 = vunpack.c.h.b16 %v6673
        %v8182 = vunpack.c.l.b16 %v6674
        %v8183 = vunpack.c.h.b16 %v6674
        %v8184 = vunpack.c.l.b16 %v6675
        %v8185 = vunpack.c.h.b16 %v6675
        %v8186 = vunpack.c.l.b16 %v6676
        %v8187 = vunpack.c.h.b16 %v6676
        %v8188 = vunpack.c.l.b16 %v6677
        %v8189 = vunpack.c.h.b16 %v6677
        %v8190 = vunpack.c.l.b16 %v6678
        %v8191 = vunpack.c.h.b16 %v6678
        %v8192 = vunpack.c.l.b16 %v6679
        %v8193 = vunpack.c.h.b16 %v6679
        %v8194 = vunpack.c.l.b16 %v6680
        %v8195 = vunpack.c.h.b16 %v6680
        %v8196 = vunpack.c.l.b16 %v6681
        %v8197 = vunpack.c.h.b16 %v6681
        %v8198 = vunpack.c.l.b16 %v6682
        %v8199 = vunpack.c.h.b16 %v6682
        %v8200 = vunpack.c.l.b16 %v6683
        %v8201 = vunpack.c.h.b16 %v6683
        %v8202 = vunpack.c.l.b16 %v6684
        %v8203 = vunpack.c.h.b16 %v6684
        %v8204 = vunpack.c.l.b16 %v6685
        %v8205 = vunpack.c.h.b16 %v6685
        %v8206 = vunpack.c.l.b16 %v6686
        %v8207 = vunpack.c.h.b16 %v6686
        %v8208 = vunpack.c.l.b16 %v6687
        %v8209 = vunpack.c.h.b16 %v6687
        %v8210 = vunpack.c.l.b16 %v6688
        %v8211 = vunpack.c.h.b16 %v6688
        %v8212 = vunpack.c.l.b16 %v6689
        %v8213 = vunpack.c.h.b16 %v6689
        %v8214 = vunpack.c.l.b16 %v6690
        %v8215 = vunpack.c.h.b16 %v6690
        %v8216 = vunpack.c.l.b16 %v6691
        %v8217 = vunpack.c.h.b16 %v6691
        %v8218 = vunpack.c.l.b16 %v6692
        %v8219 = vunpack.c.h.b16 %v6692
        %v8220 = vunpack.c.l.b16 %v6693
        %v8221 = vunpack.c.h.b16 %v6693
        %v8222 = vunpack.c.l.b16 %v6694
        %v8223 = vunpack.c.h.b16 %v6694
        %v8224 = vunpack.c.l.b16 %v6695
        %v8225 = vunpack.c.h.b16 %v6695
        %v8226 = vunpack.c.l.b16 %v6696
        %v8227 = vunpack.c.h.b16 %v6696
        %v8228 = vunpack.c.l.b16 %v6697
        %v8229 = vunpack.c.h.b16 %v6697
        %v8230 = vunpack.c.l.b16 %v6698
        %v8231 = vunpack.c.h.b16 %v6698
        %v8232 = vunpack.c.l.b16 %v6699
        %v8233 = vunpack.c.h.b16 %v6699
        %v8234 = vunpack.c.l.b16 %v6700
        %v8235 = vunpack.c.h.b16 %v6700
        %v8236 = vunpack.c.l.b16 %v6701
        %v8237 = vunpack.c.h.b16 %v6701
        %v8238 = vpack.c.b16 %v7230, %v7214
        %v8239 = vpack.c.b16 %v7231, %v7215
        %v8240 = vpack.c.b16 %v7232, %v7216
        %v8241 = vpack.c.b16 %v7233, %v7217
        %v8242 = vpack.c.b16 %v7234, %v7218
        %v8243 = vpack.c.b16 %v7235, %v7219
        %v8244 = vpack.c.b16 %v7236, %v7220
        %v8245 = vpack.c.b16 %v7237, %v7221
        %v8246 = vpack.c.b16 %v7238, %v7222
        %v8247 = vpack.c.b16 %v7239, %v7223
        %v8248 = vpack.c.b16 %v7240, %v7224
        %v8249 = vpack.c.b16 %v7241, %v7225
        %v8250 = vpack.c.b16 %v7242, %v7226
        %v8251 = vpack.c.b16 %v7243, %v7227
        %v8252 = vpack.c.b16 %v7244, %v7228
        %v8253 = vpack.c.b16 %v7245, %v7229
        %v8254 = vpack.c.b16 %v7262, %v7246
        %v8255 = vpack.c.b16 %v7263, %v7247
        %v8256 = vpack.c.b16 %v7264, %v7248
        %v8257 = vpack.c.b16 %v7265, %v7249
        %v8258 = vpack.c.b16 %v7266, %v7250
        %v8259 = vpack.c.b16 %v7267, %v7251
        %v8260 = vpack.c.b16 %v7268, %v7252
        %v8261 = vpack.c.b16 %v7269, %v7253
        %v8262 = vpack.c.b16 %v7270, %v7254
        %v8263 = vpack.c.b16 %v7271, %v7255
        %v8264 = vpack.c.b16 %v7272, %v7256
        %v8265 = vpack.c.b16 %v7273, %v7257
        %v8266 = vpack.c.b16 %v7274, %v7258
        %v8267 = vpack.c.b16 %v7275, %v7259
        %v8268 = vpack.c.b16 %v7276, %v7260
        %v8269 = vpack.c.b16 %v7277, %v7261
        %v8270 = vpack.c.b16 %v7294, %v7278
        %v8271 = vpack.c.b16 %v7295, %v7279
        %v8272 = vpack.c.b16 %v7296, %v7280
        %v8273 = vpack.c.b16 %v7297, %v7281
        %v8274 = vpack.c.b16 %v7298, %v7282
        %v8275 = vpack.c.b16 %v7299, %v7283
        %v8276 = vpack.c.b16 %v7300, %v7284
        %v8277 = vpack.c.b16 %v7301, %v7285
        %v8278 = vpack.c.b16 %v7302, %v7286
        %v8279 = vpack.c.b16 %v7303, %v7287
        %v8280 = vpack.c.b16 %v7304, %v7288
        %v8281 = vpack.c.b16 %v7305, %v7289
        %v8282 = vpack.c.b16 %v7306, %v7290
        %v8283 = vpack.c.b16 %v7307, %v7291
        %v8284 = vpack.c.b16 %v7308, %v7292
        %v8285 = vpack.c.b16 %v7309, %v7293
        %v8286 = vpack.c.b16 %v7326, %v7310
        %v8287 = vpack.c.b16 %v7327, %v7311
        %v8288 = vpack.c.b16 %v7328, %v7312
        %v8289 = vpack.c.b16 %v7329, %v7313
        %v8290 = vpack.c.b16 %v7330, %v7314
        %v8291 = vpack.c.b16 %v7331, %v7315
        %v8292 = vpack.c.b16 %v7332, %v7316
        %v8293 = vpack.c.b16 %v7333, %v7317
        %v8294 = vpack.c.b16 %v7334, %v7318
        %v8295 = vpack.c.b16 %v7335, %v7319
        %v8296 = vpack.c.b16 %v7336, %v7320
        %v8297 = vpack.c.b16 %v7337, %v7321
        %v8298 = vpack.c.b16 %v7338, %v7322
        %v8299 = vpack.c.b16 %v7339, %v7323
        %v8300 = vpack.c.b16 %v7340, %v7324
        %v8301 = vpack.c.b16 %v7341, %v7325
        %v8302 = vpack.c.b16 %v7358, %v7342
        %v8303 = vpack.c.b16 %v7359, %v7343
        %v8304 = vpack.c.b16 %v7360, %v7344
        %v8305 = vpack.c.b16 %v7361, %v7345
        %v8306 = vpack.c.b16 %v7362, %v7346
        %v8307 = vpack.c.b16 %v7363, %v7347
        %v8308 = vpack.c.b16 %v7364, %v7348
        %v8309 = vpack.c.b16 %v7365, %v7349
        %v8310 = vpack.c.b16 %v7366, %v7350
        %v8311 = vpack.c.b16 %v7367, %v7351
        %v8312 = vpack.c.b16 %v7368, %v7352
        %v8313 = vpack.c.b16 %v7369, %v7353
        %v8314 = vpack.c.b16 %v7370, %v7354
        %v8315 = vpack.c.b16 %v7371, %v7355
        %v8316 = vpack.c.b16 %v7372, %v7356
        %v8317 = vpack.c.b16 %v7373, %v7357
        %v8318 = vpack.c.b16 %v7390, %v7374
        %v8319 = vpack.c.b16 %v7391, %v7375
        %v8320 = vpack.c.b16 %v7392, %v7376
        %v8321 = vpack.c.b16 %v7393, %v7377
        %v8322 = vpack.c.b16 %v7394, %v7378
        %v8323 = vpack.c.b16 %v7395, %v7379
        %v8324 = vpack.c.b16 %v7396, %v7380
        %v8325 = vpack.c.b16 %v7397, %v7381
        %v8326 = vpack.c.b16 %v7398, %v7382
        %v8327 = vpack.c.b16 %v7399, %v7383
        %v8328 = vpack.c.b16 %v7400, %v7384
        %v8329 = vpack.c.b16 %v7401, %v7385
        %v8330 = vpack.c.b16 %v7402, %v7386
        %v8331 = vpack.c.b16 %v7403, %v7387
        %v8332 = vpack.c.b16 %v7404, %v7388
        %v8333 = vpack.c.b16 %v7405, %v7389
        %v8334 = vpack.c.b16 %v7422, %v7406
        %v8335 = vpack.c.b16 %v7423, %v7407
        %v8336 = vpack.c.b16 %v7424, %v7408
        %v8337 = vpack.c.b16 %v7425, %v7409
        %v8338 = vpack.c.b16 %v7426, %v7410
        %v8339 = vpack.c.b16 %v7427, %v7411
        %v8340 = vpack.c.b16 %v7428, %v7412
        %v8341 = vpack.c.b16 %v7429, %v7413
        %v8342 = vpack.c.b16 %v7430, %v7414
        %v8343 = vpack.c.b16 %v7431, %v7415
        %v8344 = vpack.c.b16 %v7432, %v7416
        %v8345 = vpack.c.b16 %v7433, %v7417
        %v8346 = vpack.c.b16 %v7434, %v7418
        %v8347 = vpack.c.b16 %v7435, %v7419
        %v8348 = vpack.c.b16 %v7436, %v7420
        %v8349 = vpack.c.b16 %v7437, %v7421
        %v8350 = vpack.c.b16 %v7454, %v7438
        %v8351 = vpack.c.b16 %v7455, %v7439
        %v8352 = vpack.c.b16 %v7456, %v7440
        %v8353 = vpack.c.b16 %v7457, %v7441
        %v8354 = vpack.c.b16 %v7458, %v7442
        %v8355 = vpack.c.b16 %v7459, %v7443
        %v8356 = vpack.c.b16 %v7460, %v7444
        %v8357 = vpack.c.b16 %v7461, %v7445
        %v8358 = vpack.c.b16 %v7462, %v7446
        %v8359 = vpack.c.b16 %v7463, %v7447
        %v8360 = vpack.c.b16 %v7464, %v7448
        %v8361 = vpack.c.b16 %v7465, %v7449
        %v8362 = vpack.c.b16 %v7466, %v7450
        %v8363 = vpack.c.b16 %v7467, %v7451
        %v8364 = vpack.c.b16 %v7468, %v7452
        %v8365 = vpack.c.b16 %v7469, %v7453
        %v8366 = vpack.c.b16 %v7486, %v7470
        %v8367 = vpack.c.b16 %v7487, %v7471
        %v8368 = vpack.c.b16 %v7488, %v7472
        %v8369 = vpack.c.b16 %v7489, %v7473
        %v8370 = vpack.c.b16 %v7490, %v7474
        %v8371 = vpack.c.b16 %v7491, %v7475
        %v8372 = vpack.c.b16 %v7492, %v7476
        %v8373 = vpack.c.b16 %v7493, %v7477
        %v8374 = vpack.c.b16 %v7494, %v7478
        %v8375 = vpack.c.b16 %v7495, %v7479
        %v8376 = vpack.c.b16 %v7496, %v7480
        %v8377 = vpack.c.b16 %v7497, %v7481
        %v8378 = vpack.c.b16 %v7498, %v7482
        %v8379 = vpack.c.b16 %v7499, %v7483
        %v8380 = vpack.c.b16 %v7500, %v7484
        %v8381 = vpack.c.b16 %v7501, %v7485
        %v8382 = vpack.c.b16 %v7518, %v7502
        %v8383 = vpack.c.b16 %v7519, %v7503
        %v8384 = vpack.c.b16 %v7520, %v7504
        %v8385 = vpack.c.b16 %v7521, %v7505
        %v8386 = vpack.c.b16 %v7522, %v7506
        %v8387 = vpack.c.b16 %v7523, %v7507
        %v8388 = vpack.c.b16 %v7524, %v7508
        %v8389 = vpack.c.b16 %v7525, %v7509
        %v8390 = vpack.c.b16 %v7526, %v7510
        %v8391 = vpack.c.b16 %v7527, %v7511
        %v8392 = vpack.c.b16 %v7528, %v7512
        %v8393 = vpack.c.b16 %v7529, %v7513
        %v8394 = vpack.c.b16 %v7530, %v7514
        %v8395 = vpack.c.b16 %v7531, %v7515
        %v8396 = vpack.c.b16 %v7532, %v7516
        %v8397 = vpack.c.b16 %v7533, %v7517
        %v8398 = vpack.c.b16 %v7550, %v7534
        %v8399 = vpack.c.b16 %v7551, %v7535
        %v8400 = vpack.c.b16 %v7552, %v7536
        %v8401 = vpack.c.b16 %v7553, %v7537
        %v8402 = vpack.c.b16 %v7554, %v7538
        %v8403 = vpack.c.b16 %v7555, %v7539
        %v8404 = vpack.c.b16 %v7556, %v7540
        %v8405 = vpack.c.b16 %v7557, %v7541
        %v8406 = vpack.c.b16 %v7558, %v7542
        %v8407 = vpack.c.b16 %v7559, %v7543
        %v8408 = vpack.c.b16 %v7560, %v7544
        %v8409 = vpack.c.b16 %v7561, %v7545
        %v8410 = vpack.c.b16 %v7562, %v7546
        %v8411 = vpack.c.b16 %v7563, %v7547
        %v8412 = vpack.c.b16 %v7564, %v7548
        %v8413 = vpack.c.b16 %v7565, %v7549
        %v8414 = vpack.c.b16 %v7582, %v7566
        %v8415 = vpack.c.b16 %v7583, %v7567
        %v8416 = vpack.c.b16 %v7584, %v7568
        %v8417 = vpack.c.b16 %v7585, %v7569
        %v8418 = vpack.c.b16 %v7586, %v7570
        %v8419 = vpack.c.b16 %v7587, %v7571
        %v8420 = vpack.c.b16 %v7588, %v7572
        %v8421 = vpack.c.b16 %v7589, %v7573
        %v8422 = vpack.c.b16 %v7590, %v7574
        %v8423 = vpack.c.b16 %v7591, %v7575
        %v8424 = vpack.c.b16 %v7592, %v7576
        %v8425 = vpack.c.b16 %v7593, %v7577
        %v8426 = vpack.c.b16 %v7594, %v7578
        %v8427 = vpack.c.b16 %v7595, %v7579
        %v8428 = vpack.c.b16 %v7596, %v7580
        %v8429 = vpack.c.b16 %v7597, %v7581
        %v8430 = vpack.c.b16 %v7614, %v7598
        %v8431 = vpack.c.b16 %v7615, %v7599
        %v8432 = vpack.c.b16 %v7616, %v7600
        %v8433 = vpack.c.b16 %v7617, %v7601
        %v8434 = vpack.c.b16 %v7618, %v7602
        %v8435 = vpack.c.b16 %v7619, %v7603
        %v8436 = vpack.c.b16 %v7620, %v7604
        %v8437 = vpack.c.b16 %v7621, %v7605
        %v8438 = vpack.c.b16 %v7622, %v7606
        %v8439 = vpack.c.b16 %v7623, %v7607
        %v8440 = vpack.c.b16 %v7624, %v7608
        %v8441 = vpack.c.b16 %v7625, %v7609
        %v8442 = vpack.c.b16 %v7626, %v7610
        %v8443 = vpack.c.b16 %v7627, %v7611
        %v8444 = vpack.c.b16 %v7628, %v7612
        %v8445 = vpack.c.b16 %v7629, %v7613
        %v8446 = vpack.c.b16 %v7646, %v7630
        %v8447 = vpack.c.b16 %v7647, %v7631
        %v8448 = vpack.c.b16 %v7648, %v7632
        %v8449 = vpack.c.b16 %v7649, %v7633
        %v8450 = vpack.c.b16 %v7650, %v7634
        %v8451 = vpack.c.b16 %v7651, %v7635
        %v8452 = vpack.c.b16 %v7652, %v7636
        %v8453 = vpack.c.b16 %v7653, %v7637
        %v8454 = vpack.c.b16 %v7654, %v7638
        %v8455 = vpack.c.b16 %v7655, %v7639
        %v8456 = vpack.c.b16 %v7656, %v7640
        %v8457 = vpack.c.b16 %v7657, %v7641
        %v8458 = vpack.c.b16 %v7658, %v7642
        %v8459 = vpack.c.b16 %v7659, %v7643
        %v8460 = vpack.c.b16 %v7660, %v7644
        %v8461 = vpack.c.b16 %v7661, %v7645
        %v8462 = vpack.c.b16 %v7678, %v7662
        %v8463 = vpack.c.b16 %v7679, %v7663
        %v8464 = vpack.c.b16 %v7680, %v7664
        %v8465 = vpack.c.b16 %v7681, %v7665
        %v8466 = vpack.c.b16 %v7682, %v7666
        %v8467 = vpack.c.b16 %v7683, %v7667
        %v8468 = vpack.c.b16 %v7684, %v7668
        %v8469 = vpack.c.b16 %v7685, %v7669
        %v8470 = vpack.c.b16 %v7686, %v7670
        %v8471 = vpack.c.b16 %v7687, %v7671
        %v8472 = vpack.c.b16 %v7688, %v7672
        %v8473 = vpack.c.b16 %v7689, %v7673
        %v8474 = vpack.c.b16 %v7690, %v7674
        %v8475 = vpack.c.b16 %v7691, %v7675
        %v8476 = vpack.c.b16 %v7692, %v7676
        %v8477 = vpack.c.b16 %v7693, %v7677
        %v8478 = vpack.c.b16 %v7710, %v7694
        %v8479 = vpack.c.b16 %v7711, %v7695
        %v8480 = vpack.c.b16 %v7712, %v7696
        %v8481 = vpack.c.b16 %v7713, %v7697
        %v8482 = vpack.c.b16 %v7714, %v7698
        %v8483 = vpack.c.b16 %v7715, %v7699
        %v8484 = vpack.c.b16 %v7716, %v7700
        %v8485 = vpack.c.b16 %v7717, %v7701
        %v8486 = vpack.c.b16 %v7718, %v7702
        %v8487 = vpack.c.b16 %v7719, %v7703
        %v8488 = vpack.c.b16 %v7720, %v7704
        %v8489 = vpack.c.b16 %v7721, %v7705
        %v8490 = vpack.c.b16 %v7722, %v7706
        %v8491 = vpack.c.b16 %v7723, %v7707
        %v8492 = vpack.c.b16 %v7724, %v7708
        %v8493 = vpack.c.b16 %v7725, %v7709
        %v8494 = vpack.c.b16 %v7742, %v7726
        %v8495 = vpack.c.b16 %v7743, %v7727
        %v8496 = vpack.c.b16 %v7744, %v7728
        %v8497 = vpack.c.b16 %v7745, %v7729
        %v8498 = vpack.c.b16 %v7746, %v7730
        %v8499 = vpack.c.b16 %v7747, %v7731
        %v8500 = vpack.c.b16 %v7748, %v7732
        %v8501 = vpack.c.b16 %v7749, %v7733
        %v8502 = vpack.c.b16 %v7750, %v7734
        %v8503 = vpack.c.b16 %v7751, %v7735
        %v8504 = vpack.c.b16 %v7752, %v7736
        %v8505 = vpack.c.b16 %v7753, %v7737
        %v8506 = vpack.c.b16 %v7754, %v7738
        %v8507 = vpack.c.b16 %v7755, %v7739
        %v8508 = vpack.c.b16 %v7756, %v7740
        %v8509 = vpack.c.b16 %v7757, %v7741
        %v8510 = vpack.c.b16 %v7774, %v7758
        %v8511 = vpack.c.b16 %v7775, %v7759
        %v8512 = vpack.c.b16 %v7776, %v7760
        %v8513 = vpack.c.b16 %v7777, %v7761
        %v8514 = vpack.c.b16 %v7778, %v7762
        %v8515 = vpack.c.b16 %v7779, %v7763
        %v8516 = vpack.c.b16 %v7780, %v7764
        %v8517 = vpack.c.b16 %v7781, %v7765
        %v8518 = vpack.c.b16 %v7782, %v7766
        %v8519 = vpack.c.b16 %v7783, %v7767
        %v8520 = vpack.c.b16 %v7784, %v7768
        %v8521 = vpack.c.b16 %v7785, %v7769
        %v8522 = vpack.c.b16 %v7786, %v7770
        %v8523 = vpack.c.b16 %v7787, %v7771
        %v8524 = vpack.c.b16 %v7788, %v7772
        %v8525 = vpack.c.b16 %v7789, %v7773
        %v8526 = vpack.c.b16 %v7806, %v7790
        %v8527 = vpack.c.b16 %v7807, %v7791
        %v8528 = vpack.c.b16 %v7808, %v7792
        %v8529 = vpack.c.b16 %v7809, %v7793
        %v8530 = vpack.c.b16 %v7810, %v7794
        %v8531 = vpack.c.b16 %v7811, %v7795
        %v8532 = vpack.c.b16 %v7812, %v7796
        %v8533 = vpack.c.b16 %v7813, %v7797
        %v8534 = vpack.c.b16 %v7814, %v7798
        %v8535 = vpack.c.b16 %v7815, %v7799
        %v8536 = vpack.c.b16 %v7816, %v7800
        %v8537 = vpack.c.b16 %v7817, %v7801
        %v8538 = vpack.c.b16 %v7818, %v7802
        %v8539 = vpack.c.b16 %v7819, %v7803
        %v8540 = vpack.c.b16 %v7820, %v7804
        %v8541 = vpack.c.b16 %v7821, %v7805
        %v8542 = vpack.c.b16 %v7838, %v7822
        %v8543 = vpack.c.b16 %v7839, %v7823
        %v8544 = vpack.c.b16 %v7840, %v7824
        %v8545 = vpack.c.b16 %v7841, %v7825
        %v8546 = vpack.c.b16 %v7842, %v7826
        %v8547 = vpack.c.b16 %v7843, %v7827
        %v8548 = vpack.c.b16 %v7844, %v7828
        %v8549 = vpack.c.b16 %v7845, %v7829
        %v8550 = vpack.c.b16 %v7846, %v7830
        %v8551 = vpack.c.b16 %v7847, %v7831
        %v8552 = vpack.c.b16 %v7848, %v7832
        %v8553 = vpack.c.b16 %v7849, %v7833
        %v8554 = vpack.c.b16 %v7850, %v7834
        %v8555 = vpack.c.b16 %v7851, %v7835
        %v8556 = vpack.c.b16 %v7852, %v7836
        %v8557 = vpack.c.b16 %v7853, %v7837
        %v8558 = vpack.c.b16 %v7870, %v7854
        %v8559 = vpack.c.b16 %v7871, %v7855
        %v8560 = vpack.c.b16 %v7872, %v7856
        %v8561 = vpack.c.b16 %v7873, %v7857
        %v8562 = vpack.c.b16 %v7874, %v7858
        %v8563 = vpack.c.b16 %v7875, %v7859
        %v8564 = vpack.c.b16 %v7876, %v7860
        %v8565 = vpack.c.b16 %v7877, %v7861
        %v8566 = vpack.c.b16 %v7878, %v7862
        %v8567 = vpack.c.b16 %v7879, %v7863
        %v8568 = vpack.c.b16 %v7880, %v7864
        %v8569 = vpack.c.b16 %v7881, %v7865
        %v8570 = vpack.c.b16 %v7882, %v7866
        %v8571 = vpack.c.b16 %v7883, %v7867
        %v8572 = vpack.c.b16 %v7884, %v7868
        %v8573 = vpack.c.b16 %v7885, %v7869
        %v8574 = vpack.c.b16 %v7902, %v7886
        %v8575 = vpack.c.b16 %v7903, %v7887
        %v8576 = vpack.c.b16 %v7904, %v7888
        %v8577 = vpack.c.b16 %v7905, %v7889
        %v8578 = vpack.c.b16 %v7906, %v7890
        %v8579 = vpack.c.b16 %v7907, %v7891
        %v8580 = vpack.c.b16 %v7908, %v7892
        %v8581 = vpack.c.b16 %v7909, %v7893
        %v8582 = vpack.c.b16 %v7910, %v7894
        %v8583 = vpack.c.b16 %v7911, %v7895
        %v8584 = vpack.c.b16 %v7912, %v7896
        %v8585 = vpack.c.b16 %v7913, %v7897
        %v8586 = vpack.c.b16 %v7914, %v7898
        %v8587 = vpack.c.b16 %v7915, %v7899
        %v8588 = vpack.c.b16 %v7916, %v7900
        %v8589 = vpack.c.b16 %v7917, %v7901
        %v8590 = vpack.c.b16 %v7934, %v7918
        %v8591 = vpack.c.b16 %v7935, %v7919
        %v8592 = vpack.c.b16 %v7936, %v7920
        %v8593 = vpack.c.b16 %v7937, %v7921
        %v8594 = vpack.c.b16 %v7938, %v7922
        %v8595 = vpack.c.b16 %v7939, %v7923
        %v8596 = vpack.c.b16 %v7940, %v7924
        %v8597 = vpack.c.b16 %v7941, %v7925
        %v8598 = vpack.c.b16 %v7942, %v7926
        %v8599 = vpack.c.b16 %v7943, %v7927
        %v8600 = vpack.c.b16 %v7944, %v7928
        %v8601 = vpack.c.b16 %v7945, %v7929
        %v8602 = vpack.c.b16 %v7946, %v7930
        %v8603 = vpack.c.b16 %v7947, %v7931
        %v8604 = vpack.c.b16 %v7948, %v7932
        %v8605 = vpack.c.b16 %v7949, %v7933
        %v8606 = vpack.c.b16 %v7966, %v7950
        %v8607 = vpack.c.b16 %v7967, %v7951
        %v8608 = vpack.c.b16 %v7968, %v7952
        %v8609 = vpack.c.b16 %v7969, %v7953
        %v8610 = vpack.c.b16 %v7970, %v7954
        %v8611 = vpack.c.b16 %v7971, %v7955
        %v8612 = vpack.c.b16 %v7972, %v7956
        %v8613 = vpack.c.b16 %v7973, %v7957
        %v8614 = vpack.c.b16 %v7974, %v7958
        %v8615 = vpack.c.b16 %v7975, %v7959
        %v8616 = vpack.c.b16 %v7976, %v7960
        %v8617 = vpack.c.b16 %v7977, %v7961
        %v8618 = vpack.c.b16 %v7978, %v7962
        %v8619 = vpack.c.b16 %v7979, %v7963
        %v8620 = vpack.c.b16 %v7980, %v7964
        %v8621 = vpack.c.b16 %v7981, %v7965
        %v8622 = vpack.c.b16 %v7998, %v7982
        %v8623 = vpack.c.b16 %v7999, %v7983
        %v8624 = vpack.c.b16 %v8000, %v7984
        %v8625 = vpack.c.b16 %v8001, %v7985
        %v8626 = vpack.c.b16 %v8002, %v7986
        %v8627 = vpack.c.b16 %v8003, %v7987
        %v8628 = vpack.c.b16 %v8004, %v7988
        %v8629 = vpack.c.b16 %v8005, %v7989
        %v8630 = vpack.c.b16 %v8006, %v7990
        %v8631 = vpack.c.b16 %v8007, %v7991
        %v8632 = vpack.c.b16 %v8008, %v7992
        %v8633 = vpack.c.b16 %v8009, %v7993
        %v8634 = vpack.c.b16 %v8010, %v7994
        %v8635 = vpack.c.b16 %v8011, %v7995
        %v8636 = vpack.c.b16 %v8012, %v7996
        %v8637 = vpack.c.b16 %v8013, %v7997
        %v8638 = vpack.c.b16 %v8030, %v8014
        %v8639 = vpack.c.b16 %v8031, %v8015
        %v8640 = vpack.c.b16 %v8032, %v8016
        %v8641 = vpack.c.b16 %v8033, %v8017
        %v8642 = vpack.c.b16 %v8034, %v8018
        %v8643 = vpack.c.b16 %v8035, %v8019
        %v8644 = vpack.c.b16 %v8036, %v8020
        %v8645 = vpack.c.b16 %v8037, %v8021
        %v8646 = vpack.c.b16 %v8038, %v8022
        %v8647 = vpack.c.b16 %v8039, %v8023
        %v8648 = vpack.c.b16 %v8040, %v8024
        %v8649 = vpack.c.b16 %v8041, %v8025
        %v8650 = vpack.c.b16 %v8042, %v8026
        %v8651 = vpack.c.b16 %v8043, %v8027
        %v8652 = vpack.c.b16 %v8044, %v8028
        %v8653 = vpack.c.b16 %v8045, %v8029
        %v8654 = vpack.c.b16 %v8062, %v8046
        %v8655 = vpack.c.b16 %v8063, %v8047
        %v8656 = vpack.c.b16 %v8064, %v8048
        %v8657 = vpack.c.b16 %v8065, %v8049
        %v8658 = vpack.c.b16 %v8066, %v8050
        %v8659 = vpack.c.b16 %v8067, %v8051
        %v8660 = vpack.c.b16 %v8068, %v8052
        %v8661 = vpack.c.b16 %v8069, %v8053
        %v8662 = vpack.c.b16 %v8070, %v8054
        %v8663 = vpack.c.b16 %v8071, %v8055
        %v8664 = vpack.c.b16 %v8072, %v8056
        %v8665 = vpack.c.b16 %v8073, %v8057
        %v8666 = vpack.c.b16 %v8074, %v8058
        %v8667 = vpack.c.b16 %v8075, %v8059
        %v8668 = vpack.c.b16 %v8076, %v8060
        %v8669 = vpack.c.b16 %v8077, %v8061
        %v8670 = vpack.c.b16 %v8094, %v8078
        %v8671 = vpack.c.b16 %v8095, %v8079
        %v8672 = vpack.c.b16 %v8096, %v8080
        %v8673 = vpack.c.b16 %v8097, %v8081
        %v8674 = vpack.c.b16 %v8098, %v8082
        %v8675 = vpack.c.b16 %v8099, %v8083
        %v8676 = vpack.c.b16 %v8100, %v8084
        %v8677 = vpack.c.b16 %v8101, %v8085
        %v8678 = vpack.c.b16 %v8102, %v8086
        %v8679 = vpack.c.b16 %v8103, %v8087
        %v8680 = vpack.c.b16 %v8104, %v8088
        %v8681 = vpack.c.b16 %v8105, %v8089
        %v8682 = vpack.c.b16 %v8106, %v8090
        %v8683 = vpack.c.b16 %v8107, %v8091
        %v8684 = vpack.c.b16 %v8108, %v8092
        %v8685 = vpack.c.b16 %v8109, %v8093
        %v8686 = vpack.c.b16 %v8126, %v8110
        %v8687 = vpack.c.b16 %v8127, %v8111
        %v8688 = vpack.c.b16 %v8128, %v8112
        %v8689 = vpack.c.b16 %v8129, %v8113
        %v8690 = vpack.c.b16 %v8130, %v8114
        %v8691 = vpack.c.b16 %v8131, %v8115
        %v8692 = vpack.c.b16 %v8132, %v8116
        %v8693 = vpack.c.b16 %v8133, %v8117
        %v8694 = vpack.c.b16 %v8134, %v8118
        %v8695 = vpack.c.b16 %v8135, %v8119
        %v8696 = vpack.c.b16 %v8136, %v8120
        %v8697 = vpack.c.b16 %v8137, %v8121
        %v8698 = vpack.c.b16 %v8138, %v8122
        %v8699 = vpack.c.b16 %v8139, %v8123
        %v8700 = vpack.c.b16 %v8140, %v8124
        %v8701 = vpack.c.b16 %v8141, %v8125
        %v8702 = vpack.c.b16 %v8158, %v8142
        %v8703 = vpack.c.b16 %v8159, %v8143
        %v8704 = vpack.c.b16 %v8160, %v8144
        %v8705 = vpack.c.b16 %v8161, %v8145
        %v8706 = vpack.c.b16 %v8162, %v8146
        %v8707 = vpack.c.b16 %v8163, %v8147
        %v8708 = vpack.c.b16 %v8164, %v8148
        %v8709 = vpack.c.b16 %v8165, %v8149
        %v8710 = vpack.c.b16 %v8166, %v8150
        %v8711 = vpack.c.b16 %v8167, %v8151
        %v8712 = vpack.c.b16 %v8168, %v8152
        %v8713 = vpack.c.b16 %v8169, %v8153
        %v8714 = vpack.c.b16 %v8170, %v8154
        %v8715 = vpack.c.b16 %v8171, %v8155
        %v8716 = vpack.c.b16 %v8172, %v8156
        %v8717 = vpack.c.b16 %v8173, %v8157
        %v8718 = vpack.c.b16 %v8190, %v8174
        %v8719 = vpack.c.b16 %v8191, %v8175
        %v8720 = vpack.c.b16 %v8192, %v8176
        %v8721 = vpack.c.b16 %v8193, %v8177
        %v8722 = vpack.c.b16 %v8194, %v8178
        %v8723 = vpack.c.b16 %v8195, %v8179
        %v8724 = vpack.c.b16 %v8196, %v8180
        %v8725 = vpack.c.b16 %v8197, %v8181
        %v8726 = vpack.c.b16 %v8198, %v8182
        %v8727 = vpack.c.b16 %v8199, %v8183
        %v8728 = vpack.c.b16 %v8200, %v8184
        %v8729 = vpack.c.b16 %v8201, %v8185
        %v8730 = vpack.c.b16 %v8202, %v8186
        %v8731 = vpack.c.b16 %v8203, %v8187
        %v8732 = vpack.c.b16 %v8204, %v8188
        %v8733 = vpack.c.b16 %v8205, %v8189
        %v8734 = vpack.c.b16 %v8222, %v8206
        %v8735 = vpack.c.b16 %v8223, %v8207
        %v8736 = vpack.c.b16 %v8224, %v8208
        %v8737 = vpack.c.b16 %v8225, %v8209
        %v8738 = vpack.c.b16 %v8226, %v8210
        %v8739 = vpack.c.b16 %v8227, %v8211
        %v8740 = vpack.c.b16 %v8228, %v8212
        %v8741 = vpack.c.b16 %v8229, %v8213
        %v8742 = vpack.c.b16 %v8230, %v8214
        %v8743 = vpack.c.b16 %v8231, %v8215
        %v8744 = vpack.c.b16 %v8232, %v8216
        %v8745 = vpack.c.b16 %v8233, %v8217
        %v8746 = vpack.c.b16 %v8234, %v8218
        %v8747 = vpack.c.b16 %v8235, %v8219
        %v8748 = vpack.c.b16 %v8236, %v8220
        %v8749 = vpack.c.b16 %v8237, %v8221
        %9262 = vmatprep.subr.bf16.mxu0 %v8351
        %9263 = vmatpush1.bf16.msra.mxu0 %v8350
        %9264 = vmatprep.subr.bf16.mxu0 %v8335
        %9265 = vmatpush1.bf16.msra.mxu0 %v8334
        %9266 = vmatprep.subr.bf16.mxu0 %v8319
        %9267 = vmatpush1.bf16.msra.mxu0 %v8318
        %9268 = vmatprep.subr.bf16.mxu0 %v8303
        %9269 = vmatpush1.bf16.msra.mxu0 %v8302
        %9270 = vmatprep.subr.bf16.mxu0 %v8287
        %9271 = vmatpush1.bf16.msra.mxu0 %v8286
        %9272 = vmatprep.subr.bf16.mxu0 %v8271
        %9273 = vmatpush1.bf16.msra.mxu0 %v8270
        %9274 = vmatprep.subr.bf16.mxu0 %v8255
        %9275 = vmatpush1.bf16.msra.mxu0 %v8254
        %9276 = vmatprep.subr.bf16.mxu0 %v8239
        %9277 = vmatpush1.bf16.msra.mxu0 %v8238
        %9278 = vmatprep.subr.bf16.mxu0 %v8479
        %9279 = vmatpush2.bf16.msra.mxu0 %v8478
        %9280 = vmatprep.subr.bf16.mxu0 %v8463
        %9281 = vmatpush2.bf16.msra.mxu0 %v8462
        %9282 = vmatprep.subr.bf16.mxu0 %v8447
        %9283 = vmatpush2.bf16.msra.mxu0 %v8446
        %9284 = vmatprep.subr.bf16.mxu0 %v8431
        %9285 = vmatpush2.bf16.msra.mxu0 %v8430
        %9286 = vmatprep.subr.bf16.mxu0 %v8415
        %9287 = vmatpush2.bf16.msra.mxu0 %v8414
        %9288 = vmatprep.subr.bf16.mxu0 %v8399
        %9289 = vmatpush2.bf16.msra.mxu0 %v8398
        %9290 = vmatprep.subr.bf16.mxu0 %v8383
        %9291 = vmatpush2.bf16.msra.mxu0 %v8382
        %9292 = vmatprep.subr.bf16.mxu0 %v8367
        %9293 = vmatpush2.bf16.msra.mxu0 %v8366
        %9294 = vmatprep.mubr.bf16.mxu0 %v6185
        %9295 = vmatmul.mubr.bf16.gmra.mxu0 %v6184
        %v9296 = vpop.f32.mrf.mxu0
        %v9297 = vadd.f32 0.0, %v9296
        %v9298 = vpop.f32.mrf.mxu0
        %v9299 = vadd.f32 0.0, %v9298
        %v9300 = vpop.f32.mrf.mxu0
        %v9301 = vpop.f32.mrf.mxu0
        %9302 = vdwg.mxu0
        %9303 = vmatprep.subr.bf16.mxu0 %v8607
        %9304 = vmatpush1.bf16.msra.mxu0 %v8606
        %9305 = vmatprep.subr.bf16.mxu0 %v8591
        %9306 = vmatpush1.bf16.msra.mxu0 %v8590
        %9307 = vmatprep.subr.bf16.mxu0 %v8575
        %9308 = vmatpush1.bf16.msra.mxu0 %v8574
        %9309 = vmatprep.subr.bf16.mxu0 %v8559
        %9310 = vmatpush1.bf16.msra.mxu0 %v8558
        %9311 = vmatprep.subr.bf16.mxu0 %v8543
        %9312 = vmatpush1.bf16.msra.mxu0 %v8542
        %9313 = vmatprep.subr.bf16.mxu0 %v8527
        %9314 = vmatpush1.bf16.msra.mxu0 %v8526
        %9315 = vmatprep.subr.bf16.mxu0 %v8511
        %9316 = vmatpush1.bf16.msra.mxu0 %v8510
        %9317 = vmatprep.subr.bf16.mxu0 %v8495
        %9318 = vmatpush1.bf16.msra.mxu0 %v8494
        %9319 = vmatprep.subr.bf16.mxu0 %v8735
        %9320 = vmatpush2.bf16.msra.mxu0 %v8734
        %9321 = vmatprep.subr.bf16.mxu0 %v8719
        %9322 = vmatpush2.bf16.msra.mxu0 %v8718
        %9323 = vmatprep.subr.bf16.mxu0 %v8703
        %9324 = vmatpush2.bf16.msra.mxu0 %v8702
        %9325 = vmatprep.subr.bf16.mxu0 %v8687
        %9326 = vmatpush2.bf16.msra.mxu0 %v8686
        %9327 = vmatprep.subr.bf16.mxu0 %v8671
        %9328 = vmatpush2.bf16.msra.mxu0 %v8670
        %9329 = vmatprep.subr.bf16.mxu0 %v8655
        %9330 = vmatpush2.bf16.msra.mxu0 %v8654
        %9331 = vmatprep.subr.bf16.mxu0 %v8639
        %9332 = vmatpush2.bf16.msra.mxu0 %v8638
        %9333 = vmatprep.subr.bf16.mxu0 %v8623
        %9334 = vmatpush2.bf16.msra.mxu0 %v8622
        %9335 = vmatprep.mubr.bf16.mxu0 %v6187
        %9336 = vmatmul.mubr.bf16.gmra.mxu0 %v6186
        %v9337 = vpop.f32.mrf.mxu0
        %v9338 = vadd.f32 %v9297, %v9337
        %v9339 = vpop.f32.mrf.mxu0
        %v9340 = vadd.f32 %v9299, %v9339
        %v9341 = vpop.f32.mrf.mxu0
        %v9342 = vpop.f32.mrf.mxu0
        %9343 = vdwg.mxu0
        %9344 = vmatprep.subr.bf16.mxu0 %v8353
        %9345 = vmatpush1.bf16.msra.mxu0 %v8352
        %9346 = vmatprep.subr.bf16.mxu0 %v8337
        %9347 = vmatpush1.bf16.msra.mxu0 %v8336
        %9348 = vmatprep.subr.bf16.mxu0 %v8321
        %9349 = vmatpush1.bf16.msra.mxu0 %v8320
        %9350 = vmatprep.subr.bf16.mxu0 %v8305
        %9351 = vmatpush1.bf16.msra.mxu0 %v8304
        %9352 = vmatprep.subr.bf16.mxu0 %v8289
        %9353 = vmatpush1.bf16.msra.mxu0 %v8288
        %9354 = vmatprep.subr.bf16.mxu0 %v8273
        %9355 = vmatpush1.bf16.msra.mxu0 %v8272
        %9356 = vmatprep.subr.bf16.mxu0 %v8257
        %9357 = vmatpush1.bf16.msra.mxu0 %v8256
        %9358 = vmatprep.subr.bf16.mxu0 %v8241
        %9359 = vmatpush1.bf16.msra.mxu0 %v8240
        %9360 = vmatprep.subr.bf16.mxu0 %v8481
        %9361 = vmatpush2.bf16.msra.mxu0 %v8480
        %9362 = vmatprep.subr.bf16.mxu0 %v8465
        %9363 = vmatpush2.bf16.msra.mxu0 %v8464
        %9364 = vmatprep.subr.bf16.mxu0 %v8449
        %9365 = vmatpush2.bf16.msra.mxu0 %v8448
        %9366 = vmatprep.subr.bf16.mxu0 %v8433
        %9367 = vmatpush2.bf16.msra.mxu0 %v8432
        %9368 = vmatprep.subr.bf16.mxu0 %v8417
        %9369 = vmatpush2.bf16.msra.mxu0 %v8416
        %9370 = vmatprep.subr.bf16.mxu0 %v8401
        %9371 = vmatpush2.bf16.msra.mxu0 %v8400
        %9372 = vmatprep.subr.bf16.mxu0 %v8385
        %9373 = vmatpush2.bf16.msra.mxu0 %v8384
        %9374 = vmatprep.subr.bf16.mxu0 %v8369
        %9375 = vmatpush2.bf16.msra.mxu0 %v8368
        %9376 = vmatprep.mubr.bf16.mxu0 %v6185
        %9377 = vmatmul.mubr.bf16.gmra.mxu0 %v6184
        %v9378 = vpop.f32.mrf.mxu0
        %v9379 = vadd.f32 0.0, %v9378
        %v9380 = vpop.f32.mrf.mxu0
        %v9381 = vadd.f32 0.0, %v9380
        %v9382 = vpop.f32.mrf.mxu0
        %v9383 = vpop.f32.mrf.mxu0
        %9384 = vdwg.mxu0
        %9385 = vmatprep.subr.bf16.mxu0 %v8609
        %9386 = vmatpush1.bf16.msra.mxu0 %v8608
        %9387 = vmatprep.subr.bf16.mxu0 %v8593
        %9388 = vmatpush1.bf16.msra.mxu0 %v8592
        %9389 = vmatprep.subr.bf16.mxu0 %v8577
        %9390 = vmatpush1.bf16.msra.mxu0 %v8576
        %9391 = vmatprep.subr.bf16.mxu0 %v8561
        %9392 = vmatpush1.bf16.msra.mxu0 %v8560
        %9393 = vmatprep.subr.bf16.mxu0 %v8545
        %9394 = vmatpush1.bf16.msra.mxu0 %v8544
        %9395 = vmatprep.subr.bf16.mxu0 %v8529
        %9396 = vmatpush1.bf16.msra.mxu0 %v8528
        %9397 = vmatprep.subr.bf16.mxu0 %v8513
        %9398 = vmatpush1.bf16.msra.mxu0 %v8512
        %9399 = vmatprep.subr.bf16.mxu0 %v8497
        %9400 = vmatpush1.bf16.msra.mxu0 %v8496
        %9401 = vmatprep.subr.bf16.mxu0 %v8737
        %9402 = vmatpush2.bf16.msra.mxu0 %v8736
        %9403 = vmatprep.subr.bf16.mxu0 %v8721
        %9404 = vmatpush2.bf16.msra.mxu0 %v8720
        %9405 = vmatprep.subr.bf16.mxu0 %v8705
        %9406 = vmatpush2.bf16.msra.mxu0 %v8704
        %9407 = vmatprep.subr.bf16.mxu0 %v8689
        %9408 = vmatpush2.bf16.msra.mxu0 %v8688
        %9409 = vmatprep.subr.bf16.mxu0 %v8673
        %9410 = vmatpush2.bf16.msra.mxu0 %v8672
        %9411 = vmatprep.subr.bf16.mxu0 %v8657
        %9412 = vmatpush2.bf16.msra.mxu0 %v8656
        %9413 = vmatprep.subr.bf16.mxu0 %v8641
        %9414 = vmatpush2.bf16.msra.mxu0 %v8640
        %9415 = vmatprep.subr.bf16.mxu0 %v8625
        %9416 = vmatpush2.bf16.msra.mxu0 %v8624
        %9417 = vmatprep.mubr.bf16.mxu0 %v6187
        %9418 = vmatmul.mubr.bf16.gmra.mxu0 %v6186
        %v9419 = vpop.f32.mrf.mxu0
        %v9420 = vadd.f32 %v9379, %v9419
        %v9421 = vpop.f32.mrf.mxu0
        %v9422 = vadd.f32 %v9381, %v9421
        %v9423 = vpop.f32.mrf.mxu0
        %v9424 = vpop.f32.mrf.mxu0
        %9425 = vdwg.mxu0
        %9426 = vmatprep.subr.bf16.mxu0 %v8355
        %9427 = vmatpush1.bf16.msra.mxu0 %v8354
        %9428 = vmatprep.subr.bf16.mxu0 %v8339
        %9429 = vmatpush1.bf16.msra.mxu0 %v8338
        %9430 = vmatprep.subr.bf16.mxu0 %v8323
        %9431 = vmatpush1.bf16.msra.mxu0 %v8322
        %9432 = vmatprep.subr.bf16.mxu0 %v8307
        %9433 = vmatpush1.bf16.msra.mxu0 %v8306
        %9434 = vmatprep.subr.bf16.mxu0 %v8291
        %9435 = vmatpush1.bf16.msra.mxu0 %v8290
        %9436 = vmatprep.subr.bf16.mxu0 %v8275
        %9437 = vmatpush1.bf16.msra.mxu0 %v8274
        %9438 = vmatprep.subr.bf16.mxu0 %v8259
        %9439 = vmatpush1.bf16.msra.mxu0 %v8258
        %9440 = vmatprep.subr.bf16.mxu0 %v8243
        %9441 = vmatpush1.bf16.msra.mxu0 %v8242
        %9442 = vmatprep.subr.bf16.mxu0 %v8483
        %9443 = vmatpush2.bf16.msra.mxu0 %v8482
        %9444 = vmatprep.subr.bf16.mxu0 %v8467
        %9445 = vmatpush2.bf16.msra.mxu0 %v8466
        %9446 = vmatprep.subr.bf16.mxu0 %v8451
        %9447 = vmatpush2.bf16.msra.mxu0 %v8450
        %9448 = vmatprep.subr.bf16.mxu0 %v8435
        %9449 = vmatpush2.bf16.msra.mxu0 %v8434
        %9450 = vmatprep.subr.bf16.mxu0 %v8419
        %9451 = vmatpush2.bf16.msra.mxu0 %v8418
        %9452 = vmatprep.subr.bf16.mxu0 %v8403
        %9453 = vmatpush2.bf16.msra.mxu0 %v8402
        %9454 = vmatprep.subr.bf16.mxu0 %v8387
        %9455 = vmatpush2.bf16.msra.mxu0 %v8386
        %9456 = vmatprep.subr.bf16.mxu0 %v8371
        %9457 = vmatpush2.bf16.msra.mxu0 %v8370
        %9458 = vmatprep.mubr.bf16.mxu0 %v6185
        %9459 = vmatmul.mubr.bf16.gmra.mxu0 %v6184
        %v9460 = vpop.f32.mrf.mxu0
        %v9461 = vadd.f32 0.0, %v9460
        %v9462 = vpop.f32.mrf.mxu0
        %v9463 = vadd.f32 0.0, %v9462
        %v9464 = vpop.f32.mrf.mxu0
        %v9465 = vpop.f32.mrf.mxu0
        %9466 = vdwg.mxu0
        %9467 = vmatprep.subr.bf16.mxu0 %v8611
        %9468 = vmatpush1.bf16.msra.mxu0 %v8610
        %9469 = vmatprep.subr.bf16.mxu0 %v8595
        %9470 = vmatpush1.bf16.msra.mxu0 %v8594
        %9471 = vmatprep.subr.bf16.mxu0 %v8579
        %9472 = vmatpush1.bf16.msra.mxu0 %v8578
        %9473 = vmatprep.subr.bf16.mxu0 %v8563
        %9474 = vmatpush1.bf16.msra.mxu0 %v8562
        %9475 = vmatprep.subr.bf16.mxu0 %v8547
        %9476 = vmatpush1.bf16.msra.mxu0 %v8546
        %9477 = vmatprep.subr.bf16.mxu0 %v8531
        %9478 = vmatpush1.bf16.msra.mxu0 %v8530
        %9479 = vmatprep.subr.bf16.mxu0 %v8515
        %9480 = vmatpush1.bf16.msra.mxu0 %v8514
        %9481 = vmatprep.subr.bf16.mxu0 %v8499
        %9482 = vmatpush1.bf16.msra.mxu0 %v8498
        %9483 = vmatprep.subr.bf16.mxu0 %v8739
        %9484 = vmatpush2.bf16.msra.mxu0 %v8738
        %9485 = vmatprep.subr.bf16.mxu0 %v8723
        %9486 = vmatpush2.bf16.msra.mxu0 %v8722
        %9487 = vmatprep.subr.bf16.mxu0 %v8707
        %9488 = vmatpush2.bf16.msra.mxu0 %v8706
        %9489 = vmatprep.subr.bf16.mxu0 %v8691
        %9490 = vmatpush2.bf16.msra.mxu0 %v8690
        %9491 = vmatprep.subr.bf16.mxu0 %v8675
        %9492 = vmatpush2.bf16.msra.mxu0 %v8674
        %9493 = vmatprep.subr.bf16.mxu0 %v8659
        %9494 = vmatpush2.bf16.msra.mxu0 %v8658
        %9495 = vmatprep.subr.bf16.mxu0 %v8643
        %9496 = vmatpush2.bf16.msra.mxu0 %v8642
        %9497 = vmatprep.subr.bf16.mxu0 %v8627
        %9498 = vmatpush2.bf16.msra.mxu0 %v8626
        %9499 = vmatprep.mubr.bf16.mxu0 %v6187
        %9500 = vmatmul.mubr.bf16.gmra.mxu0 %v6186
        %v9501 = vpop.f32.mrf.mxu0
        %v9502 = vadd.f32 %v9461, %v9501
        %v9503 = vpop.f32.mrf.mxu0
        %v9504 = vadd.f32 %v9463, %v9503
        %v9505 = vpop.f32.mrf.mxu0
        %v9506 = vpop.f32.mrf.mxu0
        %9507 = vdwg.mxu0
        %9508 = vmatprep.subr.bf16.mxu0 %v8357
        %9509 = vmatpush1.bf16.msra.mxu0 %v8356
        %9510 = vmatprep.subr.bf16.mxu0 %v8341
        %9511 = vmatpush1.bf16.msra.mxu0 %v8340
        %9512 = vmatprep.subr.bf16.mxu0 %v8325
        %9513 = vmatpush1.bf16.msra.mxu0 %v8324
        %9514 = vmatprep.subr.bf16.mxu0 %v8309
        %9515 = vmatpush1.bf16.msra.mxu0 %v8308
        %9516 = vmatprep.subr.bf16.mxu0 %v8293
        %9517 = vmatpush1.bf16.msra.mxu0 %v8292
        %9518 = vmatprep.subr.bf16.mxu0 %v8277
        %9519 = vmatpush1.bf16.msra.mxu0 %v8276
        %9520 = vmatprep.subr.bf16.mxu0 %v8261
        %9521 = vmatpush1.bf16.msra.mxu0 %v8260
        %9522 = vmatprep.subr.bf16.mxu0 %v8245
        %9523 = vmatpush1.bf16.msra.mxu0 %v8244
        %9524 = vmatprep.subr.bf16.mxu0 %v8485
        %9525 = vmatpush2.bf16.msra.mxu0 %v8484
        %9526 = vmatprep.subr.bf16.mxu0 %v8469
        %9527 = vmatpush2.bf16.msra.mxu0 %v8468
        %9528 = vmatprep.subr.bf16.mxu0 %v8453
        %9529 = vmatpush2.bf16.msra.mxu0 %v8452
        %9530 = vmatprep.subr.bf16.mxu0 %v8437
        %9531 = vmatpush2.bf16.msra.mxu0 %v8436
        %9532 = vmatprep.subr.bf16.mxu0 %v8421
        %9533 = vmatpush2.bf16.msra.mxu0 %v8420
        %9534 = vmatprep.subr.bf16.mxu0 %v8405
        %9535 = vmatpush2.bf16.msra.mxu0 %v8404
        %9536 = vmatprep.subr.bf16.mxu0 %v8389
        %9537 = vmatpush2.bf16.msra.mxu0 %v8388
        %9538 = vmatprep.subr.bf16.mxu0 %v8373
        %9539 = vmatpush2.bf16.msra.mxu0 %v8372
        %9540 = vmatprep.mubr.bf16.mxu0 %v6185
        %9541 = vmatmul.mubr.bf16.gmra.mxu0 %v6184
        %v9542 = vpop.f32.mrf.mxu0
        %v9543 = vadd.f32 0.0, %v9542
        %v9544 = vpop.f32.mrf.mxu0
        %v9545 = vadd.f32 0.0, %v9544
        %v9546 = vpop.f32.mrf.mxu0
        %v9547 = vpop.f32.mrf.mxu0
        %9548 = vdwg.mxu0
        %9549 = vmatprep.subr.bf16.mxu0 %v8613
        %9550 = vmatpush1.bf16.msra.mxu0 %v8612
        %9551 = vmatprep.subr.bf16.mxu0 %v8597
        %9552 = vmatpush1.bf16.msra.mxu0 %v8596
        %9553 = vmatprep.subr.bf16.mxu0 %v8581
        %9554 = vmatpush1.bf16.msra.mxu0 %v8580
        %9555 = vmatprep.subr.bf16.mxu0 %v8565
        %9556 = vmatpush1.bf16.msra.mxu0 %v8564
        %9557 = vmatprep.subr.bf16.mxu0 %v8549
        %9558 = vmatpush1.bf16.msra.mxu0 %v8548
        %9559 = vmatprep.subr.bf16.mxu0 %v8533
        %9560 = vmatpush1.bf16.msra.mxu0 %v8532
        %9561 = vmatprep.subr.bf16.mxu0 %v8517
        %9562 = vmatpush1.bf16.msra.mxu0 %v8516
        %9563 = vmatprep.subr.bf16.mxu0 %v8501
        %9564 = vmatpush1.bf16.msra.mxu0 %v8500
        %9565 = vmatprep.subr.bf16.mxu0 %v8741
        %9566 = vmatpush2.bf16.msra.mxu0 %v8740
        %9567 = vmatprep.subr.bf16.mxu0 %v8725
        %9568 = vmatpush2.bf16.msra.mxu0 %v8724
        %9569 = vmatprep.subr.bf16.mxu0 %v8709
        %9570 = vmatpush2.bf16.msra.mxu0 %v8708
        %9571 = vmatprep.subr.bf16.mxu0 %v8693
        %9572 = vmatpush2.bf16.msra.mxu0 %v8692
        %9573 = vmatprep.subr.bf16.mxu0 %v8677
        %9574 = vmatpush2.bf16.msra.mxu0 %v8676
        %9575 = vmatprep.subr.bf16.mxu0 %v8661
        %9576 = vmatpush2.bf16.msra.mxu0 %v8660
        %9577 = vmatprep.subr.bf16.mxu0 %v8645
        %9578 = vmatpush2.bf16.msra.mxu0 %v8644
        %9579 = vmatprep.subr.bf16.mxu0 %v8629
        %9580 = vmatpush2.bf16.msra.mxu0 %v8628
        %9581 = vmatprep.mubr.bf16.mxu0 %v6187
        %9582 = vmatmul.mubr.bf16.gmra.mxu0 %v6186
        %v9583 = vpop.f32.mrf.mxu0
        %v9584 = vadd.f32 %v9543, %v9583
        %v9585 = vpop.f32.mrf.mxu0
        %v9586 = vadd.f32 %v9545, %v9585
        %v9587 = vpop.f32.mrf.mxu0
        %v9588 = vpop.f32.mrf.mxu0
        %9589 = vdwg.mxu0
        %9590 = vmatprep.subr.bf16.mxu0 %v8359
        %9591 = vmatpush1.bf16.msra.mxu0 %v8358
        %9592 = vmatprep.subr.bf16.mxu0 %v8343
        %9593 = vmatpush1.bf16.msra.mxu0 %v8342
        %9594 = vmatprep.subr.bf16.mxu0 %v8327
        %9595 = vmatpush1.bf16.msra.mxu0 %v8326
        %9596 = vmatprep.subr.bf16.mxu0 %v8311
        %9597 = vmatpush1.bf16.msra.mxu0 %v8310
        %9598 = vmatprep.subr.bf16.mxu0 %v8295
        %9599 = vmatpush1.bf16.msra.mxu0 %v8294
        %9600 = vmatprep.subr.bf16.mxu0 %v8279
        %9601 = vmatpush1.bf16.msra.mxu0 %v8278
        %9602 = vmatprep.subr.bf16.mxu0 %v8263
        %9603 = vmatpush1.bf16.msra.mxu0 %v8262
        %9604 = vmatprep.subr.bf16.mxu0 %v8247
        %9605 = vmatpush1.bf16.msra.mxu0 %v8246
        %9606 = vmatprep.subr.bf16.mxu0 %v8487
        %9607 = vmatpush2.bf16.msra.mxu0 %v8486
        %9608 = vmatprep.subr.bf16.mxu0 %v8471
        %9609 = vmatpush2.bf16.msra.mxu0 %v8470
        %9610 = vmatprep.subr.bf16.mxu0 %v8455
        %9611 = vmatpush2.bf16.msra.mxu0 %v8454
        %9612 = vmatprep.subr.bf16.mxu0 %v8439
        %9613 = vmatpush2.bf16.msra.mxu0 %v8438
        %9614 = vmatprep.subr.bf16.mxu0 %v8423
        %9615 = vmatpush2.bf16.msra.mxu0 %v8422
        %9616 = vmatprep.subr.bf16.mxu0 %v8407
        %9617 = vmatpush2.bf16.msra.mxu0 %v8406
        %9618 = vmatprep.subr.bf16.mxu0 %v8391
        %9619 = vmatpush2.bf16.msra.mxu0 %v8390
        %9620 = vmatprep.subr.bf16.mxu0 %v8375
        %9621 = vmatpush2.bf16.msra.mxu0 %v8374
        %9622 = vmatprep.mubr.bf16.mxu0 %v6185
        %9623 = vmatmul.mubr.bf16.gmra.mxu0 %v6184
        %v9624 = vpop.f32.mrf.mxu0
        %v9625 = vadd.f32 0.0, %v9624
        %v9626 = vpop.f32.mrf.mxu0
        %v9627 = vadd.f32 0.0, %v9626
        %v9628 = vpop.f32.mrf.mxu0
        %v9629 = vpop.f32.mrf.mxu0
        %9630 = vdwg.mxu0
        %9631 = vmatprep.subr.bf16.mxu0 %v8615
        %9632 = vmatpush1.bf16.msra.mxu0 %v8614
        %9633 = vmatprep.subr.bf16.mxu0 %v8599
        %9634 = vmatpush1.bf16.msra.mxu0 %v8598
        %9635 = vmatprep.subr.bf16.mxu0 %v8583
        %9636 = vmatpush1.bf16.msra.mxu0 %v8582
        %9637 = vmatprep.subr.bf16.mxu0 %v8567
        %9638 = vmatpush1.bf16.msra.mxu0 %v8566
        %9639 = vmatprep.subr.bf16.mxu0 %v8551
        %9640 = vmatpush1.bf16.msra.mxu0 %v8550
        %9641 = vmatprep.subr.bf16.mxu0 %v8535
        %9642 = vmatpush1.bf16.msra.mxu0 %v8534
        %9643 = vmatprep.subr.bf16.mxu0 %v8519
        %9644 = vmatpush1.bf16.msra.mxu0 %v8518
        %9645 = vmatprep.subr.bf16.mxu0 %v8503
        %9646 = vmatpush1.bf16.msra.mxu0 %v8502
        %9647 = vmatprep.subr.bf16.mxu0 %v8743
        %9648 = vmatpush2.bf16.msra.mxu0 %v8742
        %9649 = vmatprep.subr.bf16.mxu0 %v8727
        %9650 = vmatpush2.bf16.msra.mxu0 %v8726
        %9651 = vmatprep.subr.bf16.mxu0 %v8711
        %9652 = vmatpush2.bf16.msra.mxu0 %v8710
        %9653 = vmatprep.subr.bf16.mxu0 %v8695
        %9654 = vmatpush2.bf16.msra.mxu0 %v8694
        %9655 = vmatprep.subr.bf16.mxu0 %v8679
        %9656 = vmatpush2.bf16.msra.mxu0 %v8678
        %9657 = vmatprep.subr.bf16.mxu0 %v8663
        %9658 = vmatpush2.bf16.msra.mxu0 %v8662
        %9659 = vmatprep.subr.bf16.mxu0 %v8647
        %9660 = vmatpush2.bf16.msra.mxu0 %v8646
        %9661 = vmatprep.subr.bf16.mxu0 %v8631
        %9662 = vmatpush2.bf16.msra.mxu0 %v8630
        %9663 = vmatprep.mubr.bf16.mxu0 %v6187
        %9664 = vmatmul.mubr.bf16.gmra.mxu0 %v6186
        %v9665 = vpop.f32.mrf.mxu0
        %v9666 = vadd.f32 %v9625, %v9665
        %v9667 = vpop.f32.mrf.mxu0
        %v9668 = vadd.f32 %v9627, %v9667
        %v9669 = vpop.f32.mrf.mxu0
        %v9670 = vpop.f32.mrf.mxu0
        %9671 = vdwg.mxu0
        %9672 = vmatprep.subr.bf16.mxu0 %v8361
        %9673 = vmatpush1.bf16.msra.mxu0 %v8360
        %9674 = vmatprep.subr.bf16.mxu0 %v8345
        %9675 = vmatpush1.bf16.msra.mxu0 %v8344
        %9676 = vmatprep.subr.bf16.mxu0 %v8329
        %9677 = vmatpush1.bf16.msra.mxu0 %v8328
        %9678 = vmatprep.subr.bf16.mxu0 %v8313
        %9679 = vmatpush1.bf16.msra.mxu0 %v8312
        %9680 = vmatprep.subr.bf16.mxu0 %v8297
        %9681 = vmatpush1.bf16.msra.mxu0 %v8296
        %9682 = vmatprep.subr.bf16.mxu0 %v8281
        %9683 = vmatpush1.bf16.msra.mxu0 %v8280
        %9684 = vmatprep.subr.bf16.mxu0 %v8265
        %9685 = vmatpush1.bf16.msra.mxu0 %v8264
        %9686 = vmatprep.subr.bf16.mxu0 %v8249
        %9687 = vmatpush1.bf16.msra.mxu0 %v8248
        %9688 = vmatprep.subr.bf16.mxu0 %v8489
        %9689 = vmatpush2.bf16.msra.mxu0 %v8488
        %9690 = vmatprep.subr.bf16.mxu0 %v8473
        %9691 = vmatpush2.bf16.msra.mxu0 %v8472
        %9692 = vmatprep.subr.bf16.mxu0 %v8457
        %9693 = vmatpush2.bf16.msra.mxu0 %v8456
        %9694 = vmatprep.subr.bf16.mxu0 %v8441
        %9695 = vmatpush2.bf16.msra.mxu0 %v8440
        %9696 = vmatprep.subr.bf16.mxu0 %v8425
        %9697 = vmatpush2.bf16.msra.mxu0 %v8424
        %9698 = vmatprep.subr.bf16.mxu0 %v8409
        %9699 = vmatpush2.bf16.msra.mxu0 %v8408
        %9700 = vmatprep.subr.bf16.mxu0 %v8393
        %9701 = vmatpush2.bf16.msra.mxu0 %v8392
        %9702 = vmatprep.subr.bf16.mxu0 %v8377
        %9703 = vmatpush2.bf16.msra.mxu0 %v8376
        %9704 = vmatprep.mubr.bf16.mxu0 %v6185
        %9705 = vmatmul.mubr.bf16.gmra.mxu0 %v6184
        %v9706 = vpop.f32.mrf.mxu0
        %v9707 = vadd.f32 0.0, %v9706
        %v9708 = vpop.f32.mrf.mxu0
        %v9709 = vadd.f32 0.0, %v9708
        %v9710 = vpop.f32.mrf.mxu0
        %v9711 = vpop.f32.mrf.mxu0
        %9712 = vdwg.mxu0
        %9713 = vmatprep.subr.bf16.mxu0 %v8617
        %9714 = vmatpush1.bf16.msra.mxu0 %v8616
        %9715 = vmatprep.subr.bf16.mxu0 %v8601
        %9716 = vmatpush1.bf16.msra.mxu0 %v8600
        %9717 = vmatprep.subr.bf16.mxu0 %v8585
        %9718 = vmatpush1.bf16.msra.mxu0 %v8584
        %9719 = vmatprep.subr.bf16.mxu0 %v8569
        %9720 = vmatpush1.bf16.msra.mxu0 %v8568
        %9721 = vmatprep.subr.bf16.mxu0 %v8553
        %9722 = vmatpush1.bf16.msra.mxu0 %v8552
        %9723 = vmatprep.subr.bf16.mxu0 %v8537
        %9724 = vmatpush1.bf16.msra.mxu0 %v8536
        %9725 = vmatprep.subr.bf16.mxu0 %v8521
        %9726 = vmatpush1.bf16.msra.mxu0 %v8520
        %9727 = vmatprep.subr.bf16.mxu0 %v8505
        %9728 = vmatpush1.bf16.msra.mxu0 %v8504
        %9729 = vmatprep.subr.bf16.mxu0 %v8745
        %9730 = vmatpush2.bf16.msra.mxu0 %v8744
        %9731 = vmatprep.subr.bf16.mxu0 %v8729
        %9732 = vmatpush2.bf16.msra.mxu0 %v8728
        %9733 = vmatprep.subr.bf16.mxu0 %v8713
        %9734 = vmatpush2.bf16.msra.mxu0 %v8712
        %9735 = vmatprep.subr.bf16.mxu0 %v8697
        %9736 = vmatpush2.bf16.msra.mxu0 %v8696
        %9737 = vmatprep.subr.bf16.mxu0 %v8681
        %9738 = vmatpush2.bf16.msra.mxu0 %v8680
        %9739 = vmatprep.subr.bf16.mxu0 %v8665
        %9740 = vmatpush2.bf16.msra.mxu0 %v8664
        %9741 = vmatprep.subr.bf16.mxu0 %v8649
        %9742 = vmatpush2.bf16.msra.mxu0 %v8648
        %9743 = vmatprep.subr.bf16.mxu0 %v8633
        %9744 = vmatpush2.bf16.msra.mxu0 %v8632
        %9745 = vmatprep.mubr.bf16.mxu0 %v6187
        %9746 = vmatmul.mubr.bf16.gmra.mxu0 %v6186
        %v9747 = vpop.f32.mrf.mxu0
        %v9748 = vadd.f32 %v9707, %v9747
        %v9749 = vpop.f32.mrf.mxu0
        %v9750 = vadd.f32 %v9709, %v9749
        %v9751 = vpop.f32.mrf.mxu0
        %v9752 = vpop.f32.mrf.mxu0
        %9753 = vdwg.mxu0
        %9754 = vmatprep.subr.bf16.mxu0 %v8363
        %9755 = vmatpush1.bf16.msra.mxu0 %v8362
        %9756 = vmatprep.subr.bf16.mxu0 %v8347
        %9757 = vmatpush1.bf16.msra.mxu0 %v8346
        %9758 = vmatprep.subr.bf16.mxu0 %v8331
        %9759 = vmatpush1.bf16.msra.mxu0 %v8330
        %9760 = vmatprep.subr.bf16.mxu0 %v8315
        %9761 = vmatpush1.bf16.msra.mxu0 %v8314
        %9762 = vmatprep.subr.bf16.mxu0 %v8299
        %9763 = vmatpush1.bf16.msra.mxu0 %v8298
        %9764 = vmatprep.subr.bf16.mxu0 %v8283
        %9765 = vmatpush1.bf16.msra.mxu0 %v8282
        %9766 = vmatprep.subr.bf16.mxu0 %v8267
        %9767 = vmatpush1.bf16.msra.mxu0 %v8266
        %9768 = vmatprep.subr.bf16.mxu0 %v8251
        %9769 = vmatpush1.bf16.msra.mxu0 %v8250
        %9770 = vmatprep.subr.bf16.mxu0 %v8491
        %9771 = vmatpush2.bf16.msra.mxu0 %v8490
        %9772 = vmatprep.subr.bf16.mxu0 %v8475
        %9773 = vmatpush2.bf16.msra.mxu0 %v8474
        %9774 = vmatprep.subr.bf16.mxu0 %v8459
        %9775 = vmatpush2.bf16.msra.mxu0 %v8458
        %9776 = vmatprep.subr.bf16.mxu0 %v8443
        %9777 = vmatpush2.bf16.msra.mxu0 %v8442
        %9778 = vmatprep.subr.bf16.mxu0 %v8427
        %9779 = vmatpush2.bf16.msra.mxu0 %v8426
        %9780 = vmatprep.subr.bf16.mxu0 %v8411
        %9781 = vmatpush2.bf16.msra.mxu0 %v8410
        %9782 = vmatprep.subr.bf16.mxu0 %v8395
        %9783 = vmatpush2.bf16.msra.mxu0 %v8394
        %9784 = vmatprep.subr.bf16.mxu0 %v8379
        %9785 = vmatpush2.bf16.msra.mxu0 %v8378
        %9786 = vmatprep.mubr.bf16.mxu0 %v6185
        %9787 = vmatmul.mubr.bf16.gmra.mxu0 %v6184
        %v9788 = vpop.f32.mrf.mxu0
        %v9789 = vadd.f32 0.0, %v9788
        %v9790 = vpop.f32.mrf.mxu0
        %v9791 = vadd.f32 0.0, %v9790
        %v9792 = vpop.f32.mrf.mxu0
        %v9793 = vpop.f32.mrf.mxu0
        %9794 = vdwg.mxu0
        %9795 = vmatprep.subr.bf16.mxu0 %v8619
        %9796 = vmatpush1.bf16.msra.mxu0 %v8618
        %9797 = vmatprep.subr.bf16.mxu0 %v8603
        %9798 = vmatpush1.bf16.msra.mxu0 %v8602
        %9799 = vmatprep.subr.bf16.mxu0 %v8587
        %9800 = vmatpush1.bf16.msra.mxu0 %v8586
        %9801 = vmatprep.subr.bf16.mxu0 %v8571
        %9802 = vmatpush1.bf16.msra.mxu0 %v8570
        %9803 = vmatprep.subr.bf16.mxu0 %v8555
        %9804 = vmatpush1.bf16.msra.mxu0 %v8554
        %9805 = vmatprep.subr.bf16.mxu0 %v8539
        %9806 = vmatpush1.bf16.msra.mxu0 %v8538
        %9807 = vmatprep.subr.bf16.mxu0 %v8523
        %9808 = vmatpush1.bf16.msra.mxu0 %v8522
        %9809 = vmatprep.subr.bf16.mxu0 %v8507
        %9810 = vmatpush1.bf16.msra.mxu0 %v8506
        %9811 = vmatprep.subr.bf16.mxu0 %v8747
        %9812 = vmatpush2.bf16.msra.mxu0 %v8746
        %9813 = vmatprep.subr.bf16.mxu0 %v8731
        %9814 = vmatpush2.bf16.msra.mxu0 %v8730
        %9815 = vmatprep.subr.bf16.mxu0 %v8715
        %9816 = vmatpush2.bf16.msra.mxu0 %v8714
        %9817 = vmatprep.subr.bf16.mxu0 %v8699
        %9818 = vmatpush2.bf16.msra.mxu0 %v8698
        %9819 = vmatprep.subr.bf16.mxu0 %v8683
        %9820 = vmatpush2.bf16.msra.mxu0 %v8682
        %9821 = vmatprep.subr.bf16.mxu0 %v8667
        %9822 = vmatpush2.bf16.msra.mxu0 %v8666
        %9823 = vmatprep.subr.bf16.mxu0 %v8651
        %9824 = vmatpush2.bf16.msra.mxu0 %v8650
        %9825 = vmatprep.subr.bf16.mxu0 %v8635
        %9826 = vmatpush2.bf16.msra.mxu0 %v8634
        %9827 = vmatprep.mubr.bf16.mxu0 %v6187
        %9828 = vmatmul.mubr.bf16.gmra.mxu0 %v6186
        %v9829 = vpop.f32.mrf.mxu0
        %v9830 = vadd.f32 %v9789, %v9829
        %v9831 = vpop.f32.mrf.mxu0
        %v9832 = vadd.f32 %v9791, %v9831
        %v9833 = vpop.f32.mrf.mxu0
        %v9834 = vpop.f32.mrf.mxu0
        %9835 = vdwg.mxu0
        %9836 = vmatprep.subr.bf16.mxu0 %v8365
        %9837 = vmatpush1.bf16.msra.mxu0 %v8364
        %9838 = vmatprep.subr.bf16.mxu0 %v8349
        %9839 = vmatpush1.bf16.msra.mxu0 %v8348
        %9840 = vmatprep.subr.bf16.mxu0 %v8333
        %9841 = vmatpush1.bf16.msra.mxu0 %v8332
        %9842 = vmatprep.subr.bf16.mxu0 %v8317
        %9843 = vmatpush1.bf16.msra.mxu0 %v8316
        %9844 = vmatprep.subr.bf16.mxu0 %v8301
        %9845 = vmatpush1.bf16.msra.mxu0 %v8300
        %9846 = vmatprep.subr.bf16.mxu0 %v8285
        %9847 = vmatpush1.bf16.msra.mxu0 %v8284
        %9848 = vmatprep.subr.bf16.mxu0 %v8269
        %9849 = vmatpush1.bf16.msra.mxu0 %v8268
        %9850 = vmatprep.subr.bf16.mxu0 %v8253
        %9851 = vmatpush1.bf16.msra.mxu0 %v8252
        %9852 = vmatprep.subr.bf16.mxu0 %v8493
        %9853 = vmatpush2.bf16.msra.mxu0 %v8492
        %9854 = vmatprep.subr.bf16.mxu0 %v8477
        %9855 = vmatpush2.bf16.msra.mxu0 %v8476
        %9856 = vmatprep.subr.bf16.mxu0 %v8461
        %9857 = vmatpush2.bf16.msra.mxu0 %v8460
        %9858 = vmatprep.subr.bf16.mxu0 %v8445
        %9859 = vmatpush2.bf16.msra.mxu0 %v8444
        %9860 = vmatprep.subr.bf16.mxu0 %v8429
        %9861 = vmatpush2.bf16.msra.mxu0 %v8428
        %9862 = vmatprep.subr.bf16.mxu0 %v8413
        %9863 = vmatpush2.bf16.msra.mxu0 %v8412
        %9864 = vmatprep.subr.bf16.mxu0 %v8397
        %9865 = vmatpush2.bf16.msra.mxu0 %v8396
        %9866 = vmatprep.subr.bf16.mxu0 %v8381
        %9867 = vmatpush2.bf16.msra.mxu0 %v8380
        %9868 = vmatprep.mubr.bf16.mxu0 %v6185
        %9869 = vmatmul.mubr.bf16.gmra.mxu0 %v6184
        %v9870 = vpop.f32.mrf.mxu0
        %v9871 = vadd.f32 0.0, %v9870
        %v9872 = vpop.f32.mrf.mxu0
        %v9873 = vadd.f32 0.0, %v9872
        %v9874 = vpop.f32.mrf.mxu0
        %v9875 = vpop.f32.mrf.mxu0
        %9876 = vdwg.mxu0
        %9877 = vmatprep.subr.bf16.mxu0 %v8621
        %9878 = vmatpush1.bf16.msra.mxu0 %v8620
        %9879 = vmatprep.subr.bf16.mxu0 %v8605
        %9880 = vmatpush1.bf16.msra.mxu0 %v8604
        %9881 = vmatprep.subr.bf16.mxu0 %v8589
        %9882 = vmatpush1.bf16.msra.mxu0 %v8588
        %9883 = vmatprep.subr.bf16.mxu0 %v8573
        %9884 = vmatpush1.bf16.msra.mxu0 %v8572
        %9885 = vmatprep.subr.bf16.mxu0 %v8557
        %9886 = vmatpush1.bf16.msra.mxu0 %v8556
        %9887 = vmatprep.subr.bf16.mxu0 %v8541
        %9888 = vmatpush1.bf16.msra.mxu0 %v8540
        %9889 = vmatprep.subr.bf16.mxu0 %v8525
        %9890 = vmatpush1.bf16.msra.mxu0 %v8524
        %9891 = vmatprep.subr.bf16.mxu0 %v8509
        %9892 = vmatpush1.bf16.msra.mxu0 %v8508
        %9893 = vmatprep.subr.bf16.mxu0 %v8749
        %9894 = vmatpush2.bf16.msra.mxu0 %v8748
        %9895 = vmatprep.subr.bf16.mxu0 %v8733
        %9896 = vmatpush2.bf16.msra.mxu0 %v8732
        %9897 = vmatprep.subr.bf16.mxu0 %v8717
        %9898 = vmatpush2.bf16.msra.mxu0 %v8716
        %9899 = vmatprep.subr.bf16.mxu0 %v8701
        %9900 = vmatpush2.bf16.msra.mxu0 %v8700
        %9901 = vmatprep.subr.bf16.mxu0 %v8685
        %9902 = vmatpush2.bf16.msra.mxu0 %v8684
        %9903 = vmatprep.subr.bf16.mxu0 %v8669
        %9904 = vmatpush2.bf16.msra.mxu0 %v8668
        %9905 = vmatprep.subr.bf16.mxu0 %v8653
        %9906 = vmatpush2.bf16.msra.mxu0 %v8652
        %9907 = vmatprep.subr.bf16.mxu0 %v8637
        %9908 = vmatpush2.bf16.msra.mxu0 %v8636
        %9909 = vmatprep.mubr.bf16.mxu0 %v6187
        %9910 = vmatmul.mubr.bf16.gmra.mxu0 %v6186
        %v9911 = vpop.f32.mrf.mxu0
        %v9912 = vadd.f32 %v9871, %v9911
        %v9913 = vpop.f32.mrf.mxu0
        %v9914 = vadd.f32 %v9873, %v9913
        %v9915 = vpop.f32.mrf.mxu0
        %v9916 = vpop.f32.mrf.mxu0
        %9917 = vdwg.mxu0
        %v9934 = vcombine.low %v9338, %v9340
        %v9935 = vcombine.low %v9420, %v9422
        %v9936 = vcombine.low %v9502, %v9504
        %v9937 = vcombine.low %v9584, %v9586
        %v9939 = vunpack.c.l.s4 1966171168
        %v9940 = vunpack.c.0.s8 %v9939
        %v9941 = vlaneseq
        %v9942 = vshrl.u32 %v9941, 7
        %v9943 = vsub.s32 %v9940, %v9942
        %v9944 = vrot.slane %v9934, %v9943
        %v9946 = vunpack.c.l.s4 1966171168
        %v9947 = vunpack.c.0.s8 %v9946
        %v9948 = vlaneseq
        %v9949 = vshrl.u32 %v9948, 7
        %v9950 = vsub.s32 %v9947, %v9949
        %v9951 = vrot.slane %v9935, %v9950
        %v9953 = vunpack.c.l.s4 1966171168
        %v9954 = vunpack.c.0.s8 %v9953
        %v9955 = vlaneseq
        %v9956 = vshrl.u32 %v9955, 7
        %v9957 = vsub.s32 %v9954, %v9956
        %v9958 = vrot.slane %v9936, %v9957
        %v9960 = vunpack.c.l.s4 1966171168
        %v9961 = vunpack.c.0.s8 %v9960
        %v9962 = vlaneseq
        %v9963 = vshrl.u32 %v9962, 7
        %v9964 = vsub.s32 %v9961, %v9963
        %v9965 = vrot.slane %v9937, %v9964
        %v9966 = vcombine.low %v9944, %v9951
        %v9967 = vcombine.low %v9958, %v9965
        %v9969 = vunpack.c.l.s4 1966171168
        %v9970 = vunpack.c.0.s8 %v9969
        %v9971 = vlaneseq
        %v9972 = vshrl.u32 %v9971, 7
        %v9973 = vsub.s32 %v9970, %v9972
        %v9974 = vrot.slane %v9966, %v9973
        %v9976 = vunpack.c.l.s4 1966171168
        %v9977 = vunpack.c.0.s8 %v9976
        %v9978 = vlaneseq
        %v9979 = vshrl.u32 %v9978, 7
        %v9980 = vsub.s32 %v9977, %v9979
        %v9981 = vrot.slane %v9967, %v9980
        %v9982 = vcombine.low %v9974, %v9981
        %v9983 = vcombine.low %v9666, %v9668
        %v9984 = vcombine.low %v9748, %v9750
        %v9985 = vcombine.low %v9830, %v9832
        %v9986 = vcombine.low %v9912, %v9914
        %v9988 = vunpack.c.l.s4 1966171168
        %v9989 = vunpack.c.0.s8 %v9988
        %v9990 = vlaneseq
        %v9991 = vshrl.u32 %v9990, 7
        %v9992 = vsub.s32 %v9989, %v9991
        %v9993 = vrot.slane %v9983, %v9992
        %v9995 = vunpack.c.l.s4 1966171168
        %v9996 = vunpack.c.0.s8 %v9995
        %v9997 = vlaneseq
        %v9998 = vshrl.u32 %v9997, 7
        %v9999 = vsub.s32 %v9996, %v9998
        %v10000 = vrot.slane %v9984, %v9999
        %v10002 = vunpack.c.l.s4 1966171168
        %v10003 = vunpack.c.0.s8 %v10002
        %v10004 = vlaneseq
        %v10005 = vshrl.u32 %v10004, 7
        %v10006 = vsub.s32 %v10003, %v10005
        %v10007 = vrot.slane %v9985, %v10006
        %v10009 = vunpack.c.l.s4 1966171168
        %v10010 = vunpack.c.0.s8 %v10009
        %v10011 = vlaneseq
        %v10012 = vshrl.u32 %v10011, 7
        %v10013 = vsub.s32 %v10010, %v10012
        %v10014 = vrot.slane %v9986, %v10013
        %v10015 = vcombine.low %v9993, %v10000
        %v10016 = vcombine.low %v10007, %v10014
        %v10018 = vunpack.c.l.s4 1966171168
        %v10019 = vunpack.c.0.s8 %v10018
        %v10020 = vlaneseq
        %v10021 = vshrl.u32 %v10020, 7
        %v10022 = vsub.s32 %v10019, %v10021
        %v10023 = vrot.slane %v10015, %v10022
        %v10025 = vunpack.c.l.s4 1966171168
        %v10026 = vunpack.c.0.s8 %v10025
        %v10027 = vlaneseq
        %v10028 = vshrl.u32 %v10027, 7
        %v10029 = vsub.s32 %v10026, %v10028
        %v10030 = vrot.slane %v10016, %v10029
        %v10031 = vcombine.low %v10023, %v10030
        %v10034 = vadd.f32 %v6188, %v9982
        %v10035 = vadd.f32 %v6189, %v10031
        %10036 = vst [vmem:[#allocation2] sm:$0xff] %v10034
        %v10037 = vlaneseq
        %vm10038 = vcmp.ge.s32.totalorder %v10037, 0
        %vm10039 = vcmp.lt.s32.totalorder %v10037, 976
        %vm10040 = vmand %vm10038, %vm10039
        %10041 = vst.msk [vmem:[#allocation2 + $0x8] sm:$0xff] %vm10040, %v10035
        // Predicated region
        $region61: #{model_forward.1} parent=55 // pred_check
          %p10042 = pneg %p379
        $region62: #{model_forward.1} parent=55 // pred_check_branch
          %10044 = sbr.rel (%p10042) target = $region64
        $region63: #{model_forward.1} parent=55 // pred_region
          %v10045 = vld [vmem:[#allocation2] sm:$0xff]
          %v10046 = vld [vmem:[#allocation2 + $0x8] sm:$0xff]
          %v10047 = vld [vmem:[%s4] sm:$0xff]
          %v10048 = vld [vmem:[%s4 + $0x8] sm:$0xff]
          %v10049 = vadd.f32 %v10045, %v10047
          %v10050 = vadd.f32 %v10046, %v10048
          %v10051 = vmax.f32 %v10049, 0.0
          %v10052 = vmax.f32 %v10050, 0.0
          %v10055 = vlaneseq
          %v10056 = vshrl.u32 %v10055, 7
          %v10057 = vsub.s32 0, %v10056
          %v10058 = vrot.slane %v10051, %v10057
          %v10059 = vlaneseq
          %v10060 = vshrl.u32 %v10059, 7
          %v10061 = vsub.s32 1, %v10060
          %v10062 = vrot.slane %v10051, %v10061
          %v10063 = vlaneseq
          %v10064 = vshrl.u32 %v10063, 7
          %v10065 = vsub.s32 2, %v10064
          %v10066 = vrot.slane %v10051, %v10065
          %v10067 = vlaneseq
          %v10068 = vshrl.u32 %v10067, 7
          %v10069 = vsub.s32 3, %v10068
          %v10070 = vrot.slane %v10051, %v10069
          %v10071 = vlaneseq
          %v10072 = vshrl.u32 %v10071, 7
          %v10073 = vsub.s32 4, %v10072
          %v10074 = vrot.slane %v10051, %v10073
          %v10075 = vlaneseq
          %v10076 = vshrl.u32 %v10075, 7
          %v10077 = vsub.s32 5, %v10076
          %v10078 = vrot.slane %v10051, %v10077
          %v10079 = vlaneseq
          %v10080 = vshrl.u32 %v10079, 7
          %v10081 = vsub.s32 6, %v10080
          %v10082 = vrot.slane %v10051, %v10081
          %v10083 = vlaneseq
          %v10084 = vshrl.u32 %v10083, 7
          %v10085 = vsub.s32 7, %v10084
          %v10086 = vrot.slane %v10051, %v10085
          %v10087 = vlaneseq
          %v10088 = vshrl.u32 %v10087, 7
          %v10089 = vsub.s32 0, %v10088
          %v10090 = vrot.slane %v10052, %v10089
          %v10091 = vlaneseq
          %v10092 = vshrl.u32 %v10091, 7
          %v10093 = vsub.s32 1, %v10092
          %v10094 = vrot.slane %v10052, %v10093
          %v10095 = vlaneseq
          %v10096 = vshrl.u32 %v10095, 7
          %v10097 = vsub.s32 2, %v10096
          %v10098 = vrot.slane %v10052, %v10097
          %v10099 = vlaneseq
          %v10100 = vshrl.u32 %v10099, 7
          %v10101 = vsub.s32 3, %v10100
          %v10102 = vrot.slane %v10052, %v10101
          %v10103 = vlaneseq
          %v10104 = vshrl.u32 %v10103, 7
          %v10105 = vsub.s32 4, %v10104
          %v10106 = vrot.slane %v10052, %v10105
          %v10107 = vlaneseq
          %v10108 = vshrl.u32 %v10107, 7
          %v10109 = vsub.s32 5, %v10108
          %v10110 = vrot.slane %v10052, %v10109
          %v10111 = vlaneseq
          %v10112 = vshrl.u32 %v10111, 7
          %v10113 = vsub.s32 6, %v10112
          %v10114 = vrot.slane %v10052, %v10113
          %v10115 = vlaneseq
          %v10116 = vshrl.u32 %v10115, 7
          %v10117 = vsub.s32 7, %v10116
          %v10118 = vrot.slane %v10052, %v10117
          %v10135 = vpack.c.bf16 %v10058, %v10058
          %v10136 = vpack.c.bf16 %v10062, %v10062
          %v10137 = vpack.c.bf16 %v10066, %v10066
          %v10138 = vpack.c.bf16 %v10070, %v10070
          %v10139 = vpack.c.bf16 %v10074, %v10074
          %v10140 = vpack.c.bf16 %v10078, %v10078
          %v10141 = vpack.c.bf16 %v10082, %v10082
          %v10142 = vpack.c.bf16 %v10086, %v10086
          %v10143 = vpack.c.bf16 %v10090, %v10090
          %v10144 = vpack.c.bf16 %v10094, %v10094
          %v10145 = vpack.c.bf16 %v10098, %v10098
          %v10146 = vpack.c.bf16 %v10102, %v10102
          %v10147 = vpack.c.bf16 %v10106, %v10106
          %v10148 = vpack.c.bf16 %v10110, %v10110
          %v10149 = vpack.c.bf16 %v10114, %v10114
          %v10150 = vpack.c.bf16 %v10118, %v10118
          %v10151 = vld [vmem:[%s5] sm:$0xf]
          %v10152 = vld [vmem:[%s5 + $0x4] sm:$0xf]
          %v10153 = vld [vmem:[%s5 + $0x8] sm:$0xf]
          %v10154 = vld [vmem:[%s5 + $0xc] sm:$0xf]
          %v10155 = vld [vmem:[%s5 + $0x10] sm:$0xf]
          %v10156 = vld [vmem:[%s5 + $0x14] sm:$0xf]
          %v10157 = vld [vmem:[%s5 + $0x18] sm:$0xf]
          %v10158 = vld [vmem:[%s5 + $0x1c] sm:$0xf]
          %v10159 = vld [vmem:[%s5 + $0x20] sm:$0xf]
          %v10160 = vld [vmem:[%s5 + $0x24] sm:$0xf]
          %v10161 = vld [vmem:[%s5 + $0x28] sm:$0xf]
          %v10162 = vld [vmem:[%s5 + $0x2c] sm:$0xf]
          %v10163 = vld [vmem:[%s5 + $0x30] sm:$0xf]
          %v10164 = vld [vmem:[%s5 + $0x34] sm:$0xf]
          %v10165 = vld [vmem:[%s5 + $0x38] sm:$0xf]
          %v10166 = vld [vmem:[%s5 + $0x3c] sm:$0xf]
          %v10167 = vld [vmem:[%s5 + $0x40] sm:$0xf]
          %v10168 = vld [vmem:[%s5 + $0x44] sm:$0xf]
          %v10169 = vld [vmem:[%s5 + $0x48] sm:$0xf]
          %v10170 = vld [vmem:[%s5 + $0x4c] sm:$0xf]
          %v10171 = vld [vmem:[%s5 + $0x50] sm:$0xf]
          %v10172 = vld [vmem:[%s5 + $0x54] sm:$0xf]
          %v10173 = vld [vmem:[%s5 + $0x58] sm:$0xf]
          %v10174 = vld [vmem:[%s5 + $0x5c] sm:$0xf]
          %v10175 = vld [vmem:[%s5 + $0x60] sm:$0xf]
          %v10176 = vld [vmem:[%s5 + $0x64] sm:$0xf]
          %v10177 = vld [vmem:[%s5 + $0x68] sm:$0xf]
          %v10178 = vld [vmem:[%s5 + $0x6c] sm:$0xf]
          %v10179 = vld [vmem:[%s5 + $0x70] sm:$0xf]
          %v10180 = vld [vmem:[%s5 + $0x74] sm:$0xf]
          %v10181 = vld [vmem:[%s5 + $0x78] sm:$0xf]
          %v10182 = vld [vmem:[%s5 + $0x7c] sm:$0xf]
          %v10183 = vld [vmem:[%s5 + $0x80] sm:$0xf]
          %v10184 = vld [vmem:[%s5 + $0x84] sm:$0xf]
          %v10185 = vld [vmem:[%s5 + $0x88] sm:$0xf]
          %v10186 = vld [vmem:[%s5 + $0x8c] sm:$0xf]
          %v10187 = vld [vmem:[%s5 + $0x90] sm:$0xf]
          %v10188 = vld [vmem:[%s5 + $0x94] sm:$0xf]
          %v10189 = vld [vmem:[%s5 + $0x98] sm:$0xf]
          %v10190 = vld [vmem:[%s5 + $0x9c] sm:$0xf]
          %v10191 = vld [vmem:[%s5 + $0xa0] sm:$0xf]
          %v10192 = vld [vmem:[%s5 + $0xa4] sm:$0xf]
          %v10193 = vld [vmem:[%s5 + $0xa8] sm:$0xf]
          %v10194 = vld [vmem:[%s5 + $0xac] sm:$0xf]
          %v10195 = vld [vmem:[%s5 + $0xb0] sm:$0xf]
          %v10196 = vld [vmem:[%s5 + $0xb4] sm:$0xf]
          %v10197 = vld [vmem:[%s5 + $0xb8] sm:$0xf]
          %v10198 = vld [vmem:[%s5 + $0xbc] sm:$0xf]
          %v10199 = vld [vmem:[%s5 + $0xc0] sm:$0xf]
          %v10200 = vld [vmem:[%s5 + $0xc4] sm:$0xf]
          %v10201 = vld [vmem:[%s5 + $0xc8] sm:$0xf]
          %v10202 = vld [vmem:[%s5 + $0xcc] sm:$0xf]
          %v10203 = vld [vmem:[%s5 + $0xd0] sm:$0xf]
          %v10204 = vld [vmem:[%s5 + $0xd4] sm:$0xf]
          %v10205 = vld [vmem:[%s5 + $0xd8] sm:$0xf]
          %v10206 = vld [vmem:[%s5 + $0xdc] sm:$0xf]
          %v10207 = vld [vmem:[%s5 + $0xe0] sm:$0xf]
          %v10208 = vld [vmem:[%s5 + $0xe4] sm:$0xf]
          %v10209 = vld [vmem:[%s5 + $0xe8] sm:$0xf]
          %v10210 = vld [vmem:[%s5 + $0xec] sm:$0xf]
          %v10211 = vld [vmem:[%s5 + $0xf0] sm:$0xf]
          %v10212 = vld [vmem:[%s5 + $0xf4] sm:$0xf]
          %v10213 = vld [vmem:[%s5 + $0xf8] sm:$0xf]
          %v10214 = vld [vmem:[%s5 + $0xfc] sm:$0xf]
          %v10215 = vld [vmem:[%s5 + $0x100] sm:$0xf]
          %v10216 = vld [vmem:[%s5 + $0x104] sm:$0xf]
          %v10217 = vld [vmem:[%s5 + $0x108] sm:$0xf]
          %v10218 = vld [vmem:[%s5 + $0x10c] sm:$0xf]
          %v10219 = vld [vmem:[%s5 + $0x110] sm:$0xf]
          %v10220 = vld [vmem:[%s5 + $0x114] sm:$0xf]
          %v10221 = vld [vmem:[%s5 + $0x118] sm:$0xf]
          %v10222 = vld [vmem:[%s5 + $0x11c] sm:$0xf]
          %v10223 = vld [vmem:[%s5 + $0x120] sm:$0xf]
          %v10224 = vld [vmem:[%s5 + $0x124] sm:$0xf]
          %v10225 = vld [vmem:[%s5 + $0x128] sm:$0xf]
          %v10226 = vld [vmem:[%s5 + $0x12c] sm:$0xf]
          %v10227 = vld [vmem:[%s5 + $0x130] sm:$0xf]
          %v10228 = vld [vmem:[%s5 + $0x134] sm:$0xf]
          %v10229 = vld [vmem:[%s5 + $0x138] sm:$0xf]
          %v10230 = vld [vmem:[%s5 + $0x13c] sm:$0xf]
          %v10231 = vld [vmem:[%s5 + $0x140] sm:$0xf]
          %v10232 = vld [vmem:[%s5 + $0x144] sm:$0xf]
          %v10233 = vld [vmem:[%s5 + $0x148] sm:$0xf]
          %v10234 = vld [vmem:[%s5 + $0x14c] sm:$0xf]
          %v10235 = vld [vmem:[%s5 + $0x150] sm:$0xf]
          %v10236 = vld [vmem:[%s5 + $0x154] sm:$0xf]
          %v10237 = vld [vmem:[%s5 + $0x158] sm:$0xf]
          %v10238 = vld [vmem:[%s5 + $0x15c] sm:$0xf]
          %v10239 = vld [vmem:[%s5 + $0x160] sm:$0xf]
          %v10240 = vld [vmem:[%s5 + $0x164] sm:$0xf]
          %v10241 = vld [vmem:[%s5 + $0x168] sm:$0xf]
          %v10242 = vld [vmem:[%s5 + $0x16c] sm:$0xf]
          %v10243 = vld [vmem:[%s5 + $0x170] sm:$0xf]
          %v10244 = vld [vmem:[%s5 + $0x174] sm:$0xf]
          %v10245 = vld [vmem:[%s5 + $0x178] sm:$0xf]
          %v10246 = vld [vmem:[%s5 + $0x17c] sm:$0xf]
          %v10247 = vld [vmem:[%s5 + $0x180] sm:$0xf]
          %v10248 = vld [vmem:[%s5 + $0x184] sm:$0xf]
          %v10249 = vld [vmem:[%s5 + $0x188] sm:$0xf]
          %v10250 = vld [vmem:[%s5 + $0x18c] sm:$0xf]
          %v10251 = vld [vmem:[%s5 + $0x190] sm:$0xf]
          %v10252 = vld [vmem:[%s5 + $0x194] sm:$0xf]
          %v10253 = vld [vmem:[%s5 + $0x198] sm:$0xf]
          %v10254 = vld [vmem:[%s5 + $0x19c] sm:$0xf]
          %v10255 = vld [vmem:[%s5 + $0x1a0] sm:$0xf]
          %v10256 = vld [vmem:[%s5 + $0x1a4] sm:$0xf]
          %v10257 = vld [vmem:[%s5 + $0x1a8] sm:$0xf]
          %v10258 = vld [vmem:[%s5 + $0x1ac] sm:$0xf]
          %v10259 = vld [vmem:[%s5 + $0x1b0] sm:$0xf]
          %v10260 = vld [vmem:[%s5 + $0x1b4] sm:$0xf]
          %v10261 = vld [vmem:[%s5 + $0x1b8] sm:$0xf]
          %v10262 = vld [vmem:[%s5 + $0x1bc] sm:$0xf]
          %v10263 = vld [vmem:[%s5 + $0x1c0] sm:$0xf]
          %v10264 = vld [vmem:[%s5 + $0x1c4] sm:$0xf]
          %v10265 = vld [vmem:[%s5 + $0x1c8] sm:$0xf]
          %v10266 = vld [vmem:[%s5 + $0x1cc] sm:$0xf]
          %v10267 = vld [vmem:[%s5 + $0x1d0] sm:$0xf]
          %v10268 = vld [vmem:[%s5 + $0x1d4] sm:$0xf]
          %v10269 = vld [vmem:[%s5 + $0x1d8] sm:$0xf]
          %v10270 = vld [vmem:[%s5 + $0x1dc] sm:$0xf]
          %v10271 = vld [vmem:[%s5 + $0x1e0] sm:$0xf]
          %v10272 = vld [vmem:[%s5 + $0x1e4] sm:$0xf]
          %v10273 = vld [vmem:[%s5 + $0x1e8] sm:$0xf]
          %v10274 = vld [vmem:[%s5 + $0x1ec] sm:$0xf]
          %v10275 = vld [vmem:[%s5 + $0x1f0] sm:$0xf]
          %v10276 = vld [vmem:[%s5 + $0x1f4] sm:$0xf]
          %v10277 = vld [vmem:[%s5 + $0x1f8] sm:$0xf]
          %v10278 = vld [vmem:[%s5 + $0x1fc] sm:$0xf]
          %v10279 = vld [vmem:[%s5 + $0x200] sm:$0xf]
          %v10280 = vld [vmem:[%s5 + $0x204] sm:$0xf]
          %v10281 = vld [vmem:[%s5 + $0x208] sm:$0xf]
          %v10282 = vld [vmem:[%s5 + $0x20c] sm:$0xf]
          %v10283 = vld [vmem:[%s5 + $0x210] sm:$0xf]
          %v10284 = vld [vmem:[%s5 + $0x214] sm:$0xf]
          %v10285 = vld [vmem:[%s5 + $0x218] sm:$0xf]
          %v10286 = vld [vmem:[%s5 + $0x21c] sm:$0xf]
          %v10287 = vld [vmem:[%s5 + $0x220] sm:$0xf]
          %v10288 = vld [vmem:[%s5 + $0x224] sm:$0xf]
          %v10289 = vld [vmem:[%s5 + $0x228] sm:$0xf]
          %v10290 = vld [vmem:[%s5 + $0x22c] sm:$0xf]
          %v10291 = vld [vmem:[%s5 + $0x230] sm:$0xf]
          %v10292 = vld [vmem:[%s5 + $0x234] sm:$0xf]
          %v10293 = vld [vmem:[%s5 + $0x238] sm:$0xf]
          %v10294 = vld [vmem:[%s5 + $0x23c] sm:$0xf]
          %v10295 = vld [vmem:[%s5 + $0x240] sm:$0xf]
          %v10296 = vld [vmem:[%s5 + $0x244] sm:$0xf]
          %v10297 = vld [vmem:[%s5 + $0x248] sm:$0xf]
          %v10298 = vld [vmem:[%s5 + $0x24c] sm:$0xf]
          %v10299 = vld [vmem:[%s5 + $0x250] sm:$0xf]
          %v10300 = vld [vmem:[%s5 + $0x254] sm:$0xf]
          %v10301 = vld [vmem:[%s5 + $0x258] sm:$0xf]
          %v10302 = vld [vmem:[%s5 + $0x25c] sm:$0xf]
          %v10303 = vld [vmem:[%s5 + $0x260] sm:$0xf]
          %v10304 = vld [vmem:[%s5 + $0x264] sm:$0xf]
          %v10305 = vld [vmem:[%s5 + $0x268] sm:$0xf]
          %v10306 = vld [vmem:[%s5 + $0x26c] sm:$0xf]
          %v10307 = vld [vmem:[%s5 + $0x270] sm:$0xf]
          %v10308 = vld [vmem:[%s5 + $0x274] sm:$0xf]
          %v10309 = vld [vmem:[%s5 + $0x278] sm:$0xf]
          %v10310 = vld [vmem:[%s5 + $0x27c] sm:$0xf]
          %v10311 = vld [vmem:[%s5 + $0x280] sm:$0xf]
          %v10312 = vld [vmem:[%s5 + $0x284] sm:$0xf]
          %v10313 = vld [vmem:[%s5 + $0x288] sm:$0xf]
          %v10314 = vld [vmem:[%s5 + $0x28c] sm:$0xf]
          %v10315 = vld [vmem:[%s5 + $0x290] sm:$0xf]
          %v10316 = vld [vmem:[%s5 + $0x294] sm:$0xf]
          %v10317 = vld [vmem:[%s5 + $0x298] sm:$0xf]
          %v10318 = vld [vmem:[%s5 + $0x29c] sm:$0xf]
          %v10319 = vld [vmem:[%s5 + $0x2a0] sm:$0xf]
          %v10320 = vld [vmem:[%s5 + $0x2a4] sm:$0xf]
          %v10321 = vld [vmem:[%s5 + $0x2a8] sm:$0xf]
          %v10322 = vld [vmem:[%s5 + $0x2ac] sm:$0xf]
          %v10323 = vld [vmem:[%s5 + $0x2b0] sm:$0xf]
          %v10324 = vld [vmem:[%s5 + $0x2b4] sm:$0xf]
          %v10325 = vld [vmem:[%s5 + $0x2b8] sm:$0xf]
          %v10326 = vld [vmem:[%s5 + $0x2bc] sm:$0xf]
          %v10327 = vld [vmem:[%s5 + $0x2c0] sm:$0xf]
          %v10328 = vld [vmem:[%s5 + $0x2c4] sm:$0xf]
          %v10329 = vld [vmem:[%s5 + $0x2c8] sm:$0xf]
          %v10330 = vld [vmem:[%s5 + $0x2cc] sm:$0xf]
          %v10331 = vld [vmem:[%s5 + $0x2d0] sm:$0xf]
          %v10332 = vld [vmem:[%s5 + $0x2d4] sm:$0xf]
          %v10333 = vld [vmem:[%s5 + $0x2d8] sm:$0xf]
          %v10334 = vld [vmem:[%s5 + $0x2dc] sm:$0xf]
          %v10335 = vld [vmem:[%s5 + $0x2e0] sm:$0xf]
          %v10336 = vld [vmem:[%s5 + $0x2e4] sm:$0xf]
          %v10337 = vld [vmem:[%s5 + $0x2e8] sm:$0xf]
          %v10338 = vld [vmem:[%s5 + $0x2ec] sm:$0xf]
          %v10339 = vld [vmem:[%s5 + $0x2f0] sm:$0xf]
          %v10340 = vld [vmem:[%s5 + $0x2f4] sm:$0xf]
          %v10341 = vld [vmem:[%s5 + $0x2f8] sm:$0xf]
          %v10342 = vld [vmem:[%s5 + $0x2fc] sm:$0xf]
          %v10343 = vld [vmem:[%s5 + $0x300] sm:$0xf]
          %v10344 = vld [vmem:[%s5 + $0x304] sm:$0xf]
          %v10345 = vld [vmem:[%s5 + $0x308] sm:$0xf]
          %v10346 = vld [vmem:[%s5 + $0x30c] sm:$0xf]
          %v10347 = vld [vmem:[%s5 + $0x310] sm:$0xf]
          %v10348 = vld [vmem:[%s5 + $0x314] sm:$0xf]
          %v10349 = vld [vmem:[%s5 + $0x318] sm:$0xf]
          %v10350 = vld [vmem:[%s5 + $0x31c] sm:$0xf]
          %v10351 = vld [vmem:[%s5 + $0x320] sm:$0xf]
          %v10352 = vld [vmem:[%s5 + $0x324] sm:$0xf]
          %v10353 = vld [vmem:[%s5 + $0x328] sm:$0xf]
          %v10354 = vld [vmem:[%s5 + $0x32c] sm:$0xf]
          %v10355 = vld [vmem:[%s5 + $0x330] sm:$0xf]
          %v10356 = vld [vmem:[%s5 + $0x334] sm:$0xf]
          %v10357 = vld [vmem:[%s5 + $0x338] sm:$0xf]
          %v10358 = vld [vmem:[%s5 + $0x33c] sm:$0xf]
          %v10359 = vld [vmem:[%s5 + $0x340] sm:$0xf]
          %v10360 = vld [vmem:[%s5 + $0x344] sm:$0xf]
          %v10361 = vld [vmem:[%s5 + $0x348] sm:$0xf]
          %v10362 = vld [vmem:[%s5 + $0x34c] sm:$0xf]
          %v10363 = vld [vmem:[%s5 + $0x350] sm:$0xf]
          %v10364 = vld [vmem:[%s5 + $0x354] sm:$0xf]
          %v10365 = vld [vmem:[%s5 + $0x358] sm:$0xf]
          %v10366 = vld [vmem:[%s5 + $0x35c] sm:$0xf]
          %v10367 = vld [vmem:[%s5 + $0x360] sm:$0xf]
          %v10368 = vld [vmem:[%s5 + $0x364] sm:$0xf]
          %v10369 = vld [vmem:[%s5 + $0x368] sm:$0xf]
          %v10370 = vld [vmem:[%s5 + $0x36c] sm:$0xf]
          %v10371 = vld [vmem:[%s5 + $0x370] sm:$0xf]
          %v10372 = vld [vmem:[%s5 + $0x374] sm:$0xf]
          %v10373 = vld [vmem:[%s5 + $0x378] sm:$0xf]
          %v10374 = vld [vmem:[%s5 + $0x37c] sm:$0xf]
          %v10375 = vld [vmem:[%s5 + $0x380] sm:$0xf]
          %v10376 = vld [vmem:[%s5 + $0x384] sm:$0xf]
          %v10377 = vld [vmem:[%s5 + $0x388] sm:$0xf]
          %v10378 = vld [vmem:[%s5 + $0x38c] sm:$0xf]
          %v10379 = vld [vmem:[%s5 + $0x390] sm:$0xf]
          %v10380 = vld [vmem:[%s5 + $0x394] sm:$0xf]
          %v10381 = vld [vmem:[%s5 + $0x398] sm:$0xf]
          %v10382 = vld [vmem:[%s5 + $0x39c] sm:$0xf]
          %v10383 = vld [vmem:[%s5 + $0x3a0] sm:$0xf]
          %v10384 = vld [vmem:[%s5 + $0x3a4] sm:$0xf]
          %v10385 = vld [vmem:[%s5 + $0x3a8] sm:$0xf]
          %v10386 = vld [vmem:[%s5 + $0x3ac] sm:$0xf]
          %v10387 = vld [vmem:[%s5 + $0x3b0] sm:$0xf]
          %v10388 = vld [vmem:[%s5 + $0x3b4] sm:$0xf]
          %v10389 = vld [vmem:[%s5 + $0x3b8] sm:$0xf]
          %v10390 = vld [vmem:[%s5 + $0x3bc] sm:$0xf]
          %v10391 = vld [vmem:[%s5 + $0x3c0] sm:$0xf]
          %v10392 = vld [vmem:[%s5 + $0x3c4] sm:$0xf]
          %v10393 = vld [vmem:[%s5 + $0x3c8] sm:$0xf]
          %v10394 = vld [vmem:[%s5 + $0x3cc] sm:$0xf]
          %v10395 = vld [vmem:[%s5 + $0x3d0] sm:$0xf]
          %v10396 = vld [vmem:[%s5 + $0x3d4] sm:$0xf]
          %v10397 = vld [vmem:[%s5 + $0x3d8] sm:$0xf]
          %v10398 = vld [vmem:[%s5 + $0x3dc] sm:$0xf]
          %v10399 = vld [vmem:[%s5 + $0x3e0] sm:$0xf]
          %v10400 = vld [vmem:[%s5 + $0x3e4] sm:$0xf]
          %v10401 = vld [vmem:[%s6] sm:$0x1]
          %v10652 = vunpack.c.l.b16 %v10151
          %v10653 = vunpack.c.l.b16 %v10152
          %v10654 = vunpack.c.l.b16 %v10153
          %v10655 = vunpack.c.l.b16 %v10154
          %v10656 = vunpack.c.l.b16 %v10155
          %v10657 = vunpack.c.l.b16 %v10156
          %v10658 = vunpack.c.l.b16 %v10157
          %v10659 = vunpack.c.l.b16 %v10158
          %v10660 = vunpack.c.l.b16 %v10159
          %v10661 = vunpack.c.l.b16 %v10160
          %v10662 = vunpack.c.l.b16 %v10161
          %v10663 = vunpack.c.l.b16 %v10162
          %v10664 = vunpack.c.l.b16 %v10163
          %v10665 = vunpack.c.l.b16 %v10164
          %v10666 = vunpack.c.l.b16 %v10165
          %v10667 = vunpack.c.l.b16 %v10166
          %v10668 = vunpack.c.l.b16 %v10167
          %v10669 = vunpack.c.l.b16 %v10168
          %v10670 = vunpack.c.l.b16 %v10169
          %v10671 = vunpack.c.l.b16 %v10170
          %v10672 = vunpack.c.l.b16 %v10171
          %v10673 = vunpack.c.l.b16 %v10172
          %v10674 = vunpack.c.l.b16 %v10173
          %v10675 = vunpack.c.l.b16 %v10174
          %v10676 = vunpack.c.l.b16 %v10175
          %v10677 = vunpack.c.l.b16 %v10176
          %v10678 = vunpack.c.l.b16 %v10177
          %v10679 = vunpack.c.l.b16 %v10178
          %v10680 = vunpack.c.l.b16 %v10179
          %v10681 = vunpack.c.l.b16 %v10180
          %v10682 = vunpack.c.l.b16 %v10181
          %v10683 = vunpack.c.l.b16 %v10182
          %v10684 = vunpack.c.l.b16 %v10183
          %v10685 = vunpack.c.l.b16 %v10184
          %v10686 = vunpack.c.l.b16 %v10185
          %v10687 = vunpack.c.l.b16 %v10186
          %v10688 = vunpack.c.l.b16 %v10187
          %v10689 = vunpack.c.l.b16 %v10188
          %v10690 = vunpack.c.l.b16 %v10189
          %v10691 = vunpack.c.l.b16 %v10190
          %v10692 = vunpack.c.l.b16 %v10191
          %v10693 = vunpack.c.l.b16 %v10192
          %v10694 = vunpack.c.l.b16 %v10193
          %v10695 = vunpack.c.l.b16 %v10194
          %v10696 = vunpack.c.l.b16 %v10195
          %v10697 = vunpack.c.l.b16 %v10196
          %v10698 = vunpack.c.l.b16 %v10197
          %v10699 = vunpack.c.l.b16 %v10198
          %v10700 = vunpack.c.l.b16 %v10199
          %v10701 = vunpack.c.l.b16 %v10200
          %v10702 = vunpack.c.l.b16 %v10201
          %v10703 = vunpack.c.l.b16 %v10202
          %v10704 = vunpack.c.l.b16 %v10203
          %v10705 = vunpack.c.l.b16 %v10204
          %v10706 = vunpack.c.l.b16 %v10205
          %v10707 = vunpack.c.l.b16 %v10206
          %v10708 = vunpack.c.l.b16 %v10207
          %v10709 = vunpack.c.l.b16 %v10208
          %v10710 = vunpack.c.l.b16 %v10209
          %v10711 = vunpack.c.l.b16 %v10210
          %v10712 = vunpack.c.l.b16 %v10211
          %v10713 = vunpack.c.l.b16 %v10212
          %v10714 = vunpack.c.l.b16 %v10213
          %v10715 = vunpack.c.l.b16 %v10214
          %v10716 = vunpack.c.l.b16 %v10215
          %v10717 = vunpack.c.l.b16 %v10216
          %v10718 = vunpack.c.l.b16 %v10217
          %v10719 = vunpack.c.l.b16 %v10218
          %v10720 = vunpack.c.l.b16 %v10219
          %v10721 = vunpack.c.l.b16 %v10220
          %v10722 = vunpack.c.l.b16 %v10221
          %v10723 = vunpack.c.l.b16 %v10222
          %v10724 = vunpack.c.l.b16 %v10223
          %v10725 = vunpack.c.l.b16 %v10224
          %v10726 = vunpack.c.l.b16 %v10225
          %v10727 = vunpack.c.l.b16 %v10226
          %v10728 = vunpack.c.l.b16 %v10227
          %v10729 = vunpack.c.l.b16 %v10228
          %v10730 = vunpack.c.l.b16 %v10229
          %v10731 = vunpack.c.l.b16 %v10230
          %v10732 = vunpack.c.l.b16 %v10231
          %v10733 = vunpack.c.l.b16 %v10232
          %v10734 = vunpack.c.l.b16 %v10233
          %v10735 = vunpack.c.l.b16 %v10234
          %v10736 = vunpack.c.l.b16 %v10235
          %v10737 = vunpack.c.l.b16 %v10236
          %v10738 = vunpack.c.l.b16 %v10237
          %v10739 = vunpack.c.l.b16 %v10238
          %v10740 = vunpack.c.l.b16 %v10239
          %v10741 = vunpack.c.l.b16 %v10240
          %v10742 = vunpack.c.l.b16 %v10241
          %v10743 = vunpack.c.l.b16 %v10242
          %v10744 = vunpack.c.l.b16 %v10243
          %v10745 = vunpack.c.l.b16 %v10244
          %v10746 = vunpack.c.l.b16 %v10245
          %v10747 = vunpack.c.l.b16 %v10246
          %v10748 = vunpack.c.l.b16 %v10247
          %v10749 = vunpack.c.l.b16 %v10248
          %v10750 = vunpack.c.l.b16 %v10249
          %v10751 = vunpack.c.l.b16 %v10250
          %v10752 = vunpack.c.l.b16 %v10251
          %v10753 = vunpack.c.l.b16 %v10252
          %v10754 = vunpack.c.l.b16 %v10253
          %v10755 = vunpack.c.l.b16 %v10254
          %v10756 = vunpack.c.l.b16 %v10255
          %v10757 = vunpack.c.l.b16 %v10256
          %v10758 = vunpack.c.l.b16 %v10257
          %v10759 = vunpack.c.l.b16 %v10258
          %v10760 = vunpack.c.l.b16 %v10259
          %v10761 = vunpack.c.l.b16 %v10260
          %v10762 = vunpack.c.l.b16 %v10261
          %v10763 = vunpack.c.l.b16 %v10262
          %v10764 = vunpack.c.l.b16 %v10263
          %v10765 = vunpack.c.l.b16 %v10264
          %v10766 = vunpack.c.l.b16 %v10265
          %v10767 = vunpack.c.l.b16 %v10266
          %v10768 = vunpack.c.l.b16 %v10267
          %v10769 = vunpack.c.l.b16 %v10268
          %v10770 = vunpack.c.l.b16 %v10269
          %v10771 = vunpack.c.l.b16 %v10270
          %v10772 = vunpack.c.l.b16 %v10271
          %v10773 = vunpack.c.l.b16 %v10272
          %v10774 = vunpack.c.l.b16 %v10273
          %v10775 = vunpack.c.l.b16 %v10274
          %v10776 = vunpack.c.l.b16 %v10275
          %v10777 = vunpack.c.l.b16 %v10276
          %v10778 = vunpack.c.l.b16 %v10277
          %v10779 = vunpack.c.l.b16 %v10278
          %v10780 = vunpack.c.l.b16 %v10279
          %v10781 = vunpack.c.l.b16 %v10280
          %v10782 = vunpack.c.l.b16 %v10281
          %v10783 = vunpack.c.l.b16 %v10282
          %v10784 = vunpack.c.l.b16 %v10283
          %v10785 = vunpack.c.l.b16 %v10284
          %v10786 = vunpack.c.l.b16 %v10285
          %v10787 = vunpack.c.l.b16 %v10286
          %v10788 = vunpack.c.l.b16 %v10287
          %v10789 = vunpack.c.l.b16 %v10288
          %v10790 = vunpack.c.l.b16 %v10289
          %v10791 = vunpack.c.l.b16 %v10290
          %v10792 = vunpack.c.l.b16 %v10291
          %v10793 = vunpack.c.l.b16 %v10292
          %v10794 = vunpack.c.l.b16 %v10293
          %v10795 = vunpack.c.l.b16 %v10294
          %v10796 = vunpack.c.l.b16 %v10295
          %v10797 = vunpack.c.l.b16 %v10296
          %v10798 = vunpack.c.l.b16 %v10297
          %v10799 = vunpack.c.l.b16 %v10298
          %v10800 = vunpack.c.l.b16 %v10299
          %v10801 = vunpack.c.l.b16 %v10300
          %v10802 = vunpack.c.l.b16 %v10301
          %v10803 = vunpack.c.l.b16 %v10302
          %v10804 = vunpack.c.l.b16 %v10303
          %v10805 = vunpack.c.l.b16 %v10304
          %v10806 = vunpack.c.l.b16 %v10305
          %v10807 = vunpack.c.l.b16 %v10306
          %v10808 = vunpack.c.l.b16 %v10307
          %v10809 = vunpack.c.l.b16 %v10308
          %v10810 = vunpack.c.l.b16 %v10309
          %v10811 = vunpack.c.l.b16 %v10310
          %v10812 = vunpack.c.l.b16 %v10311
          %v10813 = vunpack.c.l.b16 %v10312
          %v10814 = vunpack.c.l.b16 %v10313
          %v10815 = vunpack.c.l.b16 %v10314
          %v10816 = vunpack.c.l.b16 %v10315
          %v10817 = vunpack.c.l.b16 %v10316
          %v10818 = vunpack.c.l.b16 %v10317
          %v10819 = vunpack.c.l.b16 %v10318
          %v10820 = vunpack.c.l.b16 %v10319
          %v10821 = vunpack.c.l.b16 %v10320
          %v10822 = vunpack.c.l.b16 %v10321
          %v10823 = vunpack.c.l.b16 %v10322
          %v10824 = vunpack.c.l.b16 %v10323
          %v10825 = vunpack.c.l.b16 %v10324
          %v10826 = vunpack.c.l.b16 %v10325
          %v10827 = vunpack.c.l.b16 %v10326
          %v10828 = vunpack.c.l.b16 %v10327
          %v10829 = vunpack.c.l.b16 %v10328
          %v10830 = vunpack.c.l.b16 %v10329
          %v10831 = vunpack.c.l.b16 %v10330
          %v10832 = vunpack.c.l.b16 %v10331
          %v10833 = vunpack.c.l.b16 %v10332
          %v10834 = vunpack.c.l.b16 %v10333
          %v10835 = vunpack.c.l.b16 %v10334
          %v10836 = vunpack.c.l.b16 %v10335
          %v10837 = vunpack.c.l.b16 %v10336
          %v10838 = vunpack.c.l.b16 %v10337
          %v10839 = vunpack.c.l.b16 %v10338
          %v10840 = vunpack.c.l.b16 %v10339
          %v10841 = vunpack.c.l.b16 %v10340
          %v10842 = vunpack.c.l.b16 %v10341
          %v10843 = vunpack.c.l.b16 %v10342
          %v10844 = vunpack.c.l.b16 %v10343
          %v10845 = vunpack.c.l.b16 %v10344
          %v10846 = vunpack.c.l.b16 %v10345
          %v10847 = vunpack.c.l.b16 %v10346
          %v10848 = vunpack.c.l.b16 %v10347
          %v10849 = vunpack.c.l.b16 %v10348
          %v10850 = vunpack.c.l.b16 %v10349
          %v10851 = vunpack.c.l.b16 %v10350
          %v10852 = vunpack.c.l.b16 %v10351
          %v10853 = vunpack.c.l.b16 %v10352
          %v10854 = vunpack.c.l.b16 %v10353
          %v10855 = vunpack.c.l.b16 %v10354
          %v10856 = vunpack.c.l.b16 %v10355
          %v10857 = vunpack.c.l.b16 %v10356
          %v10858 = vunpack.c.l.b16 %v10357
          %v10859 = vunpack.c.l.b16 %v10358
          %v10860 = vunpack.c.l.b16 %v10359
          %v10861 = vunpack.c.l.b16 %v10360
          %v10862 = vunpack.c.l.b16 %v10361
          %v10863 = vunpack.c.l.b16 %v10362
          %v10864 = vunpack.c.l.b16 %v10363
          %v10865 = vunpack.c.l.b16 %v10364
          %v10866 = vunpack.c.l.b16 %v10365
          %v10867 = vunpack.c.l.b16 %v10366
          %v10868 = vunpack.c.l.b16 %v10367
          %v10869 = vunpack.c.l.b16 %v10368
          %v10870 = vunpack.c.l.b16 %v10369
          %v10871 = vunpack.c.l.b16 %v10370
          %v10872 = vunpack.c.l.b16 %v10371
          %v10873 = vunpack.c.l.b16 %v10372
          %v10874 = vunpack.c.l.b16 %v10373
          %v10875 = vunpack.c.l.b16 %v10374
          %v10876 = vunpack.c.l.b16 %v10375
          %v10877 = vunpack.c.l.b16 %v10376
          %v10878 = vunpack.c.l.b16 %v10377
          %v10879 = vunpack.c.l.b16 %v10378
          %v10880 = vunpack.c.l.b16 %v10379
          %v10881 = vunpack.c.l.b16 %v10380
          %v10882 = vunpack.c.l.b16 %v10381
          %v10883 = vunpack.c.l.b16 %v10382
          %v10884 = vunpack.c.l.b16 %v10383
          %v10885 = vunpack.c.l.b16 %v10384
          %v10886 = vunpack.c.l.b16 %v10385
          %v10887 = vunpack.c.l.b16 %v10386
          %v10888 = vunpack.c.l.b16 %v10387
          %v10889 = vunpack.c.l.b16 %v10388
          %v10890 = vunpack.c.l.b16 %v10389
          %v10891 = vunpack.c.l.b16 %v10390
          %v10892 = vunpack.c.l.b16 %v10391
          %v10893 = vunpack.c.l.b16 %v10392
          %v10894 = vunpack.c.l.b16 %v10393
          %v10895 = vunpack.c.l.b16 %v10394
          %v10896 = vunpack.c.l.b16 %v10395
          %v10897 = vunpack.c.l.b16 %v10396
          %v10898 = vunpack.c.l.b16 %v10397
          %v10899 = vunpack.c.l.b16 %v10398
          %v10900 = vunpack.c.l.b16 %v10399
          %v10901 = vunpack.c.l.b16 %v10400
          %v10902 = vpack.c.b16 %v10653, %v10652
          %v10903 = vpack.c.b16 %v10655, %v10654
          %v10904 = vpack.c.b16 %v10657, %v10656
          %v10905 = vpack.c.b16 %v10659, %v10658
          %v10906 = vpack.c.b16 %v10661, %v10660
          %v10907 = vpack.c.b16 %v10663, %v10662
          %v10908 = vpack.c.b16 %v10665, %v10664
          %v10909 = vpack.c.b16 %v10667, %v10666
          %v10910 = vpack.c.b16 %v10669, %v10668
          %v10911 = vpack.c.b16 %v10671, %v10670
          %v10912 = vpack.c.b16 %v10673, %v10672
          %v10913 = vpack.c.b16 %v10675, %v10674
          %v10914 = vpack.c.b16 %v10677, %v10676
          %v10915 = vpack.c.b16 %v10679, %v10678
          %v10916 = vpack.c.b16 %v10681, %v10680
          %v10917 = vpack.c.b16 %v10683, %v10682
          %v10918 = vpack.c.b16 %v10685, %v10684
          %v10919 = vpack.c.b16 %v10687, %v10686
          %v10920 = vpack.c.b16 %v10689, %v10688
          %v10921 = vpack.c.b16 %v10691, %v10690
          %v10922 = vpack.c.b16 %v10693, %v10692
          %v10923 = vpack.c.b16 %v10695, %v10694
          %v10924 = vpack.c.b16 %v10697, %v10696
          %v10925 = vpack.c.b16 %v10699, %v10698
          %v10926 = vpack.c.b16 %v10701, %v10700
          %v10927 = vpack.c.b16 %v10703, %v10702
          %v10928 = vpack.c.b16 %v10705, %v10704
          %v10929 = vpack.c.b16 %v10707, %v10706
          %v10930 = vpack.c.b16 %v10709, %v10708
          %v10931 = vpack.c.b16 %v10711, %v10710
          %v10932 = vpack.c.b16 %v10713, %v10712
          %v10933 = vpack.c.b16 %v10715, %v10714
          %v10934 = vpack.c.b16 %v10717, %v10716
          %v10935 = vpack.c.b16 %v10719, %v10718
          %v10936 = vpack.c.b16 %v10721, %v10720
          %v10937 = vpack.c.b16 %v10723, %v10722
          %v10938 = vpack.c.b16 %v10725, %v10724
          %v10939 = vpack.c.b16 %v10727, %v10726
          %v10940 = vpack.c.b16 %v10729, %v10728
          %v10941 = vpack.c.b16 %v10731, %v10730
          %v10942 = vpack.c.b16 %v10733, %v10732
          %v10943 = vpack.c.b16 %v10735, %v10734
          %v10944 = vpack.c.b16 %v10737, %v10736
          %v10945 = vpack.c.b16 %v10739, %v10738
          %v10946 = vpack.c.b16 %v10741, %v10740
          %v10947 = vpack.c.b16 %v10743, %v10742
          %v10948 = vpack.c.b16 %v10745, %v10744
          %v10949 = vpack.c.b16 %v10747, %v10746
          %v10950 = vpack.c.b16 %v10749, %v10748
          %v10951 = vpack.c.b16 %v10751, %v10750
          %v10952 = vpack.c.b16 %v10753, %v10752
          %v10953 = vpack.c.b16 %v10755, %v10754
          %v10954 = vpack.c.b16 %v10757, %v10756
          %v10955 = vpack.c.b16 %v10759, %v10758
          %v10956 = vpack.c.b16 %v10761, %v10760
          %v10957 = vpack.c.b16 %v10763, %v10762
          %v10958 = vpack.c.b16 %v10765, %v10764
          %v10959 = vpack.c.b16 %v10767, %v10766
          %v10960 = vpack.c.b16 %v10769, %v10768
          %v10961 = vpack.c.b16 %v10771, %v10770
          %v10962 = vpack.c.b16 %v10773, %v10772
          %v10963 = vpack.c.b16 %v10775, %v10774
          %v10964 = vpack.c.b16 %v10777, %v10776
          %v10965 = vpack.c.b16 %v10779, %v10778
          %v10966 = vpack.c.b16 %v10781, %v10780
          %v10967 = vpack.c.b16 %v10783, %v10782
          %v10968 = vpack.c.b16 %v10785, %v10784
          %v10969 = vpack.c.b16 %v10787, %v10786
          %v10970 = vpack.c.b16 %v10789, %v10788
          %v10971 = vpack.c.b16 %v10791, %v10790
          %v10972 = vpack.c.b16 %v10793, %v10792
          %v10973 = vpack.c.b16 %v10795, %v10794
          %v10974 = vpack.c.b16 %v10797, %v10796
          %v10975 = vpack.c.b16 %v10799, %v10798
          %v10976 = vpack.c.b16 %v10801, %v10800
          %v10977 = vpack.c.b16 %v10803, %v10802
          %v10978 = vpack.c.b16 %v10805, %v10804
          %v10979 = vpack.c.b16 %v10807, %v10806
          %v10980 = vpack.c.b16 %v10809, %v10808
          %v10981 = vpack.c.b16 %v10811, %v10810
          %v10982 = vpack.c.b16 %v10813, %v10812
          %v10983 = vpack.c.b16 %v10815, %v10814
          %v10984 = vpack.c.b16 %v10817, %v10816
          %v10985 = vpack.c.b16 %v10819, %v10818
          %v10986 = vpack.c.b16 %v10821, %v10820
          %v10987 = vpack.c.b16 %v10823, %v10822
          %v10988 = vpack.c.b16 %v10825, %v10824
          %v10989 = vpack.c.b16 %v10827, %v10826
          %v10990 = vpack.c.b16 %v10829, %v10828
          %v10991 = vpack.c.b16 %v10831, %v10830
          %v10992 = vpack.c.b16 %v10833, %v10832
          %v10993 = vpack.c.b16 %v10835, %v10834
          %v10994 = vpack.c.b16 %v10837, %v10836
          %v10995 = vpack.c.b16 %v10839, %v10838
          %v10996 = vpack.c.b16 %v10841, %v10840
          %v10997 = vpack.c.b16 %v10843, %v10842
          %v10998 = vpack.c.b16 %v10845, %v10844
          %v10999 = vpack.c.b16 %v10847, %v10846
          %v11000 = vpack.c.b16 %v10849, %v10848
          %v11001 = vpack.c.b16 %v10851, %v10850
          %v11002 = vpack.c.b16 %v10853, %v10852
          %v11003 = vpack.c.b16 %v10855, %v10854
          %v11004 = vpack.c.b16 %v10857, %v10856
          %v11005 = vpack.c.b16 %v10859, %v10858
          %v11006 = vpack.c.b16 %v10861, %v10860
          %v11007 = vpack.c.b16 %v10863, %v10862
          %v11008 = vpack.c.b16 %v10865, %v10864
          %v11009 = vpack.c.b16 %v10867, %v10866
          %v11010 = vpack.c.b16 %v10869, %v10868
          %v11011 = vpack.c.b16 %v10871, %v10870
          %v11012 = vpack.c.b16 %v10873, %v10872
          %v11013 = vpack.c.b16 %v10875, %v10874
          %v11014 = vpack.c.b16 %v10877, %v10876
          %v11015 = vpack.c.b16 %v10879, %v10878
          %v11016 = vpack.c.b16 %v10881, %v10880
          %v11017 = vpack.c.b16 %v10883, %v10882
          %v11018 = vpack.c.b16 %v10885, %v10884
          %v11019 = vpack.c.b16 %v10887, %v10886
          %v11020 = vpack.c.b16 %v10889, %v10888
          %v11021 = vpack.c.b16 %v10891, %v10890
          %v11022 = vpack.c.b16 %v10893, %v10892
          %v11023 = vpack.c.b16 %v10895, %v10894
          %v11024 = vpack.c.b16 %v10897, %v10896
          %v11025 = vpack.c.b16 %v10899, %v10898
          %v11026 = vpack.c.b16 %v10901, %v10900
          %vm11152 = vcmask 654336
          %v11154 = vsel %vm11152, %v10150, 0
          %11156 = vmatprep.subr.bf16.mxu0 0
          %11157 = vmatpush1.bf16.msra.mxu0 %v10909
          %11158 = vmatprep.subr.bf16.mxu0 0
          %11159 = vmatpush1.bf16.msra.mxu0 %v10908
          %11160 = vmatprep.subr.bf16.mxu0 0
          %11161 = vmatpush1.bf16.msra.mxu0 %v10907
          %11162 = vmatprep.subr.bf16.mxu0 0
          %11163 = vmatpush1.bf16.msra.mxu0 %v10906
          %11164 = vmatprep.subr.bf16.mxu0 0
          %11165 = vmatpush1.bf16.msra.mxu0 %v10905
          %11166 = vmatprep.subr.bf16.mxu0 0
          %11167 = vmatpush1.bf16.msra.mxu0 %v10904
          %11168 = vmatprep.subr.bf16.mxu0 0
          %11169 = vmatpush1.bf16.msra.mxu0 %v10903
          %11170 = vmatprep.subr.bf16.mxu0 0
          %11171 = vmatpush1.bf16.msra.mxu0 %v10902
          %11172 = vmatprep.subr.bf16.mxu0 0
          %11173 = vmatpush2.bf16.msra.mxu0 %v10917
          %11174 = vmatprep.subr.bf16.mxu0 0
          %11175 = vmatpush2.bf16.msra.mxu0 %v10916
          %11176 = vmatprep.subr.bf16.mxu0 0
          %11177 = vmatpush2.bf16.msra.mxu0 %v10915
          %11178 = vmatprep.subr.bf16.mxu0 0
          %11179 = vmatpush2.bf16.msra.mxu0 %v10914
          %11180 = vmatprep.subr.bf16.mxu0 0
          %11181 = vmatpush2.bf16.msra.mxu0 %v10913
          %11182 = vmatprep.subr.bf16.mxu0 0
          %11183 = vmatpush2.bf16.msra.mxu0 %v10912
          %11184 = vmatprep.subr.bf16.mxu0 0
          %11185 = vmatpush2.bf16.msra.mxu0 %v10911
          %11186 = vmatprep.subr.bf16.mxu0 0
          %11187 = vmatpush2.bf16.msra.mxu0 %v10910
          %11188 = vmatprep.mubr.bf16.mxu0 %v10136
          %11189 = vmatmul.mubr.bf16.gmra.mxu0 %v10135
          %v11190 = vpop.f32.mrf.mxu0
          %v11191 = vadd.f32 %v10401, %v11190
          %v11192 = vpop.f32.mrf.mxu0
          %v11193 = vpop.f32.mrf.mxu0
          %v11194 = vpop.f32.mrf.mxu0
          %11195 = vdwg.mxu0
          %11196 = vmatprep.subr.bf16.mxu0 0
          %11197 = vmatpush1.bf16.msra.mxu0 %v10925
          %11198 = vmatprep.subr.bf16.mxu0 0
          %11199 = vmatpush1.bf16.msra.mxu0 %v10924
          %11200 = vmatprep.subr.bf16.mxu0 0
          %11201 = vmatpush1.bf16.msra.mxu0 %v10923
          %11202 = vmatprep.subr.bf16.mxu0 0
          %11203 = vmatpush1.bf16.msra.mxu0 %v10922
          %11204 = vmatprep.subr.bf16.mxu0 0
          %11205 = vmatpush1.bf16.msra.mxu0 %v10921
          %11206 = vmatprep.subr.bf16.mxu0 0
          %11207 = vmatpush1.bf16.msra.mxu0 %v10920
          %11208 = vmatprep.subr.bf16.mxu0 0
          %11209 = vmatpush1.bf16.msra.mxu0 %v10919
          %11210 = vmatprep.subr.bf16.mxu0 0
          %11211 = vmatpush1.bf16.msra.mxu0 %v10918
          %11212 = vmatprep.subr.bf16.mxu0 0
          %11213 = vmatpush2.bf16.msra.mxu0 %v10933
          %11214 = vmatprep.subr.bf16.mxu0 0
          %11215 = vmatpush2.bf16.msra.mxu0 %v10932
          %11216 = vmatprep.subr.bf16.mxu0 0
          %11217 = vmatpush2.bf16.msra.mxu0 %v10931
          %11218 = vmatprep.subr.bf16.mxu0 0
          %11219 = vmatpush2.bf16.msra.mxu0 %v10930
          %11220 = vmatprep.subr.bf16.mxu0 0
          %11221 = vmatpush2.bf16.msra.mxu0 %v10929
          %11222 = vmatprep.subr.bf16.mxu0 0
          %11223 = vmatpush2.bf16.msra.mxu0 %v10928
          %11224 = vmatprep.subr.bf16.mxu0 0
          %11225 = vmatpush2.bf16.msra.mxu0 %v10927
          %11226 = vmatprep.subr.bf16.mxu0 0
          %11227 = vmatpush2.bf16.msra.mxu0 %v10926
          %11228 = vmatprep.mubr.bf16.mxu0 %v10138
          %11229 = vmatmul.mubr.bf16.gmra.mxu0 %v10137
          %v11230 = vpop.f32.mrf.mxu0
          %v11231 = vadd.f32 %v11191, %v11230
          %v11232 = vpop.f32.mrf.mxu0
          %v11233 = vpop.f32.mrf.mxu0
          %v11234 = vpop.f32.mrf.mxu0
          %11235 = vdwg.mxu0
          %11236 = vmatprep.subr.bf16.mxu0 0
          %11237 = vmatpush1.bf16.msra.mxu0 %v10941
          %11238 = vmatprep.subr.bf16.mxu0 0
          %11239 = vmatpush1.bf16.msra.mxu0 %v10940
          %11240 = vmatprep.subr.bf16.mxu0 0
          %11241 = vmatpush1.bf16.msra.mxu0 %v10939
          %11242 = vmatprep.subr.bf16.mxu0 0
          %11243 = vmatpush1.bf16.msra.mxu0 %v10938
          %11244 = vmatprep.subr.bf16.mxu0 0
          %11245 = vmatpush1.bf16.msra.mxu0 %v10937
          %11246 = vmatprep.subr.bf16.mxu0 0
          %11247 = vmatpush1.bf16.msra.mxu0 %v10936
          %11248 = vmatprep.subr.bf16.mxu0 0
          %11249 = vmatpush1.bf16.msra.mxu0 %v10935
          %11250 = vmatprep.subr.bf16.mxu0 0
          %11251 = vmatpush1.bf16.msra.mxu0 %v10934
          %11252 = vmatprep.subr.bf16.mxu0 0
          %11253 = vmatpush2.bf16.msra.mxu0 %v10949
          %11254 = vmatprep.subr.bf16.mxu0 0
          %11255 = vmatpush2.bf16.msra.mxu0 %v10948
          %11256 = vmatprep.subr.bf16.mxu0 0
          %11257 = vmatpush2.bf16.msra.mxu0 %v10947
          %11258 = vmatprep.subr.bf16.mxu0 0
          %11259 = vmatpush2.bf16.msra.mxu0 %v10946
          %11260 = vmatprep.subr.bf16.mxu0 0
          %11261 = vmatpush2.bf16.msra.mxu0 %v10945
          %11262 = vmatprep.subr.bf16.mxu0 0
          %11263 = vmatpush2.bf16.msra.mxu0 %v10944
          %11264 = vmatprep.subr.bf16.mxu0 0
          %11265 = vmatpush2.bf16.msra.mxu0 %v10943
          %11266 = vmatprep.subr.bf16.mxu0 0
          %11267 = vmatpush2.bf16.msra.mxu0 %v10942
          %11268 = vmatprep.mubr.bf16.mxu0 %v10140
          %11269 = vmatmul.mubr.bf16.gmra.mxu0 %v10139
          %v11270 = vpop.f32.mrf.mxu0
          %v11271 = vadd.f32 %v11231, %v11270
          %v11272 = vpop.f32.mrf.mxu0
          %v11273 = vpop.f32.mrf.mxu0
          %v11274 = vpop.f32.mrf.mxu0
          %11275 = vdwg.mxu0
          %11276 = vmatprep.subr.bf16.mxu0 0
          %11277 = vmatpush1.bf16.msra.mxu0 %v10957
          %11278 = vmatprep.subr.bf16.mxu0 0
          %11279 = vmatpush1.bf16.msra.mxu0 %v10956
          %11280 = vmatprep.subr.bf16.mxu0 0
          %11281 = vmatpush1.bf16.msra.mxu0 %v10955
          %11282 = vmatprep.subr.bf16.mxu0 0
          %11283 = vmatpush1.bf16.msra.mxu0 %v10954
          %11284 = vmatprep.subr.bf16.mxu0 0
          %11285 = vmatpush1.bf16.msra.mxu0 %v10953
          %11286 = vmatprep.subr.bf16.mxu0 0
          %11287 = vmatpush1.bf16.msra.mxu0 %v10952
          %11288 = vmatprep.subr.bf16.mxu0 0
          %11289 = vmatpush1.bf16.msra.mxu0 %v10951
          %11290 = vmatprep.subr.bf16.mxu0 0
          %11291 = vmatpush1.bf16.msra.mxu0 %v10950
          %11292 = vmatprep.subr.bf16.mxu0 0
          %11293 = vmatpush2.bf16.msra.mxu0 %v10965
          %11294 = vmatprep.subr.bf16.mxu0 0
          %11295 = vmatpush2.bf16.msra.mxu0 %v10964
          %11296 = vmatprep.subr.bf16.mxu0 0
          %11297 = vmatpush2.bf16.msra.mxu0 %v10963
          %11298 = vmatprep.subr.bf16.mxu0 0
          %11299 = vmatpush2.bf16.msra.mxu0 %v10962
          %11300 = vmatprep.subr.bf16.mxu0 0
          %11301 = vmatpush2.bf16.msra.mxu0 %v10961
          %11302 = vmatprep.subr.bf16.mxu0 0
          %11303 = vmatpush2.bf16.msra.mxu0 %v10960
          %11304 = vmatprep.subr.bf16.mxu0 0
          %11305 = vmatpush2.bf16.msra.mxu0 %v10959
          %11306 = vmatprep.subr.bf16.mxu0 0
          %11307 = vmatpush2.bf16.msra.mxu0 %v10958
          %11308 = vmatprep.mubr.bf16.mxu0 %v10142
          %11309 = vmatmul.mubr.bf16.gmra.mxu0 %v10141
          %v11310 = vpop.f32.mrf.mxu0
          %v11311 = vadd.f32 %v11271, %v11310
          %v11312 = vpop.f32.mrf.mxu0
          %v11313 = vpop.f32.mrf.mxu0
          %v11314 = vpop.f32.mrf.mxu0
          %11315 = vdwg.mxu0
          %11316 = vmatprep.subr.bf16.mxu0 0
          %11317 = vmatpush1.bf16.msra.mxu0 %v10973
          %11318 = vmatprep.subr.bf16.mxu0 0
          %11319 = vmatpush1.bf16.msra.mxu0 %v10972
          %11320 = vmatprep.subr.bf16.mxu0 0
          %11321 = vmatpush1.bf16.msra.mxu0 %v10971
          %11322 = vmatprep.subr.bf16.mxu0 0
          %11323 = vmatpush1.bf16.msra.mxu0 %v10970
          %11324 = vmatprep.subr.bf16.mxu0 0
          %11325 = vmatpush1.bf16.msra.mxu0 %v10969
          %11326 = vmatprep.subr.bf16.mxu0 0
          %11327 = vmatpush1.bf16.msra.mxu0 %v10968
          %11328 = vmatprep.subr.bf16.mxu0 0
          %11329 = vmatpush1.bf16.msra.mxu0 %v10967
          %11330 = vmatprep.subr.bf16.mxu0 0
          %11331 = vmatpush1.bf16.msra.mxu0 %v10966
          %11332 = vmatprep.subr.bf16.mxu0 0
          %11333 = vmatpush2.bf16.msra.mxu0 %v10981
          %11334 = vmatprep.subr.bf16.mxu0 0
          %11335 = vmatpush2.bf16.msra.mxu0 %v10980
          %11336 = vmatprep.subr.bf16.mxu0 0
          %11337 = vmatpush2.bf16.msra.mxu0 %v10979
          %11338 = vmatprep.subr.bf16.mxu0 0
          %11339 = vmatpush2.bf16.msra.mxu0 %v10978
          %11340 = vmatprep.subr.bf16.mxu0 0
          %11341 = vmatpush2.bf16.msra.mxu0 %v10977
          %11342 = vmatprep.subr.bf16.mxu0 0
          %11343 = vmatpush2.bf16.msra.mxu0 %v10976
          %11344 = vmatprep.subr.bf16.mxu0 0
          %11345 = vmatpush2.bf16.msra.mxu0 %v10975
          %11346 = vmatprep.subr.bf16.mxu0 0
          %11347 = vmatpush2.bf16.msra.mxu0 %v10974
          %11348 = vmatprep.mubr.bf16.mxu0 %v10144
          %11349 = vmatmul.mubr.bf16.gmra.mxu0 %v10143
          %v11350 = vpop.f32.mrf.mxu0
          %v11351 = vadd.f32 %v11311, %v11350
          %v11352 = vpop.f32.mrf.mxu0
          %v11353 = vpop.f32.mrf.mxu0
          %v11354 = vpop.f32.mrf.mxu0
          %11355 = vdwg.mxu0
          %11356 = vmatprep.subr.bf16.mxu0 0
          %11357 = vmatpush1.bf16.msra.mxu0 %v10989
          %11358 = vmatprep.subr.bf16.mxu0 0
          %11359 = vmatpush1.bf16.msra.mxu0 %v10988
          %11360 = vmatprep.subr.bf16.mxu0 0
          %11361 = vmatpush1.bf16.msra.mxu0 %v10987
          %11362 = vmatprep.subr.bf16.mxu0 0
          %11363 = vmatpush1.bf16.msra.mxu0 %v10986
          %11364 = vmatprep.subr.bf16.mxu0 0
          %11365 = vmatpush1.bf16.msra.mxu0 %v10985
          %11366 = vmatprep.subr.bf16.mxu0 0
          %11367 = vmatpush1.bf16.msra.mxu0 %v10984
          %11368 = vmatprep.subr.bf16.mxu0 0
          %11369 = vmatpush1.bf16.msra.mxu0 %v10983
          %11370 = vmatprep.subr.bf16.mxu0 0
          %11371 = vmatpush1.bf16.msra.mxu0 %v10982
          %11372 = vmatprep.subr.bf16.mxu0 0
          %11373 = vmatpush2.bf16.msra.mxu0 %v10997
          %11374 = vmatprep.subr.bf16.mxu0 0
          %11375 = vmatpush2.bf16.msra.mxu0 %v10996
          %11376 = vmatprep.subr.bf16.mxu0 0
          %11377 = vmatpush2.bf16.msra.mxu0 %v10995
          %11378 = vmatprep.subr.bf16.mxu0 0
          %11379 = vmatpush2.bf16.msra.mxu0 %v10994
          %11380 = vmatprep.subr.bf16.mxu0 0
          %11381 = vmatpush2.bf16.msra.mxu0 %v10993
          %11382 = vmatprep.subr.bf16.mxu0 0
          %11383 = vmatpush2.bf16.msra.mxu0 %v10992
          %11384 = vmatprep.subr.bf16.mxu0 0
          %11385 = vmatpush2.bf16.msra.mxu0 %v10991
          %11386 = vmatprep.subr.bf16.mxu0 0
          %11387 = vmatpush2.bf16.msra.mxu0 %v10990
          %11388 = vmatprep.mubr.bf16.mxu0 %v10146
          %11389 = vmatmul.mubr.bf16.gmra.mxu0 %v10145
          %v11390 = vpop.f32.mrf.mxu0
          %v11391 = vadd.f32 %v11351, %v11390
          %v11392 = vpop.f32.mrf.mxu0
          %v11393 = vpop.f32.mrf.mxu0
          %v11394 = vpop.f32.mrf.mxu0
          %11395 = vdwg.mxu0
          %11396 = vmatprep.subr.bf16.mxu0 0
          %11397 = vmatpush1.bf16.msra.mxu0 %v11005
          %11398 = vmatprep.subr.bf16.mxu0 0
          %11399 = vmatpush1.bf16.msra.mxu0 %v11004
          %11400 = vmatprep.subr.bf16.mxu0 0
          %11401 = vmatpush1.bf16.msra.mxu0 %v11003
          %11402 = vmatprep.subr.bf16.mxu0 0
          %11403 = vmatpush1.bf16.msra.mxu0 %v11002
          %11404 = vmatprep.subr.bf16.mxu0 0
          %11405 = vmatpush1.bf16.msra.mxu0 %v11001
          %11406 = vmatprep.subr.bf16.mxu0 0
          %11407 = vmatpush1.bf16.msra.mxu0 %v11000
          %11408 = vmatprep.subr.bf16.mxu0 0
          %11409 = vmatpush1.bf16.msra.mxu0 %v10999
          %11410 = vmatprep.subr.bf16.mxu0 0
          %11411 = vmatpush1.bf16.msra.mxu0 %v10998
          %11412 = vmatprep.subr.bf16.mxu0 0
          %11413 = vmatpush2.bf16.msra.mxu0 %v11013
          %11414 = vmatprep.subr.bf16.mxu0 0
          %11415 = vmatpush2.bf16.msra.mxu0 %v11012
          %11416 = vmatprep.subr.bf16.mxu0 0
          %11417 = vmatpush2.bf16.msra.mxu0 %v11011
          %11418 = vmatprep.subr.bf16.mxu0 0
          %11419 = vmatpush2.bf16.msra.mxu0 %v11010
          %11420 = vmatprep.subr.bf16.mxu0 0
          %11421 = vmatpush2.bf16.msra.mxu0 %v11009
          %11422 = vmatprep.subr.bf16.mxu0 0
          %11423 = vmatpush2.bf16.msra.mxu0 %v11008
          %11424 = vmatprep.subr.bf16.mxu0 0
          %11425 = vmatpush2.bf16.msra.mxu0 %v11007
          %11426 = vmatprep.subr.bf16.mxu0 0
          %11427 = vmatpush2.bf16.msra.mxu0 %v11006
          %11428 = vmatprep.mubr.bf16.mxu0 %v10148
          %11429 = vmatmul.mubr.bf16.gmra.mxu0 %v10147
          %v11430 = vpop.f32.mrf.mxu0
          %v11431 = vadd.f32 %v11391, %v11430
          %v11432 = vpop.f32.mrf.mxu0
          %v11433 = vpop.f32.mrf.mxu0
          %v11434 = vpop.f32.mrf.mxu0
          %11435 = vdwg.mxu0
          %11436 = vmatprep.subr.bf16.mxu0 0
          %11437 = vmatpush1.bf16.msra.mxu0 %v11021
          %11438 = vmatprep.subr.bf16.mxu0 0
          %11439 = vmatpush1.bf16.msra.mxu0 %v11020
          %11440 = vmatprep.subr.bf16.mxu0 0
          %11441 = vmatpush1.bf16.msra.mxu0 %v11019
          %11442 = vmatprep.subr.bf16.mxu0 0
          %11443 = vmatpush1.bf16.msra.mxu0 %v11018
          %11444 = vmatprep.subr.bf16.mxu0 0
          %11445 = vmatpush1.bf16.msra.mxu0 %v11017
          %11446 = vmatprep.subr.bf16.mxu0 0
          %11447 = vmatpush1.bf16.msra.mxu0 %v11016
          %11448 = vmatprep.subr.bf16.mxu0 0
          %11449 = vmatpush1.bf16.msra.mxu0 %v11015
          %11450 = vmatprep.subr.bf16.mxu0 0
          %11451 = vmatpush1.bf16.msra.mxu0 %v11014
          %11452 = vmatprep.subr.bf16.mxu0 0
          %11453 = vmatpush2.bf16.msra.mxu0 0
          %11454 = vmatprep.subr.bf16.mxu0 0
          %11455 = vmatpush2.bf16.msra.mxu0 0
          %11456 = vmatprep.subr.bf16.mxu0 0
          %11457 = vmatpush2.bf16.msra.mxu0 0
          %11458 = vmatprep.subr.bf16.mxu0 0
          %11459 = vmatpush2.bf16.msra.mxu0 %v11026
          %11460 = vmatprep.subr.bf16.mxu0 0
          %11461 = vmatpush2.bf16.msra.mxu0 %v11025
          %11462 = vmatprep.subr.bf16.mxu0 0
          %11463 = vmatpush2.bf16.msra.mxu0 %v11024
          %11464 = vmatprep.subr.bf16.mxu0 0
          %11465 = vmatpush2.bf16.msra.mxu0 %v11023
          %11466 = vmatprep.subr.bf16.mxu0 0
          %11467 = vmatpush2.bf16.msra.mxu0 %v11022
          %11468 = vmatprep.mubr.bf16.mxu0 %v11154
          %11469 = vmatmul.mubr.bf16.gmra.mxu0 %v10149
          %v11470 = vpop.f32.mrf.mxu0
          %v11471 = vadd.f32 %v11431, %v11470
          %v11472 = vpop.f32.mrf.mxu0
          %v11473 = vpop.f32.mrf.mxu0
          %v11474 = vpop.f32.mrf.mxu0
          %11475 = vdwg.mxu0
          %v11476 = vmax.f32 %v11471, 0.0
          %v11477 = vpack.c.bf16 %v11476, %v11476
          %v11478 = vld [vmem:[%s7] sm:$0xf]
          %v11479 = vld [vmem:[%s7 + $0x4] sm:$0xf]
          %v11480 = vld [vmem:[%s7 + $0x8] sm:$0xf]
          %v11481 = vld [vmem:[%s7 + $0xc] sm:$0xf]
          %v11482 = vld [vmem:[%s7 + $0x10] sm:$0xf]
          %v11483 = vld [vmem:[%s7 + $0x14] sm:$0xf]
          %v11484 = vld [vmem:[%s7 + $0x18] sm:$0xf]
          %v11485 = vld [vmem:[%s7 + $0x1c] sm:$0xf]
          %v11486 = vld [vmem:[%s7 + $0x20] sm:$0xf]
          %v11487 = vld [vmem:[%s7 + $0x24] sm:$0xf]
          %v11488 = vld [vmem:[%s7 + $0x28] sm:$0xf]
          %v11489 = vld [vmem:[%s7 + $0x2c] sm:$0xf]
          %v11490 = vld [vmem:[%s7 + $0x30] sm:$0x3]
          %v11491 = vld [vmem:[%s8] sm:$0x1]
          %v11505 = vunpack.c.l.b16 %v11478
          %v11506 = vunpack.c.l.b16 %v11479
          %v11507 = vunpack.c.l.b16 %v11480
          %v11508 = vunpack.c.l.b16 %v11481
          %v11509 = vunpack.c.l.b16 %v11482
          %v11510 = vunpack.c.l.b16 %v11483
          %v11511 = vunpack.c.l.b16 %v11484
          %v11512 = vunpack.c.l.b16 %v11485
          %v11513 = vunpack.c.l.b16 %v11486
          %v11514 = vunpack.c.l.b16 %v11487
          %v11515 = vunpack.c.l.b16 %v11488
          %v11516 = vunpack.c.l.b16 %v11489
          %v11517 = vunpack.c.l.b16 %v11490
          %v11518 = vpack.c.b16 %v11506, %v11505
          %v11519 = vpack.c.b16 %v11508, %v11507
          %v11520 = vpack.c.b16 %v11510, %v11509
          %v11521 = vpack.c.b16 %v11512, %v11511
          %v11522 = vpack.c.b16 %v11514, %v11513
          %v11523 = vpack.c.b16 %v11516, %v11515
          %v11524 = vpack.c.b16 %v11517, %v11517
          %vm11531 = vcmask 818176
          %v11533 = vsel %vm11531, %v11477, 0
          %vm11535 = vcmask 1041408
          %v11537 = vsel %vm11535, %v11524, 0
          %11539 = vmatprep.subr.bf16.mxu0 0
          %11540 = vmatpush1.bf16.msra.mxu0 0
          %11541 = vmatprep.subr.bf16.mxu0 0
          %11542 = vmatpush1.bf16.msra.mxu0 %v11537
          %11543 = vmatprep.subr.bf16.mxu0 0
          %11544 = vmatpush1.bf16.msra.mxu0 %v11523
          %11545 = vmatprep.subr.bf16.mxu0 0
          %11546 = vmatpush1.bf16.msra.mxu0 %v11522
          %11547 = vmatprep.subr.bf16.mxu0 0
          %11548 = vmatpush1.bf16.msra.mxu0 %v11521
          %11549 = vmatprep.subr.bf16.mxu0 0
          %11550 = vmatpush1.bf16.msra.mxu0 %v11520
          %11551 = vmatprep.subr.bf16.mxu0 0
          %11552 = vmatpush1.bf16.msra.mxu0 %v11519
          %11553 = vmatprep.subr.bf16.mxu0 0
          %11554 = vmatpush1.bf16.msra.mxu0 %v11518
          %11555 = vmatprep.subr.bf16.mxu0 0
          %11556 = vmatpush2.bf16.msra.mxu0 0
          %11557 = vmatprep.subr.bf16.mxu0 0
          %11558 = vmatpush2.bf16.msra.mxu0 0
          %11559 = vmatprep.subr.bf16.mxu0 0
          %11560 = vmatpush2.bf16.msra.mxu0 0
          %11561 = vmatprep.subr.bf16.mxu0 0
          %11562 = vmatpush2.bf16.msra.mxu0 0
          %11563 = vmatprep.subr.bf16.mxu0 0
          %11564 = vmatpush2.bf16.msra.mxu0 0
          %11565 = vmatprep.subr.bf16.mxu0 0
          %11566 = vmatpush2.bf16.msra.mxu0 0
          %11567 = vmatprep.subr.bf16.mxu0 0
          %11568 = vmatpush2.bf16.msra.mxu0 0
          %11569 = vmatprep.subr.bf16.mxu0 0
          %11570 = vmatpush2.bf16.msra.mxu0 0
          %11571 = vmatprep.mubr.bf16.mxu0 0
          %11572 = vmatmul.mubr.bf16.gmra.mxu0 %v11533
          %v11573 = vpop.f32.mrf.mxu0
          %v11574 = vadd.f32 %v11491, %v11573
          %v11575 = vpop.f32.mrf.mxu0
          %v11576 = vpop.f32.mrf.mxu0
          %v11577 = vpop.f32.mrf.mxu0
          %11578 = vdwg.mxu0
          %11579 = vst [vmem:[%s362] sm:$0x1] %v11574
        $region64: #{model_forward.1} parent=55 // pred_fallthru
          _
        %s11580 = sand.u32 %s244, 1
        %s11581 = scalar_lea.sflag [#allocation4], %s11580
        %s11582 = sand.u32 %s244, 1
        %s11583 = scalar_lea.vmem [#allocation3], %s11582
        // Predicated region
        $region65: #{model_forward.1} parent=55 // pred_check
          %p11584 = pneg %p254
        $region66: #{model_forward.1} parent=55 // pred_check_branch
          %11586 = sbr.rel (%p11584) target = $region68
        $region67: #{model_forward.1} parent=55 // pred_region
          %s11588 = ssub.s32 16, 16
          %11589 = vsyncadd %s11581, %s11588
          %s11590 = smul.addr %s27, 16
          %s11591 = scalar_lea.hbm %s9, %s11590
          %s11593 = sshll.u32 %s11583, 4
          %s11594 = int_to_ptr.vmem [resolvable:$true] %s11593
          %11596 = dma.vmem_to_hbm [thread:$0]  %s11594, 16, %s11591, %s11581
        $region68: #{model_forward.1} parent=55 // pred_fallthru
          _
      $region56: #{model_forward.1} parent=5 // pred_fallthru
        _
      %p11597 = scmp.le.s32.totalorder 2, %s18
      // Predicated region
      $region69: #{model_forward.1} parent=5 // pred_check
        %p11598 = pneg %p11597
      $region70: #{model_forward.1} parent=5 // pred_check_branch
        %11600 = sbr.rel (%p11598) target = $region72
      $region71: #{model_forward.1} parent=5 // pred_region
        %s11601 = ssub.s32 %s18, 2
        // Predicated region
        $region73: #{model_forward.1} parent=71 // pred_check
          %p11602 = pneg %p260
        $region74: #{model_forward.1} parent=71 // pred_check_branch
          %11604 = sbr.rel (%p11602) target = $region76
        $region75: #{model_forward.1} parent=71 // pred_region
          %s11605 = sand.u32 %s245, 1
          %s11606 = scalar_lea.sflag [#allocation4], %s11605
          %s11607 = sand.u32 %s245, 1
          %s11608 = scalar_lea.vmem [#allocation3], %s11607
          %11609 = dma.done %s11606, 16
        $region76: #{model_forward.1} parent=71 // pred_fallthru
          _
      $region72: #{model_forward.1} parent=5 // pred_fallthru
        _
    $region6: #{model_forward.1} parent=1 // loop_footer
      %s22 = sadd.s32 1, %s18
    $region7: #{model_forward.1} parent=1 // loop_footer_branch
      %17 = sbr.rel target = $region3
    $region8: #{model_forward.1} parent=1 // loop_exit
      _
    %11610 = vsyncpa [#allocation4], 1
    %s11611 = scalar_lea.sflag [#allocation4], 1
    %11612 = vsyncpa %s11611, 1

</llo_original>
